<compile_context>
chip_gen: v7x
topology: tpu7x:2x2x1
jax: 0.10.0
libtpu: 0.0.40
codegen_flags: <defaults>
</compile_context>

<pallas_src>
import functools

import jax
import jax.numpy as jnp
from jax.experimental import pallas as pl
from jax.experimental.pallas import tpu as pltpu

LANES = 128      # fc / logits lane width
C1_PAD = 8       # conv1 out-channels 6 -> 8 (conv2 contraction dim)
TAPS_PAD = 32    # conv1 im2col taps 25 -> 32 (conv1 contraction dim)
C2 = 16          # conv2 out-channels (exact, no padding)
_EPS = 1e-5      # torch BatchNorm2d default eps


def _const_spec(shape):
    nd = len(shape)
    if nd == 2:
        return pl.BlockSpec(shape, lambda b: (0, 0))
    if nd == 3:
        return pl.BlockSpec(shape, lambda b: (0, 0, 0))
    return pl.BlockSpec(shape, lambda b: (0, 0, 0, 0))


# ---------------------------------------------------------------------------
# Fused forward kernel (one grid step == one sample)
# ---------------------------------------------------------------------------
def _lenet5_kernel(num_classes,
                   x_ref, w1_ref, sb1_ref, w2_ref, sb2_ref,
                   wf1_ref, bf_ref, wf2_ref, wf3_ref,
                   out_ref,
                   act1_ref, tmp1_ref, pool1_ref,
                   act2_ref, tmp2_ref, pool2_ref):
    K = 5
    OH1 = OW1 = 24

    # ---- layer1: conv1 as ONE im2col matmul, BN + ReLU fused into the store
    x2d = x_ref[...].reshape(OH1 * OW1, TAPS_PAD)              # [576,32] bf16
    y1 = jnp.dot(x2d, w1_ref[...], preferred_element_type=jnp.float32)
    y1 = jnp.maximum(y1 * sb1_ref[0:1, :] + sb1_ref[1:2, :], 0.0)
    act1_ref[...] = y1.reshape(OH1, OW1, C1_PAD)               # [24,24,8]

    # ---- layer1 maxpool 2x2 (H pass on major dim, W pass strided sublane) --
    tmp1_ref[...] = jnp.maximum(act1_ref[pl.ds(0, 12, stride=2), :, :],
                                act1_ref[pl.ds(1, 12, stride=2), :, :])
    pool1_ref[...] = jnp.maximum(tmp1_ref[:, pl.ds(0, 12, stride=2), :],
                                 tmp1_ref[:, pl.ds(1, 12, stride=2), :])

    # ---- layer2: 25 per-tap dots (K=8), accumulate in vregs, single store --
    acc2 = jnp.zeros((64, C2), jnp.float32)
    for idx in range(K * K):
        ki, kj = idx // K, idx % K
        patch = pool1_ref[ki:ki + 8, kj:kj + 8, :]             # [8,8,8] f32
        patch2d = patch.reshape(64, C1_PAD).astype(jnp.bfloat16)
        acc2 = acc2 + jnp.dot(patch2d, w2_ref[idx],
                              preferred_element_type=jnp.float32)
    y2 = jnp.maximum(acc2 * sb2_ref[0:1, :] + sb2_ref[1:2, :], 0.0)
    act2_ref[...] = y2.reshape(8, 8, C2)                       # [8,8,16]

    # ---- layer2 maxpool 2x2 -------------------------------------------------
    tmp2_ref[...] = jnp.maximum(act2_ref[pl.ds(0, 4, stride=2), :, :],
                                act2_ref[pl.ds(1, 4, stride=2), :, :])
    pool2_ref[...] = jnp.maximum(tmp2_ref[:, pl.ds(0, 4, stride=2), :],
                                 tmp2_ref[:, pl.ds(1, 4, stride=2), :])

    # ---- fc (256 -> 120): torch NCHW flatten folded into wf1[h, w, c, n] ---
    h1 = jnp.zeros((1, LANES), jnp.float32)
    for hh in range(4):
        for ww in range(4):
            vec = pool2_ref[hh, ww:ww + 1, :].astype(jnp.bfloat16)  # [1,16]
            h1 = h1 + jnp.dot(vec, wf1_ref[hh, ww],
                              preferred_element_type=jnp.float32)
    h1 = jnp.maximum(h1 + bf_ref[0:1, :], 0.0)

    # ---- fc1 (120 -> 84) ----------------------------------------------------
    h2 = jnp.maximum(
        jnp.dot(h1.astype(jnp.bfloat16), wf2_ref[...],
                preferred_element_type=jnp.float32) + bf_ref[1:2, :], 0.0)

    # ---- fc2 (84 -> CLASSES) + masked softmax -------------------------------
    logits = jnp.dot(h2.astype(jnp.bfloat16), wf3_ref[...],
                     preferred_element_type=jnp.float32) + bf_ref[2:3, :]
    lane = jax.lax.broadcasted_iota(jnp.int32, logits.shape, 1)
    logits = jnp.where(lane < num_classes, logits, -1e30)     # mask pad lanes
    m = jnp.max(logits, axis=-1, keepdims=True)
    e = jnp.exp(logits - m)
    denom = jnp.sum(e, axis=-1, keepdims=True)
    r = pl.reciprocal(denom, approx=True)
    r = r * (2.0 - denom * r)                                  # Newton refine
    out_ref[...] = (e * r).reshape(1, 1, LANES)


# ---------------------------------------------------------------------------
# Wrapper: parameter folding / padding (tiny, one-shot XLA ops) + pallas_call
# ---------------------------------------------------------------------------
def _fold_bn(conv_b, gamma, beta, rmean, rvar):
    s = gamma / jnp.sqrt(rvar + _EPS)
    b = (conv_b - rmean) * s + beta
    return s, b


def _pad_to(v, n):
    return jnp.pad(v, (0, n - v.shape[0]))


def lenet5_forward(x, params, num_classes):
    B, Cin, H, W = x.shape
    assert Cin == 1 and H == 28 and W == 28, "LeNet5 expects [B,1,28,28]"
    assert num_classes <= LANES

    # conv1 im2col in the wrapper (Cin=1 so it is tiny): [B, 576, 25 -> 32]
    xf = x.astype(jnp.float32)[:, 0]                           # [B,28,28]
    cols = [xf[:, ki:ki + 24, kj:kj + 24]
            for ki in range(5) for kj in range(5)]
    x_col = jnp.stack(cols, axis=-1).reshape(B, 24 * 24, 25)
    x_col = jnp.pad(x_col, ((0, 0), (0, 0), (0, TAPS_PAD - 25)))
    x_col = x_col.astype(jnp.bfloat16)

    # conv1 weights -> [taps(32), cout(8)]; folded BN1 scale/bias -> [2, 8]
    w1 = params["w1"][:, 0].reshape(6, 25).T                   # [25, 6]
    w1 = jnp.pad(w1, ((0, TAPS_PAD - 25),
                      (0, C1_PAD - 6))).astype(jnp.bfloat16)
    s1, b1 = _fold_bn(params["b1"], params["g1"], params["be1"],
                      params["rm1"], params["rv1"])
    sb1 = jnp.stack([_pad_to(s1, C1_PAD), _pad_to(b1, C1_PAD)])

    # conv2 weights -> per-tap [25, cin(8), cout(16)]; folded BN2 -> [2, 16]
    w2 = jnp.transpose(params["w2"], (2, 3, 1, 0)).reshape(25, 6, C2)
    w2 = jnp.pad(w2, ((0, 0), (0, C1_PAD - 6), (0, 0))).astype(jnp.bfloat16)
    s2, b2 = _fold_bn(params["b2"], params["g2"], params["be2"],
                      params["rm2"], params["rv2"])
    sb2 = jnp.stack([s2, b2])                                  # [2, 16]

    # fc weights: fold torch NCHW flatten (k = c*16 + h*4 + w) into wf1.
    wf1 = params["fc_w"].reshape(120, C2, 4, 4)                # [n, c, h, w]
    wf1 = jnp.transpose(wf1, (2, 3, 1, 0))                     # [h, w, c, n]
    wf1 = jnp.pad(wf1, ((0, 0), (0, 0), (0, 0),
                        (0, LANES - 120))).astype(jnp.bfloat16)
    wf2 = jnp.pad(params["fc1_w"].T,
                  ((0, LANES - 120), (0, LANES - 84))).astype(jnp.bfloat16)
    wf3 = jnp.pad(params["fc2_w"].T,
                  ((0, LANES - 84),
                   (0, LANES - num_classes))).astype(jnp.bfloat16)
    bf = jnp.stack([_pad_to(params["fc_b"], LANES),
                    _pad_to(params["fc1_b"], LANES),
                    _pad_to(params["fc2_b"], LANES)])

    kernel = functools.partial(_lenet5_kernel, num_classes)

    out_padded = pl.pallas_call(
        kernel,
        out_shape=jax.ShapeDtypeStruct((B, 1, LANES), jnp.float32),
        grid=(B,),
        in_specs=[
            pl.BlockSpec((1, 24 * 24, TAPS_PAD), lambda b: (b, 0, 0)),
            _const_spec((TAPS_PAD, C1_PAD)),
            _const_spec((2, C1_PAD)),
            _const_spec((25, C1_PAD, C2)),
            _const_spec((2, C2)),
            _const_spec((4, 4, C2, LANES)),
            _const_spec((3, LANES)),
            _const_spec((LANES, LANES)),
            _const_spec((LANES, LANES)),
        ],
        out_specs=pl.BlockSpec((1, 1, LANES), lambda b: (b, 0, 0)),
        scratch_shapes=[
            pltpu.VMEM((24, 24, C1_PAD), jnp.float32),   # conv1 activation
            pltpu.VMEM((12, 24, C1_PAD), jnp.float32),   # pool1 H-stage
            pltpu.VMEM((12, 12, C1_PAD), jnp.float32),   # pool1 out
            pltpu.VMEM((8, 8, C2), jnp.float32),         # conv2 activation
            pltpu.VMEM((4, 8, C2), jnp.float32),         # pool2 H-stage
            pltpu.VMEM((4, 4, C2), jnp.float32),         # pool2 out
        ],
        compiler_params=pltpu.CompilerParams(
            dimension_semantics=("parallel",)),
    )(x_col, w1, sb1, w2, sb2, wf1, bf, wf2, wf3)

    return out_padded.reshape(B, LANES)[:, :num_classes]


# ---------------------------------------------------------------------------
# Pure-JAX reference (for a correctness check in __main__)
# ---------------------------------------------------------------------------
def lenet5_reference(x, p, num_classes):
    def conv_bn_relu_pool(h, w, b, g, be, rm, rv):
        y = jax.lax.conv_general_dilated(
            h, w, (1, 1), "VALID",
            dimension_numbers=("NCHW", "OIHW", "NCHW"))
        y = y + b[None, :, None, None]
        y = (y - rm[None, :, None, None]) / jnp.sqrt(
            rv[None, :, None, None] + _EPS)
        y = y * g[None, :, None, None] + be[None, :, None, None]
        y = jnp.maximum(y, 0.0)
        B, C, H, W = y.shape
        return y.reshape(B, C, H // 2, 2, W // 2, 2).max(axis=(3, 5))

    out = conv_bn_relu_pool(x, p["w1"], p["b1"], p["g1"], p["be1"],
                            p["rm1"], p["rv1"])
    out = conv_bn_relu_pool(out, p["w2"], p["b2"], p["g2"], p["be2"],
                            p["rm2"], p["rv2"])
    flat = out.reshape(out.shape[0], -1)
    h = jnp.maximum(flat @ p["fc_w"].T + p["fc_b"], 0.0)
    h = jnp.maximum(h @ p["fc1_w"].T + p["fc1_b"], 0.0)
    logits = h @ p["fc2_w"].T + p["fc2_b"]
    return jax.nn.softmax(logits, axis=-1)


# ---------------------------------------------------------------------------
def make_params(key, classes):
    ks = jax.random.split(key, 12)

    def nrm(k, shape, s=0.1):
        return jax.random.normal(k, shape, jnp.float32) * s

    return dict(
        # layer1: Conv2d(1, 6, 5) + BatchNorm2d(6)
        w1=nrm(ks[0], (6, 1, 5, 5)),
        b1=nrm(ks[1], (6,)),
        g1=1.0 + 0.1 * jnp.arange(6, dtype=jnp.float32),
        be1=0.05 * jnp.arange(6, dtype=jnp.float32),
        rm1=nrm(ks[2], (6,), 0.05),
        rv1=1.0 + jnp.abs(nrm(ks[3], (6,))),
        # layer2: Conv2d(6, 16, 5) + BatchNorm2d(16)
        w2=nrm(ks[4], (16, 6, 5, 5)),
        b2=nrm(ks[5], (16,)),
        g2=1.0 + 0.05 * jnp.arange(16, dtype=jnp.float32),
        be2=0.02 * jnp.arange(16, dtype=jnp.float32),
        rm2=nrm(ks[6], (16,), 0.05),
        rv2=1.0 + jnp.abs(nrm(ks[7], (16,))),
        # fc layers (torch Linear weight layout: [out, in])
        fc_w=nrm(ks[8], (120, 256)),
        fc_b=jnp.zeros((120,), jnp.float32),
        fc1_w=nrm(ks[9], (84, 120)),
        fc1_b=jnp.zeros((84,), jnp.float32),
        fc2_w=nrm(ks[10], (classes, 84)),
        fc2_b=jnp.zeros((classes,), jnp.float32),
    )


if __name__ == "__main__":
    B, CLASSES = 2, 47  # EMNIST-balanced; input must be 28x28 (fc expects 256)
    key = jax.random.PRNGKey(0)
    pkey, xkey = jax.random.split(key)
    params = make_params(pkey, CLASSES)
    x = jax.random.normal(xkey, (B, 1, 28, 28), jnp.float32)

    fwd = jax.jit(lenet5_forward, static_argnums=(2,))
    out = jax.block_until_ready(fwd(x, params, CLASSES))

    assert out.shape == (B, CLASSES), out.shape
    row_sums = jnp.sum(out, axis=1)
    assert bool(jnp.all(jnp.abs(row_sums - 1.0) < 1e-3)), row_sums

    ref = lenet5_reference(x, params, CLASSES)
    max_err = float(jnp.max(jnp.abs(out - ref)))
    # bf16 matmul operands (f32 accumulation) drift slightly vs f32 reference.
    assert max_err < 2e-2, f"mismatch vs reference: {max_err}"

    print("KERNEL_OK")
</pallas_src>

<mosaic_0001>
module attributes {stable_mosaic.version = 11 : i64} {
  func.func @_lenet5_kernel(%arg0: i32, %arg1: memref<1x576x32xbf16, #tpu.memory_space<vmem>>, %arg2: memref<32x8xbf16, #tpu.memory_space<vmem>>, %arg3: memref<2x8xf32, #tpu.memory_space<vmem>>, %arg4: memref<25x8x16xbf16, #tpu.memory_space<vmem>>, %arg5: memref<2x16xf32, #tpu.memory_space<vmem>>, %arg6: memref<4x4x16x128xbf16, #tpu.memory_space<vmem>>, %arg7: memref<3x128xf32, #tpu.memory_space<vmem>>, %arg8: memref<128x128xbf16, #tpu.memory_space<vmem>>, %arg9: memref<128x128xbf16, #tpu.memory_space<vmem>>, %arg10: memref<1x1x128xf32, #tpu.memory_space<vmem>>, %arg11: memref<24x24x8xf32, #tpu.memory_space<vmem>>, %arg12: memref<12x24x8xf32, #tpu.memory_space<vmem>>, %arg13: memref<12x12x8xf32, #tpu.memory_space<vmem>>, %arg14: memref<8x8x16xf32, #tpu.memory_space<vmem>>, %arg15: memref<4x8x16xf32, #tpu.memory_space<vmem>>, %arg16: memref<4x4x16xf32, #tpu.memory_space<vmem>>) attributes {dimension_semantics = [#tpu.dimension_semantics<parallel>], iteration_bounds = array<i64: 2>, scalar_prefetch = 0 : i64, scratch_operands = 6 : i64, tpu.core_type = #tpu.core_type<tc>, window_params = [{transform_indices = @transform_0, window_bounds = array<i64: 1, 576, 32>}, {pipeline_mode = #tpu.pipeline_mode<synchronous>, transform_indices = @transform_1, window_bounds = array<i64: 32, 8>}, {pipeline_mode = #tpu.pipeline_mode<synchronous>, transform_indices = @transform_2, window_bounds = array<i64: 2, 8>}, {pipeline_mode = #tpu.pipeline_mode<synchronous>, transform_indices = @transform_3, window_bounds = array<i64: 25, 8, 16>}, {pipeline_mode = #tpu.pipeline_mode<synchronous>, transform_indices = @transform_4, window_bounds = array<i64: 2, 16>}, {pipeline_mode = #tpu.pipeline_mode<synchronous>, transform_indices = @transform_5, window_bounds = array<i64: 4, 4, 16, 128>}, {pipeline_mode = #tpu.pipeline_mode<synchronous>, transform_indices = @transform_6, window_bounds = array<i64: 3, 128>}, {pipeline_mode = #tpu.pipeline_mode<synchronous>, transform_indices = @transform_7, window_bounds = array<i64: 128, 128>}, {pipeline_mode = #tpu.pipeline_mode<synchronous>, transform_indices = @transform_8, window_bounds = array<i64: 128, 128>}, {transform_indices = @transform_9, window_bounds = array<i64: 1, 1, 128>}]} {
    %c0 = arith.constant 0 : index
    %c0_0 = arith.constant 0 : index
    %c0_1 = arith.constant 0 : index
    %0 = vector.load %arg1[%c0, %c0_0, %c0_1] : memref<1x576x32xbf16, #tpu.memory_space<vmem>>, vector<1x576x32xbf16>
    %1 = vector.shape_cast %0 : vector<1x576x32xbf16> to vector<576x32xbf16>
    %c0_2 = arith.constant 0 : index
    %c0_3 = arith.constant 0 : index
    %2 = vector.load %arg2[%c0_2, %c0_3] : memref<32x8xbf16, #tpu.memory_space<vmem>>, vector<32x8xbf16>
    %cst = arith.constant dense<0.000000e+00> : vector<576x8xf32>
    %3 = tpu.matmul %1, %2, %cst {dimension_numbers = #tpu.dot_dimension_numbers<[1], [0], [0], [1], [0, 0, 1, 1], [], []>} : vector<576x32xbf16>, vector<32x8xbf16>, vector<576x8xf32> -> vector<576x8xf32>
    %c0_4 = arith.constant 0 : index
    %c0_5 = arith.constant 0 : index
    %4 = vector.load %arg3[%c0_4, %c0_5] : memref<2x8xf32, #tpu.memory_space<vmem>>, vector<1x8xf32>
    %5 = vector.broadcast %4 : vector<1x8xf32> to vector<576x8xf32>
    %6 = arith.mulf %3, %5 : vector<576x8xf32>
    %c1 = arith.constant 1 : index
    %c0_6 = arith.constant 0 : index
    %7 = vector.load %arg3[%c1, %c0_6] : memref<2x8xf32, #tpu.memory_space<vmem>>, vector<1x8xf32>
    %8 = vector.broadcast %7 : vector<1x8xf32> to vector<576x8xf32>
    %9 = arith.addf %6, %8 : vector<576x8xf32>
    %cst_7 = arith.constant 0.000000e+00 : f32
    %10 = vector.broadcast %cst_7 : f32 to vector<576x8xf32>
    %11 = arith.maximumf %9, %10 : vector<576x8xf32>
    %12 = vector.shape_cast %11 : vector<576x8xf32> to vector<24x24x8xf32>
    %c0_8 = arith.constant 0 : index
    %c0_9 = arith.constant 0 : index
    %c0_10 = arith.constant 0 : index
    %13 = vector.load %arg11[%c0_8, %c0_9, %c0_10] : memref<24x24x8xf32, #tpu.memory_space<vmem>>, vector<24x24x8xf32>
    tpu.vector_store %arg11[%c0_8, %c0_9, %c0_10], %12 {strides = array<i32>} : memref<24x24x8xf32, #tpu.memory_space<vmem>>, vector<24x24x8xf32>,
    %c0_11 = arith.constant 0 : index
    %c0_12 = arith.constant 0 : index
    %c0_13 = arith.constant 0 : index
    %14 = tpu.strided_load %arg11[%c0_11, %c0_12, %c0_13] {strides = array<i32: 2, 1, 1>} : memref<24x24x8xf32, #tpu.memory_space<vmem>>, vector<12x24x8xf32>
    %c1_14 = arith.constant 1 : index
    %c0_15 = arith.constant 0 : index
    %c0_16 = arith.constant 0 : index
    %15 = tpu.strided_load %arg11[%c1_14, %c0_15, %c0_16] {strides = array<i32: 2, 1, 1>} : memref<24x24x8xf32, #tpu.memory_space<vmem>>, vector<12x24x8xf32>
    %16 = arith.maximumf %14, %15 : vector<12x24x8xf32>
    %c0_17 = arith.constant 0 : index
    %c0_18 = arith.constant 0 : index
    %c0_19 = arith.constant 0 : index
    %17 = vector.load %arg12[%c0_17, %c0_18, %c0_19] : memref<12x24x8xf32, #tpu.memory_space<vmem>>, vector<12x24x8xf32>
    tpu.vector_store %arg12[%c0_17, %c0_18, %c0_19], %16 {strides = array<i32>} : memref<12x24x8xf32, #tpu.memory_space<vmem>>, vector<12x24x8xf32>,
    %c0_20 = arith.constant 0 : index
    %c0_21 = arith.constant 0 : index
    %c0_22 = arith.constant 0 : index
    %18 = tpu.strided_load %arg12[%c0_20, %c0_21, %c0_22] {strides = array<i32: 1, 2, 1>} : memref<12x24x8xf32, #tpu.memory_space<vmem>>, vector<12x12x8xf32>
    %c0_23 = arith.constant 0 : index
    %c1_24 = arith.constant 1 : index
    %c0_25 = arith.constant 0 : index
    %19 = tpu.strided_load %arg12[%c0_23, %c1_24, %c0_25] {strides = array<i32: 1, 2, 1>} : memref<12x24x8xf32, #tpu.memory_space<vmem>>, vector<12x12x8xf32>
    %20 = arith.maximumf %18, %19 : vector<12x12x8xf32>
    %c0_26 = arith.constant 0 : index
    %c0_27 = arith.constant 0 : index
    %c0_28 = arith.constant 0 : index
    %21 = vector.load %arg13[%c0_26, %c0_27, %c0_28] : memref<12x12x8xf32, #tpu.memory_space<vmem>>, vector<12x12x8xf32>
    tpu.vector_store %arg13[%c0_26, %c0_27, %c0_28], %20 {strides = array<i32>} : memref<12x12x8xf32, #tpu.memory_space<vmem>>, vector<12x12x8xf32>,
    %cst_29 = arith.constant 0.000000e+00 : f32
    %22 = vector.broadcast %cst_29 : f32 to vector<64x16xf32>
    %c0_30 = arith.constant 0 : index
    %c0_31 = arith.constant 0 : index
    %c0_32 = arith.constant 0 : index
    %23 = vector.load %arg13[%c0_30, %c0_31, %c0_32] : memref<12x12x8xf32, #tpu.memory_space<vmem>>, vector<8x8x8xf32>
    %24 = vector.shape_cast %23 : vector<8x8x8xf32> to vector<64x8xf32>
    %25 = arith.truncf %24 : vector<64x8xf32> to vector<64x8xbf16>
    %c0_33 = arith.constant 0 : index
    %c0_34 = arith.constant 0 : index
    %c0_35 = arith.constant 0 : index
    %26 = vector.load %arg4[%c0_33, %c0_34, %c0_35] : memref<25x8x16xbf16, #tpu.memory_space<vmem>>, vector<1x8x16xbf16>
    %27 = vector.shape_cast %26 : vector<1x8x16xbf16> to vector<8x16xbf16>
    %cst_36 = arith.constant dense<0.000000e+00> : vector<64x16xf32>
    %28 = tpu.matmul %25, %27, %cst_36 {dimension_numbers = #tpu.dot_dimension_numbers<[1], [0], [0], [1], [0, 0, 1, 1], [], []>} : vector<64x8xbf16>, vector<8x16xbf16>, vector<64x16xf32> -> vector<64x16xf32>
    %29 = arith.addf %22, %28 : vector<64x16xf32>
    %c0_37 = arith.constant 0 : index
    %c1_38 = arith.constant 1 : index
    %c0_39 = arith.constant 0 : index
    %30 = vector.load %arg13[%c0_37, %c1_38, %c0_39] : memref<12x12x8xf32, #tpu.memory_space<vmem>>, vector<8x8x8xf32>
    %31 = vector.shape_cast %30 : vector<8x8x8xf32> to vector<64x8xf32>
    %32 = arith.truncf %31 : vector<64x8xf32> to vector<64x8xbf16>
    %c1_40 = arith.constant 1 : index
    %c0_41 = arith.constant 0 : index
    %c0_42 = arith.constant 0 : index
    %33 = vector.load %arg4[%c1_40, %c0_41, %c0_42] : memref<25x8x16xbf16, #tpu.memory_space<vmem>>, vector<1x8x16xbf16>
    %34 = vector.shape_cast %33 : vector<1x8x16xbf16> to vector<8x16xbf16>
    %cst_43 = arith.constant dense<0.000000e+00> : vector<64x16xf32>
    %35 = tpu.matmul %32, %34, %cst_43 {dimension_numbers = #tpu.dot_dimension_numbers<[1], [0], [0], [1], [0, 0, 1, 1], [], []>} : vector<64x8xbf16>, vector<8x16xbf16>, vector<64x16xf32> -> vector<64x16xf32>
    %36 = arith.addf %29, %35 : vector<64x16xf32>
    %c0_44 = arith.constant 0 : index
    %c2 = arith.constant 2 : index
    %c0_45 = arith.constant 0 : index
    %37 = vector.load %arg13[%c0_44, %c2, %c0_45] : memref<12x12x8xf32, #tpu.memory_space<vmem>>, vector<8x8x8xf32>
    %38 = vector.shape_cast %37 : vector<8x8x8xf32> to vector<64x8xf32>
    %39 = arith.truncf %38 : vector<64x8xf32> to vector<64x8xbf16>
    %c2_46 = arith.constant 2 : index
    %c0_47 = arith.constant 0 : index
    %c0_48 = arith.constant 0 : index
    %40 = vector.load %arg4[%c2_46, %c0_47, %c0_48] : memref<25x8x16xbf16, #tpu.memory_space<vmem>>, vector<1x8x16xbf16>
    %41 = vector.shape_cast %40 : vector<1x8x16xbf16> to vector<8x16xbf16>
    %cst_49 = arith.constant dense<0.000000e+00> : vector<64x16xf32>
    %42 = tpu.matmul %39, %41, %cst_49 {dimension_numbers = #tpu.dot_dimension_numbers<[1], [0], [0], [1], [0, 0, 1, 1], [], []>} : vector<64x8xbf16>, vector<8x16xbf16>, vector<64x16xf32> -> vector<64x16xf32>
    %43 = arith.addf %36, %42 : vector<64x16xf32>
    %c0_50 = arith.constant 0 : index
    %c3 = arith.constant 3 : index
    %c0_51 = arith.constant 0 : index
    %44 = vector.load %arg13[%c0_50, %c3, %c0_51] : memref<12x12x8xf32, #tpu.memory_space<vmem>>, vector<8x8x8xf32>
    %45 = vector.shape_cast %44 : vector<8x8x8xf32> to vector<64x8xf32>
    %46 = arith.truncf %45 : vector<64x8xf32> to vector<64x8xbf16>
    %c3_52 = arith.constant 3 : index
    %c0_53 = arith.constant 0 : index
    %c0_54 = arith.constant 0 : index
    %47 = vector.load %arg4[%c3_52, %c0_53, %c0_54] : memref<25x8x16xbf16, #tpu.memory_space<vmem>>, vector<1x8x16xbf16>
    %48 = vector.shape_cast %47 : vector<1x8x16xbf16> to vector<8x16xbf16>
    %cst_55 = arith.constant dense<0.000000e+00> : vector<64x16xf32>
    %49 = tpu.matmul %46, %48, %cst_55 {dimension_numbers = #tpu.dot_dimension_numbers<[1], [0], [0], [1], [0, 0, 1, 1], [], []>} : vector<64x8xbf16>, vector<8x16xbf16>, vector<64x16xf32> -> vector<64x16xf32>
    %50 = arith.addf %43, %49 : vector<64x16xf32>
    %c0_56 = arith.constant 0 : index
    %c4 = arith.constant 4 : index
    %c0_57 = arith.constant 0 : index
    %51 = vector.load %arg13[%c0_56, %c4, %c0_57] : memref<12x12x8xf32, #tpu.memory_space<vmem>>, vector<8x8x8xf32>
    %52 = vector.shape_cast %51 : vector<8x8x8xf32> to vector<64x8xf32>
    %53 = arith.truncf %52 : vector<64x8xf32> to vector<64x8xbf16>
    %c4_58 = arith.constant 4 : index
    %c0_59 = arith.constant 0 : index
    %c0_60 = arith.constant 0 : index
    %54 = vector.load %arg4[%c4_58, %c0_59, %c0_60] : memref<25x8x16xbf16, #tpu.memory_space<vmem>>, vector<1x8x16xbf16>
    %55 = vector.shape_cast %54 : vector<1x8x16xbf16> to vector<8x16xbf16>
    %cst_61 = arith.constant dense<0.000000e+00> : vector<64x16xf32>
    %56 = tpu.matmul %53, %55, %cst_61 {dimension_numbers = #tpu.dot_dimension_numbers<[1], [0], [0], [1], [0, 0, 1, 1], [], []>} : vector<64x8xbf16>, vector<8x16xbf16>, vector<64x16xf32> -> vector<64x16xf32>
    %57 = arith.addf %50, %56 : vector<64x16xf32>
    %c1_62 = arith.constant 1 : index
    %c0_63 = arith.constant 0 : index
    %c0_64 = arith.constant 0 : index
    %58 = vector.load %arg13[%c1_62, %c0_63, %c0_64] : memref<12x12x8xf32, #tpu.memory_space<vmem>>, vector<8x8x8xf32>
    %59 = vector.shape_cast %58 : vector<8x8x8xf32> to vector<64x8xf32>
    %60 = arith.truncf %59 : vector<64x8xf32> to vector<64x8xbf16>
    %c5 = arith.constant 5 : index
    %c0_65 = arith.constant 0 : index
    %c0_66 = arith.constant 0 : index
    %61 = vector.load %arg4[%c5, %c0_65, %c0_66] : memref<25x8x16xbf16, #tpu.memory_space<vmem>>, vector<1x8x16xbf16>
    %62 = vector.shape_cast %61 : vector<1x8x16xbf16> to vector<8x16xbf16>
    %cst_67 = arith.constant dense<0.000000e+00> : vector<64x16xf32>
    %63 = tpu.matmul %60, %62, %cst_67 {dimension_numbers = #tpu.dot_dimension_numbers<[1], [0], [0], [1], [0, 0, 1, 1], [], []>} : vector<64x8xbf16>, vector<8x16xbf16>, vector<64x16xf32> -> vector<64x16xf32>
    %64 = arith.addf %57, %63 : vector<64x16xf32>
    %c1_68 = arith.constant 1 : index
    %c1_69 = arith.constant 1 : index
    %c0_70 = arith.constant 0 : index
    %65 = vector.load %arg13[%c1_68, %c1_69, %c0_70] : memref<12x12x8xf32, #tpu.memory_space<vmem>>, vector<8x8x8xf32>
    %66 = vector.shape_cast %65 : vector<8x8x8xf32> to vector<64x8xf32>
    %67 = arith.truncf %66 : vector<64x8xf32> to vector<64x8xbf16>
    %c6 = arith.constant 6 : index
    %c0_71 = arith.constant 0 : index
    %c0_72 = arith.constant 0 : index
    %68 = vector.load %arg4[%c6, %c0_71, %c0_72] : memref<25x8x16xbf16, #tpu.memory_space<vmem>>, vector<1x8x16xbf16>
    %69 = vector.shape_cast %68 : vector<1x8x16xbf16> to vector<8x16xbf16>
    %cst_73 = arith.constant dense<0.000000e+00> : vector<64x16xf32>
    %70 = tpu.matmul %67, %69, %cst_73 {dimension_numbers = #tpu.dot_dimension_numbers<[1], [0], [0], [1], [0, 0, 1, 1], [], []>} : vector<64x8xbf16>, vector<8x16xbf16>, vector<64x16xf32> -> vector<64x16xf32>
    %71 = arith.addf %64, %70 : vector<64x16xf32>
    %c1_74 = arith.constant 1 : index
    %c2_75 = arith.constant 2 : index
    %c0_76 = arith.constant 0 : index
    %72 = vector.load %arg13[%c1_74, %c2_75, %c0_76] : memref<12x12x8xf32, #tpu.memory_space<vmem>>, vector<8x8x8xf32>
    %73 = vector.shape_cast %72 : vector<8x8x8xf32> to vector<64x8xf32>
    %74 = arith.truncf %73 : vector<64x8xf32> to vector<64x8xbf16>
    %c7 = arith.constant 7 : index
    %c0_77 = arith.constant 0 : index
    %c0_78 = arith.constant 0 : index
    %75 = vector.load %arg4[%c7, %c0_77, %c0_78] : memref<25x8x16xbf16, #tpu.memory_space<vmem>>, vector<1x8x16xbf16>
    %76 = vector.shape_cast %75 : vector<1x8x16xbf16> to vector<8x16xbf16>
    %cst_79 = arith.constant dense<0.000000e+00> : vector<64x16xf32>
    %77 = tpu.matmul %74, %76, %cst_79 {dimension_numbers = #tpu.dot_dimension_numbers<[1], [0], [0], [1], [0, 0, 1, 1], [], []>} : vector<64x8xbf16>, vector<8x16xbf16>, vector<64x16xf32> -> vector<64x16xf32>
    %78 = arith.addf %71, %77 : vector<64x16xf32>
    %c1_80 = arith.constant 1 : index
    %c3_81 = arith.constant 3 : index
    %c0_82 = arith.constant 0 : index
    %79 = vector.load %arg13[%c1_80, %c3_81, %c0_82] : memref<12x12x8xf32, #tpu.memory_space<vmem>>, vector<8x8x8xf32>
    %80 = vector.shape_cast %79 : vector<8x8x8xf32> to vector<64x8xf32>
    %81 = arith.truncf %80 : vector<64x8xf32> to vector<64x8xbf16>
    %c8 = arith.constant 8 : index
    %c0_83 = arith.constant 0 : index
    %c0_84 = arith.constant 0 : index
    %82 = vector.load %arg4[%c8, %c0_83, %c0_84] : memref<25x8x16xbf16, #tpu.memory_space<vmem>>, vector<1x8x16xbf16>
    %83 = vector.shape_cast %82 : vector<1x8x16xbf16> to vector<8x16xbf16>
    %cst_85 = arith.constant dense<0.000000e+00> : vector<64x16xf32>
    %84 = tpu.matmul %81, %83, %cst_85 {dimension_numbers = #tpu.dot_dimension_numbers<[1], [0], [0], [1], [0, 0, 1, 1], [], []>} : vector<64x8xbf16>, vector<8x16xbf16>, vector<64x16xf32> -> vector<64x16xf32>
    %85 = arith.addf %78, %84 : vector<64x16xf32>
    %c1_86 = arith.constant 1 : index
    %c4_87 = arith.constant 4 : index
    %c0_88 = arith.constant 0 : index
    %86 = vector.load %arg13[%c1_86, %c4_87, %c0_88] : memref<12x12x8xf32, #tpu.memory_space<vmem>>, vector<8x8x8xf32>
    %87 = vector.shape_cast %86 : vector<8x8x8xf32> to vector<64x8xf32>
    %88 = arith.truncf %87 : vector<64x8xf32> to vector<64x8xbf16>
    %c9 = arith.constant 9 : index
    %c0_89 = arith.constant 0 : index
    %c0_90 = arith.constant 0 : index
    %89 = vector.load %arg4[%c9, %c0_89, %c0_90] : memref<25x8x16xbf16, #tpu.memory_space<vmem>>, vector<1x8x16xbf16>
    %90 = vector.shape_cast %89 : vector<1x8x16xbf16> to vector<8x16xbf16>
    %cst_91 = arith.constant dense<0.000000e+00> : vector<64x16xf32>
    %91 = tpu.matmul %88, %90, %cst_91 {dimension_numbers = #tpu.dot_dimension_numbers<[1], [0], [0], [1], [0, 0, 1, 1], [], []>} : vector<64x8xbf16>, vector<8x16xbf16>, vector<64x16xf32> -> vector<64x16xf32>
    %92 = arith.addf %85, %91 : vector<64x16xf32>
    %c2_92 = arith.constant 2 : index
    %c0_93 = arith.constant 0 : index
    %c0_94 = arith.constant 0 : index
    %93 = vector.load %arg13[%c2_92, %c0_93, %c0_94] : memref<12x12x8xf32, #tpu.memory_space<vmem>>, vector<8x8x8xf32>
    %94 = vector.shape_cast %93 : vector<8x8x8xf32> to vector<64x8xf32>
    %95 = arith.truncf %94 : vector<64x8xf32> to vector<64x8xbf16>
    %c10 = arith.constant 10 : index
    %c0_95 = arith.constant 0 : index
    %c0_96 = arith.constant 0 : index
    %96 = vector.load %arg4[%c10, %c0_95, %c0_96] : memref<25x8x16xbf16, #tpu.memory_space<vmem>>, vector<1x8x16xbf16>
    %97 = vector.shape_cast %96 : vector<1x8x16xbf16> to vector<8x16xbf16>
    %cst_97 = arith.constant dense<0.000000e+00> : vector<64x16xf32>
    %98 = tpu.matmul %95, %97, %cst_97 {dimension_numbers = #tpu.dot_dimension_numbers<[1], [0], [0], [1], [0, 0, 1, 1], [], []>} : vector<64x8xbf16>, vector<8x16xbf16>, vector<64x16xf32> -> vector<64x16xf32>
    %99 = arith.addf %92, %98 : vector<64x16xf32>
    %c2_98 = arith.constant 2 : index
    %c1_99 = arith.constant 1 : index
    %c0_100 = arith.constant 0 : index
    %100 = vector.load %arg13[%c2_98, %c1_99, %c0_100] : memref<12x12x8xf32, #tpu.memory_space<vmem>>, vector<8x8x8xf32>
    %101 = vector.shape_cast %100 : vector<8x8x8xf32> to vector<64x8xf32>
    %102 = arith.truncf %101 : vector<64x8xf32> to vector<64x8xbf16>
    %c11 = arith.constant 11 : index
    %c0_101 = arith.constant 0 : index
    %c0_102 = arith.constant 0 : index
    %103 = vector.load %arg4[%c11, %c0_101, %c0_102] : memref<25x8x16xbf16, #tpu.memory_space<vmem>>, vector<1x8x16xbf16>
    %104 = vector.shape_cast %103 : vector<1x8x16xbf16> to vector<8x16xbf16>
    %cst_103 = arith.constant dense<0.000000e+00> : vector<64x16xf32>
    %105 = tpu.matmul %102, %104, %cst_103 {dimension_numbers = #tpu.dot_dimension_numbers<[1], [0], [0], [1], [0, 0, 1, 1], [], []>} : vector<64x8xbf16>, vector<8x16xbf16>, vector<64x16xf32> -> vector<64x16xf32>
    %106 = arith.addf %99, %105 : vector<64x16xf32>
    %c2_104 = arith.constant 2 : index
    %c2_105 = arith.constant 2 : index
    %c0_106 = arith.constant 0 : index
    %107 = vector.load %arg13[%c2_104, %c2_105, %c0_106] : memref<12x12x8xf32, #tpu.memory_space<vmem>>, vector<8x8x8xf32>
    %108 = vector.shape_cast %107 : vector<8x8x8xf32> to vector<64x8xf32>
    %109 = arith.truncf %108 : vector<64x8xf32> to vector<64x8xbf16>
    %c12 = arith.constant 12 : index
    %c0_107 = arith.constant 0 : index
    %c0_108 = arith.constant 0 : index
    %110 = vector.load %arg4[%c12, %c0_107, %c0_108] : memref<25x8x16xbf16, #tpu.memory_space<vmem>>, vector<1x8x16xbf16>
    %111 = vector.shape_cast %110 : vector<1x8x16xbf16> to vector<8x16xbf16>
    %cst_109 = arith.constant dense<0.000000e+00> : vector<64x16xf32>
    %112 = tpu.matmul %109, %111, %cst_109 {dimension_numbers = #tpu.dot_dimension_numbers<[1], [0], [0], [1], [0, 0, 1, 1], [], []>} : vector<64x8xbf16>, vector<8x16xbf16>, vector<64x16xf32> -> vector<64x16xf32>
    %113 = arith.addf %106, %112 : vector<64x16xf32>
    %c2_110 = arith.constant 2 : index
    %c3_111 = arith.constant 3 : index
    %c0_112 = arith.constant 0 : index
    %114 = vector.load %arg13[%c2_110, %c3_111, %c0_112] : memref<12x12x8xf32, #tpu.memory_space<vmem>>, vector<8x8x8xf32>
    %115 = vector.shape_cast %114 : vector<8x8x8xf32> to vector<64x8xf32>
    %116 = arith.truncf %115 : vector<64x8xf32> to vector<64x8xbf16>
    %c13 = arith.constant 13 : index
    %c0_113 = arith.constant 0 : index
    %c0_114 = arith.constant 0 : index
    %117 = vector.load %arg4[%c13, %c0_113, %c0_114] : memref<25x8x16xbf16, #tpu.memory_space<vmem>>, vector<1x8x16xbf16>
    %118 = vector.shape_cast %117 : vector<1x8x16xbf16> to vector<8x16xbf16>
    %cst_115 = arith.constant dense<0.000000e+00> : vector<64x16xf32>
    %119 = tpu.matmul %116, %118, %cst_115 {dimension_numbers = #tpu.dot_dimension_numbers<[1], [0], [0], [1], [0, 0, 1, 1], [], []>} : vector<64x8xbf16>, vector<8x16xbf16>, vector<64x16xf32> -> vector<64x16xf32>
    %120 = arith.addf %113, %119 : vector<64x16xf32>
    %c2_116 = arith.constant 2 : index
    %c4_117 = arith.constant 4 : index
    %c0_118 = arith.constant 0 : index
    %121 = vector.load %arg13[%c2_116, %c4_117, %c0_118] : memref<12x12x8xf32, #tpu.memory_space<vmem>>, vector<8x8x8xf32>
    %122 = vector.shape_cast %121 : vector<8x8x8xf32> to vector<64x8xf32>
    %123 = arith.truncf %122 : vector<64x8xf32> to vector<64x8xbf16>
    %c14 = arith.constant 14 : index
    %c0_119 = arith.constant 0 : index
    %c0_120 = arith.constant 0 : index
    %124 = vector.load %arg4[%c14, %c0_119, %c0_120] : memref<25x8x16xbf16, #tpu.memory_space<vmem>>, vector<1x8x16xbf16>
    %125 = vector.shape_cast %124 : vector<1x8x16xbf16> to vector<8x16xbf16>
    %cst_121 = arith.constant dense<0.000000e+00> : vector<64x16xf32>
    %126 = tpu.matmul %123, %125, %cst_121 {dimension_numbers = #tpu.dot_dimension_numbers<[1], [0], [0], [1], [0, 0, 1, 1], [], []>} : vector<64x8xbf16>, vector<8x16xbf16>, vector<64x16xf32> -> vector<64x16xf32>
    %127 = arith.addf %120, %126 : vector<64x16xf32>
    %c3_122 = arith.constant 3 : index
    %c0_123 = arith.constant 0 : index
    %c0_124 = arith.constant 0 : index
    %128 = vector.load %arg13[%c3_122, %c0_123, %c0_124] : memref<12x12x8xf32, #tpu.memory_space<vmem>>, vector<8x8x8xf32>
    %129 = vector.shape_cast %128 : vector<8x8x8xf32> to vector<64x8xf32>
    %130 = arith.truncf %129 : vector<64x8xf32> to vector<64x8xbf16>
    %c15 = arith.constant 15 : index
    %c0_125 = arith.constant 0 : index
    %c0_126 = arith.constant 0 : index
    %131 = vector.load %arg4[%c15, %c0_125, %c0_126] : memref<25x8x16xbf16, #tpu.memory_space<vmem>>, vector<1x8x16xbf16>
    %132 = vector.shape_cast %131 : vector<1x8x16xbf16> to vector<8x16xbf16>
    %cst_127 = arith.constant dense<0.000000e+00> : vector<64x16xf32>
    %133 = tpu.matmul %130, %132, %cst_127 {dimension_numbers = #tpu.dot_dimension_numbers<[1], [0], [0], [1], [0, 0, 1, 1], [], []>} : vector<64x8xbf16>, vector<8x16xbf16>, vector<64x16xf32> -> vector<64x16xf32>
    %134 = arith.addf %127, %133 : vector<64x16xf32>
    %c3_128 = arith.constant 3 : index
    %c1_129 = arith.constant 1 : index
    %c0_130 = arith.constant 0 : index
    %135 = vector.load %arg13[%c3_128, %c1_129, %c0_130] : memref<12x12x8xf32, #tpu.memory_space<vmem>>, vector<8x8x8xf32>
    %136 = vector.shape_cast %135 : vector<8x8x8xf32> to vector<64x8xf32>
    %137 = arith.truncf %136 : vector<64x8xf32> to vector<64x8xbf16>
    %c16 = arith.constant 16 : index
    %c0_131 = arith.constant 0 : index
    %c0_132 = arith.constant 0 : index
    %138 = vector.load %arg4[%c16, %c0_131, %c0_132] : memref<25x8x16xbf16, #tpu.memory_space<vmem>>, vector<1x8x16xbf16>
    %139 = vector.shape_cast %138 : vector<1x8x16xbf16> to vector<8x16xbf16>
    %cst_133 = arith.constant dense<0.000000e+00> : vector<64x16xf32>
    %140 = tpu.matmul %137, %139, %cst_133 {dimension_numbers = #tpu.dot_dimension_numbers<[1], [0], [0], [1], [0, 0, 1, 1], [], []>} : vector<64x8xbf16>, vector<8x16xbf16>, vector<64x16xf32> -> vector<64x16xf32>
    %141 = arith.addf %134, %140 : vector<64x16xf32>
    %c3_134 = arith.constant 3 : index
    %c2_135 = arith.constant 2 : index
    %c0_136 = arith.constant 0 : index
    %142 = vector.load %arg13[%c3_134, %c2_135, %c0_136] : memref<12x12x8xf32, #tpu.memory_space<vmem>>, vector<8x8x8xf32>
    %143 = vector.shape_cast %142 : vector<8x8x8xf32> to vector<64x8xf32>
    %144 = arith.truncf %143 : vector<64x8xf32> to vector<64x8xbf16>
    %c17 = arith.constant 17 : index
    %c0_137 = arith.constant 0 : index
    %c0_138 = arith.constant 0 : index
    %145 = vector.load %arg4[%c17, %c0_137, %c0_138] : memref<25x8x16xbf16, #tpu.memory_space<vmem>>, vector<1x8x16xbf16>
    %146 = vector.shape_cast %145 : vector<1x8x16xbf16> to vector<8x16xbf16>
    %cst_139 = arith.constant dense<0.000000e+00> : vector<64x16xf32>
    %147 = tpu.matmul %144, %146, %cst_139 {dimension_numbers = #tpu.dot_dimension_numbers<[1], [0], [0], [1], [0, 0, 1, 1], [], []>} : vector<64x8xbf16>, vector<8x16xbf16>, vector<64x16xf32> -> vector<64x16xf32>
    %148 = arith.addf %141, %147 : vector<64x16xf32>
    %c3_140 = arith.constant 3 : index
    %c3_141 = arith.constant 3 : index
    %c0_142 = arith.constant 0 : index
    %149 = vector.load %arg13[%c3_140, %c3_141, %c0_142] : memref<12x12x8xf32, #tpu.memory_space<vmem>>, vector<8x8x8xf32>
    %150 = vector.shape_cast %149 : vector<8x8x8xf32> to vector<64x8xf32>
    %151 = arith.truncf %150 : vector<64x8xf32> to vector<64x8xbf16>
    %c18 = arith.constant 18 : index
    %c0_143 = arith.constant 0 : index
    %c0_144 = arith.constant 0 : index
    %152 = vector.load %arg4[%c18, %c0_143, %c0_144] : memref<25x8x16xbf16, #tpu.memory_space<vmem>>, vector<1x8x16xbf16>
    %153 = vector.shape_cast %152 : vector<1x8x16xbf16> to vector<8x16xbf16>
    %cst_145 = arith.constant dense<0.000000e+00> : vector<64x16xf32>
    %154 = tpu.matmul %151, %153, %cst_145 {dimension_numbers = #tpu.dot_dimension_numbers<[1], [0], [0], [1], [0, 0, 1, 1], [], []>} : vector<64x8xbf16>, vector<8x16xbf16>, vector<64x16xf32> -> vector<64x16xf32>
    %155 = arith.addf %148, %154 : vector<64x16xf32>
    %c3_146 = arith.constant 3 : index
    %c4_147 = arith.constant 4 : index
    %c0_148 = arith.constant 0 : index
    %156 = vector.load %arg13[%c3_146, %c4_147, %c0_148] : memref<12x12x8xf32, #tpu.memory_space<vmem>>, vector<8x8x8xf32>
    %157 = vector.shape_cast %156 : vector<8x8x8xf32> to vector<64x8xf32>
    %158 = arith.truncf %157 : vector<64x8xf32> to vector<64x8xbf16>
    %c19 = arith.constant 19 : index
    %c0_149 = arith.constant 0 : index
    %c0_150 = arith.constant 0 : index
    %159 = vector.load %arg4[%c19, %c0_149, %c0_150] : memref<25x8x16xbf16, #tpu.memory_space<vmem>>, vector<1x8x16xbf16>
    %160 = vector.shape_cast %159 : vector<1x8x16xbf16> to vector<8x16xbf16>
    %cst_151 = arith.constant dense<0.000000e+00> : vector<64x16xf32>
    %161 = tpu.matmul %158, %160, %cst_151 {dimension_numbers = #tpu.dot_dimension_numbers<[1], [0], [0], [1], [0, 0, 1, 1], [], []>} : vector<64x8xbf16>, vector<8x16xbf16>, vector<64x16xf32> -> vector<64x16xf32>
    %162 = arith.addf %155, %161 : vector<64x16xf32>
    %c4_152 = arith.constant 4 : index
    %c0_153 = arith.constant 0 : index
    %c0_154 = arith.constant 0 : index
    %163 = vector.load %arg13[%c4_152, %c0_153, %c0_154] : memref<12x12x8xf32, #tpu.memory_space<vmem>>, vector<8x8x8xf32>
    %164 = vector.shape_cast %163 : vector<8x8x8xf32> to vector<64x8xf32>
    %165 = arith.truncf %164 : vector<64x8xf32> to vector<64x8xbf16>
    %c20 = arith.constant 20 : index
    %c0_155 = arith.constant 0 : index
    %c0_156 = arith.constant 0 : index
    %166 = vector.load %arg4[%c20, %c0_155, %c0_156] : memref<25x8x16xbf16, #tpu.memory_space<vmem>>, vector<1x8x16xbf16>
    %167 = vector.shape_cast %166 : vector<1x8x16xbf16> to vector<8x16xbf16>
    %cst_157 = arith.constant dense<0.000000e+00> : vector<64x16xf32>
    %168 = tpu.matmul %165, %167, %cst_157 {dimension_numbers = #tpu.dot_dimension_numbers<[1], [0], [0], [1], [0, 0, 1, 1], [], []>} : vector<64x8xbf16>, vector<8x16xbf16>, vector<64x16xf32> -> vector<64x16xf32>
    %169 = arith.addf %162, %168 : vector<64x16xf32>
    %c4_158 = arith.constant 4 : index
    %c1_159 = arith.constant 1 : index
    %c0_160 = arith.constant 0 : index
    %170 = vector.load %arg13[%c4_158, %c1_159, %c0_160] : memref<12x12x8xf32, #tpu.memory_space<vmem>>, vector<8x8x8xf32>
    %171 = vector.shape_cast %170 : vector<8x8x8xf32> to vector<64x8xf32>
    %172 = arith.truncf %171 : vector<64x8xf32> to vector<64x8xbf16>
    %c21 = arith.constant 21 : index
    %c0_161 = arith.constant 0 : index
    %c0_162 = arith.constant 0 : index
    %173 = vector.load %arg4[%c21, %c0_161, %c0_162] : memref<25x8x16xbf16, #tpu.memory_space<vmem>>, vector<1x8x16xbf16>
    %174 = vector.shape_cast %173 : vector<1x8x16xbf16> to vector<8x16xbf16>
    %cst_163 = arith.constant dense<0.000000e+00> : vector<64x16xf32>
    %175 = tpu.matmul %172, %174, %cst_163 {dimension_numbers = #tpu.dot_dimension_numbers<[1], [0], [0], [1], [0, 0, 1, 1], [], []>} : vector<64x8xbf16>, vector<8x16xbf16>, vector<64x16xf32> -> vector<64x16xf32>
    %176 = arith.addf %169, %175 : vector<64x16xf32>
    %c4_164 = arith.constant 4 : index
    %c2_165 = arith.constant 2 : index
    %c0_166 = arith.constant 0 : index
    %177 = vector.load %arg13[%c4_164, %c2_165, %c0_166] : memref<12x12x8xf32, #tpu.memory_space<vmem>>, vector<8x8x8xf32>
    %178 = vector.shape_cast %177 : vector<8x8x8xf32> to vector<64x8xf32>
    %179 = arith.truncf %178 : vector<64x8xf32> to vector<64x8xbf16>
    %c22 = arith.constant 22 : index
    %c0_167 = arith.constant 0 : index
    %c0_168 = arith.constant 0 : index
    %180 = vector.load %arg4[%c22, %c0_167, %c0_168] : memref<25x8x16xbf16, #tpu.memory_space<vmem>>, vector<1x8x16xbf16>
    %181 = vector.shape_cast %180 : vector<1x8x16xbf16> to vector<8x16xbf16>
    %cst_169 = arith.constant dense<0.000000e+00> : vector<64x16xf32>
    %182 = tpu.matmul %179, %181, %cst_169 {dimension_numbers = #tpu.dot_dimension_numbers<[1], [0], [0], [1], [0, 0, 1, 1], [], []>} : vector<64x8xbf16>, vector<8x16xbf16>, vector<64x16xf32> -> vector<64x16xf32>
    %183 = arith.addf %176, %182 : vector<64x16xf32>
    %c4_170 = arith.constant 4 : index
    %c3_171 = arith.constant 3 : index
    %c0_172 = arith.constant 0 : index
    %184 = vector.load %arg13[%c4_170, %c3_171, %c0_172] : memref<12x12x8xf32, #tpu.memory_space<vmem>>, vector<8x8x8xf32>
    %185 = vector.shape_cast %184 : vector<8x8x8xf32> to vector<64x8xf32>
    %186 = arith.truncf %185 : vector<64x8xf32> to vector<64x8xbf16>
    %c23 = arith.constant 23 : index
    %c0_173 = arith.constant 0 : index
    %c0_174 = arith.constant 0 : index
    %187 = vector.load %arg4[%c23, %c0_173, %c0_174] : memref<25x8x16xbf16, #tpu.memory_space<vmem>>, vector<1x8x16xbf16>
    %188 = vector.shape_cast %187 : vector<1x8x16xbf16> to vector<8x16xbf16>
    %cst_175 = arith.constant dense<0.000000e+00> : vector<64x16xf32>
    %189 = tpu.matmul %186, %188, %cst_175 {dimension_numbers = #tpu.dot_dimension_numbers<[1], [0], [0], [1], [0, 0, 1, 1], [], []>} : vector<64x8xbf16>, vector<8x16xbf16>, vector<64x16xf32> -> vector<64x16xf32>
    %190 = arith.addf %183, %189 : vector<64x16xf32>
    %c4_176 = arith.constant 4 : index
    %c4_177 = arith.constant 4 : index
    %c0_178 = arith.constant 0 : index
    %191 = vector.load %arg13[%c4_176, %c4_177, %c0_178] : memref<12x12x8xf32, #tpu.memory_space<vmem>>, vector<8x8x8xf32>
    %192 = vector.shape_cast %191 : vector<8x8x8xf32> to vector<64x8xf32>
    %193 = arith.truncf %192 : vector<64x8xf32> to vector<64x8xbf16>
    %c24 = arith.constant 24 : index
    %c0_179 = arith.constant 0 : index
    %c0_180 = arith.constant 0 : index
    %194 = vector.load %arg4[%c24, %c0_179, %c0_180] : memref<25x8x16xbf16, #tpu.memory_space<vmem>>, vector<1x8x16xbf16>
    %195 = vector.shape_cast %194 : vector<1x8x16xbf16> to vector<8x16xbf16>
    %cst_181 = arith.constant dense<0.000000e+00> : vector<64x16xf32>
    %196 = tpu.matmul %193, %195, %cst_181 {dimension_numbers = #tpu.dot_dimension_numbers<[1], [0], [0], [1], [0, 0, 1, 1], [], []>} : vector<64x8xbf16>, vector<8x16xbf16>, vector<64x16xf32> -> vector<64x16xf32>
    %197 = arith.addf %190, %196 : vector<64x16xf32>
    %c0_182 = arith.constant 0 : index
    %c0_183 = arith.constant 0 : index
    %198 = vector.load %arg5[%c0_182, %c0_183] : memref<2x16xf32, #tpu.memory_space<vmem>>, vector<1x16xf32>
    %199 = vector.broadcast %198 : vector<1x16xf32> to vector<64x16xf32>
    %200 = arith.mulf %197, %199 : vector<64x16xf32>
    %c1_184 = arith.constant 1 : index
    %c0_185 = arith.constant 0 : index
    %201 = vector.load %arg5[%c1_184, %c0_185] : memref<2x16xf32, #tpu.memory_space<vmem>>, vector<1x16xf32>
    %202 = vector.broadcast %201 : vector<1x16xf32> to vector<64x16xf32>
    %203 = arith.addf %200, %202 : vector<64x16xf32>
    %cst_186 = arith.constant 0.000000e+00 : f32
    %204 = vector.broadcast %cst_186 : f32 to vector<64x16xf32>
    %205 = arith.maximumf %203, %204 : vector<64x16xf32>
    %206 = vector.shape_cast %205 : vector<64x16xf32> to vector<8x8x16xf32>
    %c0_187 = arith.constant 0 : index
    %c0_188 = arith.constant 0 : index
    %c0_189 = arith.constant 0 : index
    %207 = vector.load %arg14[%c0_187, %c0_188, %c0_189] : memref<8x8x16xf32, #tpu.memory_space<vmem>>, vector<8x8x16xf32>
    tpu.vector_store %arg14[%c0_187, %c0_188, %c0_189], %206 {strides = array<i32>} : memref<8x8x16xf32, #tpu.memory_space<vmem>>, vector<8x8x16xf32>,
    %c0_190 = arith.constant 0 : index
    %c0_191 = arith.constant 0 : index
    %c0_192 = arith.constant 0 : index
    %208 = tpu.strided_load %arg14[%c0_190, %c0_191, %c0_192] {strides = array<i32: 2, 1, 1>} : memref<8x8x16xf32, #tpu.memory_space<vmem>>, vector<4x8x16xf32>
    %c1_193 = arith.constant 1 : index
    %c0_194 = arith.constant 0 : index
    %c0_195 = arith.constant 0 : index
    %209 = tpu.strided_load %arg14[%c1_193, %c0_194, %c0_195] {strides = array<i32: 2, 1, 1>} : memref<8x8x16xf32, #tpu.memory_space<vmem>>, vector<4x8x16xf32>
    %210 = arith.maximumf %208, %209 : vector<4x8x16xf32>
    %c0_196 = arith.constant 0 : index
    %c0_197 = arith.constant 0 : index
    %c0_198 = arith.constant 0 : index
    %211 = vector.load %arg15[%c0_196, %c0_197, %c0_198] : memref<4x8x16xf32, #tpu.memory_space<vmem>>, vector<4x8x16xf32>
    tpu.vector_store %arg15[%c0_196, %c0_197, %c0_198], %210 {strides = array<i32>} : memref<4x8x16xf32, #tpu.memory_space<vmem>>, vector<4x8x16xf32>,
    %c0_199 = arith.constant 0 : index
    %c0_200 = arith.constant 0 : index
    %c0_201 = arith.constant 0 : index
    %212 = tpu.strided_load %arg15[%c0_199, %c0_200, %c0_201] {strides = array<i32: 1, 2, 1>} : memref<4x8x16xf32, #tpu.memory_space<vmem>>, vector<4x4x16xf32>
    %c0_202 = arith.constant 0 : index
    %c1_203 = arith.constant 1 : index
    %c0_204 = arith.constant 0 : index
    %213 = tpu.strided_load %arg15[%c0_202, %c1_203, %c0_204] {strides = array<i32: 1, 2, 1>} : memref<4x8x16xf32, #tpu.memory_space<vmem>>, vector<4x4x16xf32>
    %214 = arith.maximumf %212, %213 : vector<4x4x16xf32>
    %c0_205 = arith.constant 0 : index
    %c0_206 = arith.constant 0 : index
    %c0_207 = arith.constant 0 : index
    %215 = vector.load %arg16[%c0_205, %c0_206, %c0_207] : memref<4x4x16xf32, #tpu.memory_space<vmem>>, vector<4x4x16xf32>
    tpu.vector_store %arg16[%c0_205, %c0_206, %c0_207], %214 {strides = array<i32>} : memref<4x4x16xf32, #tpu.memory_space<vmem>>, vector<4x4x16xf32>,
    %cst_208 = arith.constant 0.000000e+00 : f32
    %216 = vector.broadcast %cst_208 : f32 to vector<1x128xf32>
    %c0_209 = arith.constant 0 : index
    %c0_210 = arith.constant 0 : index
    %c0_211 = arith.constant 0 : index
    %217 = vector.load %arg16[%c0_209, %c0_210, %c0_211] : memref<4x4x16xf32, #tpu.memory_space<vmem>>, vector<1x1x16xf32>
    %218 = vector.shape_cast %217 : vector<1x1x16xf32> to vector<1x16xf32>
    %219 = arith.truncf %218 : vector<1x16xf32> to vector<1x16xbf16>
    %c0_212 = arith.constant 0 : index
    %c0_213 = arith.constant 0 : index
    %c0_214 = arith.constant 0 : index
    %c0_215 = arith.constant 0 : index
    %220 = vector.load %arg6[%c0_212, %c0_213, %c0_214, %c0_215] : memref<4x4x16x128xbf16, #tpu.memory_space<vmem>>, vector<1x1x16x128xbf16>
    %221 = vector.shape_cast %220 : vector<1x1x16x128xbf16> to vector<16x128xbf16>
    %cst_216 = arith.constant dense<0.000000e+00> : vector<1x128xf32>
    %222 = tpu.matmul %219, %221, %cst_216 {dimension_numbers = #tpu.dot_dimension_numbers<[1], [0], [0], [1], [0, 0, 1, 1], [], []>} : vector<1x16xbf16>, vector<16x128xbf16>, vector<1x128xf32> -> vector<1x128xf32>
    %223 = arith.addf %216, %222 : vector<1x128xf32>
    %c0_217 = arith.constant 0 : index
    %c1_218 = arith.constant 1 : index
    %c0_219 = arith.constant 0 : index
    %224 = vector.load %arg16[%c0_217, %c1_218, %c0_219] : memref<4x4x16xf32, #tpu.memory_space<vmem>>, vector<1x1x16xf32>
    %225 = vector.shape_cast %224 : vector<1x1x16xf32> to vector<1x16xf32>
    %226 = arith.truncf %225 : vector<1x16xf32> to vector<1x16xbf16>
    %c0_220 = arith.constant 0 : index
    %c1_221 = arith.constant 1 : index
    %c0_222 = arith.constant 0 : index
    %c0_223 = arith.constant 0 : index
    %227 = vector.load %arg6[%c0_220, %c1_221, %c0_222, %c0_223] : memref<4x4x16x128xbf16, #tpu.memory_space<vmem>>, vector<1x1x16x128xbf16>
    %228 = vector.shape_cast %227 : vector<1x1x16x128xbf16> to vector<16x128xbf16>
    %cst_224 = arith.constant dense<0.000000e+00> : vector<1x128xf32>
    %229 = tpu.matmul %226, %228, %cst_224 {dimension_numbers = #tpu.dot_dimension_numbers<[1], [0], [0], [1], [0, 0, 1, 1], [], []>} : vector<1x16xbf16>, vector<16x128xbf16>, vector<1x128xf32> -> vector<1x128xf32>
    %230 = arith.addf %223, %229 : vector<1x128xf32>
    %c0_225 = arith.constant 0 : index
    %c2_226 = arith.constant 2 : index
    %c0_227 = arith.constant 0 : index
    %231 = vector.load %arg16[%c0_225, %c2_226, %c0_227] : memref<4x4x16xf32, #tpu.memory_space<vmem>>, vector<1x1x16xf32>
    %232 = vector.shape_cast %231 : vector<1x1x16xf32> to vector<1x16xf32>
    %233 = arith.truncf %232 : vector<1x16xf32> to vector<1x16xbf16>
    %c0_228 = arith.constant 0 : index
    %c2_229 = arith.constant 2 : index
    %c0_230 = arith.constant 0 : index
    %c0_231 = arith.constant 0 : index
    %234 = vector.load %arg6[%c0_228, %c2_229, %c0_230, %c0_231] : memref<4x4x16x128xbf16, #tpu.memory_space<vmem>>, vector<1x1x16x128xbf16>
    %235 = vector.shape_cast %234 : vector<1x1x16x128xbf16> to vector<16x128xbf16>
    %cst_232 = arith.constant dense<0.000000e+00> : vector<1x128xf32>
    %236 = tpu.matmul %233, %235, %cst_232 {dimension_numbers = #tpu.dot_dimension_numbers<[1], [0], [0], [1], [0, 0, 1, 1], [], []>} : vector<1x16xbf16>, vector<16x128xbf16>, vector<1x128xf32> -> vector<1x128xf32>
    %237 = arith.addf %230, %236 : vector<1x128xf32>
    %c0_233 = arith.constant 0 : index
    %c3_234 = arith.constant 3 : index
    %c0_235 = arith.constant 0 : index
    %238 = vector.load %arg16[%c0_233, %c3_234, %c0_235] : memref<4x4x16xf32, #tpu.memory_space<vmem>>, vector<1x1x16xf32>
    %239 = vector.shape_cast %238 : vector<1x1x16xf32> to vector<1x16xf32>
    %240 = arith.truncf %239 : vector<1x16xf32> to vector<1x16xbf16>
    %c0_236 = arith.constant 0 : index
    %c3_237 = arith.constant 3 : index
    %c0_238 = arith.constant 0 : index
    %c0_239 = arith.constant 0 : index
    %241 = vector.load %arg6[%c0_236, %c3_237, %c0_238, %c0_239] : memref<4x4x16x128xbf16, #tpu.memory_space<vmem>>, vector<1x1x16x128xbf16>
    %242 = vector.shape_cast %241 : vector<1x1x16x128xbf16> to vector<16x128xbf16>
    %cst_240 = arith.constant dense<0.000000e+00> : vector<1x128xf32>
    %243 = tpu.matmul %240, %242, %cst_240 {dimension_numbers = #tpu.dot_dimension_numbers<[1], [0], [0], [1], [0, 0, 1, 1], [], []>} : vector<1x16xbf16>, vector<16x128xbf16>, vector<1x128xf32> -> vector<1x128xf32>
    %244 = arith.addf %237, %243 : vector<1x128xf32>
    %c1_241 = arith.constant 1 : index
    %c0_242 = arith.constant 0 : index
    %c0_243 = arith.constant 0 : index
    %245 = vector.load %arg16[%c1_241, %c0_242, %c0_243] : memref<4x4x16xf32, #tpu.memory_space<vmem>>, vector<1x1x16xf32>
    %246 = vector.shape_cast %245 : vector<1x1x16xf32> to vector<1x16xf32>
    %247 = arith.truncf %246 : vector<1x16xf32> to vector<1x16xbf16>
    %c1_244 = arith.constant 1 : index
    %c0_245 = arith.constant 0 : index
    %c0_246 = arith.constant 0 : index
    %c0_247 = arith.constant 0 : index
    %248 = vector.load %arg6[%c1_244, %c0_245, %c0_246, %c0_247] : memref<4x4x16x128xbf16, #tpu.memory_space<vmem>>, vector<1x1x16x128xbf16>
    %249 = vector.shape_cast %248 : vector<1x1x16x128xbf16> to vector<16x128xbf16>
    %cst_248 = arith.constant dense<0.000000e+00> : vector<1x128xf32>
    %250 = tpu.matmul %247, %249, %cst_248 {dimension_numbers = #tpu.dot_dimension_numbers<[1], [0], [0], [1], [0, 0, 1, 1], [], []>} : vector<1x16xbf16>, vector<16x128xbf16>, vector<1x128xf32> -> vector<1x128xf32>
    %251 = arith.addf %244, %250 : vector<1x128xf32>
    %c1_249 = arith.constant 1 : index
    %c1_250 = arith.constant 1 : index
    %c0_251 = arith.constant 0 : index
    %252 = vector.load %arg16[%c1_249, %c1_250, %c0_251] : memref<4x4x16xf32, #tpu.memory_space<vmem>>, vector<1x1x16xf32>
    %253 = vector.shape_cast %252 : vector<1x1x16xf32> to vector<1x16xf32>
    %254 = arith.truncf %253 : vector<1x16xf32> to vector<1x16xbf16>
    %c1_252 = arith.constant 1 : index
    %c1_253 = arith.constant 1 : index
    %c0_254 = arith.constant 0 : index
    %c0_255 = arith.constant 0 : index
    %255 = vector.load %arg6[%c1_252, %c1_253, %c0_254, %c0_255] : memref<4x4x16x128xbf16, #tpu.memory_space<vmem>>, vector<1x1x16x128xbf16>
    %256 = vector.shape_cast %255 : vector<1x1x16x128xbf16> to vector<16x128xbf16>
    %cst_256 = arith.constant dense<0.000000e+00> : vector<1x128xf32>
    %257 = tpu.matmul %254, %256, %cst_256 {dimension_numbers = #tpu.dot_dimension_numbers<[1], [0], [0], [1], [0, 0, 1, 1], [], []>} : vector<1x16xbf16>, vector<16x128xbf16>, vector<1x128xf32> -> vector<1x128xf32>
    %258 = arith.addf %251, %257 : vector<1x128xf32>
    %c1_257 = arith.constant 1 : index
    %c2_258 = arith.constant 2 : index
    %c0_259 = arith.constant 0 : index
    %259 = vector.load %arg16[%c1_257, %c2_258, %c0_259] : memref<4x4x16xf32, #tpu.memory_space<vmem>>, vector<1x1x16xf32>
    %260 = vector.shape_cast %259 : vector<1x1x16xf32> to vector<1x16xf32>
    %261 = arith.truncf %260 : vector<1x16xf32> to vector<1x16xbf16>
    %c1_260 = arith.constant 1 : index
    %c2_261 = arith.constant 2 : index
    %c0_262 = arith.constant 0 : index
    %c0_263 = arith.constant 0 : index
    %262 = vector.load %arg6[%c1_260, %c2_261, %c0_262, %c0_263] : memref<4x4x16x128xbf16, #tpu.memory_space<vmem>>, vector<1x1x16x128xbf16>
    %263 = vector.shape_cast %262 : vector<1x1x16x128xbf16> to vector<16x128xbf16>
    %cst_264 = arith.constant dense<0.000000e+00> : vector<1x128xf32>
    %264 = tpu.matmul %261, %263, %cst_264 {dimension_numbers = #tpu.dot_dimension_numbers<[1], [0], [0], [1], [0, 0, 1, 1], [], []>} : vector<1x16xbf16>, vector<16x128xbf16>, vector<1x128xf32> -> vector<1x128xf32>
    %265 = arith.addf %258, %264 : vector<1x128xf32>
    %c1_265 = arith.constant 1 : index
    %c3_266 = arith.constant 3 : index
    %c0_267 = arith.constant 0 : index
    %266 = vector.load %arg16[%c1_265, %c3_266, %c0_267] : memref<4x4x16xf32, #tpu.memory_space<vmem>>, vector<1x1x16xf32>
    %267 = vector.shape_cast %266 : vector<1x1x16xf32> to vector<1x16xf32>
    %268 = arith.truncf %267 : vector<1x16xf32> to vector<1x16xbf16>
    %c1_268 = arith.constant 1 : index
    %c3_269 = arith.constant 3 : index
    %c0_270 = arith.constant 0 : index
    %c0_271 = arith.constant 0 : index
    %269 = vector.load %arg6[%c1_268, %c3_269, %c0_270, %c0_271] : memref<4x4x16x128xbf16, #tpu.memory_space<vmem>>, vector<1x1x16x128xbf16>
    %270 = vector.shape_cast %269 : vector<1x1x16x128xbf16> to vector<16x128xbf16>
    %cst_272 = arith.constant dense<0.000000e+00> : vector<1x128xf32>
    %271 = tpu.matmul %268, %270, %cst_272 {dimension_numbers = #tpu.dot_dimension_numbers<[1], [0], [0], [1], [0, 0, 1, 1], [], []>} : vector<1x16xbf16>, vector<16x128xbf16>, vector<1x128xf32> -> vector<1x128xf32>
    %272 = arith.addf %265, %271 : vector<1x128xf32>
    %c2_273 = arith.constant 2 : index
    %c0_274 = arith.constant 0 : index
    %c0_275 = arith.constant 0 : index
    %273 = vector.load %arg16[%c2_273, %c0_274, %c0_275] : memref<4x4x16xf32, #tpu.memory_space<vmem>>, vector<1x1x16xf32>
    %274 = vector.shape_cast %273 : vector<1x1x16xf32> to vector<1x16xf32>
    %275 = arith.truncf %274 : vector<1x16xf32> to vector<1x16xbf16>
    %c2_276 = arith.constant 2 : index
    %c0_277 = arith.constant 0 : index
    %c0_278 = arith.constant 0 : index
    %c0_279 = arith.constant 0 : index
    %276 = vector.load %arg6[%c2_276, %c0_277, %c0_278, %c0_279] : memref<4x4x16x128xbf16, #tpu.memory_space<vmem>>, vector<1x1x16x128xbf16>
    %277 = vector.shape_cast %276 : vector<1x1x16x128xbf16> to vector<16x128xbf16>
    %cst_280 = arith.constant dense<0.000000e+00> : vector<1x128xf32>
    %278 = tpu.matmul %275, %277, %cst_280 {dimension_numbers = #tpu.dot_dimension_numbers<[1], [0], [0], [1], [0, 0, 1, 1], [], []>} : vector<1x16xbf16>, vector<16x128xbf16>, vector<1x128xf32> -> vector<1x128xf32>
    %279 = arith.addf %272, %278 : vector<1x128xf32>
    %c2_281 = arith.constant 2 : index
    %c1_282 = arith.constant 1 : index
    %c0_283 = arith.constant 0 : index
    %280 = vector.load %arg16[%c2_281, %c1_282, %c0_283] : memref<4x4x16xf32, #tpu.memory_space<vmem>>, vector<1x1x16xf32>
    %281 = vector.shape_cast %280 : vector<1x1x16xf32> to vector<1x16xf32>
    %282 = arith.truncf %281 : vector<1x16xf32> to vector<1x16xbf16>
    %c2_284 = arith.constant 2 : index
    %c1_285 = arith.constant 1 : index
    %c0_286 = arith.constant 0 : index
    %c0_287 = arith.constant 0 : index
    %283 = vector.load %arg6[%c2_284, %c1_285, %c0_286, %c0_287] : memref<4x4x16x128xbf16, #tpu.memory_space<vmem>>, vector<1x1x16x128xbf16>
    %284 = vector.shape_cast %283 : vector<1x1x16x128xbf16> to vector<16x128xbf16>
    %cst_288 = arith.constant dense<0.000000e+00> : vector<1x128xf32>
    %285 = tpu.matmul %282, %284, %cst_288 {dimension_numbers = #tpu.dot_dimension_numbers<[1], [0], [0], [1], [0, 0, 1, 1], [], []>} : vector<1x16xbf16>, vector<16x128xbf16>, vector<1x128xf32> -> vector<1x128xf32>
    %286 = arith.addf %279, %285 : vector<1x128xf32>
    %c2_289 = arith.constant 2 : index
    %c2_290 = arith.constant 2 : index
    %c0_291 = arith.constant 0 : index
    %287 = vector.load %arg16[%c2_289, %c2_290, %c0_291] : memref<4x4x16xf32, #tpu.memory_space<vmem>>, vector<1x1x16xf32>
    %288 = vector.shape_cast %287 : vector<1x1x16xf32> to vector<1x16xf32>
    %289 = arith.truncf %288 : vector<1x16xf32> to vector<1x16xbf16>
    %c2_292 = arith.constant 2 : index
    %c2_293 = arith.constant 2 : index
    %c0_294 = arith.constant 0 : index
    %c0_295 = arith.constant 0 : index
    %290 = vector.load %arg6[%c2_292, %c2_293, %c0_294, %c0_295] : memref<4x4x16x128xbf16, #tpu.memory_space<vmem>>, vector<1x1x16x128xbf16>
    %291 = vector.shape_cast %290 : vector<1x1x16x128xbf16> to vector<16x128xbf16>
    %cst_296 = arith.constant dense<0.000000e+00> : vector<1x128xf32>
    %292 = tpu.matmul %289, %291, %cst_296 {dimension_numbers = #tpu.dot_dimension_numbers<[1], [0], [0], [1], [0, 0, 1, 1], [], []>} : vector<1x16xbf16>, vector<16x128xbf16>, vector<1x128xf32> -> vector<1x128xf32>
    %293 = arith.addf %286, %292 : vector<1x128xf32>
    %c2_297 = arith.constant 2 : index
    %c3_298 = arith.constant 3 : index
    %c0_299 = arith.constant 0 : index
    %294 = vector.load %arg16[%c2_297, %c3_298, %c0_299] : memref<4x4x16xf32, #tpu.memory_space<vmem>>, vector<1x1x16xf32>
    %295 = vector.shape_cast %294 : vector<1x1x16xf32> to vector<1x16xf32>
    %296 = arith.truncf %295 : vector<1x16xf32> to vector<1x16xbf16>
    %c2_300 = arith.constant 2 : index
    %c3_301 = arith.constant 3 : index
    %c0_302 = arith.constant 0 : index
    %c0_303 = arith.constant 0 : index
    %297 = vector.load %arg6[%c2_300, %c3_301, %c0_302, %c0_303] : memref<4x4x16x128xbf16, #tpu.memory_space<vmem>>, vector<1x1x16x128xbf16>
    %298 = vector.shape_cast %297 : vector<1x1x16x128xbf16> to vector<16x128xbf16>
    %cst_304 = arith.constant dense<0.000000e+00> : vector<1x128xf32>
    %299 = tpu.matmul %296, %298, %cst_304 {dimension_numbers = #tpu.dot_dimension_numbers<[1], [0], [0], [1], [0, 0, 1, 1], [], []>} : vector<1x16xbf16>, vector<16x128xbf16>, vector<1x128xf32> -> vector<1x128xf32>
    %300 = arith.addf %293, %299 : vector<1x128xf32>
    %c3_305 = arith.constant 3 : index
    %c0_306 = arith.constant 0 : index
    %c0_307 = arith.constant 0 : index
    %301 = vector.load %arg16[%c3_305, %c0_306, %c0_307] : memref<4x4x16xf32, #tpu.memory_space<vmem>>, vector<1x1x16xf32>
    %302 = vector.shape_cast %301 : vector<1x1x16xf32> to vector<1x16xf32>
    %303 = arith.truncf %302 : vector<1x16xf32> to vector<1x16xbf16>
    %c3_308 = arith.constant 3 : index
    %c0_309 = arith.constant 0 : index
    %c0_310 = arith.constant 0 : index
    %c0_311 = arith.constant 0 : index
    %304 = vector.load %arg6[%c3_308, %c0_309, %c0_310, %c0_311] : memref<4x4x16x128xbf16, #tpu.memory_space<vmem>>, vector<1x1x16x128xbf16>
    %305 = vector.shape_cast %304 : vector<1x1x16x128xbf16> to vector<16x128xbf16>
    %cst_312 = arith.constant dense<0.000000e+00> : vector<1x128xf32>
    %306 = tpu.matmul %303, %305, %cst_312 {dimension_numbers = #tpu.dot_dimension_numbers<[1], [0], [0], [1], [0, 0, 1, 1], [], []>} : vector<1x16xbf16>, vector<16x128xbf16>, vector<1x128xf32> -> vector<1x128xf32>
    %307 = arith.addf %300, %306 : vector<1x128xf32>
    %c3_313 = arith.constant 3 : index
    %c1_314 = arith.constant 1 : index
    %c0_315 = arith.constant 0 : index
    %308 = vector.load %arg16[%c3_313, %c1_314, %c0_315] : memref<4x4x16xf32, #tpu.memory_space<vmem>>, vector<1x1x16xf32>
    %309 = vector.shape_cast %308 : vector<1x1x16xf32> to vector<1x16xf32>
    %310 = arith.truncf %309 : vector<1x16xf32> to vector<1x16xbf16>
    %c3_316 = arith.constant 3 : index
    %c1_317 = arith.constant 1 : index
    %c0_318 = arith.constant 0 : index
    %c0_319 = arith.constant 0 : index
    %311 = vector.load %arg6[%c3_316, %c1_317, %c0_318, %c0_319] : memref<4x4x16x128xbf16, #tpu.memory_space<vmem>>, vector<1x1x16x128xbf16>
    %312 = vector.shape_cast %311 : vector<1x1x16x128xbf16> to vector<16x128xbf16>
    %cst_320 = arith.constant dense<0.000000e+00> : vector<1x128xf32>
    %313 = tpu.matmul %310, %312, %cst_320 {dimension_numbers = #tpu.dot_dimension_numbers<[1], [0], [0], [1], [0, 0, 1, 1], [], []>} : vector<1x16xbf16>, vector<16x128xbf16>, vector<1x128xf32> -> vector<1x128xf32>
    %314 = arith.addf %307, %313 : vector<1x128xf32>
    %c3_321 = arith.constant 3 : index
    %c2_322 = arith.constant 2 : index
    %c0_323 = arith.constant 0 : index
    %315 = vector.load %arg16[%c3_321, %c2_322, %c0_323] : memref<4x4x16xf32, #tpu.memory_space<vmem>>, vector<1x1x16xf32>
    %316 = vector.shape_cast %315 : vector<1x1x16xf32> to vector<1x16xf32>
    %317 = arith.truncf %316 : vector<1x16xf32> to vector<1x16xbf16>
    %c3_324 = arith.constant 3 : index
    %c2_325 = arith.constant 2 : index
    %c0_326 = arith.constant 0 : index
    %c0_327 = arith.constant 0 : index
    %318 = vector.load %arg6[%c3_324, %c2_325, %c0_326, %c0_327] : memref<4x4x16x128xbf16, #tpu.memory_space<vmem>>, vector<1x1x16x128xbf16>
    %319 = vector.shape_cast %318 : vector<1x1x16x128xbf16> to vector<16x128xbf16>
    %cst_328 = arith.constant dense<0.000000e+00> : vector<1x128xf32>
    %320 = tpu.matmul %317, %319, %cst_328 {dimension_numbers = #tpu.dot_dimension_numbers<[1], [0], [0], [1], [0, 0, 1, 1], [], []>} : vector<1x16xbf16>, vector<16x128xbf16>, vector<1x128xf32> -> vector<1x128xf32>
    %321 = arith.addf %314, %320 : vector<1x128xf32>
    %c3_329 = arith.constant 3 : index
    %c3_330 = arith.constant 3 : index
    %c0_331 = arith.constant 0 : index
    %322 = vector.load %arg16[%c3_329, %c3_330, %c0_331] : memref<4x4x16xf32, #tpu.memory_space<vmem>>, vector<1x1x16xf32>
    %323 = vector.shape_cast %322 : vector<1x1x16xf32> to vector<1x16xf32>
    %324 = arith.truncf %323 : vector<1x16xf32> to vector<1x16xbf16>
    %c3_332 = arith.constant 3 : index
    %c3_333 = arith.constant 3 : index
    %c0_334 = arith.constant 0 : index
    %c0_335 = arith.constant 0 : index
    %325 = vector.load %arg6[%c3_332, %c3_333, %c0_334, %c0_335] : memref<4x4x16x128xbf16, #tpu.memory_space<vmem>>, vector<1x1x16x128xbf16>
    %326 = vector.shape_cast %325 : vector<1x1x16x128xbf16> to vector<16x128xbf16>
    %cst_336 = arith.constant dense<0.000000e+00> : vector<1x128xf32>
    %327 = tpu.matmul %324, %326, %cst_336 {dimension_numbers = #tpu.dot_dimension_numbers<[1], [0], [0], [1], [0, 0, 1, 1], [], []>} : vector<1x16xbf16>, vector<16x128xbf16>, vector<1x128xf32> -> vector<1x128xf32>
    %328 = arith.addf %321, %327 : vector<1x128xf32>
    %c0_337 = arith.constant 0 : index
    %c0_338 = arith.constant 0 : index
    %329 = vector.load %arg7[%c0_337, %c0_338] : memref<3x128xf32, #tpu.memory_space<vmem>>, vector<1x128xf32>
    %330 = arith.addf %328, %329 : vector<1x128xf32>
    %cst_339 = arith.constant 0.000000e+00 : f32
    %331 = vector.broadcast %cst_339 : f32 to vector<1x128xf32>
    %332 = arith.maximumf %330, %331 : vector<1x128xf32>
    %333 = arith.truncf %332 : vector<1x128xf32> to vector<1x128xbf16>
    %c0_340 = arith.constant 0 : index
    %c0_341 = arith.constant 0 : index
    %334 = vector.load %arg8[%c0_340, %c0_341] : memref<128x128xbf16, #tpu.memory_space<vmem>>, vector<128x128xbf16>
    %cst_342 = arith.constant dense<0.000000e+00> : vector<1x128xf32>
    %335 = tpu.matmul %333, %334, %cst_342 {dimension_numbers = #tpu.dot_dimension_numbers<[1], [0], [0], [1], [0, 0, 1, 1], [], []>} : vector<1x128xbf16>, vector<128x128xbf16>, vector<1x128xf32> -> vector<1x128xf32>
    %c1_343 = arith.constant 1 : index
    %c0_344 = arith.constant 0 : index
    %336 = vector.load %arg7[%c1_343, %c0_344] : memref<3x128xf32, #tpu.memory_space<vmem>>, vector<1x128xf32>
    %337 = arith.addf %335, %336 : vector<1x128xf32>
    %cst_345 = arith.constant 0.000000e+00 : f32
    %338 = vector.broadcast %cst_345 : f32 to vector<1x128xf32>
    %339 = arith.maximumf %337, %338 : vector<1x128xf32>
    %340 = arith.truncf %339 : vector<1x128xf32> to vector<1x128xbf16>
    %c0_346 = arith.constant 0 : index
    %c0_347 = arith.constant 0 : index
    %341 = vector.load %arg9[%c0_346, %c0_347] : memref<128x128xbf16, #tpu.memory_space<vmem>>, vector<128x128xbf16>
    %cst_348 = arith.constant dense<0.000000e+00> : vector<1x128xf32>
    %342 = tpu.matmul %340, %341, %cst_348 {dimension_numbers = #tpu.dot_dimension_numbers<[1], [0], [0], [1], [0, 0, 1, 1], [], []>} : vector<1x128xbf16>, vector<128x128xbf16>, vector<1x128xf32> -> vector<1x128xf32>
    %c2_349 = arith.constant 2 : index
    %c0_350 = arith.constant 0 : index
    %343 = vector.load %arg7[%c2_349, %c0_350] : memref<3x128xf32, #tpu.memory_space<vmem>>, vector<1x128xf32>
    %344 = arith.addf %342, %343 : vector<1x128xf32>
    %345 = tpu.iota {dimensions = array<i32: 1>} : vector<1x128xi32>
    %c47_i32 = arith.constant 47 : i32
    %346 = vector.broadcast %c47_i32 : i32 to vector<1x128xi32>
    %347 = arith.cmpi slt, %345, %346 : vector<1x128xi32>
    %cst_351 = arith.constant -1.000000e+30 : f32
    %348 = vector.broadcast %cst_351 : f32 to vector<1x128xf32>
    %349 = arith.select %347, %344, %348 : vector<1x128xi1>, vector<1x128xf32>
    %cst_352 = arith.constant dense<0xFF800000> : vector<1xf32>
    %350 = vector.multi_reduction <maximumf>, %349, %cst_352 [1] : vector<1x128xf32> to vector<1xf32>
    %351 = vector.shape_cast %350 : vector<1xf32> to vector<1x1xf32>
    %352 = vector.broadcast %351 : vector<1x1xf32> to vector<1x128xf32>
    %353 = arith.subf %349, %352 : vector<1x128xf32>
    %354 = math.exp %353 : vector<1x128xf32>
    %cst_353 = arith.constant dense<0.000000e+00> : vector<1xf32>
    %355 = vector.multi_reduction <add>, %354, %cst_353 [1] : vector<1x128xf32> to vector<1xf32>
    %356 = vector.shape_cast %355 : vector<1xf32> to vector<1x1xf32>
    %357 = tpu.reciprocal %356 {approx = true} : vector<1x1xf32> -> vector<1x1xf32>
    %358 = arith.mulf %356, %357 : vector<1x1xf32>
    %cst_354 = arith.constant 2.000000e+00 : f32
    %359 = vector.broadcast %cst_354 : f32 to vector<1x1xf32>
    %360 = arith.subf %359, %358 : vector<1x1xf32>
    %361 = arith.mulf %357, %360 : vector<1x1xf32>
    %362 = vector.broadcast %361 : vector<1x1xf32> to vector<1x128xf32>
    %363 = arith.mulf %354, %362 : vector<1x128xf32>
    %364 = vector.shape_cast %363 : vector<1x128xf32> to vector<1x1x128xf32>
    %c0_355 = arith.constant 0 : index
    %c0_356 = arith.constant 0 : index
    %c0_357 = arith.constant 0 : index
    %365 = vector.load %arg10[%c0_355, %c0_356, %c0_357] : memref<1x1x128xf32, #tpu.memory_space<vmem>>, vector<1x1x128xf32>
    tpu.vector_store %arg10[%c0_355, %c0_356, %c0_357], %364 {strides = array<i32>} : memref<1x1x128xf32, #tpu.memory_space<vmem>>, vector<1x1x128xf32>,
    return
  }
  func.func @transform_0(%arg0: i32) -> (i32, i32, i32) {
    %c0_i32 = arith.constant 0 : i32
    %c0_i32_0 = arith.constant 0 : i32
    %c0_i32_1 = arith.constant 0 : i32
    return %arg0, %c0_i32, %c0_i32_0 : i32, i32, i32
  }
  func.func @transform_1(%arg0: i32) -> (i32, i32) {
    %c0_i32 = arith.constant 0 : i32
    %c0_i32_0 = arith.constant 0 : i32
    %c0_i32_1 = arith.constant 0 : i32
    return %c0_i32, %c0_i32_0 : i32, i32
  }
  func.func @transform_2(%arg0: i32) -> (i32, i32) {
    %c0_i32 = arith.constant 0 : i32
    %c0_i32_0 = arith.constant 0 : i32
    %c0_i32_1 = arith.constant 0 : i32
    return %c0_i32, %c0_i32_0 : i32, i32
  }
  func.func @transform_3(%arg0: i32) -> (i32, i32, i32) {
    %c0_i32 = arith.constant 0 : i32
    %c0_i32_0 = arith.constant 0 : i32
    %c0_i32_1 = arith.constant 0 : i32
    %c0_i32_2 = arith.constant 0 : i32
    return %c0_i32, %c0_i32_0, %c0_i32_1 : i32, i32, i32
  }
  func.func @transform_4(%arg0: i32) -> (i32, i32) {
    %c0_i32 = arith.constant 0 : i32
    %c0_i32_0 = arith.constant 0 : i32
    %c0_i32_1 = arith.constant 0 : i32
    return %c0_i32, %c0_i32_0 : i32, i32
  }
  func.func @transform_5(%arg0: i32) -> (i32, i32, i32, i32) {
    %c0_i32 = arith.constant 0 : i32
    %c0_i32_0 = arith.constant 0 : i32
    %c0_i32_1 = arith.constant 0 : i32
    %c0_i32_2 = arith.constant 0 : i32
    %c0_i32_3 = arith.constant 0 : i32
    return %c0_i32, %c0_i32_0, %c0_i32_1, %c0_i32_2 : i32, i32, i32, i32
  }
  func.func @transform_6(%arg0: i32) -> (i32, i32) {
    %c0_i32 = arith.constant 0 : i32
    %c0_i32_0 = arith.constant 0 : i32
    %c0_i32_1 = arith.constant 0 : i32
    return %c0_i32, %c0_i32_0 : i32, i32
  }
  func.func @transform_7(%arg0: i32) -> (i32, i32) {
    %c0_i32 = arith.constant 0 : i32
    %c0_i32_0 = arith.constant 0 : i32
    %c0_i32_1 = arith.constant 0 : i32
    return %c0_i32, %c0_i32_0 : i32, i32
  }
  func.func @transform_8(%arg0: i32) -> (i32, i32) {
    %c0_i32 = arith.constant 0 : i32
    %c0_i32_0 = arith.constant 0 : i32
    %c0_i32_1 = arith.constant 0 : i32
    return %c0_i32, %c0_i32_0 : i32, i32
  }
  func.func @transform_9(%arg0: i32) -> (i32, i32, i32) {
    %c0_i32 = arith.constant 0 : i32
    %c0_i32_0 = arith.constant 0 : i32
    %c0_i32_1 = arith.constant 0 : i32
    return %arg0, %c0_i32, %c0_i32_0 : i32, i32, i32
  }
}

</mosaic_0001>

<llo_original>
// kernel: lenet5_forward.1
$region0: #{lenet5_forward.1}
  #allocation0 [shape = 'u32[]', space=smem, size = 0x4, offset = 0x4, fixed_abs, tag = 'smem constant byte address 0x4 - core index']
  #allocation1 [shape = 'u32[144,128]{1,0:T(1,128)}', space=vmem, size = 0x12000, scoped, tag = 'internal scratch']
  #allocation2 [shape = 'f32[24,24,8]{2,1,0:T(8,128)}', space=vmem, size = 0x48000, scoped, tag = 'scratch operand']
  #allocation3 [shape = 'f32[12,24,8]{2,1,0:T(8,128)}', space=vmem, size = 0x24000, scoped, tag = 'scratch operand']
  #allocation4 [shape = 'f32[12,12,8]{2,1,0:T(8,128)}', space=vmem, size = 0x18000, scoped, tag = 'scratch operand']
  #allocation5 [shape = 'f32[8,8,16]{2,1,0:T(8,128)}', space=vmem, size = 0x8000, scoped, tag = 'scratch operand']
  #allocation6 [shape = 'f32[4,8,16]{2,1,0:T(8,128)}', space=vmem, size = 0x4000, scoped, tag = 'scratch operand']
  #allocation7 [shape = 'f32[4,4,16]{2,1,0:T(4,128)}', space=vmem, size = 0x2000, scoped, tag = 'scratch operand']
  %s0 = inlined_call_operand.vmem [shape: bf16[2,576,32], index: 0, kind: input, shape index: {}]
  %s1 = inlined_call_operand.vmem [shape: bf16[32,8], index: 1, kind: input, shape index: {}]
  %s2 = inlined_call_operand.vmem [shape: f32[2,8], index: 2, kind: input, shape index: {}]
  %s3 = inlined_call_operand.vmem [shape: bf16[25,8,16], index: 3, kind: input, shape index: {}]
  %s4 = inlined_call_operand.vmem [shape: f32[2,16], index: 4, kind: input, shape index: {}]
  %s5 = inlined_call_operand.vmem [shape: bf16[4,4,16,128], index: 5, kind: input, shape index: {}]
  %s6 = inlined_call_operand.vmem [shape: f32[3,128], index: 6, kind: input, shape index: {}]
  %s7 = inlined_call_operand.vmem [shape: bf16[128,128], index: 7, kind: input, shape index: {}]
  %s8 = inlined_call_operand.vmem [shape: bf16[128,128], index: 8, kind: input, shape index: {}]
  %s9 = inlined_call_operand.hbm [shape: f32[2,1,128], index: 9, kind: output, shape index: {}]
  %s10 = sld [smem:[#allocation0]]
  $region69: #{lenet5_forward.1} parent=0
    _
  %s12 = ssub.s32 1, %s10
  %s13 = scalar_select 0, %s12, %s10
  $region1: #{lenet5_forward.1} parent=0
    #allocation8 [shape = 'u8[1024]{0}', space=vmem, size = 0x400, scoped, tag = 'output window, operand 0']
    #allocation9 [shape = 's32[2]{0}', space=sflag, size = 0x8, scoped, tag = 'scoped memory for lenet5_forward.1']
    %14 = vsyncpa [#allocation9], 0
    %s15 = scalar_lea.sflag [#allocation9], 1
    %16 = vsyncpa %s15, 0
    loop: start=0, step=1, limit=4
    $region2: #{lenet5_forward.1} parent=1 // loop_pre_header
      _
    $region3: #{lenet5_forward.1} parent=1 // loop_header
      %s18 = sphi 0, %s22
      %p19 = scmp.ge.s32.totalorder %s18, 4
      %s28 = sphi 0, %s30
      %s31 = sphi 0, %s28
      %s32 = sphi 0, %s31
      %s48 = sphi 0, %s32
      %s52 = sphi 0, %s52
      %s54 = sphi 0, %s52
      %s55 = sphi 0, %s54
      %s69 = sphi 0, %s55
      %s73 = sphi 0, %s73
      %s75 = sphi 0, %s73
      %s76 = sphi 0, %s75
      %s90 = sphi 0, %s76
      %s94 = sphi 0, %s94
      %s96 = sphi 0, %s94
      %s97 = sphi 0, %s96
      %s111 = sphi 0, %s97
      %s115 = sphi 0, %s115
      %s117 = sphi 0, %s115
      %s118 = sphi 0, %s117
      %s132 = sphi 0, %s118
      %s136 = sphi 0, %s136
      %s138 = sphi 0, %s136
      %s139 = sphi 0, %s138
      %s153 = sphi 0, %s139
      %s157 = sphi 0, %s157
      %s159 = sphi 0, %s157
      %s160 = sphi 0, %s159
      %s174 = sphi 0, %s160
      %s178 = sphi 0, %s178
      %s180 = sphi 0, %s178
      %s181 = sphi 0, %s180
      %s195 = sphi 0, %s181
      %s199 = sphi 0, %s199
      %s201 = sphi 0, %s199
      %s202 = sphi 0, %s201
      %s216 = sphi 0, %s202
      %s222 = sphi 0, %s224
      %s225 = sphi 0, %s222
      %s226 = sphi 0, %s225
      %s242 = sphi 0, %s226
    $region4: #{lenet5_forward.1} parent=1 // loop_header_branch
      %21 = sbr.rel (%p19) target = $region8
    $region5: #{lenet5_forward.1} parent=1 // loop_body
      %s23 = ssub.s32 %s18, 1
      %s24 = ssub.s32 %s18, 2
      %s25 = sadd.s32 %s18, 1
      %s26 = ssub.s32 %s18, %s25
      %p27 = scmp.eq.s32.totalorder %s26, 0
      %s29 = sadd.s32 %s28, 1
      %s30 = scalar_select %p27, %s28, %s29
      %p33 = pneg %p27
      %p34 = scmp.eq.s32.totalorder %s18, 1
      %p35 = por %p33, %p34
      %p36 = scmp.ne.s32.totalorder %s28, %s31
      %p37 = scmp.eq.s32.totalorder %s18, 0
      %p38 = por %p36, %p37
      %p39 = scmp.ne.s32.totalorder %s28, %s31
      %p40 = scmp.eq.s32.totalorder %s23, 1
      %p41 = por %p39, %p40
      %p42 = scmp.ne.s32.totalorder %s31, %s32
      %p43 = scmp.eq.s32.totalorder %s23, 0
      %p44 = por %p42, %p43
      %p45 = scmp.ne.s32.totalorder %s31, %s32
      %p46 = scmp.eq.s32.totalorder %s24, 1
      %p47 = por %p45, %p46
      %p49 = scmp.ne.s32.totalorder %s32, %s48
      %p50 = scmp.eq.s32.totalorder %s24, 0
      %p51 = por %p49, %p50
      %s53 = sadd.s32 %s52, 1
      %p56 = scmp.eq.s32.totalorder %s18, 1
      %p57 = scmp.ne.s32.totalorder %s52, %s54
      %p58 = scmp.eq.s32.totalorder %s18, 0
      %p59 = por %p57, %p58
      %p60 = scmp.ne.s32.totalorder %s52, %s54
      %p61 = scmp.eq.s32.totalorder %s23, 1
      %p62 = por %p60, %p61
      %p63 = scmp.ne.s32.totalorder %s54, %s55
      %p64 = scmp.eq.s32.totalorder %s23, 0
      %p65 = por %p63, %p64
      %p66 = scmp.ne.s32.totalorder %s54, %s55
      %p67 = scmp.eq.s32.totalorder %s24, 1
      %p68 = por %p66, %p67
      %p70 = scmp.ne.s32.totalorder %s55, %s69
      %p71 = scmp.eq.s32.totalorder %s24, 0
      %p72 = por %p70, %p71
      %s74 = sadd.s32 %s73, 1
      %p77 = scmp.eq.s32.totalorder %s18, 1
      %p78 = scmp.ne.s32.totalorder %s73, %s75
      %p79 = scmp.eq.s32.totalorder %s18, 0
      %p80 = por %p78, %p79
      %p81 = scmp.ne.s32.totalorder %s73, %s75
      %p82 = scmp.eq.s32.totalorder %s23, 1
      %p83 = por %p81, %p82
      %p84 = scmp.ne.s32.totalorder %s75, %s76
      %p85 = scmp.eq.s32.totalorder %s23, 0
      %p86 = por %p84, %p85
      %p87 = scmp.ne.s32.totalorder %s75, %s76
      %p88 = scmp.eq.s32.totalorder %s24, 1
      %p89 = por %p87, %p88
      %p91 = scmp.ne.s32.totalorder %s76, %s90
      %p92 = scmp.eq.s32.totalorder %s24, 0
      %p93 = por %p91, %p92
      %s95 = sadd.s32 %s94, 1
      %p98 = scmp.eq.s32.totalorder %s18, 1
      %p99 = scmp.ne.s32.totalorder %s94, %s96
      %p100 = scmp.eq.s32.totalorder %s18, 0
      %p101 = por %p99, %p100
      %p102 = scmp.ne.s32.totalorder %s94, %s96
      %p103 = scmp.eq.s32.totalorder %s23, 1
      %p104 = por %p102, %p103
      %p105 = scmp.ne.s32.totalorder %s96, %s97
      %p106 = scmp.eq.s32.totalorder %s23, 0
      %p107 = por %p105, %p106
      %p108 = scmp.ne.s32.totalorder %s96, %s97
      %p109 = scmp.eq.s32.totalorder %s24, 1
      %p110 = por %p108, %p109
      %p112 = scmp.ne.s32.totalorder %s97, %s111
      %p113 = scmp.eq.s32.totalorder %s24, 0
      %p114 = por %p112, %p113
      %s116 = sadd.s32 %s115, 1
      %p119 = scmp.eq.s32.totalorder %s18, 1
      %p120 = scmp.ne.s32.totalorder %s115, %s117
      %p121 = scmp.eq.s32.totalorder %s18, 0
      %p122 = por %p120, %p121
      %p123 = scmp.ne.s32.totalorder %s115, %s117
      %p124 = scmp.eq.s32.totalorder %s23, 1
      %p125 = por %p123, %p124
      %p126 = scmp.ne.s32.totalorder %s117, %s118
      %p127 = scmp.eq.s32.totalorder %s23, 0
      %p128 = por %p126, %p127
      %p129 = scmp.ne.s32.totalorder %s117, %s118
      %p130 = scmp.eq.s32.totalorder %s24, 1
      %p131 = por %p129, %p130
      %p133 = scmp.ne.s32.totalorder %s118, %s132
      %p134 = scmp.eq.s32.totalorder %s24, 0
      %p135 = por %p133, %p134
      %s137 = sadd.s32 %s136, 1
      %p140 = scmp.eq.s32.totalorder %s18, 1
      %p141 = scmp.ne.s32.totalorder %s136, %s138
      %p142 = scmp.eq.s32.totalorder %s18, 0
      %p143 = por %p141, %p142
      %p144 = scmp.ne.s32.totalorder %s136, %s138
      %p145 = scmp.eq.s32.totalorder %s23, 1
      %p146 = por %p144, %p145
      %p147 = scmp.ne.s32.totalorder %s138, %s139
      %p148 = scmp.eq.s32.totalorder %s23, 0
      %p149 = por %p147, %p148
      %p150 = scmp.ne.s32.totalorder %s138, %s139
      %p151 = scmp.eq.s32.totalorder %s24, 1
      %p152 = por %p150, %p151
      %p154 = scmp.ne.s32.totalorder %s139, %s153
      %p155 = scmp.eq.s32.totalorder %s24, 0
      %p156 = por %p154, %p155
      %s158 = sadd.s32 %s157, 1
      %p161 = scmp.eq.s32.totalorder %s18, 1
      %p162 = scmp.ne.s32.totalorder %s157, %s159
      %p163 = scmp.eq.s32.totalorder %s18, 0
      %p164 = por %p162, %p163
      %p165 = scmp.ne.s32.totalorder %s157, %s159
      %p166 = scmp.eq.s32.totalorder %s23, 1
      %p167 = por %p165, %p166
      %p168 = scmp.ne.s32.totalorder %s159, %s160
      %p169 = scmp.eq.s32.totalorder %s23, 0
      %p170 = por %p168, %p169
      %p171 = scmp.ne.s32.totalorder %s159, %s160
      %p172 = scmp.eq.s32.totalorder %s24, 1
      %p173 = por %p171, %p172
      %p175 = scmp.ne.s32.totalorder %s160, %s174
      %p176 = scmp.eq.s32.totalorder %s24, 0
      %p177 = por %p175, %p176
      %s179 = sadd.s32 %s178, 1
      %p182 = scmp.eq.s32.totalorder %s18, 1
      %p183 = scmp.ne.s32.totalorder %s178, %s180
      %p184 = scmp.eq.s32.totalorder %s18, 0
      %p185 = por %p183, %p184
      %p186 = scmp.ne.s32.totalorder %s178, %s180
      %p187 = scmp.eq.s32.totalorder %s23, 1
      %p188 = por %p186, %p187
      %p189 = scmp.ne.s32.totalorder %s180, %s181
      %p190 = scmp.eq.s32.totalorder %s23, 0
      %p191 = por %p189, %p190
      %p192 = scmp.ne.s32.totalorder %s180, %s181
      %p193 = scmp.eq.s32.totalorder %s24, 1
      %p194 = por %p192, %p193
      %p196 = scmp.ne.s32.totalorder %s181, %s195
      %p197 = scmp.eq.s32.totalorder %s24, 0
      %p198 = por %p196, %p197
      %s200 = sadd.s32 %s199, 1
      %p203 = scmp.eq.s32.totalorder %s18, 1
      %p204 = scmp.ne.s32.totalorder %s199, %s201
      %p205 = scmp.eq.s32.totalorder %s18, 0
      %p206 = por %p204, %p205
      %p207 = scmp.ne.s32.totalorder %s199, %s201
      %p208 = scmp.eq.s32.totalorder %s23, 1
      %p209 = por %p207, %p208
      %p210 = scmp.ne.s32.totalorder %s201, %s202
      %p211 = scmp.eq.s32.totalorder %s23, 0
      %p212 = por %p210, %p211
      %p213 = scmp.ne.s32.totalorder %s201, %s202
      %p214 = scmp.eq.s32.totalorder %s24, 1
      %p215 = por %p213, %p214
      %p217 = scmp.ne.s32.totalorder %s202, %s216
      %p218 = scmp.eq.s32.totalorder %s24, 0
      %p219 = por %p217, %p218
      %s220 = ssub.s32 %s18, %s25
      %p221 = scmp.eq.s32.totalorder %s220, 0
      %s223 = sadd.s32 %s222, 1
      %s224 = scalar_select %p221, %s222, %s223
      %p227 = pneg %p221
      %p228 = scmp.eq.s32.totalorder %s18, 1
      %p229 = por %p227, %p228
      %p230 = scmp.ne.s32.totalorder %s222, %s225
      %p231 = scmp.eq.s32.totalorder %s18, 0
      %p232 = por %p230, %p231
      %p233 = scmp.ne.s32.totalorder %s222, %s225
      %p234 = scmp.eq.s32.totalorder %s23, 1
      %p235 = por %p233, %p234
      %p236 = scmp.ne.s32.totalorder %s225, %s226
      %p237 = scmp.eq.s32.totalorder %s23, 0
      %p238 = por %p236, %p237
      %p239 = scmp.ne.s32.totalorder %s225, %s226
      %p240 = scmp.eq.s32.totalorder %s24, 1
      %p241 = por %p239, %p240
      %p243 = scmp.ne.s32.totalorder %s226, %s242
      %p244 = scmp.eq.s32.totalorder %s24, 0
      %p245 = por %p243, %p244
      %p246 = scmp.le.s32.totalorder 1, %s18
      %p247 = scmp.lt.s32.totalorder %s18, 3
      %p248 = pnand %p246, %p247
      %p249 = pneg %p248
      // Predicated region
      $region9: #{lenet5_forward.1} parent=5 // pred_check
        _
      $region10: #{lenet5_forward.1} parent=5 // pred_check_branch
        %251 = sbr.rel (%p248) target = $region12
      $region11: #{lenet5_forward.1} parent=5 // pred_region
        %s252 = ssub.s32 %s18, 1
        // Predicated region
        $region13: #{lenet5_forward.1} parent=11 // pred_check
          %p253 = pneg %p65
        $region14: #{lenet5_forward.1} parent=11 // pred_check_branch
          %255 = sbr.rel (%p253) target = $region16
        $region15: #{lenet5_forward.1} parent=11 // pred_region
          _
        $region16: #{lenet5_forward.1} parent=11 // pred_fallthru
          _
        // Predicated region
        $region17: #{lenet5_forward.1} parent=11 // pred_check
          %p256 = pneg %p86
        $region18: #{lenet5_forward.1} parent=11 // pred_check_branch
          %258 = sbr.rel (%p256) target = $region20
        $region19: #{lenet5_forward.1} parent=11 // pred_region
          _
        $region20: #{lenet5_forward.1} parent=11 // pred_fallthru
          _
        // Predicated region
        $region21: #{lenet5_forward.1} parent=11 // pred_check
          %p259 = pneg %p107
        $region22: #{lenet5_forward.1} parent=11 // pred_check_branch
          %261 = sbr.rel (%p259) target = $region24
        $region23: #{lenet5_forward.1} parent=11 // pred_region
          _
        $region24: #{lenet5_forward.1} parent=11 // pred_fallthru
          _
        // Predicated region
        $region25: #{lenet5_forward.1} parent=11 // pred_check
          %p262 = pneg %p128
        $region26: #{lenet5_forward.1} parent=11 // pred_check_branch
          %264 = sbr.rel (%p262) target = $region28
        $region27: #{lenet5_forward.1} parent=11 // pred_region
          _
        $region28: #{lenet5_forward.1} parent=11 // pred_fallthru
          _
        // Predicated region
        $region29: #{lenet5_forward.1} parent=11 // pred_check
          %p265 = pneg %p149
        $region30: #{lenet5_forward.1} parent=11 // pred_check_branch
          %267 = sbr.rel (%p265) target = $region32
        $region31: #{lenet5_forward.1} parent=11 // pred_region
          _
        $region32: #{lenet5_forward.1} parent=11 // pred_fallthru
          _
        // Predicated region
        $region33: #{lenet5_forward.1} parent=11 // pred_check
          %p268 = pneg %p170
        $region34: #{lenet5_forward.1} parent=11 // pred_check_branch
          %270 = sbr.rel (%p268) target = $region36
        $region35: #{lenet5_forward.1} parent=11 // pred_region
          _
        $region36: #{lenet5_forward.1} parent=11 // pred_fallthru
          _
        // Predicated region
        $region37: #{lenet5_forward.1} parent=11 // pred_check
          %p271 = pneg %p191
        $region38: #{lenet5_forward.1} parent=11 // pred_check_branch
          %273 = sbr.rel (%p271) target = $region40
        $region39: #{lenet5_forward.1} parent=11 // pred_region
          _
        $region40: #{lenet5_forward.1} parent=11 // pred_fallthru
          _
        // Predicated region
        $region41: #{lenet5_forward.1} parent=11 // pred_check
          %p274 = pneg %p212
        $region42: #{lenet5_forward.1} parent=11 // pred_check_branch
          %276 = sbr.rel (%p274) target = $region44
        $region43: #{lenet5_forward.1} parent=11 // pred_region
          _
        $region44: #{lenet5_forward.1} parent=11 // pred_fallthru
          _
      $region12: #{lenet5_forward.1} parent=5 // pred_fallthru
        _
      %p277 = scmp.lt.s32.totalorder %s18, 2
      // Predicated region
      $region45: #{lenet5_forward.1} parent=5 // pred_check
        %p278 = pneg %p277
      $region46: #{lenet5_forward.1} parent=5 // pred_check_branch
        %280 = sbr.rel (%p278) target = $region48
      $region47: #{lenet5_forward.1} parent=5 // pred_region
        // Predicated region
        $region49: #{lenet5_forward.1} parent=47 // pred_check
          %p281 = pneg %p38
        $region50: #{lenet5_forward.1} parent=47 // pred_check_branch
          %283 = sbr.rel (%p281) target = $region52
        $region51: #{lenet5_forward.1} parent=47 // pred_region
          %p284 = scmp.lt.s32.totalorder %s18, 1
          %s285 = scalar_select %p284, %s18, 1
          %s286 = smul.addr %s285, 72
          %s287 = smul.addr %s286, 4
          %s288 = scalar_lea.vmem %s0, %s287
        $region52: #{lenet5_forward.1} parent=47 // pred_fallthru
          _
      $region48: #{lenet5_forward.1} parent=5 // pred_fallthru
        _
      %p289 = scmp.le.s32.totalorder 1, %s18
      %p290 = scmp.lt.s32.totalorder %s18, 3
      %p291 = pnand %p289, %p290
      %p292 = pneg %p291
      // Predicated region
      $region53: #{lenet5_forward.1} parent=5 // pred_check
        _
      $region54: #{lenet5_forward.1} parent=5 // pred_check_branch
        %294 = sbr.rel (%p291) target = $region56
      $region55: #{lenet5_forward.1} parent=5 // pred_region
        %s295 = ssub.s32 %s18, 1
        %p296 = scmp.lt.s32.totalorder %s23, 1
        %s297 = scalar_select %p296, %s23, 1
        %s298 = smul.addr %s297, 72
        %s299 = smul.addr %s298, 4
        %s300 = scalar_lea.vmem %s0, %s299
        %p301 = pneg %p44
        %p302 = pneg %p41
        %p303 = pneg %p65
        %p304 = pneg %p62
        %p305 = pneg %p86
        %p306 = pneg %p83
        %p307 = pneg %p107
        %p308 = pneg %p104
        %p309 = pneg %p128
        %p310 = pneg %p125
        %p311 = pneg %p149
        %p312 = pneg %p146
        %p313 = pneg %p170
        %p314 = pneg %p167
        %p315 = pneg %p191
        %p316 = pneg %p188
        %p317 = pneg %p212
        %p318 = pneg %p209
        %p319 = pneg %p238
        %p320 = pneg %p235
        %s321 = sand.u32 %s225, 1
        %s322 = scalar_lea.sflag [#allocation9], %s321
        %s323 = sand.u32 %s225, 1
        %s324 = scalar_lea.vmem [#allocation8], %s323
        %p325 = scmp.lt.s32.totalorder %s23, 1
        %s326 = scalar_select %p325, %s23, 1
        %s327 = smul.addr %s326, 72
        %s328 = smul.addr %s327, 4
        %s329 = scalar_lea.vmem %s0, %s328
        %v331 = vld [vmem:[%s329] sm:$0xf]
        %v332 = vld [vmem:[%s329 + $0x4] sm:$0xf]
        %v333 = vld [vmem:[%s329 + $0x8] sm:$0xf]
        %v334 = vld [vmem:[%s329 + $0xc] sm:$0xf]
        %v335 = vld [vmem:[%s329 + $0x10] sm:$0xf]
        %v336 = vld [vmem:[%s329 + $0x14] sm:$0xf]
        %v337 = vld [vmem:[%s329 + $0x18] sm:$0xf]
        %v338 = vld [vmem:[%s329 + $0x1c] sm:$0xf]
        %v339 = vld [vmem:[%s329 + $0x20] sm:$0xf]
        %v340 = vld [vmem:[%s329 + $0x24] sm:$0xf]
        %v341 = vld [vmem:[%s329 + $0x28] sm:$0xf]
        %v342 = vld [vmem:[%s329 + $0x2c] sm:$0xf]
        %v343 = vld [vmem:[%s329 + $0x30] sm:$0xf]
        %v344 = vld [vmem:[%s329 + $0x34] sm:$0xf]
        %v345 = vld [vmem:[%s329 + $0x38] sm:$0xf]
        %v346 = vld [vmem:[%s329 + $0x3c] sm:$0xf]
        %v347 = vld [vmem:[%s329 + $0x40] sm:$0xf]
        %v348 = vld [vmem:[%s329 + $0x44] sm:$0xf]
        %v349 = vld [vmem:[%s329 + $0x48] sm:$0xf]
        %v350 = vld [vmem:[%s329 + $0x4c] sm:$0xf]
        %v351 = vld [vmem:[%s329 + $0x50] sm:$0xf]
        %v352 = vld [vmem:[%s329 + $0x54] sm:$0xf]
        %v353 = vld [vmem:[%s329 + $0x58] sm:$0xf]
        %v354 = vld [vmem:[%s329 + $0x5c] sm:$0xf]
        %v355 = vld [vmem:[%s329 + $0x60] sm:$0xf]
        %v356 = vld [vmem:[%s329 + $0x64] sm:$0xf]
        %v357 = vld [vmem:[%s329 + $0x68] sm:$0xf]
        %v358 = vld [vmem:[%s329 + $0x6c] sm:$0xf]
        %v359 = vld [vmem:[%s329 + $0x70] sm:$0xf]
        %v360 = vld [vmem:[%s329 + $0x74] sm:$0xf]
        %v361 = vld [vmem:[%s329 + $0x78] sm:$0xf]
        %v362 = vld [vmem:[%s329 + $0x7c] sm:$0xf]
        %v363 = vld [vmem:[%s329 + $0x80] sm:$0xf]
        %v364 = vld [vmem:[%s329 + $0x84] sm:$0xf]
        %v365 = vld [vmem:[%s329 + $0x88] sm:$0xf]
        %v366 = vld [vmem:[%s329 + $0x8c] sm:$0xf]
        %v367 = vld [vmem:[%s329 + $0x90] sm:$0xf]
        %v368 = vld [vmem:[%s329 + $0x94] sm:$0xf]
        %v369 = vld [vmem:[%s329 + $0x98] sm:$0xf]
        %v370 = vld [vmem:[%s329 + $0x9c] sm:$0xf]
        %v371 = vld [vmem:[%s329 + $0xa0] sm:$0xf]
        %v372 = vld [vmem:[%s329 + $0xa4] sm:$0xf]
        %v373 = vld [vmem:[%s329 + $0xa8] sm:$0xf]
        %v374 = vld [vmem:[%s329 + $0xac] sm:$0xf]
        %v375 = vld [vmem:[%s329 + $0xb0] sm:$0xf]
        %v376 = vld [vmem:[%s329 + $0xb4] sm:$0xf]
        %v377 = vld [vmem:[%s329 + $0xb8] sm:$0xf]
        %v378 = vld [vmem:[%s329 + $0xbc] sm:$0xf]
        %v379 = vld [vmem:[%s329 + $0xc0] sm:$0xf]
        %v380 = vld [vmem:[%s329 + $0xc4] sm:$0xf]
        %v381 = vld [vmem:[%s329 + $0xc8] sm:$0xf]
        %v382 = vld [vmem:[%s329 + $0xcc] sm:$0xf]
        %v383 = vld [vmem:[%s329 + $0xd0] sm:$0xf]
        %v384 = vld [vmem:[%s329 + $0xd4] sm:$0xf]
        %v385 = vld [vmem:[%s329 + $0xd8] sm:$0xf]
        %v386 = vld [vmem:[%s329 + $0xdc] sm:$0xf]
        %v387 = vld [vmem:[%s329 + $0xe0] sm:$0xf]
        %v388 = vld [vmem:[%s329 + $0xe4] sm:$0xf]
        %v389 = vld [vmem:[%s329 + $0xe8] sm:$0xf]
        %v390 = vld [vmem:[%s329 + $0xec] sm:$0xf]
        %v391 = vld [vmem:[%s329 + $0xf0] sm:$0xf]
        %v392 = vld [vmem:[%s329 + $0xf4] sm:$0xf]
        %v393 = vld [vmem:[%s329 + $0xf8] sm:$0xf]
        %v394 = vld [vmem:[%s329 + $0xfc] sm:$0xf]
        %v395 = vld [vmem:[%s329 + $0x100] sm:$0xf]
        %v396 = vld [vmem:[%s329 + $0x104] sm:$0xf]
        %v397 = vld [vmem:[%s329 + $0x108] sm:$0xf]
        %v398 = vld [vmem:[%s329 + $0x10c] sm:$0xf]
        %v399 = vld [vmem:[%s329 + $0x110] sm:$0xf]
        %v400 = vld [vmem:[%s329 + $0x114] sm:$0xf]
        %v401 = vld [vmem:[%s329 + $0x118] sm:$0xf]
        %v402 = vld [vmem:[%s329 + $0x11c] sm:$0xf]
        %v403 = vld [vmem:[%s1] sm:$0xf]
        %v404 = vld [vmem:[%s1 + $0x4] sm:$0xf]
        %v405 = vld [vmem:[%s1 + $0x8] sm:$0xf]
        %v406 = vld [vmem:[%s1 + $0xc] sm:$0xf]
        %v479 = vunpack.c.l.b16 %v331
        %v480 = vunpack.c.l.b16 %v332
        %v481 = vunpack.c.l.b16 %v333
        %v482 = vunpack.c.l.b16 %v334
        %v483 = vunpack.c.l.b16 %v335
        %v484 = vunpack.c.l.b16 %v336
        %v485 = vunpack.c.l.b16 %v337
        %v486 = vunpack.c.l.b16 %v338
        %v487 = vunpack.c.l.b16 %v339
        %v488 = vunpack.c.l.b16 %v340
        %v489 = vunpack.c.l.b16 %v341
        %v490 = vunpack.c.l.b16 %v342
        %v491 = vunpack.c.l.b16 %v343
        %v492 = vunpack.c.l.b16 %v344
        %v493 = vunpack.c.l.b16 %v345
        %v494 = vunpack.c.l.b16 %v346
        %v495 = vunpack.c.l.b16 %v347
        %v496 = vunpack.c.l.b16 %v348
        %v497 = vunpack.c.l.b16 %v349
        %v498 = vunpack.c.l.b16 %v350
        %v499 = vunpack.c.l.b16 %v351
        %v500 = vunpack.c.l.b16 %v352
        %v501 = vunpack.c.l.b16 %v353
        %v502 = vunpack.c.l.b16 %v354
        %v503 = vunpack.c.l.b16 %v355
        %v504 = vunpack.c.l.b16 %v356
        %v505 = vunpack.c.l.b16 %v357
        %v506 = vunpack.c.l.b16 %v358
        %v507 = vunpack.c.l.b16 %v359
        %v508 = vunpack.c.l.b16 %v360
        %v509 = vunpack.c.l.b16 %v361
        %v510 = vunpack.c.l.b16 %v362
        %v511 = vunpack.c.l.b16 %v363
        %v512 = vunpack.c.l.b16 %v364
        %v513 = vunpack.c.l.b16 %v365
        %v514 = vunpack.c.l.b16 %v366
        %v515 = vunpack.c.l.b16 %v367
        %v516 = vunpack.c.l.b16 %v368
        %v517 = vunpack.c.l.b16 %v369
        %v518 = vunpack.c.l.b16 %v370
        %v519 = vunpack.c.l.b16 %v371
        %v520 = vunpack.c.l.b16 %v372
        %v521 = vunpack.c.l.b16 %v373
        %v522 = vunpack.c.l.b16 %v374
        %v523 = vunpack.c.l.b16 %v375
        %v524 = vunpack.c.l.b16 %v376
        %v525 = vunpack.c.l.b16 %v377
        %v526 = vunpack.c.l.b16 %v378
        %v527 = vunpack.c.l.b16 %v379
        %v528 = vunpack.c.l.b16 %v380
        %v529 = vunpack.c.l.b16 %v381
        %v530 = vunpack.c.l.b16 %v382
        %v531 = vunpack.c.l.b16 %v383
        %v532 = vunpack.c.l.b16 %v384
        %v533 = vunpack.c.l.b16 %v385
        %v534 = vunpack.c.l.b16 %v386
        %v535 = vunpack.c.l.b16 %v387
        %v536 = vunpack.c.l.b16 %v388
        %v537 = vunpack.c.l.b16 %v389
        %v538 = vunpack.c.l.b16 %v390
        %v539 = vunpack.c.l.b16 %v391
        %v540 = vunpack.c.l.b16 %v392
        %v541 = vunpack.c.l.b16 %v393
        %v542 = vunpack.c.l.b16 %v394
        %v543 = vunpack.c.l.b16 %v395
        %v544 = vunpack.c.l.b16 %v396
        %v545 = vunpack.c.l.b16 %v397
        %v546 = vunpack.c.l.b16 %v398
        %v547 = vunpack.c.l.b16 %v399
        %v548 = vunpack.c.l.b16 %v400
        %v549 = vunpack.c.l.b16 %v401
        %v550 = vunpack.c.l.b16 %v402
        %v551 = vpack.c.b16 %v480, %v479
        %v552 = vpack.c.b16 %v482, %v481
        %v553 = vpack.c.b16 %v484, %v483
        %v554 = vpack.c.b16 %v486, %v485
        %v555 = vpack.c.b16 %v488, %v487
        %v556 = vpack.c.b16 %v490, %v489
        %v557 = vpack.c.b16 %v492, %v491
        %v558 = vpack.c.b16 %v494, %v493
        %v559 = vpack.c.b16 %v496, %v495
        %v560 = vpack.c.b16 %v498, %v497
        %v561 = vpack.c.b16 %v500, %v499
        %v562 = vpack.c.b16 %v502, %v501
        %v563 = vpack.c.b16 %v504, %v503
        %v564 = vpack.c.b16 %v506, %v505
        %v565 = vpack.c.b16 %v508, %v507
        %v566 = vpack.c.b16 %v510, %v509
        %v567 = vpack.c.b16 %v512, %v511
        %v568 = vpack.c.b16 %v514, %v513
        %v569 = vpack.c.b16 %v516, %v515
        %v570 = vpack.c.b16 %v518, %v517
        %v571 = vpack.c.b16 %v520, %v519
        %v572 = vpack.c.b16 %v522, %v521
        %v573 = vpack.c.b16 %v524, %v523
        %v574 = vpack.c.b16 %v526, %v525
        %v575 = vpack.c.b16 %v528, %v527
        %v576 = vpack.c.b16 %v530, %v529
        %v577 = vpack.c.b16 %v532, %v531
        %v578 = vpack.c.b16 %v534, %v533
        %v579 = vpack.c.b16 %v536, %v535
        %v580 = vpack.c.b16 %v538, %v537
        %v581 = vpack.c.b16 %v540, %v539
        %v582 = vpack.c.b16 %v542, %v541
        %v583 = vpack.c.b16 %v544, %v543
        %v584 = vpack.c.b16 %v546, %v545
        %v585 = vpack.c.b16 %v548, %v547
        %v586 = vpack.c.b16 %v550, %v549
        %v591 = vunpack.c.l.b16 %v403
        %v592 = vunpack.c.l.b16 %v404
        %v593 = vunpack.c.l.b16 %v405
        %v594 = vunpack.c.l.b16 %v406
        %v595 = vpack.c.b16 %v592, %v591
        %v596 = vpack.c.b16 %v594, %v593
        %vm599 = vcmask 261120
        %v601 = vsel %vm599, %v551, 0
        %v604 = vsel %vm599, %v552, 0
        %v607 = vsel %vm599, %v553, 0
        %v610 = vsel %vm599, %v554, 0
        %v613 = vsel %vm599, %v555, 0
        %v616 = vsel %vm599, %v556, 0
        %v619 = vsel %vm599, %v557, 0
        %v622 = vsel %vm599, %v558, 0
        %v625 = vsel %vm599, %v559, 0
        %v628 = vsel %vm599, %v560, 0
        %v631 = vsel %vm599, %v561, 0
        %v634 = vsel %vm599, %v562, 0
        %v637 = vsel %vm599, %v563, 0
        %v640 = vsel %vm599, %v564, 0
        %v643 = vsel %vm599, %v565, 0
        %v646 = vsel %vm599, %v566, 0
        %v649 = vsel %vm599, %v567, 0
        %v652 = vsel %vm599, %v568, 0
        %v655 = vsel %vm599, %v569, 0
        %v658 = vsel %vm599, %v570, 0
        %v661 = vsel %vm599, %v571, 0
        %v664 = vsel %vm599, %v572, 0
        %v667 = vsel %vm599, %v573, 0
        %v670 = vsel %vm599, %v574, 0
        %v673 = vsel %vm599, %v575, 0
        %v676 = vsel %vm599, %v576, 0
        %v679 = vsel %vm599, %v577, 0
        %v682 = vsel %vm599, %v578, 0
        %v685 = vsel %vm599, %v579, 0
        %v688 = vsel %vm599, %v580, 0
        %v691 = vsel %vm599, %v581, 0
        %v694 = vsel %vm599, %v582, 0
        %v697 = vsel %vm599, %v583, 0
        %v700 = vsel %vm599, %v584, 0
        %v703 = vsel %vm599, %v585, 0
        %v706 = vsel %vm599, %v586, 0
        %708 = vmatprep.subr.bf16.mxu0 0
        %709 = vmatpush1.bf16.msra.mxu0 %v595
        %710 = vmatprep.subr.bf16.mxu0 0
        %711 = vmatpush1.bf16.msra.mxu0 %v596
        %712 = vmatprep.subr.bf16.mxu0 0
        %713 = vmatpush1.bf16.msra.mxu0 0
        %714 = vmatprep.subr.bf16.mxu0 0
        %715 = vmatpush1.bf16.msra.mxu0 0
        %716 = vmatprep.subr.bf16.mxu0 0
        %717 = vmatpush1.bf16.msra.mxu0 0
        %718 = vmatprep.subr.bf16.mxu0 0
        %719 = vmatpush1.bf16.msra.mxu0 0
        %720 = vmatprep.subr.bf16.mxu0 0
        %721 = vmatpush1.bf16.msra.mxu0 0
        %722 = vmatprep.subr.bf16.mxu0 0
        %723 = vmatpush1.bf16.msra.mxu0 0
        %724 = vmatprep.subr.bf16.mxu0 0
        %725 = vmatpush1.bf16.msra.mxu0 0
        %726 = vmatprep.subr.bf16.mxu0 0
        %727 = vmatpush1.bf16.msra.mxu0 0
        %728 = vmatprep.subr.bf16.mxu0 0
        %729 = vmatpush1.bf16.msra.mxu0 0
        %730 = vmatprep.subr.bf16.mxu0 0
        %731 = vmatpush1.bf16.msra.mxu0 0
        %732 = vmatprep.subr.bf16.mxu0 0
        %733 = vmatpush1.bf16.msra.mxu0 0
        %734 = vmatprep.subr.bf16.mxu0 0
        %735 = vmatpush1.bf16.msra.mxu0 0
        %736 = vmatprep.subr.bf16.mxu0 0
        %737 = vmatpush1.bf16.msra.mxu0 0
        %738 = vmatprep.subr.bf16.mxu0 0
        %739 = vmatpush1.bf16.msra.mxu0 0
        %740 = vmatprep.mubr.bf16.mxu0 0
        %741 = vmatmul.mubr.bf16.gmra.mrb[0].mxu0 %v601
        %v742 = vpop.f32.mrb[0].mxu0
        %v743 = vadd.f32 0.0, %v742
        %v744 = vpop.f32.mrb[0].mxu0
        %v745 = vpop.f32.mrb[0].mxu0
        %v746 = vadd.f32 0.0, %v745
        %v747 = vpop.f32.mrb[0].mxu0
        %748 = vmatprep.mubr.bf16.mxu0 0
        %749 = vmatmul.mubr.bf16.gmra.mrb[0].mxu0 %v604
        %v750 = vpop.f32.mrb[0].mxu0
        %v751 = vadd.f32 0.0, %v750
        %v752 = vpop.f32.mrb[0].mxu0
        %v753 = vpop.f32.mrb[0].mxu0
        %v754 = vadd.f32 0.0, %v753
        %v755 = vpop.f32.mrb[0].mxu0
        %756 = vmatprep.mubr.bf16.mxu0 0
        %757 = vmatmul.mubr.bf16.gmra.mrb[0].mxu0 %v607
        %v758 = vpop.f32.mrb[0].mxu0
        %v759 = vadd.f32 0.0, %v758
        %v760 = vpop.f32.mrb[0].mxu0
        %v761 = vpop.f32.mrb[0].mxu0
        %v762 = vadd.f32 0.0, %v761
        %v763 = vpop.f32.mrb[0].mxu0
        %764 = vmatprep.mubr.bf16.mxu0 0
        %765 = vmatmul.mubr.bf16.gmra.mrb[0].mxu0 %v610
        %v766 = vpop.f32.mrb[0].mxu0
        %v767 = vadd.f32 0.0, %v766
        %v768 = vpop.f32.mrb[0].mxu0
        %v769 = vpop.f32.mrb[0].mxu0
        %v770 = vadd.f32 0.0, %v769
        %v771 = vpop.f32.mrb[0].mxu0
        %772 = vmatprep.mubr.bf16.mxu0 0
        %773 = vmatmul.mubr.bf16.gmra.mrb[0].mxu0 %v613
        %v774 = vpop.f32.mrb[0].mxu0
        %v775 = vadd.f32 0.0, %v774
        %v776 = vpop.f32.mrb[0].mxu0
        %v777 = vpop.f32.mrb[0].mxu0
        %v778 = vadd.f32 0.0, %v777
        %v779 = vpop.f32.mrb[0].mxu0
        %780 = vmatprep.mubr.bf16.mxu0 0
        %781 = vmatmul.mubr.bf16.gmra.mrb[0].mxu0 %v616
        %v782 = vpop.f32.mrb[0].mxu0
        %v783 = vadd.f32 0.0, %v782
        %v784 = vpop.f32.mrb[0].mxu0
        %v785 = vpop.f32.mrb[0].mxu0
        %v786 = vadd.f32 0.0, %v785
        %v787 = vpop.f32.mrb[0].mxu0
        %788 = vmatprep.mubr.bf16.mxu0 0
        %789 = vmatmul.mubr.bf16.gmra.mrb[0].mxu0 %v619
        %v790 = vpop.f32.mrb[0].mxu0
        %v791 = vadd.f32 0.0, %v790
        %v792 = vpop.f32.mrb[0].mxu0
        %v793 = vpop.f32.mrb[0].mxu0
        %v794 = vadd.f32 0.0, %v793
        %v795 = vpop.f32.mrb[0].mxu0
        %796 = vmatprep.mubr.bf16.mxu0 0
        %797 = vmatmul.mubr.bf16.gmra.mrb[0].mxu0 %v622
        %v798 = vpop.f32.mrb[0].mxu0
        %v799 = vadd.f32 0.0, %v798
        %v800 = vpop.f32.mrb[0].mxu0
        %v801 = vpop.f32.mrb[0].mxu0
        %v802 = vadd.f32 0.0, %v801
        %v803 = vpop.f32.mrb[0].mxu0
        %804 = vmatprep.mubr.bf16.mxu0 0
        %805 = vmatmul.mubr.bf16.gmra.mrb[0].mxu0 %v625
        %v806 = vpop.f32.mrb[0].mxu0
        %v807 = vadd.f32 0.0, %v806
        %v808 = vpop.f32.mrb[0].mxu0
        %v809 = vpop.f32.mrb[0].mxu0
        %v810 = vadd.f32 0.0, %v809
        %v811 = vpop.f32.mrb[0].mxu0
        %812 = vmatprep.mubr.bf16.mxu0 0
        %813 = vmatmul.mubr.bf16.gmra.mrb[0].mxu0 %v628
        %v814 = vpop.f32.mrb[0].mxu0
        %v815 = vadd.f32 0.0, %v814
        %v816 = vpop.f32.mrb[0].mxu0
        %v817 = vpop.f32.mrb[0].mxu0
        %v818 = vadd.f32 0.0, %v817
        %v819 = vpop.f32.mrb[0].mxu0
        %820 = vmatprep.mubr.bf16.mxu0 0
        %821 = vmatmul.mubr.bf16.gmra.mrb[0].mxu0 %v631
        %v822 = vpop.f32.mrb[0].mxu0
        %v823 = vadd.f32 0.0, %v822
        %v824 = vpop.f32.mrb[0].mxu0
        %v825 = vpop.f32.mrb[0].mxu0
        %v826 = vadd.f32 0.0, %v825
        %v827 = vpop.f32.mrb[0].mxu0
        %828 = vmatprep.mubr.bf16.mxu0 0
        %829 = vmatmul.mubr.bf16.gmra.mrb[0].mxu0 %v634
        %v830 = vpop.f32.mrb[0].mxu0
        %v831 = vadd.f32 0.0, %v830
        %v832 = vpop.f32.mrb[0].mxu0
        %v833 = vpop.f32.mrb[0].mxu0
        %v834 = vadd.f32 0.0, %v833
        %v835 = vpop.f32.mrb[0].mxu0
        %836 = vmatprep.mubr.bf16.mxu0 0
        %837 = vmatmul.mubr.bf16.gmra.mrb[0].mxu0 %v637
        %v838 = vpop.f32.mrb[0].mxu0
        %v839 = vadd.f32 0.0, %v838
        %v840 = vpop.f32.mrb[0].mxu0
        %v841 = vpop.f32.mrb[0].mxu0
        %v842 = vadd.f32 0.0, %v841
        %v843 = vpop.f32.mrb[0].mxu0
        %844 = vmatprep.mubr.bf16.mxu0 0
        %845 = vmatmul.mubr.bf16.gmra.mrb[0].mxu0 %v640
        %v846 = vpop.f32.mrb[0].mxu0
        %v847 = vadd.f32 0.0, %v846
        %v848 = vpop.f32.mrb[0].mxu0
        %v849 = vpop.f32.mrb[0].mxu0
        %v850 = vadd.f32 0.0, %v849
        %v851 = vpop.f32.mrb[0].mxu0
        %852 = vmatprep.mubr.bf16.mxu0 0
        %853 = vmatmul.mubr.bf16.gmra.mrb[0].mxu0 %v643
        %v854 = vpop.f32.mrb[0].mxu0
        %v855 = vadd.f32 0.0, %v854
        %v856 = vpop.f32.mrb[0].mxu0
        %v857 = vpop.f32.mrb[0].mxu0
        %v858 = vadd.f32 0.0, %v857
        %v859 = vpop.f32.mrb[0].mxu0
        %860 = vmatprep.mubr.bf16.mxu0 0
        %861 = vmatmul.mubr.bf16.gmra.mrb[0].mxu0 %v646
        %v862 = vpop.f32.mrb[0].mxu0
        %v863 = vadd.f32 0.0, %v862
        %v864 = vpop.f32.mrb[0].mxu0
        %v865 = vpop.f32.mrb[0].mxu0
        %v866 = vadd.f32 0.0, %v865
        %v867 = vpop.f32.mrb[0].mxu0
        %868 = vmatprep.mubr.bf16.mxu0 0
        %869 = vmatmul.mubr.bf16.gmra.mrb[0].mxu0 %v649
        %v870 = vpop.f32.mrb[0].mxu0
        %v871 = vadd.f32 0.0, %v870
        %v872 = vpop.f32.mrb[0].mxu0
        %v873 = vpop.f32.mrb[0].mxu0
        %v874 = vadd.f32 0.0, %v873
        %v875 = vpop.f32.mrb[0].mxu0
        %876 = vmatprep.mubr.bf16.mxu0 0
        %877 = vmatmul.mubr.bf16.gmra.mrb[0].mxu0 %v652
        %v878 = vpop.f32.mrb[0].mxu0
        %v879 = vadd.f32 0.0, %v878
        %v880 = vpop.f32.mrb[0].mxu0
        %v881 = vpop.f32.mrb[0].mxu0
        %v882 = vadd.f32 0.0, %v881
        %v883 = vpop.f32.mrb[0].mxu0
        %884 = vmatprep.mubr.bf16.mxu0 0
        %885 = vmatmul.mubr.bf16.gmra.mrb[0].mxu0 %v655
        %v886 = vpop.f32.mrb[0].mxu0
        %v887 = vadd.f32 0.0, %v886
        %v888 = vpop.f32.mrb[0].mxu0
        %v889 = vpop.f32.mrb[0].mxu0
        %v890 = vadd.f32 0.0, %v889
        %v891 = vpop.f32.mrb[0].mxu0
        %892 = vmatprep.mubr.bf16.mxu0 0
        %893 = vmatmul.mubr.bf16.gmra.mrb[0].mxu0 %v658
        %v894 = vpop.f32.mrb[0].mxu0
        %v895 = vadd.f32 0.0, %v894
        %v896 = vpop.f32.mrb[0].mxu0
        %v897 = vpop.f32.mrb[0].mxu0
        %v898 = vadd.f32 0.0, %v897
        %v899 = vpop.f32.mrb[0].mxu0
        %900 = vmatprep.mubr.bf16.mxu0 0
        %901 = vmatmul.mubr.bf16.gmra.mrb[0].mxu0 %v661
        %v902 = vpop.f32.mrb[0].mxu0
        %v903 = vadd.f32 0.0, %v902
        %v904 = vpop.f32.mrb[0].mxu0
        %v905 = vpop.f32.mrb[0].mxu0
        %v906 = vadd.f32 0.0, %v905
        %v907 = vpop.f32.mrb[0].mxu0
        %908 = vmatprep.mubr.bf16.mxu0 0
        %909 = vmatmul.mubr.bf16.gmra.mrb[0].mxu0 %v664
        %v910 = vpop.f32.mrb[0].mxu0
        %v911 = vadd.f32 0.0, %v910
        %v912 = vpop.f32.mrb[0].mxu0
        %v913 = vpop.f32.mrb[0].mxu0
        %v914 = vadd.f32 0.0, %v913
        %v915 = vpop.f32.mrb[0].mxu0
        %916 = vmatprep.mubr.bf16.mxu0 0
        %917 = vmatmul.mubr.bf16.gmra.mrb[0].mxu0 %v667
        %v918 = vpop.f32.mrb[0].mxu0
        %v919 = vadd.f32 0.0, %v918
        %v920 = vpop.f32.mrb[0].mxu0
        %v921 = vpop.f32.mrb[0].mxu0
        %v922 = vadd.f32 0.0, %v921
        %v923 = vpop.f32.mrb[0].mxu0
        %924 = vmatprep.mubr.bf16.mxu0 0
        %925 = vmatmul.mubr.bf16.gmra.mrb[0].mxu0 %v670
        %v926 = vpop.f32.mrb[0].mxu0
        %v927 = vadd.f32 0.0, %v926
        %v928 = vpop.f32.mrb[0].mxu0
        %v929 = vpop.f32.mrb[0].mxu0
        %v930 = vadd.f32 0.0, %v929
        %v931 = vpop.f32.mrb[0].mxu0
        %932 = vmatprep.mubr.bf16.mxu0 0
        %933 = vmatmul.mubr.bf16.gmra.mrb[0].mxu0 %v673
        %v934 = vpop.f32.mrb[0].mxu0
        %v935 = vadd.f32 0.0, %v934
        %v936 = vpop.f32.mrb[0].mxu0
        %v937 = vpop.f32.mrb[0].mxu0
        %v938 = vadd.f32 0.0, %v937
        %v939 = vpop.f32.mrb[0].mxu0
        %940 = vmatprep.mubr.bf16.mxu0 0
        %941 = vmatmul.mubr.bf16.gmra.mrb[0].mxu0 %v676
        %v942 = vpop.f32.mrb[0].mxu0
        %v943 = vadd.f32 0.0, %v942
        %v944 = vpop.f32.mrb[0].mxu0
        %v945 = vpop.f32.mrb[0].mxu0
        %v946 = vadd.f32 0.0, %v945
        %v947 = vpop.f32.mrb[0].mxu0
        %948 = vmatprep.mubr.bf16.mxu0 0
        %949 = vmatmul.mubr.bf16.gmra.mrb[0].mxu0 %v679
        %v950 = vpop.f32.mrb[0].mxu0
        %v951 = vadd.f32 0.0, %v950
        %v952 = vpop.f32.mrb[0].mxu0
        %v953 = vpop.f32.mrb[0].mxu0
        %v954 = vadd.f32 0.0, %v953
        %v955 = vpop.f32.mrb[0].mxu0
        %956 = vmatprep.mubr.bf16.mxu0 0
        %957 = vmatmul.mubr.bf16.gmra.mrb[0].mxu0 %v682
        %v958 = vpop.f32.mrb[0].mxu0
        %v959 = vadd.f32 0.0, %v958
        %v960 = vpop.f32.mrb[0].mxu0
        %v961 = vpop.f32.mrb[0].mxu0
        %v962 = vadd.f32 0.0, %v961
        %v963 = vpop.f32.mrb[0].mxu0
        %964 = vmatprep.mubr.bf16.mxu0 0
        %965 = vmatmul.mubr.bf16.gmra.mrb[0].mxu0 %v685
        %v966 = vpop.f32.mrb[0].mxu0
        %v967 = vadd.f32 0.0, %v966
        %v968 = vpop.f32.mrb[0].mxu0
        %v969 = vpop.f32.mrb[0].mxu0
        %v970 = vadd.f32 0.0, %v969
        %v971 = vpop.f32.mrb[0].mxu0
        %972 = vmatprep.mubr.bf16.mxu0 0
        %973 = vmatmul.mubr.bf16.gmra.mrb[0].mxu0 %v688
        %v974 = vpop.f32.mrb[0].mxu0
        %v975 = vadd.f32 0.0, %v974
        %v976 = vpop.f32.mrb[0].mxu0
        %v977 = vpop.f32.mrb[0].mxu0
        %v978 = vadd.f32 0.0, %v977
        %v979 = vpop.f32.mrb[0].mxu0
        %980 = vmatprep.mubr.bf16.mxu0 0
        %981 = vmatmul.mubr.bf16.gmra.mrb[0].mxu0 %v691
        %v982 = vpop.f32.mrb[0].mxu0
        %v983 = vadd.f32 0.0, %v982
        %v984 = vpop.f32.mrb[0].mxu0
        %v985 = vpop.f32.mrb[0].mxu0
        %v986 = vadd.f32 0.0, %v985
        %v987 = vpop.f32.mrb[0].mxu0
        %988 = vmatprep.mubr.bf16.mxu0 0
        %989 = vmatmul.mubr.bf16.gmra.mrb[0].mxu0 %v694
        %v990 = vpop.f32.mrb[0].mxu0
        %v991 = vadd.f32 0.0, %v990
        %v992 = vpop.f32.mrb[0].mxu0
        %v993 = vpop.f32.mrb[0].mxu0
        %v994 = vadd.f32 0.0, %v993
        %v995 = vpop.f32.mrb[0].mxu0
        %996 = vmatprep.mubr.bf16.mxu0 0
        %997 = vmatmul.mubr.bf16.gmra.mrb[0].mxu0 %v697
        %v998 = vpop.f32.mrb[0].mxu0
        %v999 = vadd.f32 0.0, %v998
        %v1000 = vpop.f32.mrb[0].mxu0
        %v1001 = vpop.f32.mrb[0].mxu0
        %v1002 = vadd.f32 0.0, %v1001
        %v1003 = vpop.f32.mrb[0].mxu0
        %1004 = vmatprep.mubr.bf16.mxu0 0
        %1005 = vmatmul.mubr.bf16.gmra.mrb[0].mxu0 %v700
        %v1006 = vpop.f32.mrb[0].mxu0
        %v1007 = vadd.f32 0.0, %v1006
        %v1008 = vpop.f32.mrb[0].mxu0
        %v1009 = vpop.f32.mrb[0].mxu0
        %v1010 = vadd.f32 0.0, %v1009
        %v1011 = vpop.f32.mrb[0].mxu0
        %1012 = vmatprep.mubr.bf16.mxu0 0
        %1013 = vmatmul.mubr.bf16.gmra.mrb[0].mxu0 %v703
        %v1014 = vpop.f32.mrb[0].mxu0
        %v1015 = vadd.f32 0.0, %v1014
        %v1016 = vpop.f32.mrb[0].mxu0
        %v1017 = vpop.f32.mrb[0].mxu0
        %v1018 = vadd.f32 0.0, %v1017
        %v1019 = vpop.f32.mrb[0].mxu0
        %1020 = vmatprep.mubr.bf16.mxu0 0
        %1021 = vmatmul.mubr.bf16.gmra.mrb[0].mxu0 %v706
        %v1022 = vpop.f32.mrb[0].mxu0
        %v1023 = vadd.f32 0.0, %v1022
        %v1024 = vpop.f32.mrb[0].mxu0
        %v1025 = vpop.f32.mrb[0].mxu0
        %v1026 = vadd.f32 0.0, %v1025
        %v1027 = vpop.f32.mrb[0].mxu0
        %1028 = vdwg.mxu0
        %v1029 = vld [vmem:[%s2] sm:$0x1]
        %v1030 = vlaneseq
        %v1031 = vshrl.u32 %v1030, 7
        %v1032 = vsub.s32 0, %v1031
        %v1033 = vrot.slane %v1029, %v1032
        %v1034 = vmul.f32 %v743, %v1033
        %v1035 = vmul.f32 %v746, %v1033
        %v1036 = vmul.f32 %v751, %v1033
        %v1037 = vmul.f32 %v754, %v1033
        %v1038 = vmul.f32 %v759, %v1033
        %v1039 = vmul.f32 %v762, %v1033
        %v1040 = vmul.f32 %v767, %v1033
        %v1041 = vmul.f32 %v770, %v1033
        %v1042 = vmul.f32 %v775, %v1033
        %v1043 = vmul.f32 %v778, %v1033
        %v1044 = vmul.f32 %v783, %v1033
        %v1045 = vmul.f32 %v786, %v1033
        %v1046 = vmul.f32 %v791, %v1033
        %v1047 = vmul.f32 %v794, %v1033
        %v1048 = vmul.f32 %v799, %v1033
        %v1049 = vmul.f32 %v802, %v1033
        %v1050 = vmul.f32 %v807, %v1033
        %v1051 = vmul.f32 %v810, %v1033
        %v1052 = vmul.f32 %v815, %v1033
        %v1053 = vmul.f32 %v818, %v1033
        %v1054 = vmul.f32 %v823, %v1033
        %v1055 = vmul.f32 %v826, %v1033
        %v1056 = vmul.f32 %v831, %v1033
        %v1057 = vmul.f32 %v834, %v1033
        %v1058 = vmul.f32 %v839, %v1033
        %v1059 = vmul.f32 %v842, %v1033
        %v1060 = vmul.f32 %v847, %v1033
        %v1061 = vmul.f32 %v850, %v1033
        %v1062 = vmul.f32 %v855, %v1033
        %v1063 = vmul.f32 %v858, %v1033
        %v1064 = vmul.f32 %v863, %v1033
        %v1065 = vmul.f32 %v866, %v1033
        %v1066 = vmul.f32 %v871, %v1033
        %v1067 = vmul.f32 %v874, %v1033
        %v1068 = vmul.f32 %v879, %v1033
        %v1069 = vmul.f32 %v882, %v1033
        %v1070 = vmul.f32 %v887, %v1033
        %v1071 = vmul.f32 %v890, %v1033
        %v1072 = vmul.f32 %v895, %v1033
        %v1073 = vmul.f32 %v898, %v1033
        %v1074 = vmul.f32 %v903, %v1033
        %v1075 = vmul.f32 %v906, %v1033
        %v1076 = vmul.f32 %v911, %v1033
        %v1077 = vmul.f32 %v914, %v1033
        %v1078 = vmul.f32 %v919, %v1033
        %v1079 = vmul.f32 %v922, %v1033
        %v1080 = vmul.f32 %v927, %v1033
        %v1081 = vmul.f32 %v930, %v1033
        %v1082 = vmul.f32 %v935, %v1033
        %v1083 = vmul.f32 %v938, %v1033
        %v1084 = vmul.f32 %v943, %v1033
        %v1085 = vmul.f32 %v946, %v1033
        %v1086 = vmul.f32 %v951, %v1033
        %v1087 = vmul.f32 %v954, %v1033
        %v1088 = vmul.f32 %v959, %v1033
        %v1089 = vmul.f32 %v962, %v1033
        %v1090 = vmul.f32 %v967, %v1033
        %v1091 = vmul.f32 %v970, %v1033
        %v1092 = vmul.f32 %v975, %v1033
        %v1093 = vmul.f32 %v978, %v1033
        %v1094 = vmul.f32 %v983, %v1033
        %v1095 = vmul.f32 %v986, %v1033
        %v1096 = vmul.f32 %v991, %v1033
        %v1097 = vmul.f32 %v994, %v1033
        %v1098 = vmul.f32 %v999, %v1033
        %v1099 = vmul.f32 %v1002, %v1033
        %v1100 = vmul.f32 %v1007, %v1033
        %v1101 = vmul.f32 %v1010, %v1033
        %v1102 = vmul.f32 %v1015, %v1033
        %v1103 = vmul.f32 %v1018, %v1033
        %v1104 = vmul.f32 %v1023, %v1033
        %v1105 = vmul.f32 %v1026, %v1033
        %v1106 = vld [vmem:[%s2 + $0x1] sm:$0x1]
        %v1107 = vlaneseq
        %v1108 = vshrl.u32 %v1107, 7
        %v1109 = vsub.s32 0, %v1108
        %v1110 = vrot.slane %v1106, %v1109
        %v1111 = vadd.f32 %v1034, %v1110
        %v1112 = vadd.f32 %v1035, %v1110
        %v1113 = vadd.f32 %v1036, %v1110
        %v1114 = vadd.f32 %v1037, %v1110
        %v1115 = vadd.f32 %v1038, %v1110
        %v1116 = vadd.f32 %v1039, %v1110
        %v1117 = vadd.f32 %v1040, %v1110
        %v1118 = vadd.f32 %v1041, %v1110
        %v1119 = vadd.f32 %v1042, %v1110
        %v1120 = vadd.f32 %v1043, %v1110
        %v1121 = vadd.f32 %v1044, %v1110
        %v1122 = vadd.f32 %v1045, %v1110
        %v1123 = vadd.f32 %v1046, %v1110
        %v1124 = vadd.f32 %v1047, %v1110
        %v1125 = vadd.f32 %v1048, %v1110
        %v1126 = vadd.f32 %v1049, %v1110
        %v1127 = vadd.f32 %v1050, %v1110
        %v1128 = vadd.f32 %v1051, %v1110
        %v1129 = vadd.f32 %v1052, %v1110
        %v1130 = vadd.f32 %v1053, %v1110
        %v1131 = vadd.f32 %v1054, %v1110
        %v1132 = vadd.f32 %v1055, %v1110
        %v1133 = vadd.f32 %v1056, %v1110
        %v1134 = vadd.f32 %v1057, %v1110
        %v1135 = vadd.f32 %v1058, %v1110
        %v1136 = vadd.f32 %v1059, %v1110
        %v1137 = vadd.f32 %v1060, %v1110
        %v1138 = vadd.f32 %v1061, %v1110
        %v1139 = vadd.f32 %v1062, %v1110
        %v1140 = vadd.f32 %v1063, %v1110
        %v1141 = vadd.f32 %v1064, %v1110
        %v1142 = vadd.f32 %v1065, %v1110
        %v1143 = vadd.f32 %v1066, %v1110
        %v1144 = vadd.f32 %v1067, %v1110
        %v1145 = vadd.f32 %v1068, %v1110
        %v1146 = vadd.f32 %v1069, %v1110
        %v1147 = vadd.f32 %v1070, %v1110
        %v1148 = vadd.f32 %v1071, %v1110
        %v1149 = vadd.f32 %v1072, %v1110
        %v1150 = vadd.f32 %v1073, %v1110
        %v1151 = vadd.f32 %v1074, %v1110
        %v1152 = vadd.f32 %v1075, %v1110
        %v1153 = vadd.f32 %v1076, %v1110
        %v1154 = vadd.f32 %v1077, %v1110
        %v1155 = vadd.f32 %v1078, %v1110
        %v1156 = vadd.f32 %v1079, %v1110
        %v1157 = vadd.f32 %v1080, %v1110
        %v1158 = vadd.f32 %v1081, %v1110
        %v1159 = vadd.f32 %v1082, %v1110
        %v1160 = vadd.f32 %v1083, %v1110
        %v1161 = vadd.f32 %v1084, %v1110
        %v1162 = vadd.f32 %v1085, %v1110
        %v1163 = vadd.f32 %v1086, %v1110
        %v1164 = vadd.f32 %v1087, %v1110
        %v1165 = vadd.f32 %v1088, %v1110
        %v1166 = vadd.f32 %v1089, %v1110
        %v1167 = vadd.f32 %v1090, %v1110
        %v1168 = vadd.f32 %v1091, %v1110
        %v1169 = vadd.f32 %v1092, %v1110
        %v1170 = vadd.f32 %v1093, %v1110
        %v1171 = vadd.f32 %v1094, %v1110
        %v1172 = vadd.f32 %v1095, %v1110
        %v1173 = vadd.f32 %v1096, %v1110
        %v1174 = vadd.f32 %v1097, %v1110
        %v1175 = vadd.f32 %v1098, %v1110
        %v1176 = vadd.f32 %v1099, %v1110
        %v1177 = vadd.f32 %v1100, %v1110
        %v1178 = vadd.f32 %v1101, %v1110
        %v1179 = vadd.f32 %v1102, %v1110
        %v1180 = vadd.f32 %v1103, %v1110
        %v1181 = vadd.f32 %v1104, %v1110
        %v1182 = vadd.f32 %v1105, %v1110
        %v1183 = vmax.f32 %v1111, 0.0
        %v1184 = vmax.f32 %v1112, 0.0
        %v1185 = vmax.f32 %v1113, 0.0
        %v1186 = vmax.f32 %v1114, 0.0
        %v1187 = vmax.f32 %v1115, 0.0
        %v1188 = vmax.f32 %v1116, 0.0
        %v1189 = vmax.f32 %v1117, 0.0
        %v1190 = vmax.f32 %v1118, 0.0
        %v1191 = vmax.f32 %v1119, 0.0
        %v1192 = vmax.f32 %v1120, 0.0
        %v1193 = vmax.f32 %v1121, 0.0
        %v1194 = vmax.f32 %v1122, 0.0
        %v1195 = vmax.f32 %v1123, 0.0
        %v1196 = vmax.f32 %v1124, 0.0
        %v1197 = vmax.f32 %v1125, 0.0
        %v1198 = vmax.f32 %v1126, 0.0
        %v1199 = vmax.f32 %v1127, 0.0
        %v1200 = vmax.f32 %v1128, 0.0
        %v1201 = vmax.f32 %v1129, 0.0
        %v1202 = vmax.f32 %v1130, 0.0
        %v1203 = vmax.f32 %v1131, 0.0
        %v1204 = vmax.f32 %v1132, 0.0
        %v1205 = vmax.f32 %v1133, 0.0
        %v1206 = vmax.f32 %v1134, 0.0
        %v1207 = vmax.f32 %v1135, 0.0
        %v1208 = vmax.f32 %v1136, 0.0
        %v1209 = vmax.f32 %v1137, 0.0
        %v1210 = vmax.f32 %v1138, 0.0
        %v1211 = vmax.f32 %v1139, 0.0
        %v1212 = vmax.f32 %v1140, 0.0
        %v1213 = vmax.f32 %v1141, 0.0
        %v1214 = vmax.f32 %v1142, 0.0
        %v1215 = vmax.f32 %v1143, 0.0
        %v1216 = vmax.f32 %v1144, 0.0
        %v1217 = vmax.f32 %v1145, 0.0
        %v1218 = vmax.f32 %v1146, 0.0
        %v1219 = vmax.f32 %v1147, 0.0
        %v1220 = vmax.f32 %v1148, 0.0
        %v1221 = vmax.f32 %v1149, 0.0
        %v1222 = vmax.f32 %v1150, 0.0
        %v1223 = vmax.f32 %v1151, 0.0
        %v1224 = vmax.f32 %v1152, 0.0
        %v1225 = vmax.f32 %v1153, 0.0
        %v1226 = vmax.f32 %v1154, 0.0
        %v1227 = vmax.f32 %v1155, 0.0
        %v1228 = vmax.f32 %v1156, 0.0
        %v1229 = vmax.f32 %v1157, 0.0
        %v1230 = vmax.f32 %v1158, 0.0
        %v1231 = vmax.f32 %v1159, 0.0
        %v1232 = vmax.f32 %v1160, 0.0
        %v1233 = vmax.f32 %v1161, 0.0
        %v1234 = vmax.f32 %v1162, 0.0
        %v1235 = vmax.f32 %v1163, 0.0
        %v1236 = vmax.f32 %v1164, 0.0
        %v1237 = vmax.f32 %v1165, 0.0
        %v1238 = vmax.f32 %v1166, 0.0
        %v1239 = vmax.f32 %v1167, 0.0
        %v1240 = vmax.f32 %v1168, 0.0
        %v1241 = vmax.f32 %v1169, 0.0
        %v1242 = vmax.f32 %v1170, 0.0
        %v1243 = vmax.f32 %v1171, 0.0
        %v1244 = vmax.f32 %v1172, 0.0
        %v1245 = vmax.f32 %v1173, 0.0
        %v1246 = vmax.f32 %v1174, 0.0
        %v1247 = vmax.f32 %v1175, 0.0
        %v1248 = vmax.f32 %v1176, 0.0
        %v1249 = vmax.f32 %v1177, 0.0
        %v1250 = vmax.f32 %v1178, 0.0
        %v1251 = vmax.f32 %v1179, 0.0
        %v1252 = vmax.f32 %v1180, 0.0
        %v1253 = vmax.f32 %v1181, 0.0
        %v1254 = vmax.f32 %v1182, 0.0
        %vm1255 = vcmask 64512
        %1256 = vst.msk [vmem:[#allocation2] sm:$0xff] %vm1255, %v1183
        %1257 = vst.msk [vmem:[#allocation2 + $0x8] sm:$0xff] %vm1255, %v1184
        %1258 = vst.msk [vmem:[#allocation2 + $0x10] sm:$0xff] %vm1255, %v1185
        %1259 = vst.msk [vmem:[#allocation2 + $0x18] sm:$0xff] %vm1255, %v1186
        %1260 = vst.msk [vmem:[#allocation2 + $0x20] sm:$0xff] %vm1255, %v1187
        %1261 = vst.msk [vmem:[#allocation2 + $0x28] sm:$0xff] %vm1255, %v1188
        %1262 = vst.msk [vmem:[#allocation2 + $0x30] sm:$0xff] %vm1255, %v1189
        %1263 = vst.msk [vmem:[#allocation2 + $0x38] sm:$0xff] %vm1255, %v1190
        %1264 = vst.msk [vmem:[#allocation2 + $0x40] sm:$0xff] %vm1255, %v1191
        %1265 = vst.msk [vmem:[#allocation2 + $0x48] sm:$0xff] %vm1255, %v1192
        %1266 = vst.msk [vmem:[#allocation2 + $0x50] sm:$0xff] %vm1255, %v1193
        %1267 = vst.msk [vmem:[#allocation2 + $0x58] sm:$0xff] %vm1255, %v1194
        %1268 = vst.msk [vmem:[#allocation2 + $0x60] sm:$0xff] %vm1255, %v1195
        %1269 = vst.msk [vmem:[#allocation2 + $0x68] sm:$0xff] %vm1255, %v1196
        %1270 = vst.msk [vmem:[#allocation2 + $0x70] sm:$0xff] %vm1255, %v1197
        %1271 = vst.msk [vmem:[#allocation2 + $0x78] sm:$0xff] %vm1255, %v1198
        %1272 = vst.msk [vmem:[#allocation2 + $0x80] sm:$0xff] %vm1255, %v1199
        %1273 = vst.msk [vmem:[#allocation2 + $0x88] sm:$0xff] %vm1255, %v1200
        %1274 = vst.msk [vmem:[#allocation2 + $0x90] sm:$0xff] %vm1255, %v1201
        %1275 = vst.msk [vmem:[#allocation2 + $0x98] sm:$0xff] %vm1255, %v1202
        %1276 = vst.msk [vmem:[#allocation2 + $0xa0] sm:$0xff] %vm1255, %v1203
        %1277 = vst.msk [vmem:[#allocation2 + $0xa8] sm:$0xff] %vm1255, %v1204
        %1278 = vst.msk [vmem:[#allocation2 + $0xb0] sm:$0xff] %vm1255, %v1205
        %1279 = vst.msk [vmem:[#allocation2 + $0xb8] sm:$0xff] %vm1255, %v1206
        %1280 = vst.msk [vmem:[#allocation2 + $0xc0] sm:$0xff] %vm1255, %v1207
        %1281 = vst.msk [vmem:[#allocation2 + $0xc8] sm:$0xff] %vm1255, %v1208
        %1282 = vst.msk [vmem:[#allocation2 + $0xd0] sm:$0xff] %vm1255, %v1209
        %1283 = vst.msk [vmem:[#allocation2 + $0xd8] sm:$0xff] %vm1255, %v1210
        %1284 = vst.msk [vmem:[#allocation2 + $0xe0] sm:$0xff] %vm1255, %v1211
        %1285 = vst.msk [vmem:[#allocation2 + $0xe8] sm:$0xff] %vm1255, %v1212
        %1286 = vst.msk [vmem:[#allocation2 + $0xf0] sm:$0xff] %vm1255, %v1213
        %1287 = vst.msk [vmem:[#allocation2 + $0xf8] sm:$0xff] %vm1255, %v1214
        %1288 = vst.msk [vmem:[#allocation2 + $0x100] sm:$0xff] %vm1255, %v1215
        %1289 = vst.msk [vmem:[#allocation2 + $0x108] sm:$0xff] %vm1255, %v1216
        %1290 = vst.msk [vmem:[#allocation2 + $0x110] sm:$0xff] %vm1255, %v1217
        %1291 = vst.msk [vmem:[#allocation2 + $0x118] sm:$0xff] %vm1255, %v1218
        %1292 = vst.msk [vmem:[#allocation2 + $0x120] sm:$0xff] %vm1255, %v1219
        %1293 = vst.msk [vmem:[#allocation2 + $0x128] sm:$0xff] %vm1255, %v1220
        %1294 = vst.msk [vmem:[#allocation2 + $0x130] sm:$0xff] %vm1255, %v1221
        %1295 = vst.msk [vmem:[#allocation2 + $0x138] sm:$0xff] %vm1255, %v1222
        %1296 = vst.msk [vmem:[#allocation2 + $0x140] sm:$0xff] %vm1255, %v1223
        %1297 = vst.msk [vmem:[#allocation2 + $0x148] sm:$0xff] %vm1255, %v1224
        %1298 = vst.msk [vmem:[#allocation2 + $0x150] sm:$0xff] %vm1255, %v1225
        %1299 = vst.msk [vmem:[#allocation2 + $0x158] sm:$0xff] %vm1255, %v1226
        %1300 = vst.msk [vmem:[#allocation2 + $0x160] sm:$0xff] %vm1255, %v1227
        %1301 = vst.msk [vmem:[#allocation2 + $0x168] sm:$0xff] %vm1255, %v1228
        %1302 = vst.msk [vmem:[#allocation2 + $0x170] sm:$0xff] %vm1255, %v1229
        %1303 = vst.msk [vmem:[#allocation2 + $0x178] sm:$0xff] %vm1255, %v1230
        %1304 = vst.msk [vmem:[#allocation2 + $0x180] sm:$0xff] %vm1255, %v1231
        %1305 = vst.msk [vmem:[#allocation2 + $0x188] sm:$0xff] %vm1255, %v1232
        %1306 = vst.msk [vmem:[#allocation2 + $0x190] sm:$0xff] %vm1255, %v1233
        %1307 = vst.msk [vmem:[#allocation2 + $0x198] sm:$0xff] %vm1255, %v1234
        %1308 = vst.msk [vmem:[#allocation2 + $0x1a0] sm:$0xff] %vm1255, %v1235
        %1309 = vst.msk [vmem:[#allocation2 + $0x1a8] sm:$0xff] %vm1255, %v1236
        %1310 = vst.msk [vmem:[#allocation2 + $0x1b0] sm:$0xff] %vm1255, %v1237
        %1311 = vst.msk [vmem:[#allocation2 + $0x1b8] sm:$0xff] %vm1255, %v1238
        %1312 = vst.msk [vmem:[#allocation2 + $0x1c0] sm:$0xff] %vm1255, %v1239
        %1313 = vst.msk [vmem:[#allocation2 + $0x1c8] sm:$0xff] %vm1255, %v1240
        %1314 = vst.msk [vmem:[#allocation2 + $0x1d0] sm:$0xff] %vm1255, %v1241
        %1315 = vst.msk [vmem:[#allocation2 + $0x1d8] sm:$0xff] %vm1255, %v1242
        %1316 = vst.msk [vmem:[#allocation2 + $0x1e0] sm:$0xff] %vm1255, %v1243
        %1317 = vst.msk [vmem:[#allocation2 + $0x1e8] sm:$0xff] %vm1255, %v1244
        %1318 = vst.msk [vmem:[#allocation2 + $0x1f0] sm:$0xff] %vm1255, %v1245
        %1319 = vst.msk [vmem:[#allocation2 + $0x1f8] sm:$0xff] %vm1255, %v1246
        %1320 = vst.msk [vmem:[#allocation2 + $0x200] sm:$0xff] %vm1255, %v1247
        %1321 = vst.msk [vmem:[#allocation2 + $0x208] sm:$0xff] %vm1255, %v1248
        %1322 = vst.msk [vmem:[#allocation2 + $0x210] sm:$0xff] %vm1255, %v1249
        %1323 = vst.msk [vmem:[#allocation2 + $0x218] sm:$0xff] %vm1255, %v1250
        %1324 = vst.msk [vmem:[#allocation2 + $0x220] sm:$0xff] %vm1255, %v1251
        %1325 = vst.msk [vmem:[#allocation2 + $0x228] sm:$0xff] %vm1255, %v1252
        %1326 = vst.msk [vmem:[#allocation2 + $0x230] sm:$0xff] %vm1255, %v1253
        %1327 = vst.msk [vmem:[#allocation2 + $0x238] sm:$0xff] %vm1255, %v1254
        %v1328 = vld [vmem:[#allocation2] sm:$0xff]
        %v1329 = vld [vmem:[#allocation2 + $0x8] sm:$0xff]
        %v1330 = vld [vmem:[#allocation2 + $0x10] sm:$0xff]
        %v1331 = vld [vmem:[#allocation2 + $0x30] sm:$0xff]
        %v1332 = vld [vmem:[#allocation2 + $0x38] sm:$0xff]
        %v1333 = vld [vmem:[#allocation2 + $0x40] sm:$0xff]
        %v1334 = vld [vmem:[#allocation2 + $0x60] sm:$0xff]
        %v1335 = vld [vmem:[#allocation2 + $0x68] sm:$0xff]
        %v1336 = vld [vmem:[#allocation2 + $0x70] sm:$0xff]
        %v1337 = vld [vmem:[#allocation2 + $0x90] sm:$0xff]
        %v1338 = vld [vmem:[#allocation2 + $0x98] sm:$0xff]
        %v1339 = vld [vmem:[#allocation2 + $0xa0] sm:$0xff]
        %v1340 = vld [vmem:[#allocation2 + $0xc0] sm:$0xff]
        %v1341 = vld [vmem:[#allocation2 + $0xc8] sm:$0xff]
        %v1342 = vld [vmem:[#allocation2 + $0xd0] sm:$0xff]
        %v1343 = vld [vmem:[#allocation2 + $0xf0] sm:$0xff]
        %v1344 = vld [vmem:[#allocation2 + $0xf8] sm:$0xff]
        %v1345 = vld [vmem:[#allocation2 + $0x100] sm:$0xff]
        %v1346 = vld [vmem:[#allocation2 + $0x120] sm:$0xff]
        %v1347 = vld [vmem:[#allocation2 + $0x128] sm:$0xff]
        %v1348 = vld [vmem:[#allocation2 + $0x130] sm:$0xff]
        %v1349 = vld [vmem:[#allocation2 + $0x150] sm:$0xff]
        %v1350 = vld [vmem:[#allocation2 + $0x158] sm:$0xff]
        %v1351 = vld [vmem:[#allocation2 + $0x160] sm:$0xff]
        %v1352 = vld [vmem:[#allocation2 + $0x180] sm:$0xff]
        %v1353 = vld [vmem:[#allocation2 + $0x188] sm:$0xff]
        %v1354 = vld [vmem:[#allocation2 + $0x190] sm:$0xff]
        %v1355 = vld [vmem:[#allocation2 + $0x1b0] sm:$0xff]
        %v1356 = vld [vmem:[#allocation2 + $0x1b8] sm:$0xff]
        %v1357 = vld [vmem:[#allocation2 + $0x1c0] sm:$0xff]
        %v1358 = vld [vmem:[#allocation2 + $0x1e0] sm:$0xff]
        %v1359 = vld [vmem:[#allocation2 + $0x1e8] sm:$0xff]
        %v1360 = vld [vmem:[#allocation2 + $0x1f0] sm:$0xff]
        %v1361 = vld [vmem:[#allocation2 + $0x210] sm:$0xff]
        %v1362 = vld [vmem:[#allocation2 + $0x218] sm:$0xff]
        %v1363 = vld [vmem:[#allocation2 + $0x220] sm:$0xff]
        %s1364 = scalar_lea.vmem [#allocation2], 24
        %v1365 = vld [vmem:[%s1364] sm:$0xff]
        %v1366 = vld [vmem:[%s1364 + $0x8] sm:$0xff]
        %v1367 = vld [vmem:[%s1364 + $0x10] sm:$0xff]
        %v1368 = vld [vmem:[%s1364 + $0x30] sm:$0xff]
        %v1369 = vld [vmem:[%s1364 + $0x38] sm:$0xff]
        %v1370 = vld [vmem:[%s1364 + $0x40] sm:$0xff]
        %v1371 = vld [vmem:[%s1364 + $0x60] sm:$0xff]
        %v1372 = vld [vmem:[%s1364 + $0x68] sm:$0xff]
        %v1373 = vld [vmem:[%s1364 + $0x70] sm:$0xff]
        %v1374 = vld [vmem:[%s1364 + $0x90] sm:$0xff]
        %v1375 = vld [vmem:[%s1364 + $0x98] sm:$0xff]
        %v1376 = vld [vmem:[%s1364 + $0xa0] sm:$0xff]
        %v1377 = vld [vmem:[%s1364 + $0xc0] sm:$0xff]
        %v1378 = vld [vmem:[%s1364 + $0xc8] sm:$0xff]
        %v1379 = vld [vmem:[%s1364 + $0xd0] sm:$0xff]
        %v1380 = vld [vmem:[%s1364 + $0xf0] sm:$0xff]
        %v1381 = vld [vmem:[%s1364 + $0xf8] sm:$0xff]
        %v1382 = vld [vmem:[%s1364 + $0x100] sm:$0xff]
        %v1383 = vld [vmem:[%s1364 + $0x120] sm:$0xff]
        %v1384 = vld [vmem:[%s1364 + $0x128] sm:$0xff]
        %v1385 = vld [vmem:[%s1364 + $0x130] sm:$0xff]
        %v1386 = vld [vmem:[%s1364 + $0x150] sm:$0xff]
        %v1387 = vld [vmem:[%s1364 + $0x158] sm:$0xff]
        %v1388 = vld [vmem:[%s1364 + $0x160] sm:$0xff]
        %v1389 = vld [vmem:[%s1364 + $0x180] sm:$0xff]
        %v1390 = vld [vmem:[%s1364 + $0x188] sm:$0xff]
        %v1391 = vld [vmem:[%s1364 + $0x190] sm:$0xff]
        %v1392 = vld [vmem:[%s1364 + $0x1b0] sm:$0xff]
        %v1393 = vld [vmem:[%s1364 + $0x1b8] sm:$0xff]
        %v1394 = vld [vmem:[%s1364 + $0x1c0] sm:$0xff]
        %v1395 = vld [vmem:[%s1364 + $0x1e0] sm:$0xff]
        %v1396 = vld [vmem:[%s1364 + $0x1e8] sm:$0xff]
        %v1397 = vld [vmem:[%s1364 + $0x1f0] sm:$0xff]
        %v1398 = vld [vmem:[%s1364 + $0x210] sm:$0xff]
        %v1399 = vld [vmem:[%s1364 + $0x218] sm:$0xff]
        %v1400 = vld [vmem:[%s1364 + $0x220] sm:$0xff]
        %v1401 = vmax.f32 %v1328, %v1365
        %v1402 = vmax.f32 %v1329, %v1366
        %v1403 = vmax.f32 %v1330, %v1367
        %v1404 = vmax.f32 %v1331, %v1368
        %v1405 = vmax.f32 %v1332, %v1369
        %v1406 = vmax.f32 %v1333, %v1370
        %v1407 = vmax.f32 %v1334, %v1371
        %v1408 = vmax.f32 %v1335, %v1372
        %v1409 = vmax.f32 %v1336, %v1373
        %v1410 = vmax.f32 %v1337, %v1374
        %v1411 = vmax.f32 %v1338, %v1375
        %v1412 = vmax.f32 %v1339, %v1376
        %v1413 = vmax.f32 %v1340, %v1377
        %v1414 = vmax.f32 %v1341, %v1378
        %v1415 = vmax.f32 %v1342, %v1379
        %v1416 = vmax.f32 %v1343, %v1380
        %v1417 = vmax.f32 %v1344, %v1381
        %v1418 = vmax.f32 %v1345, %v1382
        %v1419 = vmax.f32 %v1346, %v1383
        %v1420 = vmax.f32 %v1347, %v1384
        %v1421 = vmax.f32 %v1348, %v1385
        %v1422 = vmax.f32 %v1349, %v1386
        %v1423 = vmax.f32 %v1350, %v1387
        %v1424 = vmax.f32 %v1351, %v1388
        %v1425 = vmax.f32 %v1352, %v1389
        %v1426 = vmax.f32 %v1353, %v1390
        %v1427 = vmax.f32 %v1354, %v1391
        %v1428 = vmax.f32 %v1355, %v1392
        %v1429 = vmax.f32 %v1356, %v1393
        %v1430 = vmax.f32 %v1357, %v1394
        %v1431 = vmax.f32 %v1358, %v1395
        %v1432 = vmax.f32 %v1359, %v1396
        %v1433 = vmax.f32 %v1360, %v1397
        %v1434 = vmax.f32 %v1361, %v1398
        %v1435 = vmax.f32 %v1362, %v1399
        %v1436 = vmax.f32 %v1363, %v1400
        %1437 = vst.msk [vmem:[#allocation3] sm:$0xff] %vm1255, %v1401
        %1438 = vst.msk [vmem:[#allocation3 + $0x8] sm:$0xff] %vm1255, %v1402
        %1439 = vst.msk [vmem:[#allocation3 + $0x10] sm:$0xff] %vm1255, %v1403
        %1440 = vst.msk [vmem:[#allocation3 + $0x18] sm:$0xff] %vm1255, %v1404
        %1441 = vst.msk [vmem:[#allocation3 + $0x20] sm:$0xff] %vm1255, %v1405
        %1442 = vst.msk [vmem:[#allocation3 + $0x28] sm:$0xff] %vm1255, %v1406
        %1443 = vst.msk [vmem:[#allocation3 + $0x30] sm:$0xff] %vm1255, %v1407
        %1444 = vst.msk [vmem:[#allocation3 + $0x38] sm:$0xff] %vm1255, %v1408
        %1445 = vst.msk [vmem:[#allocation3 + $0x40] sm:$0xff] %vm1255, %v1409
        %1446 = vst.msk [vmem:[#allocation3 + $0x48] sm:$0xff] %vm1255, %v1410
        %1447 = vst.msk [vmem:[#allocation3 + $0x50] sm:$0xff] %vm1255, %v1411
        %1448 = vst.msk [vmem:[#allocation3 + $0x58] sm:$0xff] %vm1255, %v1412
        %1449 = vst.msk [vmem:[#allocation3 + $0x60] sm:$0xff] %vm1255, %v1413
        %1450 = vst.msk [vmem:[#allocation3 + $0x68] sm:$0xff] %vm1255, %v1414
        %1451 = vst.msk [vmem:[#allocation3 + $0x70] sm:$0xff] %vm1255, %v1415
        %1452 = vst.msk [vmem:[#allocation3 + $0x78] sm:$0xff] %vm1255, %v1416
        %1453 = vst.msk [vmem:[#allocation3 + $0x80] sm:$0xff] %vm1255, %v1417
        %1454 = vst.msk [vmem:[#allocation3 + $0x88] sm:$0xff] %vm1255, %v1418
        %1455 = vst.msk [vmem:[#allocation3 + $0x90] sm:$0xff] %vm1255, %v1419
        %1456 = vst.msk [vmem:[#allocation3 + $0x98] sm:$0xff] %vm1255, %v1420
        %1457 = vst.msk [vmem:[#allocation3 + $0xa0] sm:$0xff] %vm1255, %v1421
        %1458 = vst.msk [vmem:[#allocation3 + $0xa8] sm:$0xff] %vm1255, %v1422
        %1459 = vst.msk [vmem:[#allocation3 + $0xb0] sm:$0xff] %vm1255, %v1423
        %1460 = vst.msk [vmem:[#allocation3 + $0xb8] sm:$0xff] %vm1255, %v1424
        %1461 = vst.msk [vmem:[#allocation3 + $0xc0] sm:$0xff] %vm1255, %v1425
        %1462 = vst.msk [vmem:[#allocation3 + $0xc8] sm:$0xff] %vm1255, %v1426
        %1463 = vst.msk [vmem:[#allocation3 + $0xd0] sm:$0xff] %vm1255, %v1427
        %1464 = vst.msk [vmem:[#allocation3 + $0xd8] sm:$0xff] %vm1255, %v1428
        %1465 = vst.msk [vmem:[#allocation3 + $0xe0] sm:$0xff] %vm1255, %v1429
        %1466 = vst.msk [vmem:[#allocation3 + $0xe8] sm:$0xff] %vm1255, %v1430
        %1467 = vst.msk [vmem:[#allocation3 + $0xf0] sm:$0xff] %vm1255, %v1431
        %1468 = vst.msk [vmem:[#allocation3 + $0xf8] sm:$0xff] %vm1255, %v1432
        %1469 = vst.msk [vmem:[#allocation3 + $0x100] sm:$0xff] %vm1255, %v1433
        %1470 = vst.msk [vmem:[#allocation3 + $0x108] sm:$0xff] %vm1255, %v1434
        %1471 = vst.msk [vmem:[#allocation3 + $0x110] sm:$0xff] %vm1255, %v1435
        %1472 = vst.msk [vmem:[#allocation3 + $0x118] sm:$0xff] %vm1255, %v1436
        %v1473 = vld [vmem:[#allocation3] ss:$2 sm:$0xff]
        %s1474 = scalar_lea.vmem [#allocation3], 16
        %v1475 = vld [vmem:[%s1474] ss:$2 sm:$0xf]
        %s1476 = scalar_lea.vmem [#allocation3], 24
        %v1477 = vld [vmem:[%s1476] ss:$2 sm:$0xff]
        %s1478 = scalar_lea.vmem [#allocation3], 40
        %v1479 = vld [vmem:[%s1478] ss:$2 sm:$0xf]
        %s1480 = scalar_lea.vmem [#allocation3], 48
        %v1481 = vld [vmem:[%s1480] ss:$2 sm:$0xff]
        %s1482 = scalar_lea.vmem [#allocation3], 64
        %v1483 = vld [vmem:[%s1482] ss:$2 sm:$0xf]
        %s1484 = scalar_lea.vmem [#allocation3], 72
        %v1485 = vld [vmem:[%s1484] ss:$2 sm:$0xff]
        %s1486 = scalar_lea.vmem [#allocation3], 88
        %v1487 = vld [vmem:[%s1486] ss:$2 sm:$0xf]
        %s1488 = scalar_lea.vmem [#allocation3], 96
        %v1489 = vld [vmem:[%s1488] ss:$2 sm:$0xff]
        %s1490 = scalar_lea.vmem [#allocation3], 112
        %v1491 = vld [vmem:[%s1490] ss:$2 sm:$0xf]
        %s1492 = scalar_lea.vmem [#allocation3], 120
        %v1493 = vld [vmem:[%s1492] ss:$2 sm:$0xff]
        %s1494 = scalar_lea.vmem [#allocation3], 136
        %v1495 = vld [vmem:[%s1494] ss:$2 sm:$0xf]
        %s1496 = scalar_lea.vmem [#allocation3], 144
        %v1497 = vld [vmem:[%s1496] ss:$2 sm:$0xff]
        %s1498 = scalar_lea.vmem [#allocation3], 160
        %v1499 = vld [vmem:[%s1498] ss:$2 sm:$0xf]
        %s1500 = scalar_lea.vmem [#allocation3], 168
        %v1501 = vld [vmem:[%s1500] ss:$2 sm:$0xff]
        %s1502 = scalar_lea.vmem [#allocation3], 184
        %v1503 = vld [vmem:[%s1502] ss:$2 sm:$0xf]
        %s1504 = scalar_lea.vmem [#allocation3], 192
        %v1505 = vld [vmem:[%s1504] ss:$2 sm:$0xff]
        %s1506 = scalar_lea.vmem [#allocation3], 208
        %v1507 = vld [vmem:[%s1506] ss:$2 sm:$0xf]
        %s1508 = scalar_lea.vmem [#allocation3], 216
        %v1509 = vld [vmem:[%s1508] ss:$2 sm:$0xff]
        %s1510 = scalar_lea.vmem [#allocation3], 232
        %v1511 = vld [vmem:[%s1510] ss:$2 sm:$0xf]
        %s1512 = scalar_lea.vmem [#allocation3], 240
        %v1513 = vld [vmem:[%s1512] ss:$2 sm:$0xff]
        %s1514 = scalar_lea.vmem [#allocation3], 256
        %v1515 = vld [vmem:[%s1514] ss:$2 sm:$0xf]
        %s1516 = scalar_lea.vmem [#allocation3], 264
        %v1517 = vld [vmem:[%s1516] ss:$2 sm:$0xff]
        %s1518 = scalar_lea.vmem [#allocation3], 280
        %v1519 = vld [vmem:[%s1518] ss:$2 sm:$0xf]
        %s1520 = scalar_lea.vmem [#allocation3], 1
        %v1521 = vld [vmem:[%s1520] ss:$2 sm:$0xff]
        %s1522 = scalar_lea.vmem [#allocation3], 17
        %v1523 = vld [vmem:[%s1522] ss:$2 sm:$0xf]
        %s1524 = scalar_lea.vmem [#allocation3], 25
        %v1525 = vld [vmem:[%s1524] ss:$2 sm:$0xff]
        %s1526 = scalar_lea.vmem [#allocation3], 41
        %v1527 = vld [vmem:[%s1526] ss:$2 sm:$0xf]
        %s1528 = scalar_lea.vmem [#allocation3], 49
        %v1529 = vld [vmem:[%s1528] ss:$2 sm:$0xff]
        %s1530 = scalar_lea.vmem [#allocation3], 65
        %v1531 = vld [vmem:[%s1530] ss:$2 sm:$0xf]
        %s1532 = scalar_lea.vmem [#allocation3], 73
        %v1533 = vld [vmem:[%s1532] ss:$2 sm:$0xff]
        %s1534 = scalar_lea.vmem [#allocation3], 89
        %v1535 = vld [vmem:[%s1534] ss:$2 sm:$0xf]
        %s1536 = scalar_lea.vmem [#allocation3], 97
        %v1537 = vld [vmem:[%s1536] ss:$2 sm:$0xff]
        %s1538 = scalar_lea.vmem [#allocation3], 113
        %v1539 = vld [vmem:[%s1538] ss:$2 sm:$0xf]
        %s1540 = scalar_lea.vmem [#allocation3], 121
        %v1541 = vld [vmem:[%s1540] ss:$2 sm:$0xff]
        %s1542 = scalar_lea.vmem [#allocation3], 137
        %v1543 = vld [vmem:[%s1542] ss:$2 sm:$0xf]
        %s1544 = scalar_lea.vmem [#allocation3], 145
        %v1545 = vld [vmem:[%s1544] ss:$2 sm:$0xff]
        %s1546 = scalar_lea.vmem [#allocation3], 161
        %v1547 = vld [vmem:[%s1546] ss:$2 sm:$0xf]
        %s1548 = scalar_lea.vmem [#allocation3], 169
        %v1549 = vld [vmem:[%s1548] ss:$2 sm:$0xff]
        %s1550 = scalar_lea.vmem [#allocation3], 185
        %v1551 = vld [vmem:[%s1550] ss:$2 sm:$0xf]
        %s1552 = scalar_lea.vmem [#allocation3], 193
        %v1553 = vld [vmem:[%s1552] ss:$2 sm:$0xff]
        %s1554 = scalar_lea.vmem [#allocation3], 209
        %v1555 = vld [vmem:[%s1554] ss:$2 sm:$0xf]
        %s1556 = scalar_lea.vmem [#allocation3], 217
        %v1557 = vld [vmem:[%s1556] ss:$2 sm:$0xff]
        %s1558 = scalar_lea.vmem [#allocation3], 233
        %v1559 = vld [vmem:[%s1558] ss:$2 sm:$0xf]
        %s1560 = scalar_lea.vmem [#allocation3], 241
        %v1561 = vld [vmem:[%s1560] ss:$2 sm:$0xff]
        %s1562 = scalar_lea.vmem [#allocation3], 257
        %v1563 = vld [vmem:[%s1562] ss:$2 sm:$0xf]
        %s1564 = scalar_lea.vmem [#allocation3], 265
        %v1565 = vld [vmem:[%s1564] ss:$2 sm:$0xff]
        %s1566 = scalar_lea.vmem [#allocation3], 281
        %v1567 = vld [vmem:[%s1566] ss:$2 sm:$0xf]
        %v1568 = vmax.f32 %v1473, %v1521
        %v1569 = vmax.f32 %v1475, %v1523
        %v1570 = vmax.f32 %v1477, %v1525
        %v1571 = vmax.f32 %v1479, %v1527
        %v1572 = vmax.f32 %v1481, %v1529
        %v1573 = vmax.f32 %v1483, %v1531
        %v1574 = vmax.f32 %v1485, %v1533
        %v1575 = vmax.f32 %v1487, %v1535
        %v1576 = vmax.f32 %v1489, %v1537
        %v1577 = vmax.f32 %v1491, %v1539
        %v1578 = vmax.f32 %v1493, %v1541
        %v1579 = vmax.f32 %v1495, %v1543
        %v1580 = vmax.f32 %v1497, %v1545
        %v1581 = vmax.f32 %v1499, %v1547
        %v1582 = vmax.f32 %v1501, %v1549
        %v1583 = vmax.f32 %v1503, %v1551
        %v1584 = vmax.f32 %v1505, %v1553
        %v1585 = vmax.f32 %v1507, %v1555
        %v1586 = vmax.f32 %v1509, %v1557
        %v1587 = vmax.f32 %v1511, %v1559
        %v1588 = vmax.f32 %v1513, %v1561
        %v1589 = vmax.f32 %v1515, %v1563
        %v1590 = vmax.f32 %v1517, %v1565
        %v1591 = vmax.f32 %v1519, %v1567
        %1592 = vst.msk [vmem:[#allocation4] sm:$0xff] %vm1255, %v1568
        %vm1593 = vcmask 60416
        %1594 = vst.msk [vmem:[#allocation4 + $0x8] sm:$0xf] %vm1593, %v1569
        %1595 = vst.msk [vmem:[#allocation4 + $0x10] sm:$0xff] %vm1255, %v1570
        %1596 = vst.msk [vmem:[#allocation4 + $0x18] sm:$0xf] %vm1593, %v1571
        %1597 = vst.msk [vmem:[#allocation4 + $0x20] sm:$0xff] %vm1255, %v1572
        %1598 = vst.msk [vmem:[#allocation4 + $0x28] sm:$0xf] %vm1593, %v1573
        %1599 = vst.msk [vmem:[#allocation4 + $0x30] sm:$0xff] %vm1255, %v1574
        %1600 = vst.msk [vmem:[#allocation4 + $0x38] sm:$0xf] %vm1593, %v1575
        %1601 = vst.msk [vmem:[#allocation4 + $0x40] sm:$0xff] %vm1255, %v1576
        %1602 = vst.msk [vmem:[#allocation4 + $0x48] sm:$0xf] %vm1593, %v1577
        %1603 = vst.msk [vmem:[#allocation4 + $0x50] sm:$0xff] %vm1255, %v1578
        %1604 = vst.msk [vmem:[#allocation4 + $0x58] sm:$0xf] %vm1593, %v1579
        %1605 = vst.msk [vmem:[#allocation4 + $0x60] sm:$0xff] %vm1255, %v1580
        %1606 = vst.msk [vmem:[#allocation4 + $0x68] sm:$0xf] %vm1593, %v1581
        %1607 = vst.msk [vmem:[#allocation4 + $0x70] sm:$0xff] %vm1255, %v1582
        %1608 = vst.msk [vmem:[#allocation4 + $0x78] sm:$0xf] %vm1593, %v1583
        %1609 = vst.msk [vmem:[#allocation4 + $0x80] sm:$0xff] %vm1255, %v1584
        %1610 = vst.msk [vmem:[#allocation4 + $0x88] sm:$0xf] %vm1593, %v1585
        %1611 = vst.msk [vmem:[#allocation4 + $0x90] sm:$0xff] %vm1255, %v1586
        %1612 = vst.msk [vmem:[#allocation4 + $0x98] sm:$0xf] %vm1593, %v1587
        %1613 = vst.msk [vmem:[#allocation4 + $0xa0] sm:$0xff] %vm1255, %v1588
        %1614 = vst.msk [vmem:[#allocation4 + $0xa8] sm:$0xf] %vm1593, %v1589
        %1615 = vst.msk [vmem:[#allocation4 + $0xb0] sm:$0xff] %vm1255, %v1590
        %1616 = vst.msk [vmem:[#allocation4 + $0xb8] sm:$0xf] %vm1593, %v1591
        %v1617 = vld [vmem:[#allocation4] sm:$0xff]
        %v1618 = vld [vmem:[#allocation4 + $0x10] sm:$0xff]
        %v1619 = vld [vmem:[#allocation4 + $0x20] sm:$0xff]
        %v1620 = vld [vmem:[#allocation4 + $0x30] sm:$0xff]
        %v1621 = vld [vmem:[#allocation4 + $0x40] sm:$0xff]
        %v1622 = vld [vmem:[#allocation4 + $0x50] sm:$0xff]
        %v1623 = vld [vmem:[#allocation4 + $0x60] sm:$0xff]
        %v1624 = vld [vmem:[#allocation4 + $0x70] sm:$0xff]
        %v1625 = vpack.c.bf16 %v1618, %v1617
        %v1626 = vpack.c.bf16 %v1620, %v1619
        %v1627 = vpack.c.bf16 %v1622, %v1621
        %v1628 = vpack.c.bf16 %v1624, %v1623
        %v1629 = vld [vmem:[%s3] sm:$0xf]
        %v1630 = vld [vmem:[#allocation4 + $0x1] sm:$0xff]
        %v1631 = vld [vmem:[#allocation4 + $0x11] sm:$0xff]
        %v1632 = vld [vmem:[#allocation4 + $0x21] sm:$0xff]
        %v1633 = vld [vmem:[#allocation4 + $0x31] sm:$0xff]
        %v1634 = vld [vmem:[#allocation4 + $0x41] sm:$0xff]
        %v1635 = vld [vmem:[#allocation4 + $0x51] sm:$0xff]
        %v1636 = vld [vmem:[#allocation4 + $0x61] sm:$0xff]
        %v1637 = vld [vmem:[#allocation4 + $0x71] sm:$0xff]
        %v1638 = vpack.c.bf16 %v1631, %v1630
        %v1639 = vpack.c.bf16 %v1633, %v1632
        %v1640 = vpack.c.bf16 %v1635, %v1634
        %v1641 = vpack.c.bf16 %v1637, %v1636
        %s1642 = scalar_lea.vmem %s3, 4
        %v1643 = vld [vmem:[%s1642] sm:$0xf]
        %v1645 = vsel %vm1255, %v1638, 0
        %v1648 = vsel %vm1255, %v1639, 0
        %v1651 = vsel %vm1255, %v1640, 0
        %v1654 = vsel %vm1255, %v1641, 0
        %vm1656 = vcmask 1043456
        %v1658 = vsel %vm1656, %v1643, 0
        %1660 = vmatprep.subr.bf16.mxu0 0
        %1661 = vmatpush1.bf16.msra.mxu0 %v1658
        %1662 = vmatprep.subr.bf16.mxu0 0
        %1663 = vmatpush1.bf16.msra.mxu0 0
        %1664 = vmatprep.subr.bf16.mxu0 0
        %1665 = vmatpush1.bf16.msra.mxu0 0
        %1666 = vmatprep.subr.bf16.mxu0 0
        %1667 = vmatpush1.bf16.msra.mxu0 0
        %1668 = vmatprep.subr.bf16.mxu0 0
        %1669 = vmatpush1.bf16.msra.mxu0 0
        %1670 = vmatprep.subr.bf16.mxu0 0
        %1671 = vmatpush1.bf16.msra.mxu0 0
        %1672 = vmatprep.subr.bf16.mxu0 0
        %1673 = vmatpush1.bf16.msra.mxu0 0
        %1674 = vmatprep.subr.bf16.mxu0 0
        %1675 = vmatpush1.bf16.msra.mxu0 0
        %1676 = vmatprep.subr.bf16.mxu0 0
        %1677 = vmatpush1.bf16.msra.mxu0 0
        %1678 = vmatprep.subr.bf16.mxu0 0
        %1679 = vmatpush1.bf16.msra.mxu0 0
        %1680 = vmatprep.subr.bf16.mxu0 0
        %1681 = vmatpush1.bf16.msra.mxu0 0
        %1682 = vmatprep.subr.bf16.mxu0 0
        %1683 = vmatpush1.bf16.msra.mxu0 0
        %1684 = vmatprep.subr.bf16.mxu0 0
        %1685 = vmatpush1.bf16.msra.mxu0 0
        %1686 = vmatprep.subr.bf16.mxu0 0
        %1687 = vmatpush1.bf16.msra.mxu0 0
        %1688 = vmatprep.subr.bf16.mxu0 0
        %1689 = vmatpush1.bf16.msra.mxu0 0
        %1690 = vmatprep.subr.bf16.mxu0 0
        %1691 = vmatpush1.bf16.msra.mxu0 0
        %1692 = vmatprep.mubr.bf16.mxu0 0
        %1693 = vmatmul.mubr.bf16.gmra.mrb[0].mxu0 %v1645
        %v1694 = vpop.f32.mrb[0].mxu0
        %v1695 = vadd.f32 0.0, %v1694
        %v1696 = vpop.f32.mrb[0].mxu0
        %v1697 = vpop.f32.mrb[0].mxu0
        %v1698 = vadd.f32 0.0, %v1697
        %v1699 = vpop.f32.mrb[0].mxu0
        %1700 = vmatprep.mubr.bf16.mxu0 0
        %1701 = vmatmul.mubr.bf16.gmra.mrb[0].mxu0 %v1648
        %v1702 = vpop.f32.mrb[0].mxu0
        %v1703 = vadd.f32 0.0, %v1702
        %v1704 = vpop.f32.mrb[0].mxu0
        %v1705 = vpop.f32.mrb[0].mxu0
        %v1706 = vadd.f32 0.0, %v1705
        %v1707 = vpop.f32.mrb[0].mxu0
        %1708 = vmatprep.mubr.bf16.mxu0 0
        %1709 = vmatmul.mubr.bf16.gmra.mrb[0].mxu0 %v1651
        %v1710 = vpop.f32.mrb[0].mxu0
        %v1711 = vadd.f32 0.0, %v1710
        %v1712 = vpop.f32.mrb[0].mxu0
        %v1713 = vpop.f32.mrb[0].mxu0
        %v1714 = vadd.f32 0.0, %v1713
        %v1715 = vpop.f32.mrb[0].mxu0
        %1716 = vmatprep.mubr.bf16.mxu0 0
        %1717 = vmatmul.mubr.bf16.gmra.mrb[0].mxu0 %v1654
        %v1718 = vpop.f32.mrb[0].mxu0
        %v1719 = vadd.f32 0.0, %v1718
        %v1720 = vpop.f32.mrb[0].mxu0
        %v1721 = vpop.f32.mrb[0].mxu0
        %v1722 = vadd.f32 0.0, %v1721
        %v1723 = vpop.f32.mrb[0].mxu0
        %1724 = vdwg.mxu0
        %v1726 = vsel %vm1255, %v1625, 0
        %v1729 = vsel %vm1255, %v1626, 0
        %v1732 = vsel %vm1255, %v1627, 0
        %v1735 = vsel %vm1255, %v1628, 0
        %v1738 = vsel %vm1656, %v1629, 0
        %1740 = vmatprep.subr.bf16.mxu0 0
        %1741 = vmatpush1.bf16.msra.mxu0 %v1738
        %1742 = vmatprep.subr.bf16.mxu0 0
        %1743 = vmatpush1.bf16.msra.mxu0 0
        %1744 = vmatprep.subr.bf16.mxu0 0
        %1745 = vmatpush1.bf16.msra.mxu0 0
        %1746 = vmatprep.subr.bf16.mxu0 0
        %1747 = vmatpush1.bf16.msra.mxu0 0
        %1748 = vmatprep.subr.bf16.mxu0 0
        %1749 = vmatpush1.bf16.msra.mxu0 0
        %1750 = vmatprep.subr.bf16.mxu0 0
        %1751 = vmatpush1.bf16.msra.mxu0 0
        %1752 = vmatprep.subr.bf16.mxu0 0
        %1753 = vmatpush1.bf16.msra.mxu0 0
        %1754 = vmatprep.subr.bf16.mxu0 0
        %1755 = vmatpush1.bf16.msra.mxu0 0
        %1756 = vmatprep.subr.bf16.mxu0 0
        %1757 = vmatpush1.bf16.msra.mxu0 0
        %1758 = vmatprep.subr.bf16.mxu0 0
        %1759 = vmatpush1.bf16.msra.mxu0 0
        %1760 = vmatprep.subr.bf16.mxu0 0
        %1761 = vmatpush1.bf16.msra.mxu0 0
        %1762 = vmatprep.subr.bf16.mxu0 0
        %1763 = vmatpush1.bf16.msra.mxu0 0
        %1764 = vmatprep.subr.bf16.mxu0 0
        %1765 = vmatpush1.bf16.msra.mxu0 0
        %1766 = vmatprep.subr.bf16.mxu0 0
        %1767 = vmatpush1.bf16.msra.mxu0 0
        %1768 = vmatprep.subr.bf16.mxu0 0
        %1769 = vmatpush1.bf16.msra.mxu0 0
        %1770 = vmatprep.subr.bf16.mxu0 0
        %1771 = vmatpush1.bf16.msra.mxu0 0
        %1772 = vmatprep.mubr.bf16.mxu0 0
        %1773 = vmatmul.mubr.bf16.gmra.mrb[0].mxu0 %v1726
        %v1774 = vpop.f32.mrb[0].mxu0
        %v1775 = vadd.f32 %v1695, %v1774
        %v1776 = vpop.f32.mrb[0].mxu0
        %v1777 = vpop.f32.mrb[0].mxu0
        %v1778 = vadd.f32 %v1698, %v1777
        %v1779 = vpop.f32.mrb[0].mxu0
        %1780 = vmatprep.mubr.bf16.mxu0 0
        %1781 = vmatmul.mubr.bf16.gmra.mrb[0].mxu0 %v1729
        %v1782 = vpop.f32.mrb[0].mxu0
        %v1783 = vadd.f32 %v1703, %v1782
        %v1784 = vpop.f32.mrb[0].mxu0
        %v1785 = vpop.f32.mrb[0].mxu0
        %v1786 = vadd.f32 %v1706, %v1785
        %v1787 = vpop.f32.mrb[0].mxu0
        %1788 = vmatprep.mubr.bf16.mxu0 0
        %1789 = vmatmul.mubr.bf16.gmra.mrb[0].mxu0 %v1732
        %v1790 = vpop.f32.mrb[0].mxu0
        %v1791 = vadd.f32 %v1711, %v1790
        %v1792 = vpop.f32.mrb[0].mxu0
        %v1793 = vpop.f32.mrb[0].mxu0
        %v1794 = vadd.f32 %v1714, %v1793
        %v1795 = vpop.f32.mrb[0].mxu0
        %1796 = vmatprep.mubr.bf16.mxu0 0
        %1797 = vmatmul.mubr.bf16.gmra.mrb[0].mxu0 %v1735
        %v1798 = vpop.f32.mrb[0].mxu0
        %v1799 = vadd.f32 %v1719, %v1798
        %v1800 = vpop.f32.mrb[0].mxu0
        %v1801 = vpop.f32.mrb[0].mxu0
        %v1802 = vadd.f32 %v1722, %v1801
        %v1803 = vpop.f32.mrb[0].mxu0
        %1804 = vdwg.mxu0
        %v1805 = vld [vmem:[#allocation4 + $0x2] sm:$0xff]
        %v1806 = vld [vmem:[#allocation4 + $0x12] sm:$0xff]
        %v1807 = vld [vmem:[#allocation4 + $0x22] sm:$0xff]
        %v1808 = vld [vmem:[#allocation4 + $0x32] sm:$0xff]
        %v1809 = vld [vmem:[#allocation4 + $0x42] sm:$0xff]
        %v1810 = vld [vmem:[#allocation4 + $0x52] sm:$0xff]
        %v1811 = vld [vmem:[#allocation4 + $0x62] sm:$0xff]
        %v1812 = vld [vmem:[#allocation4 + $0x72] sm:$0xff]
        %v1813 = vpack.c.bf16 %v1806, %v1805
        %v1814 = vpack.c.bf16 %v1808, %v1807
        %v1815 = vpack.c.bf16 %v1810, %v1809
        %v1816 = vpack.c.bf16 %v1812, %v1811
        %s1817 = scalar_lea.vmem %s3, 8
        %v1818 = vld [vmem:[%s1817] sm:$0xf]
        %v1820 = vsel %vm1255, %v1813, 0
        %v1823 = vsel %vm1255, %v1814, 0
        %v1826 = vsel %vm1255, %v1815, 0
        %v1829 = vsel %vm1255, %v1816, 0
        %v1832 = vsel %vm1656, %v1818, 0
        %1834 = vmatprep.subr.bf16.mxu0 0
        %1835 = vmatpush1.bf16.msra.mxu0 %v1832
        %1836 = vmatprep.subr.bf16.mxu0 0
        %1837 = vmatpush1.bf16.msra.mxu0 0
        %1838 = vmatprep.subr.bf16.mxu0 0
        %1839 = vmatpush1.bf16.msra.mxu0 0
        %1840 = vmatprep.subr.bf16.mxu0 0
        %1841 = vmatpush1.bf16.msra.mxu0 0
        %1842 = vmatprep.subr.bf16.mxu0 0
        %1843 = vmatpush1.bf16.msra.mxu0 0
        %1844 = vmatprep.subr.bf16.mxu0 0
        %1845 = vmatpush1.bf16.msra.mxu0 0
        %1846 = vmatprep.subr.bf16.mxu0 0
        %1847 = vmatpush1.bf16.msra.mxu0 0
        %1848 = vmatprep.subr.bf16.mxu0 0
        %1849 = vmatpush1.bf16.msra.mxu0 0
        %1850 = vmatprep.subr.bf16.mxu0 0
        %1851 = vmatpush1.bf16.msra.mxu0 0
        %1852 = vmatprep.subr.bf16.mxu0 0
        %1853 = vmatpush1.bf16.msra.mxu0 0
        %1854 = vmatprep.subr.bf16.mxu0 0
        %1855 = vmatpush1.bf16.msra.mxu0 0
        %1856 = vmatprep.subr.bf16.mxu0 0
        %1857 = vmatpush1.bf16.msra.mxu0 0
        %1858 = vmatprep.subr.bf16.mxu0 0
        %1859 = vmatpush1.bf16.msra.mxu0 0
        %1860 = vmatprep.subr.bf16.mxu0 0
        %1861 = vmatpush1.bf16.msra.mxu0 0
        %1862 = vmatprep.subr.bf16.mxu0 0
        %1863 = vmatpush1.bf16.msra.mxu0 0
        %1864 = vmatprep.subr.bf16.mxu0 0
        %1865 = vmatpush1.bf16.msra.mxu0 0
        %1866 = vmatprep.mubr.bf16.mxu0 0
        %1867 = vmatmul.mubr.bf16.gmra.mrb[0].mxu0 %v1820
        %v1868 = vpop.f32.mrb[0].mxu0
        %v1869 = vadd.f32 0.0, %v1868
        %v1870 = vpop.f32.mrb[0].mxu0
        %v1871 = vpop.f32.mrb[0].mxu0
        %v1872 = vadd.f32 0.0, %v1871
        %v1873 = vpop.f32.mrb[0].mxu0
        %1874 = vmatprep.mubr.bf16.mxu0 0
        %1875 = vmatmul.mubr.bf16.gmra.mrb[0].mxu0 %v1823
        %v1876 = vpop.f32.mrb[0].mxu0
        %v1877 = vadd.f32 0.0, %v1876
        %v1878 = vpop.f32.mrb[0].mxu0
        %v1879 = vpop.f32.mrb[0].mxu0
        %v1880 = vadd.f32 0.0, %v1879
        %v1881 = vpop.f32.mrb[0].mxu0
        %1882 = vmatprep.mubr.bf16.mxu0 0
        %1883 = vmatmul.mubr.bf16.gmra.mrb[0].mxu0 %v1826
        %v1884 = vpop.f32.mrb[0].mxu0
        %v1885 = vadd.f32 0.0, %v1884
        %v1886 = vpop.f32.mrb[0].mxu0
        %v1887 = vpop.f32.mrb[0].mxu0
        %v1888 = vadd.f32 0.0, %v1887
        %v1889 = vpop.f32.mrb[0].mxu0
        %1890 = vmatprep.mubr.bf16.mxu0 0
        %1891 = vmatmul.mubr.bf16.gmra.mrb[0].mxu0 %v1829
        %v1892 = vpop.f32.mrb[0].mxu0
        %v1893 = vadd.f32 0.0, %v1892
        %v1894 = vpop.f32.mrb[0].mxu0
        %v1895 = vpop.f32.mrb[0].mxu0
        %v1896 = vadd.f32 0.0, %v1895
        %v1897 = vpop.f32.mrb[0].mxu0
        %1898 = vdwg.mxu0
        %v1899 = vadd.f32 %v1775, %v1869
        %v1900 = vadd.f32 %v1778, %v1872
        %v1901 = vadd.f32 %v1783, %v1877
        %v1902 = vadd.f32 %v1786, %v1880
        %v1903 = vadd.f32 %v1791, %v1885
        %v1904 = vadd.f32 %v1794, %v1888
        %v1905 = vadd.f32 %v1799, %v1893
        %v1906 = vadd.f32 %v1802, %v1896
        %v1907 = vld [vmem:[#allocation4 + $0x3] sm:$0xff]
        %v1908 = vld [vmem:[#allocation4 + $0x13] sm:$0xff]
        %v1909 = vld [vmem:[#allocation4 + $0x23] sm:$0xff]
        %v1910 = vld [vmem:[#allocation4 + $0x33] sm:$0xff]
        %v1911 = vld [vmem:[#allocation4 + $0x43] sm:$0xff]
        %v1912 = vld [vmem:[#allocation4 + $0x53] sm:$0xff]
        %v1913 = vld [vmem:[#allocation4 + $0x63] sm:$0xff]
        %v1914 = vld [vmem:[#allocation4 + $0x73] sm:$0xff]
        %v1915 = vpack.c.bf16 %v1908, %v1907
        %v1916 = vpack.c.bf16 %v1910, %v1909
        %v1917 = vpack.c.bf16 %v1912, %v1911
        %v1918 = vpack.c.bf16 %v1914, %v1913
        %s1919 = scalar_lea.vmem %s3, 12
        %v1920 = vld [vmem:[%s1919] sm:$0xf]
        %v1922 = vsel %vm1255, %v1915, 0
        %v1925 = vsel %vm1255, %v1916, 0
        %v1928 = vsel %vm1255, %v1917, 0
        %v1931 = vsel %vm1255, %v1918, 0
        %v1934 = vsel %vm1656, %v1920, 0
        %1936 = vmatprep.subr.bf16.mxu0 0
        %1937 = vmatpush1.bf16.msra.mxu0 %v1934
        %1938 = vmatprep.subr.bf16.mxu0 0
        %1939 = vmatpush1.bf16.msra.mxu0 0
        %1940 = vmatprep.subr.bf16.mxu0 0
        %1941 = vmatpush1.bf16.msra.mxu0 0
        %1942 = vmatprep.subr.bf16.mxu0 0
        %1943 = vmatpush1.bf16.msra.mxu0 0
        %1944 = vmatprep.subr.bf16.mxu0 0
        %1945 = vmatpush1.bf16.msra.mxu0 0
        %1946 = vmatprep.subr.bf16.mxu0 0
        %1947 = vmatpush1.bf16.msra.mxu0 0
        %1948 = vmatprep.subr.bf16.mxu0 0
        %1949 = vmatpush1.bf16.msra.mxu0 0
        %1950 = vmatprep.subr.bf16.mxu0 0
        %1951 = vmatpush1.bf16.msra.mxu0 0
        %1952 = vmatprep.subr.bf16.mxu0 0
        %1953 = vmatpush1.bf16.msra.mxu0 0
        %1954 = vmatprep.subr.bf16.mxu0 0
        %1955 = vmatpush1.bf16.msra.mxu0 0
        %1956 = vmatprep.subr.bf16.mxu0 0
        %1957 = vmatpush1.bf16.msra.mxu0 0
        %1958 = vmatprep.subr.bf16.mxu0 0
        %1959 = vmatpush1.bf16.msra.mxu0 0
        %1960 = vmatprep.subr.bf16.mxu0 0
        %1961 = vmatpush1.bf16.msra.mxu0 0
        %1962 = vmatprep.subr.bf16.mxu0 0
        %1963 = vmatpush1.bf16.msra.mxu0 0
        %1964 = vmatprep.subr.bf16.mxu0 0
        %1965 = vmatpush1.bf16.msra.mxu0 0
        %1966 = vmatprep.subr.bf16.mxu0 0
        %1967 = vmatpush1.bf16.msra.mxu0 0
        %1968 = vmatprep.mubr.bf16.mxu0 0
        %1969 = vmatmul.mubr.bf16.gmra.mrb[0].mxu0 %v1922
        %v1970 = vpop.f32.mrb[0].mxu0
        %v1971 = vadd.f32 0.0, %v1970
        %v1972 = vpop.f32.mrb[0].mxu0
        %v1973 = vpop.f32.mrb[0].mxu0
        %v1974 = vadd.f32 0.0, %v1973
        %v1975 = vpop.f32.mrb[0].mxu0
        %1976 = vmatprep.mubr.bf16.mxu0 0
        %1977 = vmatmul.mubr.bf16.gmra.mrb[0].mxu0 %v1925
        %v1978 = vpop.f32.mrb[0].mxu0
        %v1979 = vadd.f32 0.0, %v1978
        %v1980 = vpop.f32.mrb[0].mxu0
        %v1981 = vpop.f32.mrb[0].mxu0
        %v1982 = vadd.f32 0.0, %v1981
        %v1983 = vpop.f32.mrb[0].mxu0
        %1984 = vmatprep.mubr.bf16.mxu0 0
        %1985 = vmatmul.mubr.bf16.gmra.mrb[0].mxu0 %v1928
        %v1986 = vpop.f32.mrb[0].mxu0
        %v1987 = vadd.f32 0.0, %v1986
        %v1988 = vpop.f32.mrb[0].mxu0
        %v1989 = vpop.f32.mrb[0].mxu0
        %v1990 = vadd.f32 0.0, %v1989
        %v1991 = vpop.f32.mrb[0].mxu0
        %1992 = vmatprep.mubr.bf16.mxu0 0
        %1993 = vmatmul.mubr.bf16.gmra.mrb[0].mxu0 %v1931
        %v1994 = vpop.f32.mrb[0].mxu0
        %v1995 = vadd.f32 0.0, %v1994
        %v1996 = vpop.f32.mrb[0].mxu0
        %v1997 = vpop.f32.mrb[0].mxu0
        %v1998 = vadd.f32 0.0, %v1997
        %v1999 = vpop.f32.mrb[0].mxu0
        %2000 = vdwg.mxu0
        %v2001 = vadd.f32 %v1899, %v1971
        %v2002 = vadd.f32 %v1900, %v1974
        %v2003 = vadd.f32 %v1901, %v1979
        %v2004 = vadd.f32 %v1902, %v1982
        %v2005 = vadd.f32 %v1903, %v1987
        %v2006 = vadd.f32 %v1904, %v1990
        %v2007 = vadd.f32 %v1905, %v1995
        %v2008 = vadd.f32 %v1906, %v1998
        %v2009 = vld [vmem:[#allocation4 + $0x4] sm:$0xff]
        %v2010 = vld [vmem:[#allocation4 + $0x14] sm:$0xff]
        %v2011 = vld [vmem:[#allocation4 + $0x24] sm:$0xff]
        %v2012 = vld [vmem:[#allocation4 + $0x34] sm:$0xff]
        %v2013 = vld [vmem:[#allocation4 + $0x44] sm:$0xff]
        %v2014 = vld [vmem:[#allocation4 + $0x54] sm:$0xff]
        %v2015 = vld [vmem:[#allocation4 + $0x64] sm:$0xff]
        %v2016 = vld [vmem:[#allocation4 + $0x74] sm:$0xff]
        %v2017 = vpack.c.bf16 %v2010, %v2009
        %v2018 = vpack.c.bf16 %v2012, %v2011
        %v2019 = vpack.c.bf16 %v2014, %v2013
        %v2020 = vpack.c.bf16 %v2016, %v2015
        %s2021 = scalar_lea.vmem %s3, 16
        %v2022 = vld [vmem:[%s2021] sm:$0xf]
        %v2024 = vsel %vm1255, %v2017, 0
        %v2027 = vsel %vm1255, %v2018, 0
        %v2030 = vsel %vm1255, %v2019, 0
        %v2033 = vsel %vm1255, %v2020, 0
        %v2036 = vsel %vm1656, %v2022, 0
        %2038 = vmatprep.subr.bf16.mxu0 0
        %2039 = vmatpush1.bf16.msra.mxu0 %v2036
        %2040 = vmatprep.subr.bf16.mxu0 0
        %2041 = vmatpush1.bf16.msra.mxu0 0
        %2042 = vmatprep.subr.bf16.mxu0 0
        %2043 = vmatpush1.bf16.msra.mxu0 0
        %2044 = vmatprep.subr.bf16.mxu0 0
        %2045 = vmatpush1.bf16.msra.mxu0 0
        %2046 = vmatprep.subr.bf16.mxu0 0
        %2047 = vmatpush1.bf16.msra.mxu0 0
        %2048 = vmatprep.subr.bf16.mxu0 0
        %2049 = vmatpush1.bf16.msra.mxu0 0
        %2050 = vmatprep.subr.bf16.mxu0 0
        %2051 = vmatpush1.bf16.msra.mxu0 0
        %2052 = vmatprep.subr.bf16.mxu0 0
        %2053 = vmatpush1.bf16.msra.mxu0 0
        %2054 = vmatprep.subr.bf16.mxu0 0
        %2055 = vmatpush1.bf16.msra.mxu0 0
        %2056 = vmatprep.subr.bf16.mxu0 0
        %2057 = vmatpush1.bf16.msra.mxu0 0
        %2058 = vmatprep.subr.bf16.mxu0 0
        %2059 = vmatpush1.bf16.msra.mxu0 0
        %2060 = vmatprep.subr.bf16.mxu0 0
        %2061 = vmatpush1.bf16.msra.mxu0 0
        %2062 = vmatprep.subr.bf16.mxu0 0
        %2063 = vmatpush1.bf16.msra.mxu0 0
        %2064 = vmatprep.subr.bf16.mxu0 0
        %2065 = vmatpush1.bf16.msra.mxu0 0
        %2066 = vmatprep.subr.bf16.mxu0 0
        %2067 = vmatpush1.bf16.msra.mxu0 0
        %2068 = vmatprep.subr.bf16.mxu0 0
        %2069 = vmatpush1.bf16.msra.mxu0 0
        %2070 = vmatprep.mubr.bf16.mxu0 0
        %2071 = vmatmul.mubr.bf16.gmra.mrb[0].mxu0 %v2024
        %v2072 = vpop.f32.mrb[0].mxu0
        %v2073 = vadd.f32 0.0, %v2072
        %v2074 = vpop.f32.mrb[0].mxu0
        %v2075 = vpop.f32.mrb[0].mxu0
        %v2076 = vadd.f32 0.0, %v2075
        %v2077 = vpop.f32.mrb[0].mxu0
        %2078 = vmatprep.mubr.bf16.mxu0 0
        %2079 = vmatmul.mubr.bf16.gmra.mrb[0].mxu0 %v2027
        %v2080 = vpop.f32.mrb[0].mxu0
        %v2081 = vadd.f32 0.0, %v2080
        %v2082 = vpop.f32.mrb[0].mxu0
        %v2083 = vpop.f32.mrb[0].mxu0
        %v2084 = vadd.f32 0.0, %v2083
        %v2085 = vpop.f32.mrb[0].mxu0
        %2086 = vmatprep.mubr.bf16.mxu0 0
        %2087 = vmatmul.mubr.bf16.gmra.mrb[0].mxu0 %v2030
        %v2088 = vpop.f32.mrb[0].mxu0
        %v2089 = vadd.f32 0.0, %v2088
        %v2090 = vpop.f32.mrb[0].mxu0
        %v2091 = vpop.f32.mrb[0].mxu0
        %v2092 = vadd.f32 0.0, %v2091
        %v2093 = vpop.f32.mrb[0].mxu0
        %2094 = vmatprep.mubr.bf16.mxu0 0
        %2095 = vmatmul.mubr.bf16.gmra.mrb[0].mxu0 %v2033
        %v2096 = vpop.f32.mrb[0].mxu0
        %v2097 = vadd.f32 0.0, %v2096
        %v2098 = vpop.f32.mrb[0].mxu0
        %v2099 = vpop.f32.mrb[0].mxu0
        %v2100 = vadd.f32 0.0, %v2099
        %v2101 = vpop.f32.mrb[0].mxu0
        %2102 = vdwg.mxu0
        %v2103 = vadd.f32 %v2001, %v2073
        %v2104 = vadd.f32 %v2002, %v2076
        %v2105 = vadd.f32 %v2003, %v2081
        %v2106 = vadd.f32 %v2004, %v2084
        %v2107 = vadd.f32 %v2005, %v2089
        %v2108 = vadd.f32 %v2006, %v2092
        %v2109 = vadd.f32 %v2007, %v2097
        %v2110 = vadd.f32 %v2008, %v2100
        %s2111 = scalar_lea.vmem [#allocation4], 16
        %v2112 = vld [vmem:[%s2111] sm:$0xff]
        %v2113 = vld [vmem:[%s2111 + $0x10] sm:$0xff]
        %v2114 = vld [vmem:[%s2111 + $0x20] sm:$0xff]
        %v2115 = vld [vmem:[%s2111 + $0x30] sm:$0xff]
        %v2116 = vld [vmem:[%s2111 + $0x40] sm:$0xff]
        %v2117 = vld [vmem:[%s2111 + $0x50] sm:$0xff]
        %v2118 = vld [vmem:[%s2111 + $0x60] sm:$0xff]
        %v2119 = vld [vmem:[%s2111 + $0x70] sm:$0xff]
        %v2120 = vpack.c.bf16 %v2113, %v2112
        %v2121 = vpack.c.bf16 %v2115, %v2114
        %v2122 = vpack.c.bf16 %v2117, %v2116
        %v2123 = vpack.c.bf16 %v2119, %v2118
        %s2124 = scalar_lea.vmem %s3, 20
        %v2125 = vld [vmem:[%s2124] sm:$0xf]
        %v2127 = vsel %vm1255, %v2120, 0
        %v2130 = vsel %vm1255, %v2121, 0
        %v2133 = vsel %vm1255, %v2122, 0
        %v2136 = vsel %vm1255, %v2123, 0
        %v2139 = vsel %vm1656, %v2125, 0
        %2141 = vmatprep.subr.bf16.mxu0 0
        %2142 = vmatpush1.bf16.msra.mxu0 %v2139
        %2143 = vmatprep.subr.bf16.mxu0 0
        %2144 = vmatpush1.bf16.msra.mxu0 0
        %2145 = vmatprep.subr.bf16.mxu0 0
        %2146 = vmatpush1.bf16.msra.mxu0 0
        %2147 = vmatprep.subr.bf16.mxu0 0
        %2148 = vmatpush1.bf16.msra.mxu0 0
        %2149 = vmatprep.subr.bf16.mxu0 0
        %2150 = vmatpush1.bf16.msra.mxu0 0
        %2151 = vmatprep.subr.bf16.mxu0 0
        %2152 = vmatpush1.bf16.msra.mxu0 0
        %2153 = vmatprep.subr.bf16.mxu0 0
        %2154 = vmatpush1.bf16.msra.mxu0 0
        %2155 = vmatprep.subr.bf16.mxu0 0
        %2156 = vmatpush1.bf16.msra.mxu0 0
        %2157 = vmatprep.subr.bf16.mxu0 0
        %2158 = vmatpush1.bf16.msra.mxu0 0
        %2159 = vmatprep.subr.bf16.mxu0 0
        %2160 = vmatpush1.bf16.msra.mxu0 0
        %2161 = vmatprep.subr.bf16.mxu0 0
        %2162 = vmatpush1.bf16.msra.mxu0 0
        %2163 = vmatprep.subr.bf16.mxu0 0
        %2164 = vmatpush1.bf16.msra.mxu0 0
        %2165 = vmatprep.subr.bf16.mxu0 0
        %2166 = vmatpush1.bf16.msra.mxu0 0
        %2167 = vmatprep.subr.bf16.mxu0 0
        %2168 = vmatpush1.bf16.msra.mxu0 0
        %2169 = vmatprep.subr.bf16.mxu0 0
        %2170 = vmatpush1.bf16.msra.mxu0 0
        %2171 = vmatprep.subr.bf16.mxu0 0
        %2172 = vmatpush1.bf16.msra.mxu0 0
        %2173 = vmatprep.mubr.bf16.mxu0 0
        %2174 = vmatmul.mubr.bf16.gmra.mrb[0].mxu0 %v2127
        %v2175 = vpop.f32.mrb[0].mxu0
        %v2176 = vadd.f32 0.0, %v2175
        %v2177 = vpop.f32.mrb[0].mxu0
        %v2178 = vpop.f32.mrb[0].mxu0
        %v2179 = vadd.f32 0.0, %v2178
        %v2180 = vpop.f32.mrb[0].mxu0
        %2181 = vmatprep.mubr.bf16.mxu0 0
        %2182 = vmatmul.mubr.bf16.gmra.mrb[0].mxu0 %v2130
        %v2183 = vpop.f32.mrb[0].mxu0
        %v2184 = vadd.f32 0.0, %v2183
        %v2185 = vpop.f32.mrb[0].mxu0
        %v2186 = vpop.f32.mrb[0].mxu0
        %v2187 = vadd.f32 0.0, %v2186
        %v2188 = vpop.f32.mrb[0].mxu0
        %2189 = vmatprep.mubr.bf16.mxu0 0
        %2190 = vmatmul.mubr.bf16.gmra.mrb[0].mxu0 %v2133
        %v2191 = vpop.f32.mrb[0].mxu0
        %v2192 = vadd.f32 0.0, %v2191
        %v2193 = vpop.f32.mrb[0].mxu0
        %v2194 = vpop.f32.mrb[0].mxu0
        %v2195 = vadd.f32 0.0, %v2194
        %v2196 = vpop.f32.mrb[0].mxu0
        %2197 = vmatprep.mubr.bf16.mxu0 0
        %2198 = vmatmul.mubr.bf16.gmra.mrb[0].mxu0 %v2136
        %v2199 = vpop.f32.mrb[0].mxu0
        %v2200 = vadd.f32 0.0, %v2199
        %v2201 = vpop.f32.mrb[0].mxu0
        %v2202 = vpop.f32.mrb[0].mxu0
        %v2203 = vadd.f32 0.0, %v2202
        %v2204 = vpop.f32.mrb[0].mxu0
        %2205 = vdwg.mxu0
        %v2206 = vadd.f32 %v2103, %v2176
        %v2207 = vadd.f32 %v2104, %v2179
        %v2208 = vadd.f32 %v2105, %v2184
        %v2209 = vadd.f32 %v2106, %v2187
        %v2210 = vadd.f32 %v2107, %v2192
        %v2211 = vadd.f32 %v2108, %v2195
        %v2212 = vadd.f32 %v2109, %v2200
        %v2213 = vadd.f32 %v2110, %v2203
        %v2214 = vld [vmem:[%s2111 + $0x1] sm:$0xff]
        %v2215 = vld [vmem:[%s2111 + $0x11] sm:$0xff]
        %v2216 = vld [vmem:[%s2111 + $0x21] sm:$0xff]
        %v2217 = vld [vmem:[%s2111 + $0x31] sm:$0xff]
        %v2218 = vld [vmem:[%s2111 + $0x41] sm:$0xff]
        %v2219 = vld [vmem:[%s2111 + $0x51] sm:$0xff]
        %v2220 = vld [vmem:[%s2111 + $0x61] sm:$0xff]
        %v2221 = vld [vmem:[%s2111 + $0x71] sm:$0xff]
        %v2222 = vpack.c.bf16 %v2215, %v2214
        %v2223 = vpack.c.bf16 %v2217, %v2216
        %v2224 = vpack.c.bf16 %v2219, %v2218
        %v2225 = vpack.c.bf16 %v2221, %v2220
        %s2226 = scalar_lea.vmem %s3, 24
        %v2227 = vld [vmem:[%s2226] sm:$0xf]
        %v2229 = vsel %vm1255, %v2222, 0
        %v2232 = vsel %vm1255, %v2223, 0
        %v2235 = vsel %vm1255, %v2224, 0
        %v2238 = vsel %vm1255, %v2225, 0
        %v2241 = vsel %vm1656, %v2227, 0
        %2243 = vmatprep.subr.bf16.mxu0 0
        %2244 = vmatpush1.bf16.msra.mxu0 %v2241
        %2245 = vmatprep.subr.bf16.mxu0 0
        %2246 = vmatpush1.bf16.msra.mxu0 0
        %2247 = vmatprep.subr.bf16.mxu0 0
        %2248 = vmatpush1.bf16.msra.mxu0 0
        %2249 = vmatprep.subr.bf16.mxu0 0
        %2250 = vmatpush1.bf16.msra.mxu0 0
        %2251 = vmatprep.subr.bf16.mxu0 0
        %2252 = vmatpush1.bf16.msra.mxu0 0
        %2253 = vmatprep.subr.bf16.mxu0 0
        %2254 = vmatpush1.bf16.msra.mxu0 0
        %2255 = vmatprep.subr.bf16.mxu0 0
        %2256 = vmatpush1.bf16.msra.mxu0 0
        %2257 = vmatprep.subr.bf16.mxu0 0
        %2258 = vmatpush1.bf16.msra.mxu0 0
        %2259 = vmatprep.subr.bf16.mxu0 0
        %2260 = vmatpush1.bf16.msra.mxu0 0
        %2261 = vmatprep.subr.bf16.mxu0 0
        %2262 = vmatpush1.bf16.msra.mxu0 0
        %2263 = vmatprep.subr.bf16.mxu0 0
        %2264 = vmatpush1.bf16.msra.mxu0 0
        %2265 = vmatprep.subr.bf16.mxu0 0
        %2266 = vmatpush1.bf16.msra.mxu0 0
        %2267 = vmatprep.subr.bf16.mxu0 0
        %2268 = vmatpush1.bf16.msra.mxu0 0
        %2269 = vmatprep.subr.bf16.mxu0 0
        %2270 = vmatpush1.bf16.msra.mxu0 0
        %2271 = vmatprep.subr.bf16.mxu0 0
        %2272 = vmatpush1.bf16.msra.mxu0 0
        %2273 = vmatprep.subr.bf16.mxu0 0
        %2274 = vmatpush1.bf16.msra.mxu0 0
        %2275 = vmatprep.mubr.bf16.mxu0 0
        %2276 = vmatmul.mubr.bf16.gmra.mrb[0].mxu0 %v2229
        %v2277 = vpop.f32.mrb[0].mxu0
        %v2278 = vadd.f32 0.0, %v2277
        %v2279 = vpop.f32.mrb[0].mxu0
        %v2280 = vpop.f32.mrb[0].mxu0
        %v2281 = vadd.f32 0.0, %v2280
        %v2282 = vpop.f32.mrb[0].mxu0
        %2283 = vmatprep.mubr.bf16.mxu0 0
        %2284 = vmatmul.mubr.bf16.gmra.mrb[0].mxu0 %v2232
        %v2285 = vpop.f32.mrb[0].mxu0
        %v2286 = vadd.f32 0.0, %v2285
        %v2287 = vpop.f32.mrb[0].mxu0
        %v2288 = vpop.f32.mrb[0].mxu0
        %v2289 = vadd.f32 0.0, %v2288
        %v2290 = vpop.f32.mrb[0].mxu0
        %2291 = vmatprep.mubr.bf16.mxu0 0
        %2292 = vmatmul.mubr.bf16.gmra.mrb[0].mxu0 %v2235
        %v2293 = vpop.f32.mrb[0].mxu0
        %v2294 = vadd.f32 0.0, %v2293
        %v2295 = vpop.f32.mrb[0].mxu0
        %v2296 = vpop.f32.mrb[0].mxu0
        %v2297 = vadd.f32 0.0, %v2296
        %v2298 = vpop.f32.mrb[0].mxu0
        %2299 = vmatprep.mubr.bf16.mxu0 0
        %2300 = vmatmul.mubr.bf16.gmra.mrb[0].mxu0 %v2238
        %v2301 = vpop.f32.mrb[0].mxu0
        %v2302 = vadd.f32 0.0, %v2301
        %v2303 = vpop.f32.mrb[0].mxu0
        %v2304 = vpop.f32.mrb[0].mxu0
        %v2305 = vadd.f32 0.0, %v2304
        %v2306 = vpop.f32.mrb[0].mxu0
        %2307 = vdwg.mxu0
        %v2308 = vadd.f32 %v2206, %v2278
        %v2309 = vadd.f32 %v2207, %v2281
        %v2310 = vadd.f32 %v2208, %v2286
        %v2311 = vadd.f32 %v2209, %v2289
        %v2312 = vadd.f32 %v2210, %v2294
        %v2313 = vadd.f32 %v2211, %v2297
        %v2314 = vadd.f32 %v2212, %v2302
        %v2315 = vadd.f32 %v2213, %v2305
        %v2316 = vld [vmem:[%s2111 + $0x2] sm:$0xff]
        %v2317 = vld [vmem:[%s2111 + $0x12] sm:$0xff]
        %v2318 = vld [vmem:[%s2111 + $0x22] sm:$0xff]
        %v2319 = vld [vmem:[%s2111 + $0x32] sm:$0xff]
        %v2320 = vld [vmem:[%s2111 + $0x42] sm:$0xff]
        %v2321 = vld [vmem:[%s2111 + $0x52] sm:$0xff]
        %v2322 = vld [vmem:[%s2111 + $0x62] sm:$0xff]
        %v2323 = vld [vmem:[%s2111 + $0x72] sm:$0xff]
        %v2324 = vpack.c.bf16 %v2317, %v2316
        %v2325 = vpack.c.bf16 %v2319, %v2318
        %v2326 = vpack.c.bf16 %v2321, %v2320
        %v2327 = vpack.c.bf16 %v2323, %v2322
        %s2328 = scalar_lea.vmem %s3, 28
        %v2329 = vld [vmem:[%s2328] sm:$0xf]
        %v2331 = vsel %vm1255, %v2324, 0
        %v2334 = vsel %vm1255, %v2325, 0
        %v2337 = vsel %vm1255, %v2326, 0
        %v2340 = vsel %vm1255, %v2327, 0
        %v2343 = vsel %vm1656, %v2329, 0
        %2345 = vmatprep.subr.bf16.mxu0 0
        %2346 = vmatpush1.bf16.msra.mxu0 %v2343
        %2347 = vmatprep.subr.bf16.mxu0 0
        %2348 = vmatpush1.bf16.msra.mxu0 0
        %2349 = vmatprep.subr.bf16.mxu0 0
        %2350 = vmatpush1.bf16.msra.mxu0 0
        %2351 = vmatprep.subr.bf16.mxu0 0
        %2352 = vmatpush1.bf16.msra.mxu0 0
        %2353 = vmatprep.subr.bf16.mxu0 0
        %2354 = vmatpush1.bf16.msra.mxu0 0
        %2355 = vmatprep.subr.bf16.mxu0 0
        %2356 = vmatpush1.bf16.msra.mxu0 0
        %2357 = vmatprep.subr.bf16.mxu0 0
        %2358 = vmatpush1.bf16.msra.mxu0 0
        %2359 = vmatprep.subr.bf16.mxu0 0
        %2360 = vmatpush1.bf16.msra.mxu0 0
        %2361 = vmatprep.subr.bf16.mxu0 0
        %2362 = vmatpush1.bf16.msra.mxu0 0
        %2363 = vmatprep.subr.bf16.mxu0 0
        %2364 = vmatpush1.bf16.msra.mxu0 0
        %2365 = vmatprep.subr.bf16.mxu0 0
        %2366 = vmatpush1.bf16.msra.mxu0 0
        %2367 = vmatprep.subr.bf16.mxu0 0
        %2368 = vmatpush1.bf16.msra.mxu0 0
        %2369 = vmatprep.subr.bf16.mxu0 0
        %2370 = vmatpush1.bf16.msra.mxu0 0
        %2371 = vmatprep.subr.bf16.mxu0 0
        %2372 = vmatpush1.bf16.msra.mxu0 0
        %2373 = vmatprep.subr.bf16.mxu0 0
        %2374 = vmatpush1.bf16.msra.mxu0 0
        %2375 = vmatprep.subr.bf16.mxu0 0
        %2376 = vmatpush1.bf16.msra.mxu0 0
        %2377 = vmatprep.mubr.bf16.mxu0 0
        %2378 = vmatmul.mubr.bf16.gmra.mrb[0].mxu0 %v2331
        %v2379 = vpop.f32.mrb[0].mxu0
        %v2380 = vadd.f32 0.0, %v2379
        %v2381 = vpop.f32.mrb[0].mxu0
        %v2382 = vpop.f32.mrb[0].mxu0
        %v2383 = vadd.f32 0.0, %v2382
        %v2384 = vpop.f32.mrb[0].mxu0
        %2385 = vmatprep.mubr.bf16.mxu0 0
        %2386 = vmatmul.mubr.bf16.gmra.mrb[0].mxu0 %v2334
        %v2387 = vpop.f32.mrb[0].mxu0
        %v2388 = vadd.f32 0.0, %v2387
        %v2389 = vpop.f32.mrb[0].mxu0
        %v2390 = vpop.f32.mrb[0].mxu0
        %v2391 = vadd.f32 0.0, %v2390
        %v2392 = vpop.f32.mrb[0].mxu0
        %2393 = vmatprep.mubr.bf16.mxu0 0
        %2394 = vmatmul.mubr.bf16.gmra.mrb[0].mxu0 %v2337
        %v2395 = vpop.f32.mrb[0].mxu0
        %v2396 = vadd.f32 0.0, %v2395
        %v2397 = vpop.f32.mrb[0].mxu0
        %v2398 = vpop.f32.mrb[0].mxu0
        %v2399 = vadd.f32 0.0, %v2398
        %v2400 = vpop.f32.mrb[0].mxu0
        %2401 = vmatprep.mubr.bf16.mxu0 0
        %2402 = vmatmul.mubr.bf16.gmra.mrb[0].mxu0 %v2340
        %v2403 = vpop.f32.mrb[0].mxu0
        %v2404 = vadd.f32 0.0, %v2403
        %v2405 = vpop.f32.mrb[0].mxu0
        %v2406 = vpop.f32.mrb[0].mxu0
        %v2407 = vadd.f32 0.0, %v2406
        %v2408 = vpop.f32.mrb[0].mxu0
        %2409 = vdwg.mxu0
        %v2410 = vadd.f32 %v2308, %v2380
        %v2411 = vadd.f32 %v2309, %v2383
        %v2412 = vadd.f32 %v2310, %v2388
        %v2413 = vadd.f32 %v2311, %v2391
        %v2414 = vadd.f32 %v2312, %v2396
        %v2415 = vadd.f32 %v2313, %v2399
        %v2416 = vadd.f32 %v2314, %v2404
        %v2417 = vadd.f32 %v2315, %v2407
        %v2418 = vld [vmem:[%s2111 + $0x3] sm:$0xff]
        %v2419 = vld [vmem:[%s2111 + $0x13] sm:$0xff]
        %v2420 = vld [vmem:[%s2111 + $0x23] sm:$0xff]
        %v2421 = vld [vmem:[%s2111 + $0x33] sm:$0xff]
        %v2422 = vld [vmem:[%s2111 + $0x43] sm:$0xff]
        %v2423 = vld [vmem:[%s2111 + $0x53] sm:$0xff]
        %v2424 = vld [vmem:[%s2111 + $0x63] sm:$0xff]
        %v2425 = vld [vmem:[%s2111 + $0x73] sm:$0xff]
        %v2426 = vpack.c.bf16 %v2419, %v2418
        %v2427 = vpack.c.bf16 %v2421, %v2420
        %v2428 = vpack.c.bf16 %v2423, %v2422
        %v2429 = vpack.c.bf16 %v2425, %v2424
        %s2430 = scalar_lea.vmem %s3, 32
        %v2431 = vld [vmem:[%s2430] sm:$0xf]
        %v2433 = vsel %vm1255, %v2426, 0
        %v2436 = vsel %vm1255, %v2427, 0
        %v2439 = vsel %vm1255, %v2428, 0
        %v2442 = vsel %vm1255, %v2429, 0
        %v2445 = vsel %vm1656, %v2431, 0
        %2447 = vmatprep.subr.bf16.mxu0 0
        %2448 = vmatpush1.bf16.msra.mxu0 %v2445
        %2449 = vmatprep.subr.bf16.mxu0 0
        %2450 = vmatpush1.bf16.msra.mxu0 0
        %2451 = vmatprep.subr.bf16.mxu0 0
        %2452 = vmatpush1.bf16.msra.mxu0 0
        %2453 = vmatprep.subr.bf16.mxu0 0
        %2454 = vmatpush1.bf16.msra.mxu0 0
        %2455 = vmatprep.subr.bf16.mxu0 0
        %2456 = vmatpush1.bf16.msra.mxu0 0
        %2457 = vmatprep.subr.bf16.mxu0 0
        %2458 = vmatpush1.bf16.msra.mxu0 0
        %2459 = vmatprep.subr.bf16.mxu0 0
        %2460 = vmatpush1.bf16.msra.mxu0 0
        %2461 = vmatprep.subr.bf16.mxu0 0
        %2462 = vmatpush1.bf16.msra.mxu0 0
        %2463 = vmatprep.subr.bf16.mxu0 0
        %2464 = vmatpush1.bf16.msra.mxu0 0
        %2465 = vmatprep.subr.bf16.mxu0 0
        %2466 = vmatpush1.bf16.msra.mxu0 0
        %2467 = vmatprep.subr.bf16.mxu0 0
        %2468 = vmatpush1.bf16.msra.mxu0 0
        %2469 = vmatprep.subr.bf16.mxu0 0
        %2470 = vmatpush1.bf16.msra.mxu0 0
        %2471 = vmatprep.subr.bf16.mxu0 0
        %2472 = vmatpush1.bf16.msra.mxu0 0
        %2473 = vmatprep.subr.bf16.mxu0 0
        %2474 = vmatpush1.bf16.msra.mxu0 0
        %2475 = vmatprep.subr.bf16.mxu0 0
        %2476 = vmatpush1.bf16.msra.mxu0 0
        %2477 = vmatprep.subr.bf16.mxu0 0
        %2478 = vmatpush1.bf16.msra.mxu0 0
        %2479 = vmatprep.mubr.bf16.mxu0 0
        %2480 = vmatmul.mubr.bf16.gmra.mrb[0].mxu0 %v2433
        %v2481 = vpop.f32.mrb[0].mxu0
        %v2482 = vadd.f32 0.0, %v2481
        %v2483 = vpop.f32.mrb[0].mxu0
        %v2484 = vpop.f32.mrb[0].mxu0
        %v2485 = vadd.f32 0.0, %v2484
        %v2486 = vpop.f32.mrb[0].mxu0
        %2487 = vmatprep.mubr.bf16.mxu0 0
        %2488 = vmatmul.mubr.bf16.gmra.mrb[0].mxu0 %v2436
        %v2489 = vpop.f32.mrb[0].mxu0
        %v2490 = vadd.f32 0.0, %v2489
        %v2491 = vpop.f32.mrb[0].mxu0
        %v2492 = vpop.f32.mrb[0].mxu0
        %v2493 = vadd.f32 0.0, %v2492
        %v2494 = vpop.f32.mrb[0].mxu0
        %2495 = vmatprep.mubr.bf16.mxu0 0
        %2496 = vmatmul.mubr.bf16.gmra.mrb[0].mxu0 %v2439
        %v2497 = vpop.f32.mrb[0].mxu0
        %v2498 = vadd.f32 0.0, %v2497
        %v2499 = vpop.f32.mrb[0].mxu0
        %v2500 = vpop.f32.mrb[0].mxu0
        %v2501 = vadd.f32 0.0, %v2500
        %v2502 = vpop.f32.mrb[0].mxu0
        %2503 = vmatprep.mubr.bf16.mxu0 0
        %2504 = vmatmul.mubr.bf16.gmra.mrb[0].mxu0 %v2442
        %v2505 = vpop.f32.mrb[0].mxu0
        %v2506 = vadd.f32 0.0, %v2505
        %v2507 = vpop.f32.mrb[0].mxu0
        %v2508 = vpop.f32.mrb[0].mxu0
        %v2509 = vadd.f32 0.0, %v2508
        %v2510 = vpop.f32.mrb[0].mxu0
        %2511 = vdwg.mxu0
        %v2512 = vadd.f32 %v2410, %v2482
        %v2513 = vadd.f32 %v2411, %v2485
        %v2514 = vadd.f32 %v2412, %v2490
        %v2515 = vadd.f32 %v2413, %v2493
        %v2516 = vadd.f32 %v2414, %v2498
        %v2517 = vadd.f32 %v2415, %v2501
        %v2518 = vadd.f32 %v2416, %v2506
        %v2519 = vadd.f32 %v2417, %v2509
        %v2520 = vld [vmem:[%s2111 + $0x4] sm:$0xff]
        %v2521 = vld [vmem:[%s2111 + $0x14] sm:$0xff]
        %v2522 = vld [vmem:[%s2111 + $0x24] sm:$0xff]
        %v2523 = vld [vmem:[%s2111 + $0x34] sm:$0xff]
        %v2524 = vld [vmem:[%s2111 + $0x44] sm:$0xff]
        %v2525 = vld [vmem:[%s2111 + $0x54] sm:$0xff]
        %v2526 = vld [vmem:[%s2111 + $0x64] sm:$0xff]
        %v2527 = vld [vmem:[%s2111 + $0x74] sm:$0xff]
        %v2528 = vpack.c.bf16 %v2521, %v2520
        %v2529 = vpack.c.bf16 %v2523, %v2522
        %v2530 = vpack.c.bf16 %v2525, %v2524
        %v2531 = vpack.c.bf16 %v2527, %v2526
        %s2532 = scalar_lea.vmem %s3, 36
        %v2533 = vld [vmem:[%s2532] sm:$0xf]
        %v2535 = vsel %vm1255, %v2528, 0
        %v2538 = vsel %vm1255, %v2529, 0
        %v2541 = vsel %vm1255, %v2530, 0
        %v2544 = vsel %vm1255, %v2531, 0
        %v2547 = vsel %vm1656, %v2533, 0
        %2549 = vmatprep.subr.bf16.mxu0 0
        %2550 = vmatpush1.bf16.msra.mxu0 %v2547
        %2551 = vmatprep.subr.bf16.mxu0 0
        %2552 = vmatpush1.bf16.msra.mxu0 0
        %2553 = vmatprep.subr.bf16.mxu0 0
        %2554 = vmatpush1.bf16.msra.mxu0 0
        %2555 = vmatprep.subr.bf16.mxu0 0
        %2556 = vmatpush1.bf16.msra.mxu0 0
        %2557 = vmatprep.subr.bf16.mxu0 0
        %2558 = vmatpush1.bf16.msra.mxu0 0
        %2559 = vmatprep.subr.bf16.mxu0 0
        %2560 = vmatpush1.bf16.msra.mxu0 0
        %2561 = vmatprep.subr.bf16.mxu0 0
        %2562 = vmatpush1.bf16.msra.mxu0 0
        %2563 = vmatprep.subr.bf16.mxu0 0
        %2564 = vmatpush1.bf16.msra.mxu0 0
        %2565 = vmatprep.subr.bf16.mxu0 0
        %2566 = vmatpush1.bf16.msra.mxu0 0
        %2567 = vmatprep.subr.bf16.mxu0 0
        %2568 = vmatpush1.bf16.msra.mxu0 0
        %2569 = vmatprep.subr.bf16.mxu0 0
        %2570 = vmatpush1.bf16.msra.mxu0 0
        %2571 = vmatprep.subr.bf16.mxu0 0
        %2572 = vmatpush1.bf16.msra.mxu0 0
        %2573 = vmatprep.subr.bf16.mxu0 0
        %2574 = vmatpush1.bf16.msra.mxu0 0
        %2575 = vmatprep.subr.bf16.mxu0 0
        %2576 = vmatpush1.bf16.msra.mxu0 0
        %2577 = vmatprep.subr.bf16.mxu0 0
        %2578 = vmatpush1.bf16.msra.mxu0 0
        %2579 = vmatprep.subr.bf16.mxu0 0
        %2580 = vmatpush1.bf16.msra.mxu0 0
        %2581 = vmatprep.mubr.bf16.mxu0 0
        %2582 = vmatmul.mubr.bf16.gmra.mrb[0].mxu0 %v2535
        %v2583 = vpop.f32.mrb[0].mxu0
        %v2584 = vadd.f32 0.0, %v2583
        %v2585 = vpop.f32.mrb[0].mxu0
        %v2586 = vpop.f32.mrb[0].mxu0
        %v2587 = vadd.f32 0.0, %v2586
        %v2588 = vpop.f32.mrb[0].mxu0
        %2589 = vmatprep.mubr.bf16.mxu0 0
        %2590 = vmatmul.mubr.bf16.gmra.mrb[0].mxu0 %v2538
        %v2591 = vpop.f32.mrb[0].mxu0
        %v2592 = vadd.f32 0.0, %v2591
        %v2593 = vpop.f32.mrb[0].mxu0
        %v2594 = vpop.f32.mrb[0].mxu0
        %v2595 = vadd.f32 0.0, %v2594
        %v2596 = vpop.f32.mrb[0].mxu0
        %2597 = vmatprep.mubr.bf16.mxu0 0
        %2598 = vmatmul.mubr.bf16.gmra.mrb[0].mxu0 %v2541
        %v2599 = vpop.f32.mrb[0].mxu0
        %v2600 = vadd.f32 0.0, %v2599
        %v2601 = vpop.f32.mrb[0].mxu0
        %v2602 = vpop.f32.mrb[0].mxu0
        %v2603 = vadd.f32 0.0, %v2602
        %v2604 = vpop.f32.mrb[0].mxu0
        %2605 = vmatprep.mubr.bf16.mxu0 0
        %2606 = vmatmul.mubr.bf16.gmra.mrb[0].mxu0 %v2544
        %v2607 = vpop.f32.mrb[0].mxu0
        %v2608 = vadd.f32 0.0, %v2607
        %v2609 = vpop.f32.mrb[0].mxu0
        %v2610 = vpop.f32.mrb[0].mxu0
        %v2611 = vadd.f32 0.0, %v2610
        %v2612 = vpop.f32.mrb[0].mxu0
        %2613 = vdwg.mxu0
        %v2614 = vadd.f32 %v2512, %v2584
        %v2615 = vadd.f32 %v2513, %v2587
        %v2616 = vadd.f32 %v2514, %v2592
        %v2617 = vadd.f32 %v2515, %v2595
        %v2618 = vadd.f32 %v2516, %v2600
        %v2619 = vadd.f32 %v2517, %v2603
        %v2620 = vadd.f32 %v2518, %v2608
        %v2621 = vadd.f32 %v2519, %v2611
        %s2622 = scalar_lea.vmem [#allocation4], 32
        %v2623 = vld [vmem:[%s2622] sm:$0xff]
        %v2624 = vld [vmem:[%s2622 + $0x10] sm:$0xff]
        %v2625 = vld [vmem:[%s2622 + $0x20] sm:$0xff]
        %v2626 = vld [vmem:[%s2622 + $0x30] sm:$0xff]
        %v2627 = vld [vmem:[%s2622 + $0x40] sm:$0xff]
        %v2628 = vld [vmem:[%s2622 + $0x50] sm:$0xff]
        %v2629 = vld [vmem:[%s2622 + $0x60] sm:$0xff]
        %v2630 = vld [vmem:[%s2622 + $0x70] sm:$0xff]
        %v2631 = vpack.c.bf16 %v2624, %v2623
        %v2632 = vpack.c.bf16 %v2626, %v2625
        %v2633 = vpack.c.bf16 %v2628, %v2627
        %v2634 = vpack.c.bf16 %v2630, %v2629
        %s2635 = scalar_lea.vmem %s3, 40
        %v2636 = vld [vmem:[%s2635] sm:$0xf]
        %v2638 = vsel %vm1255, %v2631, 0
        %v2641 = vsel %vm1255, %v2632, 0
        %v2644 = vsel %vm1255, %v2633, 0
        %v2647 = vsel %vm1255, %v2634, 0
        %v2650 = vsel %vm1656, %v2636, 0
        %2652 = vmatprep.subr.bf16.mxu0 0
        %2653 = vmatpush1.bf16.msra.mxu0 %v2650
        %2654 = vmatprep.subr.bf16.mxu0 0
        %2655 = vmatpush1.bf16.msra.mxu0 0
        %2656 = vmatprep.subr.bf16.mxu0 0
        %2657 = vmatpush1.bf16.msra.mxu0 0
        %2658 = vmatprep.subr.bf16.mxu0 0
        %2659 = vmatpush1.bf16.msra.mxu0 0
        %2660 = vmatprep.subr.bf16.mxu0 0
        %2661 = vmatpush1.bf16.msra.mxu0 0
        %2662 = vmatprep.subr.bf16.mxu0 0
        %2663 = vmatpush1.bf16.msra.mxu0 0
        %2664 = vmatprep.subr.bf16.mxu0 0
        %2665 = vmatpush1.bf16.msra.mxu0 0
        %2666 = vmatprep.subr.bf16.mxu0 0
        %2667 = vmatpush1.bf16.msra.mxu0 0
        %2668 = vmatprep.subr.bf16.mxu0 0
        %2669 = vmatpush1.bf16.msra.mxu0 0
        %2670 = vmatprep.subr.bf16.mxu0 0
        %2671 = vmatpush1.bf16.msra.mxu0 0
        %2672 = vmatprep.subr.bf16.mxu0 0
        %2673 = vmatpush1.bf16.msra.mxu0 0
        %2674 = vmatprep.subr.bf16.mxu0 0
        %2675 = vmatpush1.bf16.msra.mxu0 0
        %2676 = vmatprep.subr.bf16.mxu0 0
        %2677 = vmatpush1.bf16.msra.mxu0 0
        %2678 = vmatprep.subr.bf16.mxu0 0
        %2679 = vmatpush1.bf16.msra.mxu0 0
        %2680 = vmatprep.subr.bf16.mxu0 0
        %2681 = vmatpush1.bf16.msra.mxu0 0
        %2682 = vmatprep.subr.bf16.mxu0 0
        %2683 = vmatpush1.bf16.msra.mxu0 0
        %2684 = vmatprep.mubr.bf16.mxu0 0
        %2685 = vmatmul.mubr.bf16.gmra.mrb[0].mxu0 %v2638
        %v2686 = vpop.f32.mrb[0].mxu0
        %v2687 = vadd.f32 0.0, %v2686
        %v2688 = vpop.f32.mrb[0].mxu0
        %v2689 = vpop.f32.mrb[0].mxu0
        %v2690 = vadd.f32 0.0, %v2689
        %v2691 = vpop.f32.mrb[0].mxu0
        %2692 = vmatprep.mubr.bf16.mxu0 0
        %2693 = vmatmul.mubr.bf16.gmra.mrb[0].mxu0 %v2641
        %v2694 = vpop.f32.mrb[0].mxu0
        %v2695 = vadd.f32 0.0, %v2694
        %v2696 = vpop.f32.mrb[0].mxu0
        %v2697 = vpop.f32.mrb[0].mxu0
        %v2698 = vadd.f32 0.0, %v2697
        %v2699 = vpop.f32.mrb[0].mxu0
        %2700 = vmatprep.mubr.bf16.mxu0 0
        %2701 = vmatmul.mubr.bf16.gmra.mrb[0].mxu0 %v2644
        %v2702 = vpop.f32.mrb[0].mxu0
        %v2703 = vadd.f32 0.0, %v2702
        %v2704 = vpop.f32.mrb[0].mxu0
        %v2705 = vpop.f32.mrb[0].mxu0
        %v2706 = vadd.f32 0.0, %v2705
        %v2707 = vpop.f32.mrb[0].mxu0
        %2708 = vmatprep.mubr.bf16.mxu0 0
        %2709 = vmatmul.mubr.bf16.gmra.mrb[0].mxu0 %v2647
        %v2710 = vpop.f32.mrb[0].mxu0
        %v2711 = vadd.f32 0.0, %v2710
        %v2712 = vpop.f32.mrb[0].mxu0
        %v2713 = vpop.f32.mrb[0].mxu0
        %v2714 = vadd.f32 0.0, %v2713
        %v2715 = vpop.f32.mrb[0].mxu0
        %2716 = vdwg.mxu0
        %v2717 = vadd.f32 %v2614, %v2687
        %v2718 = vadd.f32 %v2615, %v2690
        %v2719 = vadd.f32 %v2616, %v2695
        %v2720 = vadd.f32 %v2617, %v2698
        %v2721 = vadd.f32 %v2618, %v2703
        %v2722 = vadd.f32 %v2619, %v2706
        %v2723 = vadd.f32 %v2620, %v2711
        %v2724 = vadd.f32 %v2621, %v2714
        %v2725 = vld [vmem:[%s2622 + $0x1] sm:$0xff]
        %v2726 = vld [vmem:[%s2622 + $0x11] sm:$0xff]
        %v2727 = vld [vmem:[%s2622 + $0x21] sm:$0xff]
        %v2728 = vld [vmem:[%s2622 + $0x31] sm:$0xff]
        %v2729 = vld [vmem:[%s2622 + $0x41] sm:$0xff]
        %v2730 = vld [vmem:[%s2622 + $0x51] sm:$0xff]
        %v2731 = vld [vmem:[%s2622 + $0x61] sm:$0xff]
        %v2732 = vld [vmem:[%s2622 + $0x71] sm:$0xff]
        %v2733 = vpack.c.bf16 %v2726, %v2725
        %v2734 = vpack.c.bf16 %v2728, %v2727
        %v2735 = vpack.c.bf16 %v2730, %v2729
        %v2736 = vpack.c.bf16 %v2732, %v2731
        %s2737 = scalar_lea.vmem %s3, 44
        %v2738 = vld [vmem:[%s2737] sm:$0xf]
        %v2740 = vsel %vm1255, %v2733, 0
        %v2743 = vsel %vm1255, %v2734, 0
        %v2746 = vsel %vm1255, %v2735, 0
        %v2749 = vsel %vm1255, %v2736, 0
        %v2752 = vsel %vm1656, %v2738, 0
        %2754 = vmatprep.subr.bf16.mxu0 0
        %2755 = vmatpush1.bf16.msra.mxu0 %v2752
        %2756 = vmatprep.subr.bf16.mxu0 0
        %2757 = vmatpush1.bf16.msra.mxu0 0
        %2758 = vmatprep.subr.bf16.mxu0 0
        %2759 = vmatpush1.bf16.msra.mxu0 0
        %2760 = vmatprep.subr.bf16.mxu0 0
        %2761 = vmatpush1.bf16.msra.mxu0 0
        %2762 = vmatprep.subr.bf16.mxu0 0
        %2763 = vmatpush1.bf16.msra.mxu0 0
        %2764 = vmatprep.subr.bf16.mxu0 0
        %2765 = vmatpush1.bf16.msra.mxu0 0
        %2766 = vmatprep.subr.bf16.mxu0 0
        %2767 = vmatpush1.bf16.msra.mxu0 0
        %2768 = vmatprep.subr.bf16.mxu0 0
        %2769 = vmatpush1.bf16.msra.mxu0 0
        %2770 = vmatprep.subr.bf16.mxu0 0
        %2771 = vmatpush1.bf16.msra.mxu0 0
        %2772 = vmatprep.subr.bf16.mxu0 0
        %2773 = vmatpush1.bf16.msra.mxu0 0
        %2774 = vmatprep.subr.bf16.mxu0 0
        %2775 = vmatpush1.bf16.msra.mxu0 0
        %2776 = vmatprep.subr.bf16.mxu0 0
        %2777 = vmatpush1.bf16.msra.mxu0 0
        %2778 = vmatprep.subr.bf16.mxu0 0
        %2779 = vmatpush1.bf16.msra.mxu0 0
        %2780 = vmatprep.subr.bf16.mxu0 0
        %2781 = vmatpush1.bf16.msra.mxu0 0
        %2782 = vmatprep.subr.bf16.mxu0 0
        %2783 = vmatpush1.bf16.msra.mxu0 0
        %2784 = vmatprep.subr.bf16.mxu0 0
        %2785 = vmatpush1.bf16.msra.mxu0 0
        %2786 = vmatprep.mubr.bf16.mxu0 0
        %2787 = vmatmul.mubr.bf16.gmra.mrb[0].mxu0 %v2740
        %v2788 = vpop.f32.mrb[0].mxu0
        %v2789 = vadd.f32 0.0, %v2788
        %v2790 = vpop.f32.mrb[0].mxu0
        %v2791 = vpop.f32.mrb[0].mxu0
        %v2792 = vadd.f32 0.0, %v2791
        %v2793 = vpop.f32.mrb[0].mxu0
        %2794 = vmatprep.mubr.bf16.mxu0 0
        %2795 = vmatmul.mubr.bf16.gmra.mrb[0].mxu0 %v2743
        %v2796 = vpop.f32.mrb[0].mxu0
        %v2797 = vadd.f32 0.0, %v2796
        %v2798 = vpop.f32.mrb[0].mxu0
        %v2799 = vpop.f32.mrb[0].mxu0
        %v2800 = vadd.f32 0.0, %v2799
        %v2801 = vpop.f32.mrb[0].mxu0
        %2802 = vmatprep.mubr.bf16.mxu0 0
        %2803 = vmatmul.mubr.bf16.gmra.mrb[0].mxu0 %v2746
        %v2804 = vpop.f32.mrb[0].mxu0
        %v2805 = vadd.f32 0.0, %v2804
        %v2806 = vpop.f32.mrb[0].mxu0
        %v2807 = vpop.f32.mrb[0].mxu0
        %v2808 = vadd.f32 0.0, %v2807
        %v2809 = vpop.f32.mrb[0].mxu0
        %2810 = vmatprep.mubr.bf16.mxu0 0
        %2811 = vmatmul.mubr.bf16.gmra.mrb[0].mxu0 %v2749
        %v2812 = vpop.f32.mrb[0].mxu0
        %v2813 = vadd.f32 0.0, %v2812
        %v2814 = vpop.f32.mrb[0].mxu0
        %v2815 = vpop.f32.mrb[0].mxu0
        %v2816 = vadd.f32 0.0, %v2815
        %v2817 = vpop.f32.mrb[0].mxu0
        %2818 = vdwg.mxu0
        %v2819 = vadd.f32 %v2717, %v2789
        %v2820 = vadd.f32 %v2718, %v2792
        %v2821 = vadd.f32 %v2719, %v2797
        %v2822 = vadd.f32 %v2720, %v2800
        %v2823 = vadd.f32 %v2721, %v2805
        %v2824 = vadd.f32 %v2722, %v2808
        %v2825 = vadd.f32 %v2723, %v2813
        %v2826 = vadd.f32 %v2724, %v2816
        %v2827 = vld [vmem:[%s2622 + $0x2] sm:$0xff]
        %v2828 = vld [vmem:[%s2622 + $0x12] sm:$0xff]
        %v2829 = vld [vmem:[%s2622 + $0x22] sm:$0xff]
        %v2830 = vld [vmem:[%s2622 + $0x32] sm:$0xff]
        %v2831 = vld [vmem:[%s2622 + $0x42] sm:$0xff]
        %v2832 = vld [vmem:[%s2622 + $0x52] sm:$0xff]
        %v2833 = vld [vmem:[%s2622 + $0x62] sm:$0xff]
        %v2834 = vld [vmem:[%s2622 + $0x72] sm:$0xff]
        %v2835 = vpack.c.bf16 %v2828, %v2827
        %v2836 = vpack.c.bf16 %v2830, %v2829
        %v2837 = vpack.c.bf16 %v2832, %v2831
        %v2838 = vpack.c.bf16 %v2834, %v2833
        %s2839 = scalar_lea.vmem %s3, 48
        %v2840 = vld [vmem:[%s2839] sm:$0xf]
        %v2842 = vsel %vm1255, %v2835, 0
        %v2845 = vsel %vm1255, %v2836, 0
        %v2848 = vsel %vm1255, %v2837, 0
        %v2851 = vsel %vm1255, %v2838, 0
        %v2854 = vsel %vm1656, %v2840, 0
        %2856 = vmatprep.subr.bf16.mxu0 0
        %2857 = vmatpush1.bf16.msra.mxu0 %v2854
        %2858 = vmatprep.subr.bf16.mxu0 0
        %2859 = vmatpush1.bf16.msra.mxu0 0
        %2860 = vmatprep.subr.bf16.mxu0 0
        %2861 = vmatpush1.bf16.msra.mxu0 0
        %2862 = vmatprep.subr.bf16.mxu0 0
        %2863 = vmatpush1.bf16.msra.mxu0 0
        %2864 = vmatprep.subr.bf16.mxu0 0
        %2865 = vmatpush1.bf16.msra.mxu0 0
        %2866 = vmatprep.subr.bf16.mxu0 0
        %2867 = vmatpush1.bf16.msra.mxu0 0
        %2868 = vmatprep.subr.bf16.mxu0 0
        %2869 = vmatpush1.bf16.msra.mxu0 0
        %2870 = vmatprep.subr.bf16.mxu0 0
        %2871 = vmatpush1.bf16.msra.mxu0 0
        %2872 = vmatprep.subr.bf16.mxu0 0
        %2873 = vmatpush1.bf16.msra.mxu0 0
        %2874 = vmatprep.subr.bf16.mxu0 0
        %2875 = vmatpush1.bf16.msra.mxu0 0
        %2876 = vmatprep.subr.bf16.mxu0 0
        %2877 = vmatpush1.bf16.msra.mxu0 0
        %2878 = vmatprep.subr.bf16.mxu0 0
        %2879 = vmatpush1.bf16.msra.mxu0 0
        %2880 = vmatprep.subr.bf16.mxu0 0
        %2881 = vmatpush1.bf16.msra.mxu0 0
        %2882 = vmatprep.subr.bf16.mxu0 0
        %2883 = vmatpush1.bf16.msra.mxu0 0
        %2884 = vmatprep.subr.bf16.mxu0 0
        %2885 = vmatpush1.bf16.msra.mxu0 0
        %2886 = vmatprep.subr.bf16.mxu0 0
        %2887 = vmatpush1.bf16.msra.mxu0 0
        %2888 = vmatprep.mubr.bf16.mxu0 0
        %2889 = vmatmul.mubr.bf16.gmra.mrb[0].mxu0 %v2842
        %v2890 = vpop.f32.mrb[0].mxu0
        %v2891 = vadd.f32 0.0, %v2890
        %v2892 = vpop.f32.mrb[0].mxu0
        %v2893 = vpop.f32.mrb[0].mxu0
        %v2894 = vadd.f32 0.0, %v2893
        %v2895 = vpop.f32.mrb[0].mxu0
        %2896 = vmatprep.mubr.bf16.mxu0 0
        %2897 = vmatmul.mubr.bf16.gmra.mrb[0].mxu0 %v2845
        %v2898 = vpop.f32.mrb[0].mxu0
        %v2899 = vadd.f32 0.0, %v2898
        %v2900 = vpop.f32.mrb[0].mxu0
        %v2901 = vpop.f32.mrb[0].mxu0
        %v2902 = vadd.f32 0.0, %v2901
        %v2903 = vpop.f32.mrb[0].mxu0
        %2904 = vmatprep.mubr.bf16.mxu0 0
        %2905 = vmatmul.mubr.bf16.gmra.mrb[0].mxu0 %v2848
        %v2906 = vpop.f32.mrb[0].mxu0
        %v2907 = vadd.f32 0.0, %v2906
        %v2908 = vpop.f32.mrb[0].mxu0
        %v2909 = vpop.f32.mrb[0].mxu0
        %v2910 = vadd.f32 0.0, %v2909
        %v2911 = vpop.f32.mrb[0].mxu0
        %2912 = vmatprep.mubr.bf16.mxu0 0
        %2913 = vmatmul.mubr.bf16.gmra.mrb[0].mxu0 %v2851
        %v2914 = vpop.f32.mrb[0].mxu0
        %v2915 = vadd.f32 0.0, %v2914
        %v2916 = vpop.f32.mrb[0].mxu0
        %v2917 = vpop.f32.mrb[0].mxu0
        %v2918 = vadd.f32 0.0, %v2917
        %v2919 = vpop.f32.mrb[0].mxu0
        %2920 = vdwg.mxu0
        %v2921 = vadd.f32 %v2819, %v2891
        %v2922 = vadd.f32 %v2820, %v2894
        %v2923 = vadd.f32 %v2821, %v2899
        %v2924 = vadd.f32 %v2822, %v2902
        %v2925 = vadd.f32 %v2823, %v2907
        %v2926 = vadd.f32 %v2824, %v2910
        %v2927 = vadd.f32 %v2825, %v2915
        %v2928 = vadd.f32 %v2826, %v2918
        %v2929 = vld [vmem:[%s2622 + $0x3] sm:$0xff]
        %v2930 = vld [vmem:[%s2622 + $0x13] sm:$0xff]
        %v2931 = vld [vmem:[%s2622 + $0x23] sm:$0xff]
        %v2932 = vld [vmem:[%s2622 + $0x33] sm:$0xff]
        %v2933 = vld [vmem:[%s2622 + $0x43] sm:$0xff]
        %v2934 = vld [vmem:[%s2622 + $0x53] sm:$0xff]
        %v2935 = vld [vmem:[%s2622 + $0x63] sm:$0xff]
        %v2936 = vld [vmem:[%s2622 + $0x73] sm:$0xff]
        %v2937 = vpack.c.bf16 %v2930, %v2929
        %v2938 = vpack.c.bf16 %v2932, %v2931
        %v2939 = vpack.c.bf16 %v2934, %v2933
        %v2940 = vpack.c.bf16 %v2936, %v2935
        %s2941 = scalar_lea.vmem %s3, 52
        %v2942 = vld [vmem:[%s2941] sm:$0xf]
        %v2944 = vsel %vm1255, %v2937, 0
        %v2947 = vsel %vm1255, %v2938, 0
        %v2950 = vsel %vm1255, %v2939, 0
        %v2953 = vsel %vm1255, %v2940, 0
        %v2956 = vsel %vm1656, %v2942, 0
        %2958 = vmatprep.subr.bf16.mxu0 0
        %2959 = vmatpush1.bf16.msra.mxu0 %v2956
        %2960 = vmatprep.subr.bf16.mxu0 0
        %2961 = vmatpush1.bf16.msra.mxu0 0
        %2962 = vmatprep.subr.bf16.mxu0 0
        %2963 = vmatpush1.bf16.msra.mxu0 0
        %2964 = vmatprep.subr.bf16.mxu0 0
        %2965 = vmatpush1.bf16.msra.mxu0 0
        %2966 = vmatprep.subr.bf16.mxu0 0
        %2967 = vmatpush1.bf16.msra.mxu0 0
        %2968 = vmatprep.subr.bf16.mxu0 0
        %2969 = vmatpush1.bf16.msra.mxu0 0
        %2970 = vmatprep.subr.bf16.mxu0 0
        %2971 = vmatpush1.bf16.msra.mxu0 0
        %2972 = vmatprep.subr.bf16.mxu0 0
        %2973 = vmatpush1.bf16.msra.mxu0 0
        %2974 = vmatprep.subr.bf16.mxu0 0
        %2975 = vmatpush1.bf16.msra.mxu0 0
        %2976 = vmatprep.subr.bf16.mxu0 0
        %2977 = vmatpush1.bf16.msra.mxu0 0
        %2978 = vmatprep.subr.bf16.mxu0 0
        %2979 = vmatpush1.bf16.msra.mxu0 0
        %2980 = vmatprep.subr.bf16.mxu0 0
        %2981 = vmatpush1.bf16.msra.mxu0 0
        %2982 = vmatprep.subr.bf16.mxu0 0
        %2983 = vmatpush1.bf16.msra.mxu0 0
        %2984 = vmatprep.subr.bf16.mxu0 0
        %2985 = vmatpush1.bf16.msra.mxu0 0
        %2986 = vmatprep.subr.bf16.mxu0 0
        %2987 = vmatpush1.bf16.msra.mxu0 0
        %2988 = vmatprep.subr.bf16.mxu0 0
        %2989 = vmatpush1.bf16.msra.mxu0 0
        %2990 = vmatprep.mubr.bf16.mxu0 0
        %2991 = vmatmul.mubr.bf16.gmra.mrb[0].mxu0 %v2944
        %v2992 = vpop.f32.mrb[0].mxu0
        %v2993 = vadd.f32 0.0, %v2992
        %v2994 = vpop.f32.mrb[0].mxu0
        %v2995 = vpop.f32.mrb[0].mxu0
        %v2996 = vadd.f32 0.0, %v2995
        %v2997 = vpop.f32.mrb[0].mxu0
        %2998 = vmatprep.mubr.bf16.mxu0 0
        %2999 = vmatmul.mubr.bf16.gmra.mrb[0].mxu0 %v2947
        %v3000 = vpop.f32.mrb[0].mxu0
        %v3001 = vadd.f32 0.0, %v3000
        %v3002 = vpop.f32.mrb[0].mxu0
        %v3003 = vpop.f32.mrb[0].mxu0
        %v3004 = vadd.f32 0.0, %v3003
        %v3005 = vpop.f32.mrb[0].mxu0
        %3006 = vmatprep.mubr.bf16.mxu0 0
        %3007 = vmatmul.mubr.bf16.gmra.mrb[0].mxu0 %v2950
        %v3008 = vpop.f32.mrb[0].mxu0
        %v3009 = vadd.f32 0.0, %v3008
        %v3010 = vpop.f32.mrb[0].mxu0
        %v3011 = vpop.f32.mrb[0].mxu0
        %v3012 = vadd.f32 0.0, %v3011
        %v3013 = vpop.f32.mrb[0].mxu0
        %3014 = vmatprep.mubr.bf16.mxu0 0
        %3015 = vmatmul.mubr.bf16.gmra.mrb[0].mxu0 %v2953
        %v3016 = vpop.f32.mrb[0].mxu0
        %v3017 = vadd.f32 0.0, %v3016
        %v3018 = vpop.f32.mrb[0].mxu0
        %v3019 = vpop.f32.mrb[0].mxu0
        %v3020 = vadd.f32 0.0, %v3019
        %v3021 = vpop.f32.mrb[0].mxu0
        %3022 = vdwg.mxu0
        %v3023 = vadd.f32 %v2921, %v2993
        %v3024 = vadd.f32 %v2922, %v2996
        %v3025 = vadd.f32 %v2923, %v3001
        %v3026 = vadd.f32 %v2924, %v3004
        %v3027 = vadd.f32 %v2925, %v3009
        %v3028 = vadd.f32 %v2926, %v3012
        %v3029 = vadd.f32 %v2927, %v3017
        %v3030 = vadd.f32 %v2928, %v3020
        %v3031 = vld [vmem:[%s2622 + $0x4] sm:$0xff]
        %v3032 = vld [vmem:[%s2622 + $0x14] sm:$0xff]
        %v3033 = vld [vmem:[%s2622 + $0x24] sm:$0xff]
        %v3034 = vld [vmem:[%s2622 + $0x34] sm:$0xff]
        %v3035 = vld [vmem:[%s2622 + $0x44] sm:$0xff]
        %v3036 = vld [vmem:[%s2622 + $0x54] sm:$0xff]
        %v3037 = vld [vmem:[%s2622 + $0x64] sm:$0xff]
        %v3038 = vld [vmem:[%s2622 + $0x74] sm:$0xff]
        %v3039 = vpack.c.bf16 %v3032, %v3031
        %v3040 = vpack.c.bf16 %v3034, %v3033
        %v3041 = vpack.c.bf16 %v3036, %v3035
        %v3042 = vpack.c.bf16 %v3038, %v3037
        %s3043 = scalar_lea.vmem %s3, 56
        %v3044 = vld [vmem:[%s3043] sm:$0xf]
        %v3046 = vsel %vm1255, %v3039, 0
        %v3049 = vsel %vm1255, %v3040, 0
        %v3052 = vsel %vm1255, %v3041, 0
        %v3055 = vsel %vm1255, %v3042, 0
        %v3058 = vsel %vm1656, %v3044, 0
        %3060 = vmatprep.subr.bf16.mxu0 0
        %3061 = vmatpush1.bf16.msra.mxu0 %v3058
        %3062 = vmatprep.subr.bf16.mxu0 0
        %3063 = vmatpush1.bf16.msra.mxu0 0
        %3064 = vmatprep.subr.bf16.mxu0 0
        %3065 = vmatpush1.bf16.msra.mxu0 0
        %3066 = vmatprep.subr.bf16.mxu0 0
        %3067 = vmatpush1.bf16.msra.mxu0 0
        %3068 = vmatprep.subr.bf16.mxu0 0
        %3069 = vmatpush1.bf16.msra.mxu0 0
        %3070 = vmatprep.subr.bf16.mxu0 0
        %3071 = vmatpush1.bf16.msra.mxu0 0
        %3072 = vmatprep.subr.bf16.mxu0 0
        %3073 = vmatpush1.bf16.msra.mxu0 0
        %3074 = vmatprep.subr.bf16.mxu0 0
        %3075 = vmatpush1.bf16.msra.mxu0 0
        %3076 = vmatprep.subr.bf16.mxu0 0
        %3077 = vmatpush1.bf16.msra.mxu0 0
        %3078 = vmatprep.subr.bf16.mxu0 0
        %3079 = vmatpush1.bf16.msra.mxu0 0
        %3080 = vmatprep.subr.bf16.mxu0 0
        %3081 = vmatpush1.bf16.msra.mxu0 0
        %3082 = vmatprep.subr.bf16.mxu0 0
        %3083 = vmatpush1.bf16.msra.mxu0 0
        %3084 = vmatprep.subr.bf16.mxu0 0
        %3085 = vmatpush1.bf16.msra.mxu0 0
        %3086 = vmatprep.subr.bf16.mxu0 0
        %3087 = vmatpush1.bf16.msra.mxu0 0
        %3088 = vmatprep.subr.bf16.mxu0 0
        %3089 = vmatpush1.bf16.msra.mxu0 0
        %3090 = vmatprep.subr.bf16.mxu0 0
        %3091 = vmatpush1.bf16.msra.mxu0 0
        %3092 = vmatprep.mubr.bf16.mxu0 0
        %3093 = vmatmul.mubr.bf16.gmra.mrb[0].mxu0 %v3046
        %v3094 = vpop.f32.mrb[0].mxu0
        %v3095 = vadd.f32 0.0, %v3094
        %v3096 = vpop.f32.mrb[0].mxu0
        %v3097 = vpop.f32.mrb[0].mxu0
        %v3098 = vadd.f32 0.0, %v3097
        %v3099 = vpop.f32.mrb[0].mxu0
        %3100 = vmatprep.mubr.bf16.mxu0 0
        %3101 = vmatmul.mubr.bf16.gmra.mrb[0].mxu0 %v3049
        %v3102 = vpop.f32.mrb[0].mxu0
        %v3103 = vadd.f32 0.0, %v3102
        %v3104 = vpop.f32.mrb[0].mxu0
        %v3105 = vpop.f32.mrb[0].mxu0
        %v3106 = vadd.f32 0.0, %v3105
        %v3107 = vpop.f32.mrb[0].mxu0
        %3108 = vmatprep.mubr.bf16.mxu0 0
        %3109 = vmatmul.mubr.bf16.gmra.mrb[0].mxu0 %v3052
        %v3110 = vpop.f32.mrb[0].mxu0
        %v3111 = vadd.f32 0.0, %v3110
        %v3112 = vpop.f32.mrb[0].mxu0
        %v3113 = vpop.f32.mrb[0].mxu0
        %v3114 = vadd.f32 0.0, %v3113
        %v3115 = vpop.f32.mrb[0].mxu0
        %3116 = vmatprep.mubr.bf16.mxu0 0
        %3117 = vmatmul.mubr.bf16.gmra.mrb[0].mxu0 %v3055
        %v3118 = vpop.f32.mrb[0].mxu0
        %v3119 = vadd.f32 0.0, %v3118
        %v3120 = vpop.f32.mrb[0].mxu0
        %v3121 = vpop.f32.mrb[0].mxu0
        %v3122 = vadd.f32 0.0, %v3121
        %v3123 = vpop.f32.mrb[0].mxu0
        %3124 = vdwg.mxu0
        %v3125 = vadd.f32 %v3023, %v3095
        %v3126 = vadd.f32 %v3024, %v3098
        %v3127 = vadd.f32 %v3025, %v3103
        %v3128 = vadd.f32 %v3026, %v3106
        %v3129 = vadd.f32 %v3027, %v3111
        %v3130 = vadd.f32 %v3028, %v3114
        %v3131 = vadd.f32 %v3029, %v3119
        %v3132 = vadd.f32 %v3030, %v3122
        %s3133 = scalar_lea.vmem [#allocation4], 48
        %v3134 = vld [vmem:[%s3133] sm:$0xff]
        %v3135 = vld [vmem:[%s3133 + $0x10] sm:$0xff]
        %v3136 = vld [vmem:[%s3133 + $0x20] sm:$0xff]
        %v3137 = vld [vmem:[%s3133 + $0x30] sm:$0xff]
        %v3138 = vld [vmem:[%s3133 + $0x40] sm:$0xff]
        %v3139 = vld [vmem:[%s3133 + $0x50] sm:$0xff]
        %v3140 = vld [vmem:[%s3133 + $0x60] sm:$0xff]
        %v3141 = vld [vmem:[%s3133 + $0x70] sm:$0xff]
        %v3142 = vpack.c.bf16 %v3135, %v3134
        %v3143 = vpack.c.bf16 %v3137, %v3136
        %v3144 = vpack.c.bf16 %v3139, %v3138
        %v3145 = vpack.c.bf16 %v3141, %v3140
        %s3146 = scalar_lea.vmem %s3, 60
        %v3147 = vld [vmem:[%s3146] sm:$0xf]
        %v3149 = vsel %vm1255, %v3142, 0
        %v3152 = vsel %vm1255, %v3143, 0
        %v3155 = vsel %vm1255, %v3144, 0
        %v3158 = vsel %vm1255, %v3145, 0
        %v3161 = vsel %vm1656, %v3147, 0
        %3163 = vmatprep.subr.bf16.mxu0 0
        %3164 = vmatpush1.bf16.msra.mxu0 %v3161
        %3165 = vmatprep.subr.bf16.mxu0 0
        %3166 = vmatpush1.bf16.msra.mxu0 0
        %3167 = vmatprep.subr.bf16.mxu0 0
        %3168 = vmatpush1.bf16.msra.mxu0 0
        %3169 = vmatprep.subr.bf16.mxu0 0
        %3170 = vmatpush1.bf16.msra.mxu0 0
        %3171 = vmatprep.subr.bf16.mxu0 0
        %3172 = vmatpush1.bf16.msra.mxu0 0
        %3173 = vmatprep.subr.bf16.mxu0 0
        %3174 = vmatpush1.bf16.msra.mxu0 0
        %3175 = vmatprep.subr.bf16.mxu0 0
        %3176 = vmatpush1.bf16.msra.mxu0 0
        %3177 = vmatprep.subr.bf16.mxu0 0
        %3178 = vmatpush1.bf16.msra.mxu0 0
        %3179 = vmatprep.subr.bf16.mxu0 0
        %3180 = vmatpush1.bf16.msra.mxu0 0
        %3181 = vmatprep.subr.bf16.mxu0 0
        %3182 = vmatpush1.bf16.msra.mxu0 0
        %3183 = vmatprep.subr.bf16.mxu0 0
        %3184 = vmatpush1.bf16.msra.mxu0 0
        %3185 = vmatprep.subr.bf16.mxu0 0
        %3186 = vmatpush1.bf16.msra.mxu0 0
        %3187 = vmatprep.subr.bf16.mxu0 0
        %3188 = vmatpush1.bf16.msra.mxu0 0
        %3189 = vmatprep.subr.bf16.mxu0 0
        %3190 = vmatpush1.bf16.msra.mxu0 0
        %3191 = vmatprep.subr.bf16.mxu0 0
        %3192 = vmatpush1.bf16.msra.mxu0 0
        %3193 = vmatprep.subr.bf16.mxu0 0
        %3194 = vmatpush1.bf16.msra.mxu0 0
        %3195 = vmatprep.mubr.bf16.mxu0 0
        %3196 = vmatmul.mubr.bf16.gmra.mrb[0].mxu0 %v3149
        %v3197 = vpop.f32.mrb[0].mxu0
        %v3198 = vadd.f32 0.0, %v3197
        %v3199 = vpop.f32.mrb[0].mxu0
        %v3200 = vpop.f32.mrb[0].mxu0
        %v3201 = vadd.f32 0.0, %v3200
        %v3202 = vpop.f32.mrb[0].mxu0
        %3203 = vmatprep.mubr.bf16.mxu0 0
        %3204 = vmatmul.mubr.bf16.gmra.mrb[0].mxu0 %v3152
        %v3205 = vpop.f32.mrb[0].mxu0
        %v3206 = vadd.f32 0.0, %v3205
        %v3207 = vpop.f32.mrb[0].mxu0
        %v3208 = vpop.f32.mrb[0].mxu0
        %v3209 = vadd.f32 0.0, %v3208
        %v3210 = vpop.f32.mrb[0].mxu0
        %3211 = vmatprep.mubr.bf16.mxu0 0
        %3212 = vmatmul.mubr.bf16.gmra.mrb[0].mxu0 %v3155
        %v3213 = vpop.f32.mrb[0].mxu0
        %v3214 = vadd.f32 0.0, %v3213
        %v3215 = vpop.f32.mrb[0].mxu0
        %v3216 = vpop.f32.mrb[0].mxu0
        %v3217 = vadd.f32 0.0, %v3216
        %v3218 = vpop.f32.mrb[0].mxu0
        %3219 = vmatprep.mubr.bf16.mxu0 0
        %3220 = vmatmul.mubr.bf16.gmra.mrb[0].mxu0 %v3158
        %v3221 = vpop.f32.mrb[0].mxu0
        %v3222 = vadd.f32 0.0, %v3221
        %v3223 = vpop.f32.mrb[0].mxu0
        %v3224 = vpop.f32.mrb[0].mxu0
        %v3225 = vadd.f32 0.0, %v3224
        %v3226 = vpop.f32.mrb[0].mxu0
        %3227 = vdwg.mxu0
        %v3228 = vadd.f32 %v3125, %v3198
        %v3229 = vadd.f32 %v3126, %v3201
        %v3230 = vadd.f32 %v3127, %v3206
        %v3231 = vadd.f32 %v3128, %v3209
        %v3232 = vadd.f32 %v3129, %v3214
        %v3233 = vadd.f32 %v3130, %v3217
        %v3234 = vadd.f32 %v3131, %v3222
        %v3235 = vadd.f32 %v3132, %v3225
        %v3236 = vld [vmem:[%s3133 + $0x1] sm:$0xff]
        %v3237 = vld [vmem:[%s3133 + $0x11] sm:$0xff]
        %v3238 = vld [vmem:[%s3133 + $0x21] sm:$0xff]
        %v3239 = vld [vmem:[%s3133 + $0x31] sm:$0xff]
        %v3240 = vld [vmem:[%s3133 + $0x41] sm:$0xff]
        %v3241 = vld [vmem:[%s3133 + $0x51] sm:$0xff]
        %v3242 = vld [vmem:[%s3133 + $0x61] sm:$0xff]
        %v3243 = vld [vmem:[%s3133 + $0x71] sm:$0xff]
        %v3244 = vpack.c.bf16 %v3237, %v3236
        %v3245 = vpack.c.bf16 %v3239, %v3238
        %v3246 = vpack.c.bf16 %v3241, %v3240
        %v3247 = vpack.c.bf16 %v3243, %v3242
        %s3248 = scalar_lea.vmem %s3, 64
        %v3249 = vld [vmem:[%s3248] sm:$0xf]
        %v3251 = vsel %vm1255, %v3244, 0
        %v3254 = vsel %vm1255, %v3245, 0
        %v3257 = vsel %vm1255, %v3246, 0
        %v3260 = vsel %vm1255, %v3247, 0
        %v3263 = vsel %vm1656, %v3249, 0
        %3265 = vmatprep.subr.bf16.mxu0 0
        %3266 = vmatpush1.bf16.msra.mxu0 %v3263
        %3267 = vmatprep.subr.bf16.mxu0 0
        %3268 = vmatpush1.bf16.msra.mxu0 0
        %3269 = vmatprep.subr.bf16.mxu0 0
        %3270 = vmatpush1.bf16.msra.mxu0 0
        %3271 = vmatprep.subr.bf16.mxu0 0
        %3272 = vmatpush1.bf16.msra.mxu0 0
        %3273 = vmatprep.subr.bf16.mxu0 0
        %3274 = vmatpush1.bf16.msra.mxu0 0
        %3275 = vmatprep.subr.bf16.mxu0 0
        %3276 = vmatpush1.bf16.msra.mxu0 0
        %3277 = vmatprep.subr.bf16.mxu0 0
        %3278 = vmatpush1.bf16.msra.mxu0 0
        %3279 = vmatprep.subr.bf16.mxu0 0
        %3280 = vmatpush1.bf16.msra.mxu0 0
        %3281 = vmatprep.subr.bf16.mxu0 0
        %3282 = vmatpush1.bf16.msra.mxu0 0
        %3283 = vmatprep.subr.bf16.mxu0 0
        %3284 = vmatpush1.bf16.msra.mxu0 0
        %3285 = vmatprep.subr.bf16.mxu0 0
        %3286 = vmatpush1.bf16.msra.mxu0 0
        %3287 = vmatprep.subr.bf16.mxu0 0
        %3288 = vmatpush1.bf16.msra.mxu0 0
        %3289 = vmatprep.subr.bf16.mxu0 0
        %3290 = vmatpush1.bf16.msra.mxu0 0
        %3291 = vmatprep.subr.bf16.mxu0 0
        %3292 = vmatpush1.bf16.msra.mxu0 0
        %3293 = vmatprep.subr.bf16.mxu0 0
        %3294 = vmatpush1.bf16.msra.mxu0 0
        %3295 = vmatprep.subr.bf16.mxu0 0
        %3296 = vmatpush1.bf16.msra.mxu0 0
        %3297 = vmatprep.mubr.bf16.mxu0 0
        %3298 = vmatmul.mubr.bf16.gmra.mrb[0].mxu0 %v3251
        %v3299 = vpop.f32.mrb[0].mxu0
        %v3300 = vadd.f32 0.0, %v3299
        %v3301 = vpop.f32.mrb[0].mxu0
        %v3302 = vpop.f32.mrb[0].mxu0
        %v3303 = vadd.f32 0.0, %v3302
        %v3304 = vpop.f32.mrb[0].mxu0
        %3305 = vmatprep.mubr.bf16.mxu0 0
        %3306 = vmatmul.mubr.bf16.gmra.mrb[0].mxu0 %v3254
        %v3307 = vpop.f32.mrb[0].mxu0
        %v3308 = vadd.f32 0.0, %v3307
        %v3309 = vpop.f32.mrb[0].mxu0
        %v3310 = vpop.f32.mrb[0].mxu0
        %v3311 = vadd.f32 0.0, %v3310
        %v3312 = vpop.f32.mrb[0].mxu0
        %3313 = vmatprep.mubr.bf16.mxu0 0
        %3314 = vmatmul.mubr.bf16.gmra.mrb[0].mxu0 %v3257
        %v3315 = vpop.f32.mrb[0].mxu0
        %v3316 = vadd.f32 0.0, %v3315
        %v3317 = vpop.f32.mrb[0].mxu0
        %v3318 = vpop.f32.mrb[0].mxu0
        %v3319 = vadd.f32 0.0, %v3318
        %v3320 = vpop.f32.mrb[0].mxu0
        %3321 = vmatprep.mubr.bf16.mxu0 0
        %3322 = vmatmul.mubr.bf16.gmra.mrb[0].mxu0 %v3260
        %v3323 = vpop.f32.mrb[0].mxu0
        %v3324 = vadd.f32 0.0, %v3323
        %v3325 = vpop.f32.mrb[0].mxu0
        %v3326 = vpop.f32.mrb[0].mxu0
        %v3327 = vadd.f32 0.0, %v3326
        %v3328 = vpop.f32.mrb[0].mxu0
        %3329 = vdwg.mxu0
        %v3330 = vadd.f32 %v3228, %v3300
        %v3331 = vadd.f32 %v3229, %v3303
        %v3332 = vadd.f32 %v3230, %v3308
        %v3333 = vadd.f32 %v3231, %v3311
        %v3334 = vadd.f32 %v3232, %v3316
        %v3335 = vadd.f32 %v3233, %v3319
        %v3336 = vadd.f32 %v3234, %v3324
        %v3337 = vadd.f32 %v3235, %v3327
        %v3338 = vld [vmem:[%s3133 + $0x2] sm:$0xff]
        %v3339 = vld [vmem:[%s3133 + $0x12] sm:$0xff]
        %v3340 = vld [vmem:[%s3133 + $0x22] sm:$0xff]
        %v3341 = vld [vmem:[%s3133 + $0x32] sm:$0xff]
        %v3342 = vld [vmem:[%s3133 + $0x42] sm:$0xff]
        %v3343 = vld [vmem:[%s3133 + $0x52] sm:$0xff]
        %v3344 = vld [vmem:[%s3133 + $0x62] sm:$0xff]
        %v3345 = vld [vmem:[%s3133 + $0x72] sm:$0xff]
        %v3346 = vpack.c.bf16 %v3339, %v3338
        %v3347 = vpack.c.bf16 %v3341, %v3340
        %v3348 = vpack.c.bf16 %v3343, %v3342
        %v3349 = vpack.c.bf16 %v3345, %v3344
        %s3350 = scalar_lea.vmem %s3, 68
        %v3351 = vld [vmem:[%s3350] sm:$0xf]
        %v3353 = vsel %vm1255, %v3346, 0
        %v3356 = vsel %vm1255, %v3347, 0
        %v3359 = vsel %vm1255, %v3348, 0
        %v3362 = vsel %vm1255, %v3349, 0
        %v3365 = vsel %vm1656, %v3351, 0
        %3367 = vmatprep.subr.bf16.mxu0 0
        %3368 = vmatpush1.bf16.msra.mxu0 %v3365
        %3369 = vmatprep.subr.bf16.mxu0 0
        %3370 = vmatpush1.bf16.msra.mxu0 0
        %3371 = vmatprep.subr.bf16.mxu0 0
        %3372 = vmatpush1.bf16.msra.mxu0 0
        %3373 = vmatprep.subr.bf16.mxu0 0
        %3374 = vmatpush1.bf16.msra.mxu0 0
        %3375 = vmatprep.subr.bf16.mxu0 0
        %3376 = vmatpush1.bf16.msra.mxu0 0
        %3377 = vmatprep.subr.bf16.mxu0 0
        %3378 = vmatpush1.bf16.msra.mxu0 0
        %3379 = vmatprep.subr.bf16.mxu0 0
        %3380 = vmatpush1.bf16.msra.mxu0 0
        %3381 = vmatprep.subr.bf16.mxu0 0
        %3382 = vmatpush1.bf16.msra.mxu0 0
        %3383 = vmatprep.subr.bf16.mxu0 0
        %3384 = vmatpush1.bf16.msra.mxu0 0
        %3385 = vmatprep.subr.bf16.mxu0 0
        %3386 = vmatpush1.bf16.msra.mxu0 0
        %3387 = vmatprep.subr.bf16.mxu0 0
        %3388 = vmatpush1.bf16.msra.mxu0 0
        %3389 = vmatprep.subr.bf16.mxu0 0
        %3390 = vmatpush1.bf16.msra.mxu0 0
        %3391 = vmatprep.subr.bf16.mxu0 0
        %3392 = vmatpush1.bf16.msra.mxu0 0
        %3393 = vmatprep.subr.bf16.mxu0 0
        %3394 = vmatpush1.bf16.msra.mxu0 0
        %3395 = vmatprep.subr.bf16.mxu0 0
        %3396 = vmatpush1.bf16.msra.mxu0 0
        %3397 = vmatprep.subr.bf16.mxu0 0
        %3398 = vmatpush1.bf16.msra.mxu0 0
        %3399 = vmatprep.mubr.bf16.mxu0 0
        %3400 = vmatmul.mubr.bf16.gmra.mrb[0].mxu0 %v3353
        %v3401 = vpop.f32.mrb[0].mxu0
        %v3402 = vadd.f32 0.0, %v3401
        %v3403 = vpop.f32.mrb[0].mxu0
        %v3404 = vpop.f32.mrb[0].mxu0
        %v3405 = vadd.f32 0.0, %v3404
        %v3406 = vpop.f32.mrb[0].mxu0
        %3407 = vmatprep.mubr.bf16.mxu0 0
        %3408 = vmatmul.mubr.bf16.gmra.mrb[0].mxu0 %v3356
        %v3409 = vpop.f32.mrb[0].mxu0
        %v3410 = vadd.f32 0.0, %v3409
        %v3411 = vpop.f32.mrb[0].mxu0
        %v3412 = vpop.f32.mrb[0].mxu0
        %v3413 = vadd.f32 0.0, %v3412
        %v3414 = vpop.f32.mrb[0].mxu0
        %3415 = vmatprep.mubr.bf16.mxu0 0
        %3416 = vmatmul.mubr.bf16.gmra.mrb[0].mxu0 %v3359
        %v3417 = vpop.f32.mrb[0].mxu0
        %v3418 = vadd.f32 0.0, %v3417
        %v3419 = vpop.f32.mrb[0].mxu0
        %v3420 = vpop.f32.mrb[0].mxu0
        %v3421 = vadd.f32 0.0, %v3420
        %v3422 = vpop.f32.mrb[0].mxu0
        %3423 = vmatprep.mubr.bf16.mxu0 0
        %3424 = vmatmul.mubr.bf16.gmra.mrb[0].mxu0 %v3362
        %v3425 = vpop.f32.mrb[0].mxu0
        %v3426 = vadd.f32 0.0, %v3425
        %v3427 = vpop.f32.mrb[0].mxu0
        %v3428 = vpop.f32.mrb[0].mxu0
        %v3429 = vadd.f32 0.0, %v3428
        %v3430 = vpop.f32.mrb[0].mxu0
        %3431 = vdwg.mxu0
        %v3432 = vadd.f32 %v3330, %v3402
        %v3433 = vadd.f32 %v3331, %v3405
        %v3434 = vadd.f32 %v3332, %v3410
        %v3435 = vadd.f32 %v3333, %v3413
        %v3436 = vadd.f32 %v3334, %v3418
        %v3437 = vadd.f32 %v3335, %v3421
        %v3438 = vadd.f32 %v3336, %v3426
        %v3439 = vadd.f32 %v3337, %v3429
        %v3440 = vld [vmem:[%s3133 + $0x3] sm:$0xff]
        %v3441 = vld [vmem:[%s3133 + $0x13] sm:$0xff]
        %v3442 = vld [vmem:[%s3133 + $0x23] sm:$0xff]
        %v3443 = vld [vmem:[%s3133 + $0x33] sm:$0xff]
        %v3444 = vld [vmem:[%s3133 + $0x43] sm:$0xff]
        %v3445 = vld [vmem:[%s3133 + $0x53] sm:$0xff]
        %v3446 = vld [vmem:[%s3133 + $0x63] sm:$0xff]
        %v3447 = vld [vmem:[%s3133 + $0x73] sm:$0xff]
        %v3448 = vpack.c.bf16 %v3441, %v3440
        %v3449 = vpack.c.bf16 %v3443, %v3442
        %v3450 = vpack.c.bf16 %v3445, %v3444
        %v3451 = vpack.c.bf16 %v3447, %v3446
        %s3452 = scalar_lea.vmem %s3, 72
        %v3453 = vld [vmem:[%s3452] sm:$0xf]
        %v3455 = vsel %vm1255, %v3448, 0
        %v3458 = vsel %vm1255, %v3449, 0
        %v3461 = vsel %vm1255, %v3450, 0
        %v3464 = vsel %vm1255, %v3451, 0
        %v3467 = vsel %vm1656, %v3453, 0
        %3469 = vmatprep.subr.bf16.mxu0 0
        %3470 = vmatpush1.bf16.msra.mxu0 %v3467
        %3471 = vmatprep.subr.bf16.mxu0 0
        %3472 = vmatpush1.bf16.msra.mxu0 0
        %3473 = vmatprep.subr.bf16.mxu0 0
        %3474 = vmatpush1.bf16.msra.mxu0 0
        %3475 = vmatprep.subr.bf16.mxu0 0
        %3476 = vmatpush1.bf16.msra.mxu0 0
        %3477 = vmatprep.subr.bf16.mxu0 0
        %3478 = vmatpush1.bf16.msra.mxu0 0
        %3479 = vmatprep.subr.bf16.mxu0 0
        %3480 = vmatpush1.bf16.msra.mxu0 0
        %3481 = vmatprep.subr.bf16.mxu0 0
        %3482 = vmatpush1.bf16.msra.mxu0 0
        %3483 = vmatprep.subr.bf16.mxu0 0
        %3484 = vmatpush1.bf16.msra.mxu0 0
        %3485 = vmatprep.subr.bf16.mxu0 0
        %3486 = vmatpush1.bf16.msra.mxu0 0
        %3487 = vmatprep.subr.bf16.mxu0 0
        %3488 = vmatpush1.bf16.msra.mxu0 0
        %3489 = vmatprep.subr.bf16.mxu0 0
        %3490 = vmatpush1.bf16.msra.mxu0 0
        %3491 = vmatprep.subr.bf16.mxu0 0
        %3492 = vmatpush1.bf16.msra.mxu0 0
        %3493 = vmatprep.subr.bf16.mxu0 0
        %3494 = vmatpush1.bf16.msra.mxu0 0
        %3495 = vmatprep.subr.bf16.mxu0 0
        %3496 = vmatpush1.bf16.msra.mxu0 0
        %3497 = vmatprep.subr.bf16.mxu0 0
        %3498 = vmatpush1.bf16.msra.mxu0 0
        %3499 = vmatprep.subr.bf16.mxu0 0
        %3500 = vmatpush1.bf16.msra.mxu0 0
        %3501 = vmatprep.mubr.bf16.mxu0 0
        %3502 = vmatmul.mubr.bf16.gmra.mrb[0].mxu0 %v3455
        %v3503 = vpop.f32.mrb[0].mxu0
        %v3504 = vadd.f32 0.0, %v3503
        %v3505 = vpop.f32.mrb[0].mxu0
        %v3506 = vpop.f32.mrb[0].mxu0
        %v3507 = vadd.f32 0.0, %v3506
        %v3508 = vpop.f32.mrb[0].mxu0
        %3509 = vmatprep.mubr.bf16.mxu0 0
        %3510 = vmatmul.mubr.bf16.gmra.mrb[0].mxu0 %v3458
        %v3511 = vpop.f32.mrb[0].mxu0
        %v3512 = vadd.f32 0.0, %v3511
        %v3513 = vpop.f32.mrb[0].mxu0
        %v3514 = vpop.f32.mrb[0].mxu0
        %v3515 = vadd.f32 0.0, %v3514
        %v3516 = vpop.f32.mrb[0].mxu0
        %3517 = vmatprep.mubr.bf16.mxu0 0
        %3518 = vmatmul.mubr.bf16.gmra.mrb[0].mxu0 %v3461
        %v3519 = vpop.f32.mrb[0].mxu0
        %v3520 = vadd.f32 0.0, %v3519
        %v3521 = vpop.f32.mrb[0].mxu0
        %v3522 = vpop.f32.mrb[0].mxu0
        %v3523 = vadd.f32 0.0, %v3522
        %v3524 = vpop.f32.mrb[0].mxu0
        %3525 = vmatprep.mubr.bf16.mxu0 0
        %3526 = vmatmul.mubr.bf16.gmra.mrb[0].mxu0 %v3464
        %v3527 = vpop.f32.mrb[0].mxu0
        %v3528 = vadd.f32 0.0, %v3527
        %v3529 = vpop.f32.mrb[0].mxu0
        %v3530 = vpop.f32.mrb[0].mxu0
        %v3531 = vadd.f32 0.0, %v3530
        %v3532 = vpop.f32.mrb[0].mxu0
        %3533 = vdwg.mxu0
        %v3534 = vadd.f32 %v3432, %v3504
        %v3535 = vadd.f32 %v3433, %v3507
        %v3536 = vadd.f32 %v3434, %v3512
        %v3537 = vadd.f32 %v3435, %v3515
        %v3538 = vadd.f32 %v3436, %v3520
        %v3539 = vadd.f32 %v3437, %v3523
        %v3540 = vadd.f32 %v3438, %v3528
        %v3541 = vadd.f32 %v3439, %v3531
        %v3542 = vld [vmem:[%s3133 + $0x4] sm:$0xff]
        %v3543 = vld [vmem:[%s3133 + $0x14] sm:$0xff]
        %v3544 = vld [vmem:[%s3133 + $0x24] sm:$0xff]
        %v3545 = vld [vmem:[%s3133 + $0x34] sm:$0xff]
        %v3546 = vld [vmem:[%s3133 + $0x44] sm:$0xff]
        %v3547 = vld [vmem:[%s3133 + $0x54] sm:$0xff]
        %v3548 = vld [vmem:[%s3133 + $0x64] sm:$0xff]
        %v3549 = vld [vmem:[%s3133 + $0x74] sm:$0xff]
        %v3550 = vpack.c.bf16 %v3543, %v3542
        %v3551 = vpack.c.bf16 %v3545, %v3544
        %v3552 = vpack.c.bf16 %v3547, %v3546
        %v3553 = vpack.c.bf16 %v3549, %v3548
        %s3554 = scalar_lea.vmem %s3, 76
        %v3555 = vld [vmem:[%s3554] sm:$0xf]
        %v3557 = vsel %vm1255, %v3550, 0
        %v3560 = vsel %vm1255, %v3551, 0
        %v3563 = vsel %vm1255, %v3552, 0
        %v3566 = vsel %vm1255, %v3553, 0
        %v3569 = vsel %vm1656, %v3555, 0
        %3571 = vmatprep.subr.bf16.mxu0 0
        %3572 = vmatpush1.bf16.msra.mxu0 %v3569
        %3573 = vmatprep.subr.bf16.mxu0 0
        %3574 = vmatpush1.bf16.msra.mxu0 0
        %3575 = vmatprep.subr.bf16.mxu0 0
        %3576 = vmatpush1.bf16.msra.mxu0 0
        %3577 = vmatprep.subr.bf16.mxu0 0
        %3578 = vmatpush1.bf16.msra.mxu0 0
        %3579 = vmatprep.subr.bf16.mxu0 0
        %3580 = vmatpush1.bf16.msra.mxu0 0
        %3581 = vmatprep.subr.bf16.mxu0 0
        %3582 = vmatpush1.bf16.msra.mxu0 0
        %3583 = vmatprep.subr.bf16.mxu0 0
        %3584 = vmatpush1.bf16.msra.mxu0 0
        %3585 = vmatprep.subr.bf16.mxu0 0
        %3586 = vmatpush1.bf16.msra.mxu0 0
        %3587 = vmatprep.subr.bf16.mxu0 0
        %3588 = vmatpush1.bf16.msra.mxu0 0
        %3589 = vmatprep.subr.bf16.mxu0 0
        %3590 = vmatpush1.bf16.msra.mxu0 0
        %3591 = vmatprep.subr.bf16.mxu0 0
        %3592 = vmatpush1.bf16.msra.mxu0 0
        %3593 = vmatprep.subr.bf16.mxu0 0
        %3594 = vmatpush1.bf16.msra.mxu0 0
        %3595 = vmatprep.subr.bf16.mxu0 0
        %3596 = vmatpush1.bf16.msra.mxu0 0
        %3597 = vmatprep.subr.bf16.mxu0 0
        %3598 = vmatpush1.bf16.msra.mxu0 0
        %3599 = vmatprep.subr.bf16.mxu0 0
        %3600 = vmatpush1.bf16.msra.mxu0 0
        %3601 = vmatprep.subr.bf16.mxu0 0
        %3602 = vmatpush1.bf16.msra.mxu0 0
        %3603 = vmatprep.mubr.bf16.mxu0 0
        %3604 = vmatmul.mubr.bf16.gmra.mrb[0].mxu0 %v3557
        %v3605 = vpop.f32.mrb[0].mxu0
        %v3606 = vadd.f32 0.0, %v3605
        %v3607 = vpop.f32.mrb[0].mxu0
        %v3608 = vpop.f32.mrb[0].mxu0
        %v3609 = vadd.f32 0.0, %v3608
        %v3610 = vpop.f32.mrb[0].mxu0
        %3611 = vmatprep.mubr.bf16.mxu0 0
        %3612 = vmatmul.mubr.bf16.gmra.mrb[0].mxu0 %v3560
        %v3613 = vpop.f32.mrb[0].mxu0
        %v3614 = vadd.f32 0.0, %v3613
        %v3615 = vpop.f32.mrb[0].mxu0
        %v3616 = vpop.f32.mrb[0].mxu0
        %v3617 = vadd.f32 0.0, %v3616
        %v3618 = vpop.f32.mrb[0].mxu0
        %3619 = vmatprep.mubr.bf16.mxu0 0
        %3620 = vmatmul.mubr.bf16.gmra.mrb[0].mxu0 %v3563
        %v3621 = vpop.f32.mrb[0].mxu0
        %v3622 = vadd.f32 0.0, %v3621
        %v3623 = vpop.f32.mrb[0].mxu0
        %v3624 = vpop.f32.mrb[0].mxu0
        %v3625 = vadd.f32 0.0, %v3624
        %v3626 = vpop.f32.mrb[0].mxu0
        %3627 = vmatprep.mubr.bf16.mxu0 0
        %3628 = vmatmul.mubr.bf16.gmra.mrb[0].mxu0 %v3566
        %v3629 = vpop.f32.mrb[0].mxu0
        %v3630 = vadd.f32 0.0, %v3629
        %v3631 = vpop.f32.mrb[0].mxu0
        %v3632 = vpop.f32.mrb[0].mxu0
        %v3633 = vadd.f32 0.0, %v3632
        %v3634 = vpop.f32.mrb[0].mxu0
        %3635 = vdwg.mxu0
        %v3636 = vadd.f32 %v3534, %v3606
        %v3637 = vadd.f32 %v3535, %v3609
        %v3638 = vadd.f32 %v3536, %v3614
        %v3639 = vadd.f32 %v3537, %v3617
        %v3640 = vadd.f32 %v3538, %v3622
        %v3641 = vadd.f32 %v3539, %v3625
        %v3642 = vadd.f32 %v3540, %v3630
        %v3643 = vadd.f32 %v3541, %v3633
        %s3644 = scalar_lea.vmem [#allocation4], 64
        %v3645 = vld [vmem:[%s3644] sm:$0xff]
        %v3646 = vld [vmem:[%s3644 + $0x10] sm:$0xff]
        %v3647 = vld [vmem:[%s3644 + $0x20] sm:$0xff]
        %v3648 = vld [vmem:[%s3644 + $0x30] sm:$0xff]
        %v3649 = vld [vmem:[%s3644 + $0x40] sm:$0xff]
        %v3650 = vld [vmem:[%s3644 + $0x50] sm:$0xff]
        %v3651 = vld [vmem:[%s3644 + $0x60] sm:$0xff]
        %v3652 = vld [vmem:[%s3644 + $0x70] sm:$0xff]
        %v3653 = vpack.c.bf16 %v3646, %v3645
        %v3654 = vpack.c.bf16 %v3648, %v3647
        %v3655 = vpack.c.bf16 %v3650, %v3649
        %v3656 = vpack.c.bf16 %v3652, %v3651
        %s3657 = scalar_lea.vmem %s3, 80
        %v3658 = vld [vmem:[%s3657] sm:$0xf]
        %v3660 = vsel %vm1255, %v3653, 0
        %v3663 = vsel %vm1255, %v3654, 0
        %v3666 = vsel %vm1255, %v3655, 0
        %v3669 = vsel %vm1255, %v3656, 0
        %v3672 = vsel %vm1656, %v3658, 0
        %3674 = vmatprep.subr.bf16.mxu0 0
        %3675 = vmatpush1.bf16.msra.mxu0 %v3672
        %3676 = vmatprep.subr.bf16.mxu0 0
        %3677 = vmatpush1.bf16.msra.mxu0 0
        %3678 = vmatprep.subr.bf16.mxu0 0
        %3679 = vmatpush1.bf16.msra.mxu0 0
        %3680 = vmatprep.subr.bf16.mxu0 0
        %3681 = vmatpush1.bf16.msra.mxu0 0
        %3682 = vmatprep.subr.bf16.mxu0 0
        %3683 = vmatpush1.bf16.msra.mxu0 0
        %3684 = vmatprep.subr.bf16.mxu0 0
        %3685 = vmatpush1.bf16.msra.mxu0 0
        %3686 = vmatprep.subr.bf16.mxu0 0
        %3687 = vmatpush1.bf16.msra.mxu0 0
        %3688 = vmatprep.subr.bf16.mxu0 0
        %3689 = vmatpush1.bf16.msra.mxu0 0
        %3690 = vmatprep.subr.bf16.mxu0 0
        %3691 = vmatpush1.bf16.msra.mxu0 0
        %3692 = vmatprep.subr.bf16.mxu0 0
        %3693 = vmatpush1.bf16.msra.mxu0 0
        %3694 = vmatprep.subr.bf16.mxu0 0
        %3695 = vmatpush1.bf16.msra.mxu0 0
        %3696 = vmatprep.subr.bf16.mxu0 0
        %3697 = vmatpush1.bf16.msra.mxu0 0
        %3698 = vmatprep.subr.bf16.mxu0 0
        %3699 = vmatpush1.bf16.msra.mxu0 0
        %3700 = vmatprep.subr.bf16.mxu0 0
        %3701 = vmatpush1.bf16.msra.mxu0 0
        %3702 = vmatprep.subr.bf16.mxu0 0
        %3703 = vmatpush1.bf16.msra.mxu0 0
        %3704 = vmatprep.subr.bf16.mxu0 0
        %3705 = vmatpush1.bf16.msra.mxu0 0
        %3706 = vmatprep.mubr.bf16.mxu0 0
        %3707 = vmatmul.mubr.bf16.gmra.mrb[0].mxu0 %v3660
        %v3708 = vpop.f32.mrb[0].mxu0
        %v3709 = vadd.f32 0.0, %v3708
        %v3710 = vpop.f32.mrb[0].mxu0
        %v3711 = vpop.f32.mrb[0].mxu0
        %v3712 = vadd.f32 0.0, %v3711
        %v3713 = vpop.f32.mrb[0].mxu0
        %3714 = vmatprep.mubr.bf16.mxu0 0
        %3715 = vmatmul.mubr.bf16.gmra.mrb[0].mxu0 %v3663
        %v3716 = vpop.f32.mrb[0].mxu0
        %v3717 = vadd.f32 0.0, %v3716
        %v3718 = vpop.f32.mrb[0].mxu0
        %v3719 = vpop.f32.mrb[0].mxu0
        %v3720 = vadd.f32 0.0, %v3719
        %v3721 = vpop.f32.mrb[0].mxu0
        %3722 = vmatprep.mubr.bf16.mxu0 0
        %3723 = vmatmul.mubr.bf16.gmra.mrb[0].mxu0 %v3666
        %v3724 = vpop.f32.mrb[0].mxu0
        %v3725 = vadd.f32 0.0, %v3724
        %v3726 = vpop.f32.mrb[0].mxu0
        %v3727 = vpop.f32.mrb[0].mxu0
        %v3728 = vadd.f32 0.0, %v3727
        %v3729 = vpop.f32.mrb[0].mxu0
        %3730 = vmatprep.mubr.bf16.mxu0 0
        %3731 = vmatmul.mubr.bf16.gmra.mrb[0].mxu0 %v3669
        %v3732 = vpop.f32.mrb[0].mxu0
        %v3733 = vadd.f32 0.0, %v3732
        %v3734 = vpop.f32.mrb[0].mxu0
        %v3735 = vpop.f32.mrb[0].mxu0
        %v3736 = vadd.f32 0.0, %v3735
        %v3737 = vpop.f32.mrb[0].mxu0
        %3738 = vdwg.mxu0
        %v3739 = vadd.f32 %v3636, %v3709
        %v3740 = vadd.f32 %v3637, %v3712
        %v3741 = vadd.f32 %v3638, %v3717
        %v3742 = vadd.f32 %v3639, %v3720
        %v3743 = vadd.f32 %v3640, %v3725
        %v3744 = vadd.f32 %v3641, %v3728
        %v3745 = vadd.f32 %v3642, %v3733
        %v3746 = vadd.f32 %v3643, %v3736
        %v3747 = vld [vmem:[%s3644 + $0x1] sm:$0xff]
        %v3748 = vld [vmem:[%s3644 + $0x11] sm:$0xff]
        %v3749 = vld [vmem:[%s3644 + $0x21] sm:$0xff]
        %v3750 = vld [vmem:[%s3644 + $0x31] sm:$0xff]
        %v3751 = vld [vmem:[%s3644 + $0x41] sm:$0xff]
        %v3752 = vld [vmem:[%s3644 + $0x51] sm:$0xff]
        %v3753 = vld [vmem:[%s3644 + $0x61] sm:$0xff]
        %v3754 = vld [vmem:[%s3644 + $0x71] sm:$0xff]
        %v3755 = vpack.c.bf16 %v3748, %v3747
        %v3756 = vpack.c.bf16 %v3750, %v3749
        %v3757 = vpack.c.bf16 %v3752, %v3751
        %v3758 = vpack.c.bf16 %v3754, %v3753
        %s3759 = scalar_lea.vmem %s3, 84
        %v3760 = vld [vmem:[%s3759] sm:$0xf]
        %v3762 = vsel %vm1255, %v3755, 0
        %v3765 = vsel %vm1255, %v3756, 0
        %v3768 = vsel %vm1255, %v3757, 0
        %v3771 = vsel %vm1255, %v3758, 0
        %v3774 = vsel %vm1656, %v3760, 0
        %3776 = vmatprep.subr.bf16.mxu0 0
        %3777 = vmatpush1.bf16.msra.mxu0 %v3774
        %3778 = vmatprep.subr.bf16.mxu0 0
        %3779 = vmatpush1.bf16.msra.mxu0 0
        %3780 = vmatprep.subr.bf16.mxu0 0
        %3781 = vmatpush1.bf16.msra.mxu0 0
        %3782 = vmatprep.subr.bf16.mxu0 0
        %3783 = vmatpush1.bf16.msra.mxu0 0
        %3784 = vmatprep.subr.bf16.mxu0 0
        %3785 = vmatpush1.bf16.msra.mxu0 0
        %3786 = vmatprep.subr.bf16.mxu0 0
        %3787 = vmatpush1.bf16.msra.mxu0 0
        %3788 = vmatprep.subr.bf16.mxu0 0
        %3789 = vmatpush1.bf16.msra.mxu0 0
        %3790 = vmatprep.subr.bf16.mxu0 0
        %3791 = vmatpush1.bf16.msra.mxu0 0
        %3792 = vmatprep.subr.bf16.mxu0 0
        %3793 = vmatpush1.bf16.msra.mxu0 0
        %3794 = vmatprep.subr.bf16.mxu0 0
        %3795 = vmatpush1.bf16.msra.mxu0 0
        %3796 = vmatprep.subr.bf16.mxu0 0
        %3797 = vmatpush1.bf16.msra.mxu0 0
        %3798 = vmatprep.subr.bf16.mxu0 0
        %3799 = vmatpush1.bf16.msra.mxu0 0
        %3800 = vmatprep.subr.bf16.mxu0 0
        %3801 = vmatpush1.bf16.msra.mxu0 0
        %3802 = vmatprep.subr.bf16.mxu0 0
        %3803 = vmatpush1.bf16.msra.mxu0 0
        %3804 = vmatprep.subr.bf16.mxu0 0
        %3805 = vmatpush1.bf16.msra.mxu0 0
        %3806 = vmatprep.subr.bf16.mxu0 0
        %3807 = vmatpush1.bf16.msra.mxu0 0
        %3808 = vmatprep.mubr.bf16.mxu0 0
        %3809 = vmatmul.mubr.bf16.gmra.mrb[0].mxu0 %v3762
        %v3810 = vpop.f32.mrb[0].mxu0
        %v3811 = vadd.f32 0.0, %v3810
        %v3812 = vpop.f32.mrb[0].mxu0
        %v3813 = vpop.f32.mrb[0].mxu0
        %v3814 = vadd.f32 0.0, %v3813
        %v3815 = vpop.f32.mrb[0].mxu0
        %3816 = vmatprep.mubr.bf16.mxu0 0
        %3817 = vmatmul.mubr.bf16.gmra.mrb[0].mxu0 %v3765
        %v3818 = vpop.f32.mrb[0].mxu0
        %v3819 = vadd.f32 0.0, %v3818
        %v3820 = vpop.f32.mrb[0].mxu0
        %v3821 = vpop.f32.mrb[0].mxu0
        %v3822 = vadd.f32 0.0, %v3821
        %v3823 = vpop.f32.mrb[0].mxu0
        %3824 = vmatprep.mubr.bf16.mxu0 0
        %3825 = vmatmul.mubr.bf16.gmra.mrb[0].mxu0 %v3768
        %v3826 = vpop.f32.mrb[0].mxu0
        %v3827 = vadd.f32 0.0, %v3826
        %v3828 = vpop.f32.mrb[0].mxu0
        %v3829 = vpop.f32.mrb[0].mxu0
        %v3830 = vadd.f32 0.0, %v3829
        %v3831 = vpop.f32.mrb[0].mxu0
        %3832 = vmatprep.mubr.bf16.mxu0 0
        %3833 = vmatmul.mubr.bf16.gmra.mrb[0].mxu0 %v3771
        %v3834 = vpop.f32.mrb[0].mxu0
        %v3835 = vadd.f32 0.0, %v3834
        %v3836 = vpop.f32.mrb[0].mxu0
        %v3837 = vpop.f32.mrb[0].mxu0
        %v3838 = vadd.f32 0.0, %v3837
        %v3839 = vpop.f32.mrb[0].mxu0
        %3840 = vdwg.mxu0
        %v3841 = vadd.f32 %v3739, %v3811
        %v3842 = vadd.f32 %v3740, %v3814
        %v3843 = vadd.f32 %v3741, %v3819
        %v3844 = vadd.f32 %v3742, %v3822
        %v3845 = vadd.f32 %v3743, %v3827
        %v3846 = vadd.f32 %v3744, %v3830
        %v3847 = vadd.f32 %v3745, %v3835
        %v3848 = vadd.f32 %v3746, %v3838
        %v3849 = vld [vmem:[%s3644 + $0x2] sm:$0xff]
        %v3850 = vld [vmem:[%s3644 + $0x12] sm:$0xff]
        %v3851 = vld [vmem:[%s3644 + $0x22] sm:$0xff]
        %v3852 = vld [vmem:[%s3644 + $0x32] sm:$0xff]
        %v3853 = vld [vmem:[%s3644 + $0x42] sm:$0xff]
        %v3854 = vld [vmem:[%s3644 + $0x52] sm:$0xff]
        %v3855 = vld [vmem:[%s3644 + $0x62] sm:$0xff]
        %v3856 = vld [vmem:[%s3644 + $0x72] sm:$0xff]
        %v3857 = vpack.c.bf16 %v3850, %v3849
        %v3858 = vpack.c.bf16 %v3852, %v3851
        %v3859 = vpack.c.bf16 %v3854, %v3853
        %v3860 = vpack.c.bf16 %v3856, %v3855
        %s3861 = scalar_lea.vmem %s3, 88
        %v3862 = vld [vmem:[%s3861] sm:$0xf]
        %v3864 = vsel %vm1255, %v3857, 0
        %v3867 = vsel %vm1255, %v3858, 0
        %v3870 = vsel %vm1255, %v3859, 0
        %v3873 = vsel %vm1255, %v3860, 0
        %v3876 = vsel %vm1656, %v3862, 0
        %3878 = vmatprep.subr.bf16.mxu0 0
        %3879 = vmatpush1.bf16.msra.mxu0 %v3876
        %3880 = vmatprep.subr.bf16.mxu0 0
        %3881 = vmatpush1.bf16.msra.mxu0 0
        %3882 = vmatprep.subr.bf16.mxu0 0
        %3883 = vmatpush1.bf16.msra.mxu0 0
        %3884 = vmatprep.subr.bf16.mxu0 0
        %3885 = vmatpush1.bf16.msra.mxu0 0
        %3886 = vmatprep.subr.bf16.mxu0 0
        %3887 = vmatpush1.bf16.msra.mxu0 0
        %3888 = vmatprep.subr.bf16.mxu0 0
        %3889 = vmatpush1.bf16.msra.mxu0 0
        %3890 = vmatprep.subr.bf16.mxu0 0
        %3891 = vmatpush1.bf16.msra.mxu0 0
        %3892 = vmatprep.subr.bf16.mxu0 0
        %3893 = vmatpush1.bf16.msra.mxu0 0
        %3894 = vmatprep.subr.bf16.mxu0 0
        %3895 = vmatpush1.bf16.msra.mxu0 0
        %3896 = vmatprep.subr.bf16.mxu0 0
        %3897 = vmatpush1.bf16.msra.mxu0 0
        %3898 = vmatprep.subr.bf16.mxu0 0
        %3899 = vmatpush1.bf16.msra.mxu0 0
        %3900 = vmatprep.subr.bf16.mxu0 0
        %3901 = vmatpush1.bf16.msra.mxu0 0
        %3902 = vmatprep.subr.bf16.mxu0 0
        %3903 = vmatpush1.bf16.msra.mxu0 0
        %3904 = vmatprep.subr.bf16.mxu0 0
        %3905 = vmatpush1.bf16.msra.mxu0 0
        %3906 = vmatprep.subr.bf16.mxu0 0
        %3907 = vmatpush1.bf16.msra.mxu0 0
        %3908 = vmatprep.subr.bf16.mxu0 0
        %3909 = vmatpush1.bf16.msra.mxu0 0
        %3910 = vmatprep.mubr.bf16.mxu0 0
        %3911 = vmatmul.mubr.bf16.gmra.mrb[0].mxu0 %v3864
        %v3912 = vpop.f32.mrb[0].mxu0
        %v3913 = vadd.f32 0.0, %v3912
        %v3914 = vpop.f32.mrb[0].mxu0
        %v3915 = vpop.f32.mrb[0].mxu0
        %v3916 = vadd.f32 0.0, %v3915
        %v3917 = vpop.f32.mrb[0].mxu0
        %3918 = vmatprep.mubr.bf16.mxu0 0
        %3919 = vmatmul.mubr.bf16.gmra.mrb[0].mxu0 %v3867
        %v3920 = vpop.f32.mrb[0].mxu0
        %v3921 = vadd.f32 0.0, %v3920
        %v3922 = vpop.f32.mrb[0].mxu0
        %v3923 = vpop.f32.mrb[0].mxu0
        %v3924 = vadd.f32 0.0, %v3923
        %v3925 = vpop.f32.mrb[0].mxu0
        %3926 = vmatprep.mubr.bf16.mxu0 0
        %3927 = vmatmul.mubr.bf16.gmra.mrb[0].mxu0 %v3870
        %v3928 = vpop.f32.mrb[0].mxu0
        %v3929 = vadd.f32 0.0, %v3928
        %v3930 = vpop.f32.mrb[0].mxu0
        %v3931 = vpop.f32.mrb[0].mxu0
        %v3932 = vadd.f32 0.0, %v3931
        %v3933 = vpop.f32.mrb[0].mxu0
        %3934 = vmatprep.mubr.bf16.mxu0 0
        %3935 = vmatmul.mubr.bf16.gmra.mrb[0].mxu0 %v3873
        %v3936 = vpop.f32.mrb[0].mxu0
        %v3937 = vadd.f32 0.0, %v3936
        %v3938 = vpop.f32.mrb[0].mxu0
        %v3939 = vpop.f32.mrb[0].mxu0
        %v3940 = vadd.f32 0.0, %v3939
        %v3941 = vpop.f32.mrb[0].mxu0
        %3942 = vdwg.mxu0
        %v3943 = vadd.f32 %v3841, %v3913
        %v3944 = vadd.f32 %v3842, %v3916
        %v3945 = vadd.f32 %v3843, %v3921
        %v3946 = vadd.f32 %v3844, %v3924
        %v3947 = vadd.f32 %v3845, %v3929
        %v3948 = vadd.f32 %v3846, %v3932
        %v3949 = vadd.f32 %v3847, %v3937
        %v3950 = vadd.f32 %v3848, %v3940
        %v3951 = vld [vmem:[%s3644 + $0x3] sm:$0xff]
        %v3952 = vld [vmem:[%s3644 + $0x13] sm:$0xff]
        %v3953 = vld [vmem:[%s3644 + $0x23] sm:$0xff]
        %v3954 = vld [vmem:[%s3644 + $0x33] sm:$0xff]
        %v3955 = vld [vmem:[%s3644 + $0x43] sm:$0xff]
        %v3956 = vld [vmem:[%s3644 + $0x53] sm:$0xff]
        %v3957 = vld [vmem:[%s3644 + $0x63] sm:$0xff]
        %v3958 = vld [vmem:[%s3644 + $0x73] sm:$0xff]
        %v3959 = vpack.c.bf16 %v3952, %v3951
        %v3960 = vpack.c.bf16 %v3954, %v3953
        %v3961 = vpack.c.bf16 %v3956, %v3955
        %v3962 = vpack.c.bf16 %v3958, %v3957
        %s3963 = scalar_lea.vmem %s3, 92
        %v3964 = vld [vmem:[%s3963] sm:$0xf]
        %v3966 = vsel %vm1255, %v3959, 0
        %v3969 = vsel %vm1255, %v3960, 0
        %v3972 = vsel %vm1255, %v3961, 0
        %v3975 = vsel %vm1255, %v3962, 0
        %v3978 = vsel %vm1656, %v3964, 0
        %3980 = vmatprep.subr.bf16.mxu0 0
        %3981 = vmatpush1.bf16.msra.mxu0 %v3978
        %3982 = vmatprep.subr.bf16.mxu0 0
        %3983 = vmatpush1.bf16.msra.mxu0 0
        %3984 = vmatprep.subr.bf16.mxu0 0
        %3985 = vmatpush1.bf16.msra.mxu0 0
        %3986 = vmatprep.subr.bf16.mxu0 0
        %3987 = vmatpush1.bf16.msra.mxu0 0
        %3988 = vmatprep.subr.bf16.mxu0 0
        %3989 = vmatpush1.bf16.msra.mxu0 0
        %3990 = vmatprep.subr.bf16.mxu0 0
        %3991 = vmatpush1.bf16.msra.mxu0 0
        %3992 = vmatprep.subr.bf16.mxu0 0
        %3993 = vmatpush1.bf16.msra.mxu0 0
        %3994 = vmatprep.subr.bf16.mxu0 0
        %3995 = vmatpush1.bf16.msra.mxu0 0
        %3996 = vmatprep.subr.bf16.mxu0 0
        %3997 = vmatpush1.bf16.msra.mxu0 0
        %3998 = vmatprep.subr.bf16.mxu0 0
        %3999 = vmatpush1.bf16.msra.mxu0 0
        %4000 = vmatprep.subr.bf16.mxu0 0
        %4001 = vmatpush1.bf16.msra.mxu0 0
        %4002 = vmatprep.subr.bf16.mxu0 0
        %4003 = vmatpush1.bf16.msra.mxu0 0
        %4004 = vmatprep.subr.bf16.mxu0 0
        %4005 = vmatpush1.bf16.msra.mxu0 0
        %4006 = vmatprep.subr.bf16.mxu0 0
        %4007 = vmatpush1.bf16.msra.mxu0 0
        %4008 = vmatprep.subr.bf16.mxu0 0
        %4009 = vmatpush1.bf16.msra.mxu0 0
        %4010 = vmatprep.subr.bf16.mxu0 0
        %4011 = vmatpush1.bf16.msra.mxu0 0
        %4012 = vmatprep.mubr.bf16.mxu0 0
        %4013 = vmatmul.mubr.bf16.gmra.mrb[0].mxu0 %v3966
        %v4014 = vpop.f32.mrb[0].mxu0
        %v4015 = vadd.f32 0.0, %v4014
        %v4016 = vpop.f32.mrb[0].mxu0
        %v4017 = vpop.f32.mrb[0].mxu0
        %v4018 = vadd.f32 0.0, %v4017
        %v4019 = vpop.f32.mrb[0].mxu0
        %4020 = vmatprep.mubr.bf16.mxu0 0
        %4021 = vmatmul.mubr.bf16.gmra.mrb[0].mxu0 %v3969
        %v4022 = vpop.f32.mrb[0].mxu0
        %v4023 = vadd.f32 0.0, %v4022
        %v4024 = vpop.f32.mrb[0].mxu0
        %v4025 = vpop.f32.mrb[0].mxu0
        %v4026 = vadd.f32 0.0, %v4025
        %v4027 = vpop.f32.mrb[0].mxu0
        %4028 = vmatprep.mubr.bf16.mxu0 0
        %4029 = vmatmul.mubr.bf16.gmra.mrb[0].mxu0 %v3972
        %v4030 = vpop.f32.mrb[0].mxu0
        %v4031 = vadd.f32 0.0, %v4030
        %v4032 = vpop.f32.mrb[0].mxu0
        %v4033 = vpop.f32.mrb[0].mxu0
        %v4034 = vadd.f32 0.0, %v4033
        %v4035 = vpop.f32.mrb[0].mxu0
        %4036 = vmatprep.mubr.bf16.mxu0 0
        %4037 = vmatmul.mubr.bf16.gmra.mrb[0].mxu0 %v3975
        %v4038 = vpop.f32.mrb[0].mxu0
        %v4039 = vadd.f32 0.0, %v4038
        %v4040 = vpop.f32.mrb[0].mxu0
        %v4041 = vpop.f32.mrb[0].mxu0
        %v4042 = vadd.f32 0.0, %v4041
        %v4043 = vpop.f32.mrb[0].mxu0
        %4044 = vdwg.mxu0
        %v4045 = vadd.f32 %v3943, %v4015
        %v4046 = vadd.f32 %v3944, %v4018
        %v4047 = vadd.f32 %v3945, %v4023
        %v4048 = vadd.f32 %v3946, %v4026
        %v4049 = vadd.f32 %v3947, %v4031
        %v4050 = vadd.f32 %v3948, %v4034
        %v4051 = vadd.f32 %v3949, %v4039
        %v4052 = vadd.f32 %v3950, %v4042
        %v4053 = vld [vmem:[%s3644 + $0x4] sm:$0xff]
        %v4054 = vld [vmem:[%s3644 + $0x14] sm:$0xff]
        %v4055 = vld [vmem:[%s3644 + $0x24] sm:$0xff]
        %v4056 = vld [vmem:[%s3644 + $0x34] sm:$0xff]
        %v4057 = vld [vmem:[%s3644 + $0x44] sm:$0xff]
        %v4058 = vld [vmem:[%s3644 + $0x54] sm:$0xff]
        %v4059 = vld [vmem:[%s3644 + $0x64] sm:$0xff]
        %v4060 = vld [vmem:[%s3644 + $0x74] sm:$0xff]
        %v4061 = vpack.c.bf16 %v4054, %v4053
        %v4062 = vpack.c.bf16 %v4056, %v4055
        %v4063 = vpack.c.bf16 %v4058, %v4057
        %v4064 = vpack.c.bf16 %v4060, %v4059
        %s4065 = scalar_lea.vmem %s3, 96
        %v4066 = vld [vmem:[%s4065] sm:$0xf]
        %v4068 = vsel %vm1255, %v4061, 0
        %v4071 = vsel %vm1255, %v4062, 0
        %v4074 = vsel %vm1255, %v4063, 0
        %v4077 = vsel %vm1255, %v4064, 0
        %v4080 = vsel %vm1656, %v4066, 0
        %4082 = vmatprep.subr.bf16.mxu0 0
        %4083 = vmatpush1.bf16.msra.mxu0 %v4080
        %4084 = vmatprep.subr.bf16.mxu0 0
        %4085 = vmatpush1.bf16.msra.mxu0 0
        %4086 = vmatprep.subr.bf16.mxu0 0
        %4087 = vmatpush1.bf16.msra.mxu0 0
        %4088 = vmatprep.subr.bf16.mxu0 0
        %4089 = vmatpush1.bf16.msra.mxu0 0
        %4090 = vmatprep.subr.bf16.mxu0 0
        %4091 = vmatpush1.bf16.msra.mxu0 0
        %4092 = vmatprep.subr.bf16.mxu0 0
        %4093 = vmatpush1.bf16.msra.mxu0 0
        %4094 = vmatprep.subr.bf16.mxu0 0
        %4095 = vmatpush1.bf16.msra.mxu0 0
        %4096 = vmatprep.subr.bf16.mxu0 0
        %4097 = vmatpush1.bf16.msra.mxu0 0
        %4098 = vmatprep.subr.bf16.mxu0 0
        %4099 = vmatpush1.bf16.msra.mxu0 0
        %4100 = vmatprep.subr.bf16.mxu0 0
        %4101 = vmatpush1.bf16.msra.mxu0 0
        %4102 = vmatprep.subr.bf16.mxu0 0
        %4103 = vmatpush1.bf16.msra.mxu0 0
        %4104 = vmatprep.subr.bf16.mxu0 0
        %4105 = vmatpush1.bf16.msra.mxu0 0
        %4106 = vmatprep.subr.bf16.mxu0 0
        %4107 = vmatpush1.bf16.msra.mxu0 0
        %4108 = vmatprep.subr.bf16.mxu0 0
        %4109 = vmatpush1.bf16.msra.mxu0 0
        %4110 = vmatprep.subr.bf16.mxu0 0
        %4111 = vmatpush1.bf16.msra.mxu0 0
        %4112 = vmatprep.subr.bf16.mxu0 0
        %4113 = vmatpush1.bf16.msra.mxu0 0
        %4114 = vmatprep.mubr.bf16.mxu0 0
        %4115 = vmatmul.mubr.bf16.gmra.mrb[0].mxu0 %v4068
        %v4116 = vpop.f32.mrb[0].mxu0
        %v4117 = vadd.f32 0.0, %v4116
        %v4118 = vpop.f32.mrb[0].mxu0
        %v4119 = vpop.f32.mrb[0].mxu0
        %v4120 = vadd.f32 0.0, %v4119
        %v4121 = vpop.f32.mrb[0].mxu0
        %4122 = vmatprep.mubr.bf16.mxu0 0
        %4123 = vmatmul.mubr.bf16.gmra.mrb[0].mxu0 %v4071
        %v4124 = vpop.f32.mrb[0].mxu0
        %v4125 = vadd.f32 0.0, %v4124
        %v4126 = vpop.f32.mrb[0].mxu0
        %v4127 = vpop.f32.mrb[0].mxu0
        %v4128 = vadd.f32 0.0, %v4127
        %v4129 = vpop.f32.mrb[0].mxu0
        %4130 = vmatprep.mubr.bf16.mxu0 0
        %4131 = vmatmul.mubr.bf16.gmra.mrb[0].mxu0 %v4074
        %v4132 = vpop.f32.mrb[0].mxu0
        %v4133 = vadd.f32 0.0, %v4132
        %v4134 = vpop.f32.mrb[0].mxu0
        %v4135 = vpop.f32.mrb[0].mxu0
        %v4136 = vadd.f32 0.0, %v4135
        %v4137 = vpop.f32.mrb[0].mxu0
        %4138 = vmatprep.mubr.bf16.mxu0 0
        %4139 = vmatmul.mubr.bf16.gmra.mrb[0].mxu0 %v4077
        %v4140 = vpop.f32.mrb[0].mxu0
        %v4141 = vadd.f32 0.0, %v4140
        %v4142 = vpop.f32.mrb[0].mxu0
        %v4143 = vpop.f32.mrb[0].mxu0
        %v4144 = vadd.f32 0.0, %v4143
        %v4145 = vpop.f32.mrb[0].mxu0
        %4146 = vdwg.mxu0
        %v4147 = vadd.f32 %v4045, %v4117
        %v4148 = vadd.f32 %v4046, %v4120
        %v4149 = vadd.f32 %v4047, %v4125
        %v4150 = vadd.f32 %v4048, %v4128
        %v4151 = vadd.f32 %v4049, %v4133
        %v4152 = vadd.f32 %v4050, %v4136
        %v4153 = vadd.f32 %v4051, %v4141
        %v4154 = vadd.f32 %v4052, %v4144
        %v4155 = vld [vmem:[%s4] sm:$0x1]
        %v4156 = vlaneseq
        %v4157 = vshrl.u32 %v4156, 7
        %v4158 = vsub.s32 0, %v4157
        %v4159 = vrot.slane %v4155, %v4158
        %v4160 = vmul.f32 %v4147, %v4159
        %v4161 = vmul.f32 %v4148, %v4159
        %v4162 = vmul.f32 %v4149, %v4159
        %v4163 = vmul.f32 %v4150, %v4159
        %v4164 = vmul.f32 %v4151, %v4159
        %v4165 = vmul.f32 %v4152, %v4159
        %v4166 = vmul.f32 %v4153, %v4159
        %v4167 = vmul.f32 %v4154, %v4159
        %v4168 = vld [vmem:[%s4 + $0x1] sm:$0x1]
        %v4169 = vlaneseq
        %v4170 = vshrl.u32 %v4169, 7
        %v4171 = vsub.s32 0, %v4170
        %v4172 = vrot.slane %v4168, %v4171
        %v4173 = vadd.f32 %v4160, %v4172
        %v4174 = vadd.f32 %v4161, %v4172
        %v4175 = vadd.f32 %v4162, %v4172
        %v4176 = vadd.f32 %v4163, %v4172
        %v4177 = vadd.f32 %v4164, %v4172
        %v4178 = vadd.f32 %v4165, %v4172
        %v4179 = vadd.f32 %v4166, %v4172
        %v4180 = vadd.f32 %v4167, %v4172
        %v4181 = vmax.f32 %v4173, 0.0
        %v4182 = vmax.f32 %v4174, 0.0
        %v4183 = vmax.f32 %v4175, 0.0
        %v4184 = vmax.f32 %v4176, 0.0
        %v4185 = vmax.f32 %v4177, 0.0
        %v4186 = vmax.f32 %v4178, 0.0
        %v4187 = vmax.f32 %v4179, 0.0
        %v4188 = vmax.f32 %v4180, 0.0
        %vm4189 = vcmask 130048
        %4190 = vst.msk [vmem:[#allocation5] sm:$0xff] %vm4189, %v4181
        %4191 = vst.msk [vmem:[#allocation5 + $0x8] sm:$0xff] %vm4189, %v4182
        %4192 = vst.msk [vmem:[#allocation5 + $0x10] sm:$0xff] %vm4189, %v4183
        %4193 = vst.msk [vmem:[#allocation5 + $0x18] sm:$0xff] %vm4189, %v4184
        %4194 = vst.msk [vmem:[#allocation5 + $0x20] sm:$0xff] %vm4189, %v4185
        %4195 = vst.msk [vmem:[#allocation5 + $0x28] sm:$0xff] %vm4189, %v4186
        %4196 = vst.msk [vmem:[#allocation5 + $0x30] sm:$0xff] %vm4189, %v4187
        %4197 = vst.msk [vmem:[#allocation5 + $0x38] sm:$0xff] %vm4189, %v4188
        %v4198 = vld [vmem:[#allocation5] sm:$0xff]
        %v4199 = vld [vmem:[#allocation5 + $0x10] sm:$0xff]
        %v4200 = vld [vmem:[#allocation5 + $0x20] sm:$0xff]
        %v4201 = vld [vmem:[#allocation5 + $0x30] sm:$0xff]
        %s4202 = scalar_lea.vmem [#allocation5], 8
        %v4203 = vld [vmem:[%s4202] sm:$0xff]
        %v4204 = vld [vmem:[%s4202 + $0x10] sm:$0xff]
        %v4205 = vld [vmem:[%s4202 + $0x20] sm:$0xff]
        %v4206 = vld [vmem:[%s4202 + $0x30] sm:$0xff]
        %v4207 = vmax.f32 %v4198, %v4203
        %v4208 = vmax.f32 %v4199, %v4204
        %v4209 = vmax.f32 %v4200, %v4205
        %v4210 = vmax.f32 %v4201, %v4206
        %4211 = vst.msk [vmem:[#allocation6] sm:$0xff] %vm4189, %v4207
        %4212 = vst.msk [vmem:[#allocation6 + $0x8] sm:$0xff] %vm4189, %v4208
        %4213 = vst.msk [vmem:[#allocation6 + $0x10] sm:$0xff] %vm4189, %v4209
        %4214 = vst.msk [vmem:[#allocation6 + $0x18] sm:$0xff] %vm4189, %v4210
        %v4215 = vld [vmem:[#allocation6] ss:$2 sm:$0xf]
        %s4216 = scalar_lea.vmem [#allocation6], 8
        %v4217 = vld [vmem:[%s4216] ss:$2 sm:$0xf]
        %s4218 = scalar_lea.vmem [#allocation6], 16
        %v4219 = vld [vmem:[%s4218] ss:$2 sm:$0xf]
        %s4220 = scalar_lea.vmem [#allocation6], 24
        %v4221 = vld [vmem:[%s4220] ss:$2 sm:$0xf]
        %s4222 = scalar_lea.vmem [#allocation6], 1
        %v4223 = vld [vmem:[%s4222] ss:$2 sm:$0xf]
        %s4224 = scalar_lea.vmem [#allocation6], 9
        %v4225 = vld [vmem:[%s4224] ss:$2 sm:$0xf]
        %s4226 = scalar_lea.vmem [#allocation6], 17
        %v4227 = vld [vmem:[%s4226] ss:$2 sm:$0xf]
        %s4228 = scalar_lea.vmem [#allocation6], 25
        %v4229 = vld [vmem:[%s4228] ss:$2 sm:$0xf]
        %v4230 = vmax.f32 %v4215, %v4223
        %v4231 = vmax.f32 %v4217, %v4225
        %v4232 = vmax.f32 %v4219, %v4227
        %v4233 = vmax.f32 %v4221, %v4229
        %vm4234 = vcmask 125952
        %4235 = vst.msk [vmem:[#allocation7] sm:$0xf] %vm4234, %v4230
        %4236 = vst.msk [vmem:[#allocation7 + $0x4] sm:$0xf] %vm4234, %v4231
        %4237 = vst.msk [vmem:[#allocation7 + $0x8] sm:$0xf] %vm4234, %v4232
        %4238 = vst.msk [vmem:[#allocation7 + $0xc] sm:$0xf] %vm4234, %v4233
        %v4239 = vld [vmem:[#allocation7] sm:$0x1]
        %v4240 = vpack.c.bf16 %v4239, %v4239
        %v4241 = vld [vmem:[%s5] sm:$0xf]
        %v4242 = vld [vmem:[%s5 + $0x4] sm:$0xf]
        %v4243 = vld [vmem:[#allocation7 + $0x1] sm:$0x1]
        %v4244 = vpack.c.bf16 %v4243, %v4243
        %s4245 = scalar_lea.vmem %s5, 8
        %v4246 = vld [vmem:[%s4245] sm:$0xf]
        %v4247 = vld [vmem:[%s4245 + $0x4] sm:$0xf]
        %v4250 = vunpack.c.l.b16 %v4246
        %v4251 = vunpack.c.l.b16 %v4247
        %v4252 = vpack.c.b16 %v4251, %v4250
        %v4255 = vsel %vm4189, %v4244, 0
        %4257 = vmatprep.subr.bf16.mxu0 0
        %4258 = vmatpush1.bf16.msra.mxu0 %v4252
        %4259 = vmatprep.subr.bf16.mxu0 0
        %4260 = vmatpush1.bf16.msra.mxu0 0
        %4261 = vmatprep.subr.bf16.mxu0 0
        %4262 = vmatpush1.bf16.msra.mxu0 0
        %4263 = vmatprep.subr.bf16.mxu0 0
        %4264 = vmatpush1.bf16.msra.mxu0 0
        %4265 = vmatprep.subr.bf16.mxu0 0
        %4266 = vmatpush1.bf16.msra.mxu0 0
        %4267 = vmatprep.subr.bf16.mxu0 0
        %4268 = vmatpush1.bf16.msra.mxu0 0
        %4269 = vmatprep.subr.bf16.mxu0 0
        %4270 = vmatpush1.bf16.msra.mxu0 0
        %4271 = vmatprep.subr.bf16.mxu0 0
        %4272 = vmatpush1.bf16.msra.mxu0 0
        %4273 = vmatprep.subr.bf16.mxu0 0
        %4274 = vmatpush1.bf16.msra.mxu0 0
        %4275 = vmatprep.subr.bf16.mxu0 0
        %4276 = vmatpush1.bf16.msra.mxu0 0
        %4277 = vmatprep.subr.bf16.mxu0 0
        %4278 = vmatpush1.bf16.msra.mxu0 0
        %4279 = vmatprep.subr.bf16.mxu0 0
        %4280 = vmatpush1.bf16.msra.mxu0 0
        %4281 = vmatprep.subr.bf16.mxu0 0
        %4282 = vmatpush1.bf16.msra.mxu0 0
        %4283 = vmatprep.subr.bf16.mxu0 0
        %4284 = vmatpush1.bf16.msra.mxu0 0
        %4285 = vmatprep.subr.bf16.mxu0 0
        %4286 = vmatpush1.bf16.msra.mxu0 0
        %4287 = vmatprep.subr.bf16.mxu0 0
        %4288 = vmatpush1.bf16.msra.mxu0 0
        %4289 = vmatprep.mubr.bf16.mxu0 0
        %4290 = vmatmul.mubr.bf16.gmra.mrb[0].mxu0 %v4255
        %v4291 = vpop.f32.mrb[0].mxu0
        %v4292 = vadd.f32 0.0, %v4291
        %v4293 = vpop.f32.mrb[0].mxu0
        %v4294 = vpop.f32.mrb[0].mxu0
        %v4295 = vpop.f32.mrb[0].mxu0
        %4296 = vdwg.mxu0
        %v4299 = vunpack.c.l.b16 %v4241
        %v4300 = vunpack.c.l.b16 %v4242
        %v4301 = vpack.c.b16 %v4300, %v4299
        %v4304 = vsel %vm4189, %v4240, 0
        %4306 = vmatprep.subr.bf16.mxu0 0
        %4307 = vmatpush1.bf16.msra.mxu0 %v4301
        %4308 = vmatprep.subr.bf16.mxu0 0
        %4309 = vmatpush1.bf16.msra.mxu0 0
        %4310 = vmatprep.subr.bf16.mxu0 0
        %4311 = vmatpush1.bf16.msra.mxu0 0
        %4312 = vmatprep.subr.bf16.mxu0 0
        %4313 = vmatpush1.bf16.msra.mxu0 0
        %4314 = vmatprep.subr.bf16.mxu0 0
        %4315 = vmatpush1.bf16.msra.mxu0 0
        %4316 = vmatprep.subr.bf16.mxu0 0
        %4317 = vmatpush1.bf16.msra.mxu0 0
        %4318 = vmatprep.subr.bf16.mxu0 0
        %4319 = vmatpush1.bf16.msra.mxu0 0
        %4320 = vmatprep.subr.bf16.mxu0 0
        %4321 = vmatpush1.bf16.msra.mxu0 0
        %4322 = vmatprep.subr.bf16.mxu0 0
        %4323 = vmatpush1.bf16.msra.mxu0 0
        %4324 = vmatprep.subr.bf16.mxu0 0
        %4325 = vmatpush1.bf16.msra.mxu0 0
        %4326 = vmatprep.subr.bf16.mxu0 0
        %4327 = vmatpush1.bf16.msra.mxu0 0
        %4328 = vmatprep.subr.bf16.mxu0 0
        %4329 = vmatpush1.bf16.msra.mxu0 0
        %4330 = vmatprep.subr.bf16.mxu0 0
        %4331 = vmatpush1.bf16.msra.mxu0 0
        %4332 = vmatprep.subr.bf16.mxu0 0
        %4333 = vmatpush1.bf16.msra.mxu0 0
        %4334 = vmatprep.subr.bf16.mxu0 0
        %4335 = vmatpush1.bf16.msra.mxu0 0
        %4336 = vmatprep.subr.bf16.mxu0 0
        %4337 = vmatpush1.bf16.msra.mxu0 0
        %4338 = vmatprep.mubr.bf16.mxu0 0
        %4339 = vmatmul.mubr.bf16.gmra.mrb[0].mxu0 %v4304
        %v4340 = vpop.f32.mrb[0].mxu0
        %v4341 = vadd.f32 %v4292, %v4340
        %v4342 = vpop.f32.mrb[0].mxu0
        %v4343 = vpop.f32.mrb[0].mxu0
        %v4344 = vpop.f32.mrb[0].mxu0
        %4345 = vdwg.mxu0
        %v4346 = vld [vmem:[#allocation7 + $0x2] sm:$0x1]
        %v4347 = vpack.c.bf16 %v4346, %v4346
        %s4348 = scalar_lea.vmem %s5, 16
        %v4349 = vld [vmem:[%s4348] sm:$0xf]
        %v4350 = vld [vmem:[%s4348 + $0x4] sm:$0xf]
        %v4353 = vunpack.c.l.b16 %v4349
        %v4354 = vunpack.c.l.b16 %v4350
        %v4355 = vpack.c.b16 %v4354, %v4353
        %v4358 = vsel %vm4189, %v4347, 0
        %4360 = vmatprep.subr.bf16.mxu0 0
        %4361 = vmatpush1.bf16.msra.mxu0 %v4355
        %4362 = vmatprep.subr.bf16.mxu0 0
        %4363 = vmatpush1.bf16.msra.mxu0 0
        %4364 = vmatprep.subr.bf16.mxu0 0
        %4365 = vmatpush1.bf16.msra.mxu0 0
        %4366 = vmatprep.subr.bf16.mxu0 0
        %4367 = vmatpush1.bf16.msra.mxu0 0
        %4368 = vmatprep.subr.bf16.mxu0 0
        %4369 = vmatpush1.bf16.msra.mxu0 0
        %4370 = vmatprep.subr.bf16.mxu0 0
        %4371 = vmatpush1.bf16.msra.mxu0 0
        %4372 = vmatprep.subr.bf16.mxu0 0
        %4373 = vmatpush1.bf16.msra.mxu0 0
        %4374 = vmatprep.subr.bf16.mxu0 0
        %4375 = vmatpush1.bf16.msra.mxu0 0
        %4376 = vmatprep.subr.bf16.mxu0 0
        %4377 = vmatpush1.bf16.msra.mxu0 0
        %4378 = vmatprep.subr.bf16.mxu0 0
        %4379 = vmatpush1.bf16.msra.mxu0 0
        %4380 = vmatprep.subr.bf16.mxu0 0
        %4381 = vmatpush1.bf16.msra.mxu0 0
        %4382 = vmatprep.subr.bf16.mxu0 0
        %4383 = vmatpush1.bf16.msra.mxu0 0
        %4384 = vmatprep.subr.bf16.mxu0 0
        %4385 = vmatpush1.bf16.msra.mxu0 0
        %4386 = vmatprep.subr.bf16.mxu0 0
        %4387 = vmatpush1.bf16.msra.mxu0 0
        %4388 = vmatprep.subr.bf16.mxu0 0
        %4389 = vmatpush1.bf16.msra.mxu0 0
        %4390 = vmatprep.subr.bf16.mxu0 0
        %4391 = vmatpush1.bf16.msra.mxu0 0
        %4392 = vmatprep.mubr.bf16.mxu0 0
        %4393 = vmatmul.mubr.bf16.gmra.mrb[0].mxu0 %v4358
        %v4394 = vpop.f32.mrb[0].mxu0
        %v4395 = vadd.f32 0.0, %v4394
        %v4396 = vpop.f32.mrb[0].mxu0
        %v4397 = vpop.f32.mrb[0].mxu0
        %v4398 = vpop.f32.mrb[0].mxu0
        %4399 = vdwg.mxu0
        %v4400 = vadd.f32 %v4341, %v4395
        %v4401 = vld [vmem:[#allocation7 + $0x3] sm:$0x1]
        %v4402 = vpack.c.bf16 %v4401, %v4401
        %s4403 = scalar_lea.vmem %s5, 24
        %v4404 = vld [vmem:[%s4403] sm:$0xf]
        %v4405 = vld [vmem:[%s4403 + $0x4] sm:$0xf]
        %v4408 = vunpack.c.l.b16 %v4404
        %v4409 = vunpack.c.l.b16 %v4405
        %v4410 = vpack.c.b16 %v4409, %v4408
        %v4413 = vsel %vm4189, %v4402, 0
        %4415 = vmatprep.subr.bf16.mxu0 0
        %4416 = vmatpush1.bf16.msra.mxu0 %v4410
        %4417 = vmatprep.subr.bf16.mxu0 0
        %4418 = vmatpush1.bf16.msra.mxu0 0
        %4419 = vmatprep.subr.bf16.mxu0 0
        %4420 = vmatpush1.bf16.msra.mxu0 0
        %4421 = vmatprep.subr.bf16.mxu0 0
        %4422 = vmatpush1.bf16.msra.mxu0 0
        %4423 = vmatprep.subr.bf16.mxu0 0
        %4424 = vmatpush1.bf16.msra.mxu0 0
        %4425 = vmatprep.subr.bf16.mxu0 0
        %4426 = vmatpush1.bf16.msra.mxu0 0
        %4427 = vmatprep.subr.bf16.mxu0 0
        %4428 = vmatpush1.bf16.msra.mxu0 0
        %4429 = vmatprep.subr.bf16.mxu0 0
        %4430 = vmatpush1.bf16.msra.mxu0 0
        %4431 = vmatprep.subr.bf16.mxu0 0
        %4432 = vmatpush1.bf16.msra.mxu0 0
        %4433 = vmatprep.subr.bf16.mxu0 0
        %4434 = vmatpush1.bf16.msra.mxu0 0
        %4435 = vmatprep.subr.bf16.mxu0 0
        %4436 = vmatpush1.bf16.msra.mxu0 0
        %4437 = vmatprep.subr.bf16.mxu0 0
        %4438 = vmatpush1.bf16.msra.mxu0 0
        %4439 = vmatprep.subr.bf16.mxu0 0
        %4440 = vmatpush1.bf16.msra.mxu0 0
        %4441 = vmatprep.subr.bf16.mxu0 0
        %4442 = vmatpush1.bf16.msra.mxu0 0
        %4443 = vmatprep.subr.bf16.mxu0 0
        %4444 = vmatpush1.bf16.msra.mxu0 0
        %4445 = vmatprep.subr.bf16.mxu0 0
        %4446 = vmatpush1.bf16.msra.mxu0 0
        %4447 = vmatprep.mubr.bf16.mxu0 0
        %4448 = vmatmul.mubr.bf16.gmra.mrb[0].mxu0 %v4413
        %v4449 = vpop.f32.mrb[0].mxu0
        %v4450 = vadd.f32 0.0, %v4449
        %v4451 = vpop.f32.mrb[0].mxu0
        %v4452 = vpop.f32.mrb[0].mxu0
        %v4453 = vpop.f32.mrb[0].mxu0
        %4454 = vdwg.mxu0
        %v4455 = vadd.f32 %v4400, %v4450
        %s4456 = scalar_lea.vmem [#allocation7], 4
        %v4457 = vld [vmem:[%s4456] sm:$0x1]
        %v4458 = vpack.c.bf16 %v4457, %v4457
        %s4459 = scalar_lea.vmem %s5, 32
        %v4460 = vld [vmem:[%s4459] sm:$0xf]
        %v4461 = vld [vmem:[%s4459 + $0x4] sm:$0xf]
        %v4464 = vunpack.c.l.b16 %v4460
        %v4465 = vunpack.c.l.b16 %v4461
        %v4466 = vpack.c.b16 %v4465, %v4464
        %v4469 = vsel %vm4189, %v4458, 0
        %4471 = vmatprep.subr.bf16.mxu0 0
        %4472 = vmatpush1.bf16.msra.mxu0 %v4466
        %4473 = vmatprep.subr.bf16.mxu0 0
        %4474 = vmatpush1.bf16.msra.mxu0 0
        %4475 = vmatprep.subr.bf16.mxu0 0
        %4476 = vmatpush1.bf16.msra.mxu0 0
        %4477 = vmatprep.subr.bf16.mxu0 0
        %4478 = vmatpush1.bf16.msra.mxu0 0
        %4479 = vmatprep.subr.bf16.mxu0 0
        %4480 = vmatpush1.bf16.msra.mxu0 0
        %4481 = vmatprep.subr.bf16.mxu0 0
        %4482 = vmatpush1.bf16.msra.mxu0 0
        %4483 = vmatprep.subr.bf16.mxu0 0
        %4484 = vmatpush1.bf16.msra.mxu0 0
        %4485 = vmatprep.subr.bf16.mxu0 0
        %4486 = vmatpush1.bf16.msra.mxu0 0
        %4487 = vmatprep.subr.bf16.mxu0 0
        %4488 = vmatpush1.bf16.msra.mxu0 0
        %4489 = vmatprep.subr.bf16.mxu0 0
        %4490 = vmatpush1.bf16.msra.mxu0 0
        %4491 = vmatprep.subr.bf16.mxu0 0
        %4492 = vmatpush1.bf16.msra.mxu0 0
        %4493 = vmatprep.subr.bf16.mxu0 0
        %4494 = vmatpush1.bf16.msra.mxu0 0
        %4495 = vmatprep.subr.bf16.mxu0 0
        %4496 = vmatpush1.bf16.msra.mxu0 0
        %4497 = vmatprep.subr.bf16.mxu0 0
        %4498 = vmatpush1.bf16.msra.mxu0 0
        %4499 = vmatprep.subr.bf16.mxu0 0
        %4500 = vmatpush1.bf16.msra.mxu0 0
        %4501 = vmatprep.subr.bf16.mxu0 0
        %4502 = vmatpush1.bf16.msra.mxu0 0
        %4503 = vmatprep.mubr.bf16.mxu0 0
        %4504 = vmatmul.mubr.bf16.gmra.mrb[0].mxu0 %v4469
        %v4505 = vpop.f32.mrb[0].mxu0
        %v4506 = vadd.f32 0.0, %v4505
        %v4507 = vpop.f32.mrb[0].mxu0
        %v4508 = vpop.f32.mrb[0].mxu0
        %v4509 = vpop.f32.mrb[0].mxu0
        %4510 = vdwg.mxu0
        %v4511 = vadd.f32 %v4455, %v4506
        %v4512 = vld [vmem:[%s4456 + $0x1] sm:$0x1]
        %v4513 = vpack.c.bf16 %v4512, %v4512
        %s4514 = scalar_lea.vmem %s5, 40
        %v4515 = vld [vmem:[%s4514] sm:$0xf]
        %v4516 = vld [vmem:[%s4514 + $0x4] sm:$0xf]
        %v4519 = vunpack.c.l.b16 %v4515
        %v4520 = vunpack.c.l.b16 %v4516
        %v4521 = vpack.c.b16 %v4520, %v4519
        %v4524 = vsel %vm4189, %v4513, 0
        %4526 = vmatprep.subr.bf16.mxu0 0
        %4527 = vmatpush1.bf16.msra.mxu0 %v4521
        %4528 = vmatprep.subr.bf16.mxu0 0
        %4529 = vmatpush1.bf16.msra.mxu0 0
        %4530 = vmatprep.subr.bf16.mxu0 0
        %4531 = vmatpush1.bf16.msra.mxu0 0
        %4532 = vmatprep.subr.bf16.mxu0 0
        %4533 = vmatpush1.bf16.msra.mxu0 0
        %4534 = vmatprep.subr.bf16.mxu0 0
        %4535 = vmatpush1.bf16.msra.mxu0 0
        %4536 = vmatprep.subr.bf16.mxu0 0
        %4537 = vmatpush1.bf16.msra.mxu0 0
        %4538 = vmatprep.subr.bf16.mxu0 0
        %4539 = vmatpush1.bf16.msra.mxu0 0
        %4540 = vmatprep.subr.bf16.mxu0 0
        %4541 = vmatpush1.bf16.msra.mxu0 0
        %4542 = vmatprep.subr.bf16.mxu0 0
        %4543 = vmatpush1.bf16.msra.mxu0 0
        %4544 = vmatprep.subr.bf16.mxu0 0
        %4545 = vmatpush1.bf16.msra.mxu0 0
        %4546 = vmatprep.subr.bf16.mxu0 0
        %4547 = vmatpush1.bf16.msra.mxu0 0
        %4548 = vmatprep.subr.bf16.mxu0 0
        %4549 = vmatpush1.bf16.msra.mxu0 0
        %4550 = vmatprep.subr.bf16.mxu0 0
        %4551 = vmatpush1.bf16.msra.mxu0 0
        %4552 = vmatprep.subr.bf16.mxu0 0
        %4553 = vmatpush1.bf16.msra.mxu0 0
        %4554 = vmatprep.subr.bf16.mxu0 0
        %4555 = vmatpush1.bf16.msra.mxu0 0
        %4556 = vmatprep.subr.bf16.mxu0 0
        %4557 = vmatpush1.bf16.msra.mxu0 0
        %4558 = vmatprep.mubr.bf16.mxu0 0
        %4559 = vmatmul.mubr.bf16.gmra.mrb[0].mxu0 %v4524
        %v4560 = vpop.f32.mrb[0].mxu0
        %v4561 = vadd.f32 0.0, %v4560
        %v4562 = vpop.f32.mrb[0].mxu0
        %v4563 = vpop.f32.mrb[0].mxu0
        %v4564 = vpop.f32.mrb[0].mxu0
        %4565 = vdwg.mxu0
        %v4566 = vadd.f32 %v4511, %v4561
        %v4567 = vld [vmem:[%s4456 + $0x2] sm:$0x1]
        %v4568 = vpack.c.bf16 %v4567, %v4567
        %s4569 = scalar_lea.vmem %s5, 48
        %v4570 = vld [vmem:[%s4569] sm:$0xf]
        %v4571 = vld [vmem:[%s4569 + $0x4] sm:$0xf]
        %v4574 = vunpack.c.l.b16 %v4570
        %v4575 = vunpack.c.l.b16 %v4571
        %v4576 = vpack.c.b16 %v4575, %v4574
        %v4579 = vsel %vm4189, %v4568, 0
        %4581 = vmatprep.subr.bf16.mxu0 0
        %4582 = vmatpush1.bf16.msra.mxu0 %v4576
        %4583 = vmatprep.subr.bf16.mxu0 0
        %4584 = vmatpush1.bf16.msra.mxu0 0
        %4585 = vmatprep.subr.bf16.mxu0 0
        %4586 = vmatpush1.bf16.msra.mxu0 0
        %4587 = vmatprep.subr.bf16.mxu0 0
        %4588 = vmatpush1.bf16.msra.mxu0 0
        %4589 = vmatprep.subr.bf16.mxu0 0
        %4590 = vmatpush1.bf16.msra.mxu0 0
        %4591 = vmatprep.subr.bf16.mxu0 0
        %4592 = vmatpush1.bf16.msra.mxu0 0
        %4593 = vmatprep.subr.bf16.mxu0 0
        %4594 = vmatpush1.bf16.msra.mxu0 0
        %4595 = vmatprep.subr.bf16.mxu0 0
        %4596 = vmatpush1.bf16.msra.mxu0 0
        %4597 = vmatprep.subr.bf16.mxu0 0
        %4598 = vmatpush1.bf16.msra.mxu0 0
        %4599 = vmatprep.subr.bf16.mxu0 0
        %4600 = vmatpush1.bf16.msra.mxu0 0
        %4601 = vmatprep.subr.bf16.mxu0 0
        %4602 = vmatpush1.bf16.msra.mxu0 0
        %4603 = vmatprep.subr.bf16.mxu0 0
        %4604 = vmatpush1.bf16.msra.mxu0 0
        %4605 = vmatprep.subr.bf16.mxu0 0
        %4606 = vmatpush1.bf16.msra.mxu0 0
        %4607 = vmatprep.subr.bf16.mxu0 0
        %4608 = vmatpush1.bf16.msra.mxu0 0
        %4609 = vmatprep.subr.bf16.mxu0 0
        %4610 = vmatpush1.bf16.msra.mxu0 0
        %4611 = vmatprep.subr.bf16.mxu0 0
        %4612 = vmatpush1.bf16.msra.mxu0 0
        %4613 = vmatprep.mubr.bf16.mxu0 0
        %4614 = vmatmul.mubr.bf16.gmra.mrb[0].mxu0 %v4579
        %v4615 = vpop.f32.mrb[0].mxu0
        %v4616 = vadd.f32 0.0, %v4615
        %v4617 = vpop.f32.mrb[0].mxu0
        %v4618 = vpop.f32.mrb[0].mxu0
        %v4619 = vpop.f32.mrb[0].mxu0
        %4620 = vdwg.mxu0
        %v4621 = vadd.f32 %v4566, %v4616
        %v4622 = vld [vmem:[%s4456 + $0x3] sm:$0x1]
        %v4623 = vpack.c.bf16 %v4622, %v4622
        %s4624 = scalar_lea.vmem %s5, 56
        %v4625 = vld [vmem:[%s4624] sm:$0xf]
        %v4626 = vld [vmem:[%s4624 + $0x4] sm:$0xf]
        %v4629 = vunpack.c.l.b16 %v4625
        %v4630 = vunpack.c.l.b16 %v4626
        %v4631 = vpack.c.b16 %v4630, %v4629
        %v4634 = vsel %vm4189, %v4623, 0
        %4636 = vmatprep.subr.bf16.mxu0 0
        %4637 = vmatpush1.bf16.msra.mxu0 %v4631
        %4638 = vmatprep.subr.bf16.mxu0 0
        %4639 = vmatpush1.bf16.msra.mxu0 0
        %4640 = vmatprep.subr.bf16.mxu0 0
        %4641 = vmatpush1.bf16.msra.mxu0 0
        %4642 = vmatprep.subr.bf16.mxu0 0
        %4643 = vmatpush1.bf16.msra.mxu0 0
        %4644 = vmatprep.subr.bf16.mxu0 0
        %4645 = vmatpush1.bf16.msra.mxu0 0
        %4646 = vmatprep.subr.bf16.mxu0 0
        %4647 = vmatpush1.bf16.msra.mxu0 0
        %4648 = vmatprep.subr.bf16.mxu0 0
        %4649 = vmatpush1.bf16.msra.mxu0 0
        %4650 = vmatprep.subr.bf16.mxu0 0
        %4651 = vmatpush1.bf16.msra.mxu0 0
        %4652 = vmatprep.subr.bf16.mxu0 0
        %4653 = vmatpush1.bf16.msra.mxu0 0
        %4654 = vmatprep.subr.bf16.mxu0 0
        %4655 = vmatpush1.bf16.msra.mxu0 0
        %4656 = vmatprep.subr.bf16.mxu0 0
        %4657 = vmatpush1.bf16.msra.mxu0 0
        %4658 = vmatprep.subr.bf16.mxu0 0
        %4659 = vmatpush1.bf16.msra.mxu0 0
        %4660 = vmatprep.subr.bf16.mxu0 0
        %4661 = vmatpush1.bf16.msra.mxu0 0
        %4662 = vmatprep.subr.bf16.mxu0 0
        %4663 = vmatpush1.bf16.msra.mxu0 0
        %4664 = vmatprep.subr.bf16.mxu0 0
        %4665 = vmatpush1.bf16.msra.mxu0 0
        %4666 = vmatprep.subr.bf16.mxu0 0
        %4667 = vmatpush1.bf16.msra.mxu0 0
        %4668 = vmatprep.mubr.bf16.mxu0 0
        %4669 = vmatmul.mubr.bf16.gmra.mrb[0].mxu0 %v4634
        %v4670 = vpop.f32.mrb[0].mxu0
        %v4671 = vadd.f32 0.0, %v4670
        %v4672 = vpop.f32.mrb[0].mxu0
        %v4673 = vpop.f32.mrb[0].mxu0
        %v4674 = vpop.f32.mrb[0].mxu0
        %4675 = vdwg.mxu0
        %v4676 = vadd.f32 %v4621, %v4671
        %s4677 = scalar_lea.vmem [#allocation7], 8
        %v4678 = vld [vmem:[%s4677] sm:$0x1]
        %v4679 = vpack.c.bf16 %v4678, %v4678
        %s4680 = scalar_lea.vmem %s5, 64
        %v4681 = vld [vmem:[%s4680] sm:$0xf]
        %v4682 = vld [vmem:[%s4680 + $0x4] sm:$0xf]
        %v4685 = vunpack.c.l.b16 %v4681
        %v4686 = vunpack.c.l.b16 %v4682
        %v4687 = vpack.c.b16 %v4686, %v4685
        %v4690 = vsel %vm4189, %v4679, 0
        %4692 = vmatprep.subr.bf16.mxu0 0
        %4693 = vmatpush1.bf16.msra.mxu0 %v4687
        %4694 = vmatprep.subr.bf16.mxu0 0
        %4695 = vmatpush1.bf16.msra.mxu0 0
        %4696 = vmatprep.subr.bf16.mxu0 0
        %4697 = vmatpush1.bf16.msra.mxu0 0
        %4698 = vmatprep.subr.bf16.mxu0 0
        %4699 = vmatpush1.bf16.msra.mxu0 0
        %4700 = vmatprep.subr.bf16.mxu0 0
        %4701 = vmatpush1.bf16.msra.mxu0 0
        %4702 = vmatprep.subr.bf16.mxu0 0
        %4703 = vmatpush1.bf16.msra.mxu0 0
        %4704 = vmatprep.subr.bf16.mxu0 0
        %4705 = vmatpush1.bf16.msra.mxu0 0
        %4706 = vmatprep.subr.bf16.mxu0 0
        %4707 = vmatpush1.bf16.msra.mxu0 0
        %4708 = vmatprep.subr.bf16.mxu0 0
        %4709 = vmatpush1.bf16.msra.mxu0 0
        %4710 = vmatprep.subr.bf16.mxu0 0
        %4711 = vmatpush1.bf16.msra.mxu0 0
        %4712 = vmatprep.subr.bf16.mxu0 0
        %4713 = vmatpush1.bf16.msra.mxu0 0
        %4714 = vmatprep.subr.bf16.mxu0 0
        %4715 = vmatpush1.bf16.msra.mxu0 0
        %4716 = vmatprep.subr.bf16.mxu0 0
        %4717 = vmatpush1.bf16.msra.mxu0 0
        %4718 = vmatprep.subr.bf16.mxu0 0
        %4719 = vmatpush1.bf16.msra.mxu0 0
        %4720 = vmatprep.subr.bf16.mxu0 0
        %4721 = vmatpush1.bf16.msra.mxu0 0
        %4722 = vmatprep.subr.bf16.mxu0 0
        %4723 = vmatpush1.bf16.msra.mxu0 0
        %4724 = vmatprep.mubr.bf16.mxu0 0
        %4725 = vmatmul.mubr.bf16.gmra.mrb[0].mxu0 %v4690
        %v4726 = vpop.f32.mrb[0].mxu0
        %v4727 = vadd.f32 0.0, %v4726
        %v4728 = vpop.f32.mrb[0].mxu0
        %v4729 = vpop.f32.mrb[0].mxu0
        %v4730 = vpop.f32.mrb[0].mxu0
        %4731 = vdwg.mxu0
        %v4732 = vadd.f32 %v4676, %v4727
        %v4733 = vld [vmem:[%s4677 + $0x1] sm:$0x1]
        %v4734 = vpack.c.bf16 %v4733, %v4733
        %s4735 = scalar_lea.vmem %s5, 72
        %v4736 = vld [vmem:[%s4735] sm:$0xf]
        %v4737 = vld [vmem:[%s4735 + $0x4] sm:$0xf]
        %v4740 = vunpack.c.l.b16 %v4736
        %v4741 = vunpack.c.l.b16 %v4737
        %v4742 = vpack.c.b16 %v4741, %v4740
        %v4745 = vsel %vm4189, %v4734, 0
        %4747 = vmatprep.subr.bf16.mxu0 0
        %4748 = vmatpush1.bf16.msra.mxu0 %v4742
        %4749 = vmatprep.subr.bf16.mxu0 0
        %4750 = vmatpush1.bf16.msra.mxu0 0
        %4751 = vmatprep.subr.bf16.mxu0 0
        %4752 = vmatpush1.bf16.msra.mxu0 0
        %4753 = vmatprep.subr.bf16.mxu0 0
        %4754 = vmatpush1.bf16.msra.mxu0 0
        %4755 = vmatprep.subr.bf16.mxu0 0
        %4756 = vmatpush1.bf16.msra.mxu0 0
        %4757 = vmatprep.subr.bf16.mxu0 0
        %4758 = vmatpush1.bf16.msra.mxu0 0
        %4759 = vmatprep.subr.bf16.mxu0 0
        %4760 = vmatpush1.bf16.msra.mxu0 0
        %4761 = vmatprep.subr.bf16.mxu0 0
        %4762 = vmatpush1.bf16.msra.mxu0 0
        %4763 = vmatprep.subr.bf16.mxu0 0
        %4764 = vmatpush1.bf16.msra.mxu0 0
        %4765 = vmatprep.subr.bf16.mxu0 0
        %4766 = vmatpush1.bf16.msra.mxu0 0
        %4767 = vmatprep.subr.bf16.mxu0 0
        %4768 = vmatpush1.bf16.msra.mxu0 0
        %4769 = vmatprep.subr.bf16.mxu0 0
        %4770 = vmatpush1.bf16.msra.mxu0 0
        %4771 = vmatprep.subr.bf16.mxu0 0
        %4772 = vmatpush1.bf16.msra.mxu0 0
        %4773 = vmatprep.subr.bf16.mxu0 0
        %4774 = vmatpush1.bf16.msra.mxu0 0
        %4775 = vmatprep.subr.bf16.mxu0 0
        %4776 = vmatpush1.bf16.msra.mxu0 0
        %4777 = vmatprep.subr.bf16.mxu0 0
        %4778 = vmatpush1.bf16.msra.mxu0 0
        %4779 = vmatprep.mubr.bf16.mxu0 0
        %4780 = vmatmul.mubr.bf16.gmra.mrb[0].mxu0 %v4745
        %v4781 = vpop.f32.mrb[0].mxu0
        %v4782 = vadd.f32 0.0, %v4781
        %v4783 = vpop.f32.mrb[0].mxu0
        %v4784 = vpop.f32.mrb[0].mxu0
        %v4785 = vpop.f32.mrb[0].mxu0
        %4786 = vdwg.mxu0
        %v4787 = vadd.f32 %v4732, %v4782
        %v4788 = vld [vmem:[%s4677 + $0x2] sm:$0x1]
        %v4789 = vpack.c.bf16 %v4788, %v4788
        %s4790 = scalar_lea.vmem %s5, 80
        %v4791 = vld [vmem:[%s4790] sm:$0xf]
        %v4792 = vld [vmem:[%s4790 + $0x4] sm:$0xf]
        %v4795 = vunpack.c.l.b16 %v4791
        %v4796 = vunpack.c.l.b16 %v4792
        %v4797 = vpack.c.b16 %v4796, %v4795
        %v4800 = vsel %vm4189, %v4789, 0
        %4802 = vmatprep.subr.bf16.mxu0 0
        %4803 = vmatpush1.bf16.msra.mxu0 %v4797
        %4804 = vmatprep.subr.bf16.mxu0 0
        %4805 = vmatpush1.bf16.msra.mxu0 0
        %4806 = vmatprep.subr.bf16.mxu0 0
        %4807 = vmatpush1.bf16.msra.mxu0 0
        %4808 = vmatprep.subr.bf16.mxu0 0
        %4809 = vmatpush1.bf16.msra.mxu0 0
        %4810 = vmatprep.subr.bf16.mxu0 0
        %4811 = vmatpush1.bf16.msra.mxu0 0
        %4812 = vmatprep.subr.bf16.mxu0 0
        %4813 = vmatpush1.bf16.msra.mxu0 0
        %4814 = vmatprep.subr.bf16.mxu0 0
        %4815 = vmatpush1.bf16.msra.mxu0 0
        %4816 = vmatprep.subr.bf16.mxu0 0
        %4817 = vmatpush1.bf16.msra.mxu0 0
        %4818 = vmatprep.subr.bf16.mxu0 0
        %4819 = vmatpush1.bf16.msra.mxu0 0
        %4820 = vmatprep.subr.bf16.mxu0 0
        %4821 = vmatpush1.bf16.msra.mxu0 0
        %4822 = vmatprep.subr.bf16.mxu0 0
        %4823 = vmatpush1.bf16.msra.mxu0 0
        %4824 = vmatprep.subr.bf16.mxu0 0
        %4825 = vmatpush1.bf16.msra.mxu0 0
        %4826 = vmatprep.subr.bf16.mxu0 0
        %4827 = vmatpush1.bf16.msra.mxu0 0
        %4828 = vmatprep.subr.bf16.mxu0 0
        %4829 = vmatpush1.bf16.msra.mxu0 0
        %4830 = vmatprep.subr.bf16.mxu0 0
        %4831 = vmatpush1.bf16.msra.mxu0 0
        %4832 = vmatprep.subr.bf16.mxu0 0
        %4833 = vmatpush1.bf16.msra.mxu0 0
        %4834 = vmatprep.mubr.bf16.mxu0 0
        %4835 = vmatmul.mubr.bf16.gmra.mrb[0].mxu0 %v4800
        %v4836 = vpop.f32.mrb[0].mxu0
        %v4837 = vadd.f32 0.0, %v4836
        %v4838 = vpop.f32.mrb[0].mxu0
        %v4839 = vpop.f32.mrb[0].mxu0
        %v4840 = vpop.f32.mrb[0].mxu0
        %4841 = vdwg.mxu0
        %v4842 = vadd.f32 %v4787, %v4837
        %v4843 = vld [vmem:[%s4677 + $0x3] sm:$0x1]
        %v4844 = vpack.c.bf16 %v4843, %v4843
        %s4845 = scalar_lea.vmem %s5, 88
        %v4846 = vld [vmem:[%s4845] sm:$0xf]
        %v4847 = vld [vmem:[%s4845 + $0x4] sm:$0xf]
        %v4850 = vunpack.c.l.b16 %v4846
        %v4851 = vunpack.c.l.b16 %v4847
        %v4852 = vpack.c.b16 %v4851, %v4850
        %v4855 = vsel %vm4189, %v4844, 0
        %4857 = vmatprep.subr.bf16.mxu0 0
        %4858 = vmatpush1.bf16.msra.mxu0 %v4852
        %4859 = vmatprep.subr.bf16.mxu0 0
        %4860 = vmatpush1.bf16.msra.mxu0 0
        %4861 = vmatprep.subr.bf16.mxu0 0
        %4862 = vmatpush1.bf16.msra.mxu0 0
        %4863 = vmatprep.subr.bf16.mxu0 0
        %4864 = vmatpush1.bf16.msra.mxu0 0
        %4865 = vmatprep.subr.bf16.mxu0 0
        %4866 = vmatpush1.bf16.msra.mxu0 0
        %4867 = vmatprep.subr.bf16.mxu0 0
        %4868 = vmatpush1.bf16.msra.mxu0 0
        %4869 = vmatprep.subr.bf16.mxu0 0
        %4870 = vmatpush1.bf16.msra.mxu0 0
        %4871 = vmatprep.subr.bf16.mxu0 0
        %4872 = vmatpush1.bf16.msra.mxu0 0
        %4873 = vmatprep.subr.bf16.mxu0 0
        %4874 = vmatpush1.bf16.msra.mxu0 0
        %4875 = vmatprep.subr.bf16.mxu0 0
        %4876 = vmatpush1.bf16.msra.mxu0 0
        %4877 = vmatprep.subr.bf16.mxu0 0
        %4878 = vmatpush1.bf16.msra.mxu0 0
        %4879 = vmatprep.subr.bf16.mxu0 0
        %4880 = vmatpush1.bf16.msra.mxu0 0
        %4881 = vmatprep.subr.bf16.mxu0 0
        %4882 = vmatpush1.bf16.msra.mxu0 0
        %4883 = vmatprep.subr.bf16.mxu0 0
        %4884 = vmatpush1.bf16.msra.mxu0 0
        %4885 = vmatprep.subr.bf16.mxu0 0
        %4886 = vmatpush1.bf16.msra.mxu0 0
        %4887 = vmatprep.subr.bf16.mxu0 0
        %4888 = vmatpush1.bf16.msra.mxu0 0
        %4889 = vmatprep.mubr.bf16.mxu0 0
        %4890 = vmatmul.mubr.bf16.gmra.mrb[0].mxu0 %v4855
        %v4891 = vpop.f32.mrb[0].mxu0
        %v4892 = vadd.f32 0.0, %v4891
        %v4893 = vpop.f32.mrb[0].mxu0
        %v4894 = vpop.f32.mrb[0].mxu0
        %v4895 = vpop.f32.mrb[0].mxu0
        %4896 = vdwg.mxu0
        %v4897 = vadd.f32 %v4842, %v4892
        %s4898 = scalar_lea.vmem [#allocation7], 12
        %v4899 = vld [vmem:[%s4898] sm:$0x1]
        %v4900 = vpack.c.bf16 %v4899, %v4899
        %s4901 = scalar_lea.vmem %s5, 96
        %v4902 = vld [vmem:[%s4901] sm:$0xf]
        %v4903 = vld [vmem:[%s4901 + $0x4] sm:$0xf]
        %v4906 = vunpack.c.l.b16 %v4902
        %v4907 = vunpack.c.l.b16 %v4903
        %v4908 = vpack.c.b16 %v4907, %v4906
        %v4911 = vsel %vm4189, %v4900, 0
        %4913 = vmatprep.subr.bf16.mxu0 0
        %4914 = vmatpush1.bf16.msra.mxu0 %v4908
        %4915 = vmatprep.subr.bf16.mxu0 0
        %4916 = vmatpush1.bf16.msra.mxu0 0
        %4917 = vmatprep.subr.bf16.mxu0 0
        %4918 = vmatpush1.bf16.msra.mxu0 0
        %4919 = vmatprep.subr.bf16.mxu0 0
        %4920 = vmatpush1.bf16.msra.mxu0 0
        %4921 = vmatprep.subr.bf16.mxu0 0
        %4922 = vmatpush1.bf16.msra.mxu0 0
        %4923 = vmatprep.subr.bf16.mxu0 0
        %4924 = vmatpush1.bf16.msra.mxu0 0
        %4925 = vmatprep.subr.bf16.mxu0 0
        %4926 = vmatpush1.bf16.msra.mxu0 0
        %4927 = vmatprep.subr.bf16.mxu0 0
        %4928 = vmatpush1.bf16.msra.mxu0 0
        %4929 = vmatprep.subr.bf16.mxu0 0
        %4930 = vmatpush1.bf16.msra.mxu0 0
        %4931 = vmatprep.subr.bf16.mxu0 0
        %4932 = vmatpush1.bf16.msra.mxu0 0
        %4933 = vmatprep.subr.bf16.mxu0 0
        %4934 = vmatpush1.bf16.msra.mxu0 0
        %4935 = vmatprep.subr.bf16.mxu0 0
        %4936 = vmatpush1.bf16.msra.mxu0 0
        %4937 = vmatprep.subr.bf16.mxu0 0
        %4938 = vmatpush1.bf16.msra.mxu0 0
        %4939 = vmatprep.subr.bf16.mxu0 0
        %4940 = vmatpush1.bf16.msra.mxu0 0
        %4941 = vmatprep.subr.bf16.mxu0 0
        %4942 = vmatpush1.bf16.msra.mxu0 0
        %4943 = vmatprep.subr.bf16.mxu0 0
        %4944 = vmatpush1.bf16.msra.mxu0 0
        %4945 = vmatprep.mubr.bf16.mxu0 0
        %4946 = vmatmul.mubr.bf16.gmra.mrb[0].mxu0 %v4911
        %v4947 = vpop.f32.mrb[0].mxu0
        %v4948 = vadd.f32 0.0, %v4947
        %v4949 = vpop.f32.mrb[0].mxu0
        %v4950 = vpop.f32.mrb[0].mxu0
        %v4951 = vpop.f32.mrb[0].mxu0
        %4952 = vdwg.mxu0
        %v4953 = vadd.f32 %v4897, %v4948
        %v4954 = vld [vmem:[%s4898 + $0x1] sm:$0x1]
        %v4955 = vpack.c.bf16 %v4954, %v4954
        %s4956 = scalar_lea.vmem %s5, 104
        %v4957 = vld [vmem:[%s4956] sm:$0xf]
        %v4958 = vld [vmem:[%s4956 + $0x4] sm:$0xf]
        %v4961 = vunpack.c.l.b16 %v4957
        %v4962 = vunpack.c.l.b16 %v4958
        %v4963 = vpack.c.b16 %v4962, %v4961
        %v4966 = vsel %vm4189, %v4955, 0
        %4968 = vmatprep.subr.bf16.mxu0 0
        %4969 = vmatpush1.bf16.msra.mxu0 %v4963
        %4970 = vmatprep.subr.bf16.mxu0 0
        %4971 = vmatpush1.bf16.msra.mxu0 0
        %4972 = vmatprep.subr.bf16.mxu0 0
        %4973 = vmatpush1.bf16.msra.mxu0 0
        %4974 = vmatprep.subr.bf16.mxu0 0
        %4975 = vmatpush1.bf16.msra.mxu0 0
        %4976 = vmatprep.subr.bf16.mxu0 0
        %4977 = vmatpush1.bf16.msra.mxu0 0
        %4978 = vmatprep.subr.bf16.mxu0 0
        %4979 = vmatpush1.bf16.msra.mxu0 0
        %4980 = vmatprep.subr.bf16.mxu0 0
        %4981 = vmatpush1.bf16.msra.mxu0 0
        %4982 = vmatprep.subr.bf16.mxu0 0
        %4983 = vmatpush1.bf16.msra.mxu0 0
        %4984 = vmatprep.subr.bf16.mxu0 0
        %4985 = vmatpush1.bf16.msra.mxu0 0
        %4986 = vmatprep.subr.bf16.mxu0 0
        %4987 = vmatpush1.bf16.msra.mxu0 0
        %4988 = vmatprep.subr.bf16.mxu0 0
        %4989 = vmatpush1.bf16.msra.mxu0 0
        %4990 = vmatprep.subr.bf16.mxu0 0
        %4991 = vmatpush1.bf16.msra.mxu0 0
        %4992 = vmatprep.subr.bf16.mxu0 0
        %4993 = vmatpush1.bf16.msra.mxu0 0
        %4994 = vmatprep.subr.bf16.mxu0 0
        %4995 = vmatpush1.bf16.msra.mxu0 0
        %4996 = vmatprep.subr.bf16.mxu0 0
        %4997 = vmatpush1.bf16.msra.mxu0 0
        %4998 = vmatprep.subr.bf16.mxu0 0
        %4999 = vmatpush1.bf16.msra.mxu0 0
        %5000 = vmatprep.mubr.bf16.mxu0 0
        %5001 = vmatmul.mubr.bf16.gmra.mrb[0].mxu0 %v4966
        %v5002 = vpop.f32.mrb[0].mxu0
        %v5003 = vadd.f32 0.0, %v5002
        %v5004 = vpop.f32.mrb[0].mxu0
        %v5005 = vpop.f32.mrb[0].mxu0
        %v5006 = vpop.f32.mrb[0].mxu0
        %5007 = vdwg.mxu0
        %v5008 = vadd.f32 %v4953, %v5003
        %v5009 = vld [vmem:[%s4898 + $0x2] sm:$0x1]
        %v5010 = vpack.c.bf16 %v5009, %v5009
        %s5011 = scalar_lea.vmem %s5, 112
        %v5012 = vld [vmem:[%s5011] sm:$0xf]
        %v5013 = vld [vmem:[%s5011 + $0x4] sm:$0xf]
        %v5016 = vunpack.c.l.b16 %v5012
        %v5017 = vunpack.c.l.b16 %v5013
        %v5018 = vpack.c.b16 %v5017, %v5016
        %v5021 = vsel %vm4189, %v5010, 0
        %5023 = vmatprep.subr.bf16.mxu0 0
        %5024 = vmatpush1.bf16.msra.mxu0 %v5018
        %5025 = vmatprep.subr.bf16.mxu0 0
        %5026 = vmatpush1.bf16.msra.mxu0 0
        %5027 = vmatprep.subr.bf16.mxu0 0
        %5028 = vmatpush1.bf16.msra.mxu0 0
        %5029 = vmatprep.subr.bf16.mxu0 0
        %5030 = vmatpush1.bf16.msra.mxu0 0
        %5031 = vmatprep.subr.bf16.mxu0 0
        %5032 = vmatpush1.bf16.msra.mxu0 0
        %5033 = vmatprep.subr.bf16.mxu0 0
        %5034 = vmatpush1.bf16.msra.mxu0 0
        %5035 = vmatprep.subr.bf16.mxu0 0
        %5036 = vmatpush1.bf16.msra.mxu0 0
        %5037 = vmatprep.subr.bf16.mxu0 0
        %5038 = vmatpush1.bf16.msra.mxu0 0
        %5039 = vmatprep.subr.bf16.mxu0 0
        %5040 = vmatpush1.bf16.msra.mxu0 0
        %5041 = vmatprep.subr.bf16.mxu0 0
        %5042 = vmatpush1.bf16.msra.mxu0 0
        %5043 = vmatprep.subr.bf16.mxu0 0
        %5044 = vmatpush1.bf16.msra.mxu0 0
        %5045 = vmatprep.subr.bf16.mxu0 0
        %5046 = vmatpush1.bf16.msra.mxu0 0
        %5047 = vmatprep.subr.bf16.mxu0 0
        %5048 = vmatpush1.bf16.msra.mxu0 0
        %5049 = vmatprep.subr.bf16.mxu0 0
        %5050 = vmatpush1.bf16.msra.mxu0 0
        %5051 = vmatprep.subr.bf16.mxu0 0
        %5052 = vmatpush1.bf16.msra.mxu0 0
        %5053 = vmatprep.subr.bf16.mxu0 0
        %5054 = vmatpush1.bf16.msra.mxu0 0
        %5055 = vmatprep.mubr.bf16.mxu0 0
        %5056 = vmatmul.mubr.bf16.gmra.mrb[0].mxu0 %v5021
        %v5057 = vpop.f32.mrb[0].mxu0
        %v5058 = vadd.f32 0.0, %v5057
        %v5059 = vpop.f32.mrb[0].mxu0
        %v5060 = vpop.f32.mrb[0].mxu0
        %v5061 = vpop.f32.mrb[0].mxu0
        %5062 = vdwg.mxu0
        %v5063 = vadd.f32 %v5008, %v5058
        %v5064 = vld [vmem:[%s4898 + $0x3] sm:$0x1]
        %v5065 = vpack.c.bf16 %v5064, %v5064
        %s5066 = scalar_lea.vmem %s5, 120
        %v5067 = vld [vmem:[%s5066] sm:$0xf]
        %v5068 = vld [vmem:[%s5066 + $0x4] sm:$0xf]
        %v5071 = vunpack.c.l.b16 %v5067
        %v5072 = vunpack.c.l.b16 %v5068
        %v5073 = vpack.c.b16 %v5072, %v5071
        %v5076 = vsel %vm4189, %v5065, 0
        %5078 = vmatprep.subr.bf16.mxu0 0
        %5079 = vmatpush1.bf16.msra.mxu0 %v5073
        %5080 = vmatprep.subr.bf16.mxu0 0
        %5081 = vmatpush1.bf16.msra.mxu0 0
        %5082 = vmatprep.subr.bf16.mxu0 0
        %5083 = vmatpush1.bf16.msra.mxu0 0
        %5084 = vmatprep.subr.bf16.mxu0 0
        %5085 = vmatpush1.bf16.msra.mxu0 0
        %5086 = vmatprep.subr.bf16.mxu0 0
        %5087 = vmatpush1.bf16.msra.mxu0 0
        %5088 = vmatprep.subr.bf16.mxu0 0
        %5089 = vmatpush1.bf16.msra.mxu0 0
        %5090 = vmatprep.subr.bf16.mxu0 0
        %5091 = vmatpush1.bf16.msra.mxu0 0
        %5092 = vmatprep.subr.bf16.mxu0 0
        %5093 = vmatpush1.bf16.msra.mxu0 0
        %5094 = vmatprep.subr.bf16.mxu0 0
        %5095 = vmatpush1.bf16.msra.mxu0 0
        %5096 = vmatprep.subr.bf16.mxu0 0
        %5097 = vmatpush1.bf16.msra.mxu0 0
        %5098 = vmatprep.subr.bf16.mxu0 0
        %5099 = vmatpush1.bf16.msra.mxu0 0
        %5100 = vmatprep.subr.bf16.mxu0 0
        %5101 = vmatpush1.bf16.msra.mxu0 0
        %5102 = vmatprep.subr.bf16.mxu0 0
        %5103 = vmatpush1.bf16.msra.mxu0 0
        %5104 = vmatprep.subr.bf16.mxu0 0
        %5105 = vmatpush1.bf16.msra.mxu0 0
        %5106 = vmatprep.subr.bf16.mxu0 0
        %5107 = vmatpush1.bf16.msra.mxu0 0
        %5108 = vmatprep.subr.bf16.mxu0 0
        %5109 = vmatpush1.bf16.msra.mxu0 0
        %5110 = vmatprep.mubr.bf16.mxu0 0
        %5111 = vmatmul.mubr.bf16.gmra.mrb[0].mxu0 %v5076
        %v5112 = vpop.f32.mrb[0].mxu0
        %v5113 = vadd.f32 0.0, %v5112
        %v5114 = vpop.f32.mrb[0].mxu0
        %v5115 = vpop.f32.mrb[0].mxu0
        %v5116 = vpop.f32.mrb[0].mxu0
        %5117 = vdwg.mxu0
        %v5118 = vadd.f32 %v5063, %v5113
        %v5119 = vld [vmem:[%s6] sm:$0x1]
        %v5120 = vadd.f32 %v5118, %v5119
        %v5121 = vmax.f32 %v5120, 0.0
        %v5122 = vpack.c.bf16 %v5121, %v5121
        %v5123 = vld [vmem:[%s7] sm:$0xf]
        %v5124 = vld [vmem:[%s7 + $0x4] sm:$0xf]
        %v5125 = vld [vmem:[%s7 + $0x8] sm:$0xf]
        %v5126 = vld [vmem:[%s7 + $0xc] sm:$0xf]
        %v5127 = vld [vmem:[%s7 + $0x10] sm:$0xf]
        %v5128 = vld [vmem:[%s7 + $0x14] sm:$0xf]
        %v5129 = vld [vmem:[%s7 + $0x18] sm:$0xf]
        %v5130 = vld [vmem:[%s7 + $0x1c] sm:$0xf]
        %v5131 = vld [vmem:[%s7 + $0x20] sm:$0xf]
        %v5132 = vld [vmem:[%s7 + $0x24] sm:$0xf]
        %v5133 = vld [vmem:[%s7 + $0x28] sm:$0xf]
        %v5134 = vld [vmem:[%s7 + $0x2c] sm:$0xf]
        %v5135 = vld [vmem:[%s7 + $0x30] sm:$0xf]
        %v5136 = vld [vmem:[%s7 + $0x34] sm:$0xf]
        %v5137 = vld [vmem:[%s7 + $0x38] sm:$0xf]
        %v5138 = vld [vmem:[%s7 + $0x3c] sm:$0xf]
        %v5139 = vld [vmem:[%s6 + $0x1] sm:$0x1]
        %v5156 = vunpack.c.l.b16 %v5123
        %v5157 = vunpack.c.l.b16 %v5124
        %v5158 = vunpack.c.l.b16 %v5125
        %v5159 = vunpack.c.l.b16 %v5126
        %v5160 = vunpack.c.l.b16 %v5127
        %v5161 = vunpack.c.l.b16 %v5128
        %v5162 = vunpack.c.l.b16 %v5129
        %v5163 = vunpack.c.l.b16 %v5130
        %v5164 = vunpack.c.l.b16 %v5131
        %v5165 = vunpack.c.l.b16 %v5132
        %v5166 = vunpack.c.l.b16 %v5133
        %v5167 = vunpack.c.l.b16 %v5134
        %v5168 = vunpack.c.l.b16 %v5135
        %v5169 = vunpack.c.l.b16 %v5136
        %v5170 = vunpack.c.l.b16 %v5137
        %v5171 = vunpack.c.l.b16 %v5138
        %v5172 = vpack.c.b16 %v5157, %v5156
        %v5173 = vpack.c.b16 %v5159, %v5158
        %v5174 = vpack.c.b16 %v5161, %v5160
        %v5175 = vpack.c.b16 %v5163, %v5162
        %v5176 = vpack.c.b16 %v5165, %v5164
        %v5177 = vpack.c.b16 %v5167, %v5166
        %v5178 = vpack.c.b16 %v5169, %v5168
        %v5179 = vpack.c.b16 %v5171, %v5170
        %5188 = vmatprep.subr.bf16.mxu0 0
        %5189 = vmatpush1.bf16.msra.mxu0 %v5172
        %5190 = vmatprep.subr.bf16.mxu0 0
        %5191 = vmatpush1.bf16.msra.mxu0 %v5173
        %5192 = vmatprep.subr.bf16.mxu0 0
        %5193 = vmatpush1.bf16.msra.mxu0 %v5174
        %5194 = vmatprep.subr.bf16.mxu0 0
        %5195 = vmatpush1.bf16.msra.mxu0 %v5175
        %5196 = vmatprep.subr.bf16.mxu0 0
        %5197 = vmatpush1.bf16.msra.mxu0 %v5176
        %5198 = vmatprep.subr.bf16.mxu0 0
        %5199 = vmatpush1.bf16.msra.mxu0 %v5177
        %5200 = vmatprep.subr.bf16.mxu0 0
        %5201 = vmatpush1.bf16.msra.mxu0 %v5178
        %5202 = vmatprep.subr.bf16.mxu0 0
        %5203 = vmatpush1.bf16.msra.mxu0 %v5179
        %5204 = vmatprep.subr.bf16.mxu0 0
        %5205 = vmatpush1.bf16.msra.mxu0 0
        %5206 = vmatprep.subr.bf16.mxu0 0
        %5207 = vmatpush1.bf16.msra.mxu0 0
        %5208 = vmatprep.subr.bf16.mxu0 0
        %5209 = vmatpush1.bf16.msra.mxu0 0
        %5210 = vmatprep.subr.bf16.mxu0 0
        %5211 = vmatpush1.bf16.msra.mxu0 0
        %5212 = vmatprep.subr.bf16.mxu0 0
        %5213 = vmatpush1.bf16.msra.mxu0 0
        %5214 = vmatprep.subr.bf16.mxu0 0
        %5215 = vmatpush1.bf16.msra.mxu0 0
        %5216 = vmatprep.subr.bf16.mxu0 0
        %5217 = vmatpush1.bf16.msra.mxu0 0
        %5218 = vmatprep.subr.bf16.mxu0 0
        %5219 = vmatpush1.bf16.msra.mxu0 0
        %5220 = vmatprep.mubr.bf16.mxu0 0
        %5221 = vmatmul.mubr.bf16.gmra.mrb[0].mxu0 %v5122
        %v5222 = vpop.f32.mrb[0].mxu0
        %v5223 = vadd.f32 %v5139, %v5222
        %v5224 = vpop.f32.mrb[0].mxu0
        %v5225 = vpop.f32.mrb[0].mxu0
        %v5226 = vpop.f32.mrb[0].mxu0
        %5227 = vdwg.mxu0
        %v5228 = vmax.f32 %v5223, 0.0
        %v5229 = vpack.c.bf16 %v5228, %v5228
        %v5230 = vld [vmem:[%s8] sm:$0xf]
        %v5231 = vld [vmem:[%s8 + $0x4] sm:$0xf]
        %v5232 = vld [vmem:[%s8 + $0x8] sm:$0xf]
        %v5233 = vld [vmem:[%s8 + $0xc] sm:$0xf]
        %v5234 = vld [vmem:[%s8 + $0x10] sm:$0xf]
        %v5235 = vld [vmem:[%s8 + $0x14] sm:$0xf]
        %v5236 = vld [vmem:[%s8 + $0x18] sm:$0xf]
        %v5237 = vld [vmem:[%s8 + $0x1c] sm:$0xf]
        %v5238 = vld [vmem:[%s8 + $0x20] sm:$0xf]
        %v5239 = vld [vmem:[%s8 + $0x24] sm:$0xf]
        %v5240 = vld [vmem:[%s8 + $0x28] sm:$0xf]
        %v5241 = vld [vmem:[%s8 + $0x2c] sm:$0xf]
        %v5242 = vld [vmem:[%s8 + $0x30] sm:$0xf]
        %v5243 = vld [vmem:[%s8 + $0x34] sm:$0xf]
        %v5244 = vld [vmem:[%s8 + $0x38] sm:$0xf]
        %v5245 = vld [vmem:[%s8 + $0x3c] sm:$0xf]
        %v5246 = vld [vmem:[%s6 + $0x2] sm:$0x1]
        %v5263 = vunpack.c.l.b16 %v5230
        %v5264 = vunpack.c.l.b16 %v5231
        %v5265 = vunpack.c.l.b16 %v5232
        %v5266 = vunpack.c.l.b16 %v5233
        %v5267 = vunpack.c.l.b16 %v5234
        %v5268 = vunpack.c.l.b16 %v5235
        %v5269 = vunpack.c.l.b16 %v5236
        %v5270 = vunpack.c.l.b16 %v5237
        %v5271 = vunpack.c.l.b16 %v5238
        %v5272 = vunpack.c.l.b16 %v5239
        %v5273 = vunpack.c.l.b16 %v5240
        %v5274 = vunpack.c.l.b16 %v5241
        %v5275 = vunpack.c.l.b16 %v5242
        %v5276 = vunpack.c.l.b16 %v5243
        %v5277 = vunpack.c.l.b16 %v5244
        %v5278 = vunpack.c.l.b16 %v5245
        %v5279 = vpack.c.b16 %v5264, %v5263
        %v5280 = vpack.c.b16 %v5266, %v5265
        %v5281 = vpack.c.b16 %v5268, %v5267
        %v5282 = vpack.c.b16 %v5270, %v5269
        %v5283 = vpack.c.b16 %v5272, %v5271
        %v5284 = vpack.c.b16 %v5274, %v5273
        %v5285 = vpack.c.b16 %v5276, %v5275
        %v5286 = vpack.c.b16 %v5278, %v5277
        %5295 = vmatprep.subr.bf16.mxu0 0
        %5296 = vmatpush1.bf16.msra.mxu0 %v5279
        %5297 = vmatprep.subr.bf16.mxu0 0
        %5298 = vmatpush1.bf16.msra.mxu0 %v5280
        %5299 = vmatprep.subr.bf16.mxu0 0
        %5300 = vmatpush1.bf16.msra.mxu0 %v5281
        %5301 = vmatprep.subr.bf16.mxu0 0
        %5302 = vmatpush1.bf16.msra.mxu0 %v5282
        %5303 = vmatprep.subr.bf16.mxu0 0
        %5304 = vmatpush1.bf16.msra.mxu0 %v5283
        %5305 = vmatprep.subr.bf16.mxu0 0
        %5306 = vmatpush1.bf16.msra.mxu0 %v5284
        %5307 = vmatprep.subr.bf16.mxu0 0
        %5308 = vmatpush1.bf16.msra.mxu0 %v5285
        %5309 = vmatprep.subr.bf16.mxu0 0
        %5310 = vmatpush1.bf16.msra.mxu0 %v5286
        %5311 = vmatprep.subr.bf16.mxu0 0
        %5312 = vmatpush1.bf16.msra.mxu0 0
        %5313 = vmatprep.subr.bf16.mxu0 0
        %5314 = vmatpush1.bf16.msra.mxu0 0
        %5315 = vmatprep.subr.bf16.mxu0 0
        %5316 = vmatpush1.bf16.msra.mxu0 0
        %5317 = vmatprep.subr.bf16.mxu0 0
        %5318 = vmatpush1.bf16.msra.mxu0 0
        %5319 = vmatprep.subr.bf16.mxu0 0
        %5320 = vmatpush1.bf16.msra.mxu0 0
        %5321 = vmatprep.subr.bf16.mxu0 0
        %5322 = vmatpush1.bf16.msra.mxu0 0
        %5323 = vmatprep.subr.bf16.mxu0 0
        %5324 = vmatpush1.bf16.msra.mxu0 0
        %5325 = vmatprep.subr.bf16.mxu0 0
        %5326 = vmatpush1.bf16.msra.mxu0 0
        %5327 = vmatprep.mubr.bf16.mxu0 0
        %5328 = vmatmul.mubr.bf16.gmra.mrb[0].mxu0 %v5229
        %v5329 = vpop.f32.mrb[0].mxu0
        %v5330 = vadd.f32 %v5246, %v5329
        %v5331 = vpop.f32.mrb[0].mxu0
        %v5332 = vpop.f32.mrb[0].mxu0
        %v5333 = vpop.f32.mrb[0].mxu0
        %5334 = vdwg.mxu0
        %v5335 = vlaneseq
        %v5336 = vand.u32 %v5335, 127
        %vm5337 = vcmp.lt.s32.totalorder %v5336, 47
        %v5338 = vsel %vm5337, %v5330, -1e+30
        %vm5339 = vcmask 1040384
        %v5340 = vsel %vm5339, %v5338, -inf
        %5341 = vmax.xlane.f32.xlu0 %v5340
        %v5342 = vpop.xlane.xlu0 %5341
        %v5343 = vsub.f32 %v5338, %v5342
        %v5344 = vmul.f32 %v5343, 1.442695
        %v5345 = vpow.pop %v5344
        %v5346 = vsel %vm5339, %v5345, 0.0
        %5347 = vadd.xlane.f32.xlu0 %v5346
        %v5348 = vpop.xlane.xlu0 %5347
        %v5349 = vrcp.pop %v5348
        %v5350 = vmul.f32 %v5348, %v5349
        %v5351 = vsub.f32 2.0, %v5350
        %v5352 = vmul.f32 %v5349, %v5351
        %v5353 = vmul.f32 %v5345, %v5352
        %5354 = vst [vmem:[%s324] sm:$0x1] %v5353
        %s5355 = sand.u32 %s225, 1
        %s5356 = scalar_lea.sflag [#allocation9], %s5355
        %s5357 = sand.u32 %s225, 1
        %s5358 = scalar_lea.vmem [#allocation8], %s5357
        // Predicated region
        $region57: #{lenet5_forward.1} parent=55 // pred_check
          %p5359 = pneg %p235
        $region58: #{lenet5_forward.1} parent=55 // pred_check_branch
          %5361 = sbr.rel (%p5359) target = $region60
        $region59: #{lenet5_forward.1} parent=55 // pred_region
          %s5363 = ssub.s32 16, 16
          %5364 = vsyncadd %s5356, %s5363
          %s5365 = smul.addr %s23, 16
          %s5366 = scalar_lea.hbm %s9, %s5365
          %s5368 = sshll.u32 %s5358, 4
          %s5369 = int_to_ptr.vmem [resolvable:$true] %s5368
          %5371 = dma.vmem_to_hbm [thread:$0]  %s5369, 16, %s5366, %s5356
        $region60: #{lenet5_forward.1} parent=55 // pred_fallthru
          _
      $region56: #{lenet5_forward.1} parent=5 // pred_fallthru
        _
      %p5372 = scmp.le.s32.totalorder 2, %s18
      // Predicated region
      $region61: #{lenet5_forward.1} parent=5 // pred_check
        %p5373 = pneg %p5372
      $region62: #{lenet5_forward.1} parent=5 // pred_check_branch
        %5375 = sbr.rel (%p5373) target = $region64
      $region63: #{lenet5_forward.1} parent=5 // pred_region
        %s5376 = ssub.s32 %s18, 2
        // Predicated region
        $region65: #{lenet5_forward.1} parent=63 // pred_check
          %p5377 = pneg %p241
        $region66: #{lenet5_forward.1} parent=63 // pred_check_branch
          %5379 = sbr.rel (%p5377) target = $region68
        $region67: #{lenet5_forward.1} parent=63 // pred_region
          %s5380 = sand.u32 %s226, 1
          %s5381 = scalar_lea.sflag [#allocation9], %s5380
          %s5382 = sand.u32 %s226, 1
          %s5383 = scalar_lea.vmem [#allocation8], %s5382
          %5384 = dma.done %s5381, 16
        $region68: #{lenet5_forward.1} parent=63 // pred_fallthru
          _
      $region64: #{lenet5_forward.1} parent=5 // pred_fallthru
        _
    $region6: #{lenet5_forward.1} parent=1 // loop_footer
      %s22 = sadd.s32 1, %s18
    $region7: #{lenet5_forward.1} parent=1 // loop_footer_branch
      %17 = sbr.rel target = $region3
    $region8: #{lenet5_forward.1} parent=1 // loop_exit
      _
    %5385 = vsyncpa [#allocation9], 1
    %s5386 = scalar_lea.sflag [#allocation9], 1
    %5387 = vsyncpa %s5386, 1

</llo_original>
